<compile_context>
chip_gen: v7x
topology: tpu7x:2x2x1
jax: 0.10.0
libtpu: 0.0.40
codegen_flags: <defaults>
</compile_context>

<pallas_src>
import functools

import jax
import jax.numpy as jnp
import numpy as np
from jax import lax
from jax.experimental import pallas as pl
from jax.experimental.pallas import tpu as pltpu


def _tpu_generation_hints():
    """Returns (vmem_limit_bytes, use_bf16_exp) tuned per TPU generation."""
    vmem_limit = 48 * 1024 * 1024      # safe everywhere (v7x has 64 MiB / TC)
    use_bf16_exp = False
    try:
        info = pltpu.get_tpu_info()
        name = (str(getattr(info, "chip_version", "")) + " " + repr(info)).lower()
        cap = getattr(info, "vmem_capacity_bytes", None)
        if any(t in name for t in ("v6", "trillium", "v7")):
            use_bf16_exp = True        # bf16 EUP path exists on v6e / v7x
        if "v7" in name:
            vmem_limit = 48 * 1024 * 1024
        elif cap is not None and int(cap) >= (100 << 20):
            # v5e / v6e report 128 MiB of VMEM: allow the big tiles.
            vmem_limit = 100 * 1024 * 1024
    except Exception:
        pass
    return vmem_limit, use_bf16_exp


# --------------------------------------------------------------------------
# Stage 1: qkv_proj (K-blocked) + per-head RMSNorm + neox RoPE (+ q scaling)
# --------------------------------------------------------------------------
def _qkv_norm_rope_kernel(x_ref, wqkv_ref, qnw_ref, knw_ref, cos_ref, sin_ref,
                          q_ref, k_ref, v_ref, acc_ref, *,
                          num_heads, num_kv_heads, head_dim, eps, scale):
    kk = pl.program_id(1)
    q_size = num_heads * head_dim
    kv_size = num_kv_heads * head_dim
    half = head_dim // 2

    @pl.when(kk == 0)
    def _():
        acc_ref[...] = jnp.zeros_like(acc_ref)

    # bf16 MXU matmul, f32 accumulation.
    acc_ref[...] += jnp.dot(x_ref[...], wqkv_ref[...],
                            preferred_element_type=jnp.float32)

    @pl.when(kk == pl.num_programs(1) - 1)
    def _():
        cosf = cos_ref[...]                     # [tm, head_dim] (halves dup'd)
        sinf = sin_ref[...]
        lane = lax.broadcasted_iota(jnp.int32, (1, head_dim), 1)
        sign = jnp.where(lane < half, -1.0, 1.0).astype(jnp.float32)
        qw = qnw_ref[...]                       # [1, head_dim]
        kw = knw_ref[...]

        def norm_rope(t, w):
            var = jnp.mean(t * t, axis=-1, keepdims=True)
            t = t * lax.rsqrt(var + eps) * w
            # neox rotate-half via XLU roll (shift of head_dim//2 is symmetric)
            return t * cosf + pltpu.roll(t, shift=half, axis=1) * sinf * sign

        # Read per-head 128-lane slices directly from the scratch ref so only
        # one head's worth of f32 vregs is live at a time (no spill storm).
        for h in range(num_heads):
            sl = slice(h * head_dim, (h + 1) * head_dim)
            q_h = norm_rope(acc_ref[:, sl], qw) * scale   # fold attn scale in
            q_ref[:, sl] = q_h.astype(q_ref.dtype)
        for h in range(num_kv_heads):
            src = slice(q_size + h * head_dim, q_size + (h + 1) * head_dim)
            dst = slice(h * head_dim, (h + 1) * head_dim)
            k_ref[:, dst] = norm_rope(acc_ref[:, src], kw).astype(k_ref.dtype)
        for h in range(num_kv_heads):
            src = slice(q_size + kv_size + h * head_dim,
                        q_size + kv_size + (h + 1) * head_dim)
            dst = slice(h * head_dim, (h + 1) * head_dim)
            v_ref[:, dst] = acc_ref[:, src].astype(v_ref.dtype)


# --------------------------------------------------------------------------
# Stage 2: flash-style causal GQA attention
# --------------------------------------------------------------------------
def _flash_gqa_kernel(q_ref, k_ref, v_ref, o_ref, m_sc, l_sc, acc_sc, *,
                      tile_q, tile_kv, head_dim, group, exp_dtype):
    i = pl.program_id(1)      # q-tile index
    j = pl.program_id(2)      # kv-tile index (reduction axis)
    q_start = i * tile_q
    kv_start = j * tile_kv

    @pl.when(j == 0)
    def _():
        m_sc[...] = jnp.full_like(m_sc, -jnp.inf)
        l_sc[...] = jnp.zeros_like(l_sc)
        acc_sc[...] = jnp.zeros_like(acc_sc)

    def process(apply_mask):
        k = k_ref[...]                          # [tile_kv, head_dim] bf16
        v = v_ref[...]
        if apply_mask:
            # TODO(synk): mask assumes contiguous prefill positions
            # (positions == arange(S)); RoPE uses the real positions.  A radix
            # KV cache / arbitrary positions needs an SMEM position table.
            row = lax.broadcasted_iota(jnp.int32, (tile_q, tile_kv), 0) + q_start
            col = lax.broadcasted_iota(jnp.int32, (tile_q, tile_kv), 1) + kv_start
            mask = row >= col
        for g in range(group):                  # GQA: reuse k/v across group
            sl = slice(g * head_dim, (g + 1) * head_dim)
            q_g = q_ref[:, sl]                  # [tile_q, head_dim] bf16
            # TODO(synk): emitting K pre-transposed from Stage 1 could avoid a
            # possible XLU relayout here; verify in the bundle dump first.
            s = lax.dot_general(q_g, k, (((1,), (1,)), ((), ())),
                                preferred_element_type=jnp.float32)
            if apply_mask:
                s = jnp.where(mask, s, -1e30)   # scale already folded into q
            m_prev = m_sc[g]
            m_new = jnp.maximum(m_prev, jnp.max(s, axis=-1, keepdims=True))
            alpha = jnp.exp(m_prev - m_new)
            # exp in bf16 on chips with a bf16 EUP; stats stay f32.
            p = jnp.exp((s - m_new).astype(exp_dtype))
            l_sc[g] = alpha * l_sc[g] + jnp.sum(
                p.astype(jnp.float32), axis=-1, keepdims=True)
            acc_sc[g] = alpha * acc_sc[g] + jnp.dot(
                p.astype(v.dtype), v, preferred_element_type=jnp.float32)
            m_sc[g] = m_new

    needs_compute = kv_start <= q_start + (tile_q - 1)
    fully_unmasked = kv_start + (tile_kv - 1) <= q_start

    # Diagonal / partially masked tiles: build the mask.
    @pl.when(jnp.logical_and(needs_compute, jnp.logical_not(fully_unmasked)))
    def _():
        process(apply_mask=True)

    # Strictly interior tiles: no iota / compare / select at all.
    @pl.when(fully_unmasked)
    def _():
        process(apply_mask=False)

    @pl.when(j == pl.num_programs(2) - 1)
    def _():
        for g in range(group):
            sl = slice(g * head_dim, (g + 1) * head_dim)
            inv_l = pl.reciprocal(l_sc[g], approx=True)   # EUP slot
            o_ref[:, sl] = (acc_sc[g] * inv_l).astype(o_ref.dtype)


# --------------------------------------------------------------------------
# Stage 3: o_proj (K-blocked matmul)
# --------------------------------------------------------------------------
def _matmul_kernel(a_ref, b_ref, o_ref, acc_ref):
    @pl.when(pl.program_id(2) == 0)
    def _():
        acc_ref[...] = jnp.zeros_like(acc_ref)

    acc_ref[...] += jnp.dot(a_ref[...], b_ref[...],
                            preferred_element_type=jnp.float32)

    @pl.when(pl.program_id(2) == pl.num_programs(2) - 1)
    def _():
        o_ref[...] = acc_ref[...].astype(o_ref.dtype)


# --------------------------------------------------------------------------
# Wrapper
# --------------------------------------------------------------------------
def qwen3_attention_forward(positions, hidden_states, params, *,
                            num_heads, num_kv_heads, head_dim,
                            rope_theta=1e6, rms_norm_eps=1e-6,
                            tile_m=256, tile_k_in=512,
                            tile_q=256, tile_kv=256,
                            tile_n=512, tile_k_out=256):
    S, H = hidden_states.shape
    q_size = num_heads * head_dim
    kv_size = num_kv_heads * head_dim
    group = num_heads // num_kv_heads
    scale = head_dim ** -0.5
    qkv_out = q_size + 2 * kv_size

    # Clamp tile requests to the problem size (keeps small test shapes legal).
    tile_m = min(tile_m, S)
    tile_k_in = min(tile_k_in, H)
    tile_q = min(tile_q, S)
    tile_kv = min(tile_kv, S)
    tile_n = min(tile_n, H)
    tile_k_out = min(tile_k_out, q_size)

    assert S % tile_m == 0 and H % tile_k_in == 0
    assert S % tile_q == 0 and S % tile_kv == 0 and tile_q == tile_kv
    assert H % tile_n == 0 and q_size % tile_k_out == 0
    assert head_dim % 128 == 0        # lane-dense per-head layout

    vmem_limit, use_bf16_exp = _tpu_generation_hints()
    exp_dtype = jnp.bfloat16 if use_bf16_exp else jnp.float32

    # Rotary tables from the real positions; halves duplicated to head_dim so
    # the kernel's roll-based rotate-half is a pure FMA.
    inv_freq = 1.0 / (rope_theta ** (
        jnp.arange(0, head_dim, 2, dtype=jnp.float32) / head_dim))
    freqs = positions.astype(jnp.float32)[:, None] * inv_freq[None, :]
    cos_full = jnp.concatenate([jnp.cos(freqs)] * 2, axis=-1)   # [S, head_dim]
    sin_full = jnp.concatenate([jnp.sin(freqs)] * 2, axis=-1)

    x_bf = hidden_states.astype(jnp.bfloat16)
    wqkv_bf = params["wqkv"].astype(jnp.bfloat16)
    wo_bf = params["wo"].astype(jnp.bfloat16)
    qnw = params["q_norm_w"].reshape(1, head_dim).astype(jnp.float32)
    knw = params["k_norm_w"].reshape(1, head_dim).astype(jnp.float32)

    # ---- Stage 1 ----
    # TODO(synk): for very large H / qkv_out on v7x (64 MiB VMEM), add an N
    # grid axis over head groups here instead of shrinking tile_m.
    q, k, v = pl.pallas_call(
        functools.partial(
            _qkv_norm_rope_kernel,
            num_heads=num_heads, num_kv_heads=num_kv_heads,
            head_dim=head_dim, eps=rms_norm_eps, scale=scale),
        grid=(S // tile_m, H // tile_k_in),
        in_specs=[
            pl.BlockSpec((tile_m, tile_k_in), lambda i, kk: (i, kk)),
            pl.BlockSpec((tile_k_in, qkv_out), lambda i, kk: (kk, 0)),
            pl.BlockSpec((1, head_dim), lambda i, kk: (0, 0)),
            pl.BlockSpec((1, head_dim), lambda i, kk: (0, 0)),
            pl.BlockSpec((tile_m, head_dim), lambda i, kk: (i, 0)),
            pl.BlockSpec((tile_m, head_dim), lambda i, kk: (i, 0)),
        ],
        out_specs=[
            pl.BlockSpec((tile_m, q_size), lambda i, kk: (i, 0)),
            pl.BlockSpec((tile_m, kv_size), lambda i, kk: (i, 0)),
            pl.BlockSpec((tile_m, kv_size), lambda i, kk: (i, 0)),
        ],
        out_shape=[
            jax.ShapeDtypeStruct((S, q_size), jnp.bfloat16),
            jax.ShapeDtypeStruct((S, kv_size), jnp.bfloat16),
            jax.ShapeDtypeStruct((S, kv_size), jnp.bfloat16),
        ],
        scratch_shapes=[pltpu.VMEM((tile_m, qkv_out), jnp.float32)],
        compiler_params=pltpu.CompilerParams(
            dimension_semantics=("parallel", "arbitrary"),
            vmem_limit_bytes=vmem_limit),
    )(x_bf, wqkv_bf, qnw, knw, cos_full, sin_full)

    # ---- Stage 2 ----
    # K/V index maps are clamped to the causal diagonal so fully-masked kv
    # tiles re-use the already resident block and are never DMA'd.
    attn_out = pl.pallas_call(
        functools.partial(
            _flash_gqa_kernel,
            tile_q=tile_q, tile_kv=tile_kv, head_dim=head_dim, group=group,
            exp_dtype=exp_dtype),
        grid=(num_kv_heads, S // tile_q, S // tile_kv),
        in_specs=[
            pl.BlockSpec((tile_q, group * head_dim), lambda h, i, j: (i, h)),
            pl.BlockSpec((tile_kv, head_dim),
                         lambda h, i, j: (jnp.minimum(i, j), h)),
            pl.BlockSpec((tile_kv, head_dim),
                         lambda h, i, j: (jnp.minimum(i, j), h)),
        ],
        out_specs=pl.BlockSpec((tile_q, group * head_dim),
                               lambda h, i, j: (i, h)),
        out_shape=jax.ShapeDtypeStruct((S, q_size), jnp.bfloat16),
        scratch_shapes=[
            pltpu.VMEM((group, tile_q, 1), jnp.float32),        # m
            pltpu.VMEM((group, tile_q, 1), jnp.float32),        # l
            pltpu.VMEM((group, tile_q, head_dim), jnp.float32), # acc
        ],
        compiler_params=pltpu.CompilerParams(
            dimension_semantics=("parallel", "parallel", "arbitrary"),
            vmem_limit_bytes=vmem_limit),
    )(q, k, v)

    # ---- Stage 3 ----
    out = pl.pallas_call(
        _matmul_kernel,
        grid=(S // tile_m, H // tile_n, q_size // tile_k_out),
        in_specs=[
            pl.BlockSpec((tile_m, tile_k_out), lambda i, n, kk: (i, kk)),
            pl.BlockSpec((tile_k_out, tile_n), lambda i, n, kk: (kk, n)),
        ],
        out_specs=pl.BlockSpec((tile_m, tile_n), lambda i, n, kk: (i, n)),
        out_shape=jax.ShapeDtypeStruct((S, H), jnp.float32),
        scratch_shapes=[pltpu.VMEM((tile_m, tile_n), jnp.float32)],
        compiler_params=pltpu.CompilerParams(
            dimension_semantics=("parallel", "parallel", "arbitrary"),
            vmem_limit_bytes=vmem_limit),
    )(attn_out, wo_bf)
    return out


# --------------------------------------------------------------------------
# Pure-JAX reference mirroring the PyTorch module semantics (f32 throughout)
# --------------------------------------------------------------------------
def qwen3_attention_reference(positions, hidden_states, params, *,
                              num_heads, num_kv_heads, head_dim,
                              rope_theta=1e6, rms_norm_eps=1e-6):
    S, H = hidden_states.shape
    q_size = num_heads * head_dim
    kv_size = num_kv_heads * head_dim
    group = num_heads // num_kv_heads
    half = head_dim // 2
    scale = head_dim ** -0.5

    qkv = hidden_states @ params["wqkv"]
    q = qkv[:, :q_size].reshape(S, num_heads, head_dim)
    k = qkv[:, q_size:q_size + kv_size].reshape(S, num_kv_heads, head_dim)
    v = qkv[:, q_size + kv_size:].reshape(S, num_kv_heads, head_dim)

    def rms(t, w):
        var = jnp.mean(t * t, axis=-1, keepdims=True)
        return t * jax.lax.rsqrt(var + rms_norm_eps) * w.reshape(1, 1, head_dim)

    q = rms(q, params["q_norm_w"])
    k = rms(k, params["k_norm_w"])

    inv_freq = 1.0 / (rope_theta ** (
        jnp.arange(0, head_dim, 2, dtype=jnp.float32) / head_dim))
    freqs = positions.astype(jnp.float32)[:, None] * inv_freq[None, :]
    cos = jnp.cos(freqs)[:, None, :]
    sin = jnp.sin(freqs)[:, None, :]

    def rope(t):
        t1, t2 = t[..., :half], t[..., half:]
        return jnp.concatenate([t1 * cos - t2 * sin, t2 * cos + t1 * sin], axis=-1)

    q, k = rope(q), rope(k)

    k_exp = jnp.repeat(k, group, axis=1)
    v_exp = jnp.repeat(v, group, axis=1)
    scores = jnp.einsum("snd,tnd->nst", q, k_exp) * scale
    causal = positions[:, None] >= positions[None, :]
    scores = jnp.where(causal[None, :, :], scores, -1e30)
    p = jax.nn.softmax(scores, axis=-1)
    o = jnp.einsum("nst,tnd->snd", p, v_exp).reshape(S, q_size)
    return o @ params["wo"]


if __name__ == "__main__":
    hidden_size = 512
    num_heads = 4
    num_kv_heads = 2
    head_dim = 128
    seq = 256
    q_size = num_heads * head_dim
    kv_size = num_kv_heads * head_dim

    key = jax.random.PRNGKey(0)
    k_x, k_wqkv, k_wo, k_qn, k_kn = jax.random.split(key, 5)

    hidden_states = jax.random.normal(k_x, (seq, hidden_size), dtype=jnp.float32)
    positions = jnp.arange(seq, dtype=jnp.int32)

    params = {
        "wqkv": 0.03 * jax.random.normal(
            k_wqkv, (hidden_size, q_size + 2 * kv_size), dtype=jnp.float32),
        "wo": 0.03 * jax.random.normal(
            k_wo, (q_size, hidden_size), dtype=jnp.float32),
        "q_norm_w": 1.0 + 0.1 * jax.random.normal(k_qn, (head_dim,), dtype=jnp.float32),
        "k_norm_w": 1.0 + 0.1 * jax.random.normal(k_kn, (head_dim,), dtype=jnp.float32),
    }

    cfg = dict(num_heads=num_heads, num_kv_heads=num_kv_heads, head_dim=head_dim,
               rope_theta=1e6, rms_norm_eps=1e-6)

    out = qwen3_attention_forward(positions, hidden_states, params, **cfg)
    out = jax.block_until_ready(out)

    ref = qwen3_attention_reference(positions, hidden_states, params, **cfg)
    np.testing.assert_allclose(np.asarray(out), np.asarray(ref),
                               rtol=5e-2, atol=5e-2)

    print("KERNEL_OK")
</pallas_src>

<mosaic_0001>
module attributes {stable_mosaic.version = 11 : i64} {
  func.func @_qkv_norm_rope_kernel(%arg0: i32, %arg1: i32, %arg2: memref<256x512xbf16, #tpu.memory_space<vmem>>, %arg3: memref<512x1024xbf16, #tpu.memory_space<vmem>>, %arg4: memref<1x128xf32, #tpu.memory_space<vmem>>, %arg5: memref<1x128xf32, #tpu.memory_space<vmem>>, %arg6: memref<256x128xf32, #tpu.memory_space<vmem>>, %arg7: memref<256x128xf32, #tpu.memory_space<vmem>>, %arg8: memref<256x512xbf16, #tpu.memory_space<vmem>>, %arg9: memref<256x256xbf16, #tpu.memory_space<vmem>>, %arg10: memref<256x256xbf16, #tpu.memory_space<vmem>>, %arg11: memref<256x1024xf32, #tpu.memory_space<vmem>>) attributes {dimension_semantics = [#tpu.dimension_semantics<parallel>, #tpu.dimension_semantics<arbitrary>], iteration_bounds = array<i64: 1, 1>, scalar_prefetch = 0 : i64, scratch_operands = 1 : i64, tpu.core_type = #tpu.core_type<tc>, window_params = [{transform_indices = @transform_0, window_bounds = array<i64: 256, 512>}, {transform_indices = @transform_1, window_bounds = array<i64: 512, 1024>}, {pipeline_mode = #tpu.pipeline_mode<synchronous>, transform_indices = @transform_2, window_bounds = array<i64: 1, 128>}, {pipeline_mode = #tpu.pipeline_mode<synchronous>, transform_indices = @transform_3, window_bounds = array<i64: 1, 128>}, {transform_indices = @transform_4, window_bounds = array<i64: 256, 128>}, {transform_indices = @transform_5, window_bounds = array<i64: 256, 128>}, {transform_indices = @transform_6, window_bounds = array<i64: 256, 512>}, {transform_indices = @transform_7, window_bounds = array<i64: 256, 256>}, {transform_indices = @transform_8, window_bounds = array<i64: 256, 256>}]} {
    %c0_i32 = arith.constant 0 : i32
    %0 = arith.cmpi eq, %arg1, %c0_i32 : i32
    %1 = arith.extui %0 : i1 to i32
    %c0_i32_0 = arith.constant 0 : i32
    %2 = arith.cmpi ne, %1, %c0_i32_0 : i32
    scf.if %2 {
      %cst_10 = arith.constant 0.000000e+00 : f32
      %12 = vector.broadcast %cst_10 : f32 to vector<256x1024xf32>
      %c0_11 = arith.constant 0 : index
      %c0_12 = arith.constant 0 : index
      %13 = vector.load %arg11[%c0_11, %c0_12] : memref<256x1024xf32, #tpu.memory_space<vmem>>, vector<256x1024xf32>
      tpu.vector_store %arg11[%c0_11, %c0_12], %12 {strides = array<i32>} : memref<256x1024xf32, #tpu.memory_space<vmem>>, vector<256x1024xf32>,
    } else {
    }
    %c0 = arith.constant 0 : index
    %c0_1 = arith.constant 0 : index
    %3 = vector.load %arg11[%c0, %c0_1] : memref<256x1024xf32, #tpu.memory_space<vmem>>, vector<256x1024xf32>
    %c0_2 = arith.constant 0 : index
    %c0_3 = arith.constant 0 : index
    %4 = vector.load %arg2[%c0_2, %c0_3] : memref<256x512xbf16, #tpu.memory_space<vmem>>, vector<256x512xbf16>
    %c0_4 = arith.constant 0 : index
    %c0_5 = arith.constant 0 : index
    %5 = vector.load %arg3[%c0_4, %c0_5] : memref<512x1024xbf16, #tpu.memory_space<vmem>>, vector<512x1024xbf16>
    %cst = arith.constant dense<0.000000e+00> : vector<256x1024xf32>
    %6 = tpu.matmul %4, %5, %cst {dimension_numbers = #tpu.dot_dimension_numbers<[1], [0], [0], [1], [0, 0, 1, 1], [], []>} : vector<256x512xbf16>, vector<512x1024xbf16>, vector<256x1024xf32> -> vector<256x1024xf32>
    %7 = arith.addf %3, %6 : vector<256x1024xf32>
    %c0_6 = arith.constant 0 : index
    %c0_7 = arith.constant 0 : index
    %8 = vector.load %arg11[%c0_6, %c0_7] : memref<256x1024xf32, #tpu.memory_space<vmem>>, vector<256x1024xf32>
    tpu.vector_store %arg11[%c0_6, %c0_7], %7 {strides = array<i32>} : memref<256x1024xf32, #tpu.memory_space<vmem>>, vector<256x1024xf32>,
    %c0_i32_8 = arith.constant 0 : i32
    %9 = arith.cmpi eq, %arg1, %c0_i32_8 : i32
    %10 = arith.extui %9 : i1 to i32
    %c0_i32_9 = arith.constant 0 : i32
    %11 = arith.cmpi ne, %10, %c0_i32_9 : i32
    scf.if %11 {
      %c0_10 = arith.constant 0 : index
      %c0_11 = arith.constant 0 : index
      %12 = vector.load %arg6[%c0_10, %c0_11] : memref<256x128xf32, #tpu.memory_space<vmem>>, vector<256x128xf32>
      %c0_12 = arith.constant 0 : index
      %c0_13 = arith.constant 0 : index
      %13 = vector.load %arg7[%c0_12, %c0_13] : memref<256x128xf32, #tpu.memory_space<vmem>>, vector<256x128xf32>
      %14 = tpu.iota {dimensions = array<i32: 1>} : vector<1x128xi32>
      %c64_i32 = arith.constant 64 : i32
      %15 = vector.broadcast %c64_i32 : i32 to vector<1x128xi32>
      %16 = arith.cmpi slt, %14, %15 : vector<1x128xi32>
      %cst_14 = arith.constant -1.000000e+00 : f32
      %cst_15 = arith.constant 1.000000e+00 : f32
      %17 = vector.broadcast %cst_14 : f32 to vector<1x128xf32>
      %18 = vector.broadcast %cst_15 : f32 to vector<1x128xf32>
      %19 = arith.select %16, %17, %18 : vector<1x128xi1>, vector<1x128xf32>
      %c0_16 = arith.constant 0 : index
      %c0_17 = arith.constant 0 : index
      %20 = vector.load %arg4[%c0_16, %c0_17] : memref<1x128xf32, #tpu.memory_space<vmem>>, vector<1x128xf32>
      %c0_18 = arith.constant 0 : index
      %c0_19 = arith.constant 0 : index
      %21 = vector.load %arg5[%c0_18, %c0_19] : memref<1x128xf32, #tpu.memory_space<vmem>>, vector<1x128xf32>
      %c0_20 = arith.constant 0 : index
      %c0_21 = arith.constant 0 : index
      %22 = vector.load %arg11[%c0_20, %c0_21] : memref<256x1024xf32, #tpu.memory_space<vmem>>, vector<256x128xf32>
      %23 = arith.mulf %22, %22 : vector<256x128xf32>
      %cst_22 = arith.constant dense<0.000000e+00> : vector<256xf32>
      %24 = vector.multi_reduction <add>, %23, %cst_22 [1] : vector<256x128xf32> to vector<256xf32>
      %25 = vector.shape_cast %24 : vector<256xf32> to vector<256x1xf32>
      %cst_23 = arith.constant 1.280000e+02 : f32
      %26 = vector.broadcast %cst_23 : f32 to vector<256x1xf32>
      %27 = arith.divf %25, %26 : vector<256x1xf32>
      %cst_24 = arith.constant 9.99999997E-7 : f32
      %28 = vector.broadcast %cst_24 : f32 to vector<256x1xf32>
      %29 = arith.addf %27, %28 : vector<256x1xf32>
      %30 = math.rsqrt %29 : vector<256x1xf32>
      %31 = vector.broadcast %30 : vector<256x1xf32> to vector<256x128xf32>
      %32 = arith.mulf %22, %31 : vector<256x128xf32>
      %33 = vector.broadcast %20 : vector<1x128xf32> to vector<256x128xf32>
      %34 = arith.mulf %32, %33 : vector<256x128xf32>
      %35 = arith.mulf %34, %12 : vector<256x128xf32>
      %c64_i32_25 = arith.constant 64 : i32
      %36 = tpu.dynamic_rotate %34 by %c64_i32_25 dim 1 : vector<256x128xf32>, i32 -> vector<256x128xf32>
      %37 = arith.mulf %36, %13 : vector<256x128xf32>
      %38 = vector.broadcast %19 : vector<1x128xf32> to vector<256x128xf32>
      %39 = arith.mulf %37, %38 : vector<256x128xf32>
      %40 = arith.addf %35, %39 : vector<256x128xf32>
      %cst_26 = arith.constant 0.0883883461 : f32
      %41 = vector.broadcast %cst_26 : f32 to vector<256x128xf32>
      %42 = arith.mulf %40, %41 : vector<256x128xf32>
      %43 = arith.truncf %42 : vector<256x128xf32> to vector<256x128xbf16>
      %c0_27 = arith.constant 0 : index
      %c0_28 = arith.constant 0 : index
      %44 = vector.load %arg8[%c0_27, %c0_28] : memref<256x512xbf16, #tpu.memory_space<vmem>>, vector<256x128xbf16>
      tpu.vector_store %arg8[%c0_27, %c0_28], %43 {strides = array<i32>} : memref<256x512xbf16, #tpu.memory_space<vmem>>, vector<256x128xbf16>,
      %c0_29 = arith.constant 0 : index
      %c128 = arith.constant 128 : index
      %45 = vector.load %arg11[%c0_29, %c128] : memref<256x1024xf32, #tpu.memory_space<vmem>>, vector<256x128xf32>
      %46 = arith.mulf %45, %45 : vector<256x128xf32>
      %cst_30 = arith.constant dense<0.000000e+00> : vector<256xf32>
      %47 = vector.multi_reduction <add>, %46, %cst_30 [1] : vector<256x128xf32> to vector<256xf32>
      %48 = vector.shape_cast %47 : vector<256xf32> to vector<256x1xf32>
      %cst_31 = arith.constant 1.280000e+02 : f32
      %49 = vector.broadcast %cst_31 : f32 to vector<256x1xf32>
      %50 = arith.divf %48, %49 : vector<256x1xf32>
      %cst_32 = arith.constant 9.99999997E-7 : f32
      %51 = vector.broadcast %cst_32 : f32 to vector<256x1xf32>
      %52 = arith.addf %50, %51 : vector<256x1xf32>
      %53 = math.rsqrt %52 : vector<256x1xf32>
      %54 = vector.broadcast %53 : vector<256x1xf32> to vector<256x128xf32>
      %55 = arith.mulf %45, %54 : vector<256x128xf32>
      %56 = vector.broadcast %20 : vector<1x128xf32> to vector<256x128xf32>
      %57 = arith.mulf %55, %56 : vector<256x128xf32>
      %58 = arith.mulf %57, %12 : vector<256x128xf32>
      %c64_i32_33 = arith.constant 64 : i32
      %59 = tpu.dynamic_rotate %57 by %c64_i32_33 dim 1 : vector<256x128xf32>, i32 -> vector<256x128xf32>
      %60 = arith.mulf %59, %13 : vector<256x128xf32>
      %61 = vector.broadcast %19 : vector<1x128xf32> to vector<256x128xf32>
      %62 = arith.mulf %60, %61 : vector<256x128xf32>
      %63 = arith.addf %58, %62 : vector<256x128xf32>
      %cst_34 = arith.constant 0.0883883461 : f32
      %64 = vector.broadcast %cst_34 : f32 to vector<256x128xf32>
      %65 = arith.mulf %63, %64 : vector<256x128xf32>
      %66 = arith.truncf %65 : vector<256x128xf32> to vector<256x128xbf16>
      %c0_35 = arith.constant 0 : index
      %c128_36 = arith.constant 128 : index
      %67 = vector.load %arg8[%c0_35, %c128_36] : memref<256x512xbf16, #tpu.memory_space<vmem>>, vector<256x128xbf16>
      tpu.vector_store %arg8[%c0_35, %c128_36], %66 {strides = array<i32>} : memref<256x512xbf16, #tpu.memory_space<vmem>>, vector<256x128xbf16>,
      %c0_37 = arith.constant 0 : index
      %c256 = arith.constant 256 : index
      %68 = vector.load %arg11[%c0_37, %c256] : memref<256x1024xf32, #tpu.memory_space<vmem>>, vector<256x128xf32>
      %69 = arith.mulf %68, %68 : vector<256x128xf32>
      %cst_38 = arith.constant dense<0.000000e+00> : vector<256xf32>
      %70 = vector.multi_reduction <add>, %69, %cst_38 [1] : vector<256x128xf32> to vector<256xf32>
      %71 = vector.shape_cast %70 : vector<256xf32> to vector<256x1xf32>
      %cst_39 = arith.constant 1.280000e+02 : f32
      %72 = vector.broadcast %cst_39 : f32 to vector<256x1xf32>
      %73 = arith.divf %71, %72 : vector<256x1xf32>
      %cst_40 = arith.constant 9.99999997E-7 : f32
      %74 = vector.broadcast %cst_40 : f32 to vector<256x1xf32>
      %75 = arith.addf %73, %74 : vector<256x1xf32>
      %76 = math.rsqrt %75 : vector<256x1xf32>
      %77 = vector.broadcast %76 : vector<256x1xf32> to vector<256x128xf32>
      %78 = arith.mulf %68, %77 : vector<256x128xf32>
      %79 = vector.broadcast %20 : vector<1x128xf32> to vector<256x128xf32>
      %80 = arith.mulf %78, %79 : vector<256x128xf32>
      %81 = arith.mulf %80, %12 : vector<256x128xf32>
      %c64_i32_41 = arith.constant 64 : i32
      %82 = tpu.dynamic_rotate %80 by %c64_i32_41 dim 1 : vector<256x128xf32>, i32 -> vector<256x128xf32>
      %83 = arith.mulf %82, %13 : vector<256x128xf32>
      %84 = vector.broadcast %19 : vector<1x128xf32> to vector<256x128xf32>
      %85 = arith.mulf %83, %84 : vector<256x128xf32>
      %86 = arith.addf %81, %85 : vector<256x128xf32>
      %cst_42 = arith.constant 0.0883883461 : f32
      %87 = vector.broadcast %cst_42 : f32 to vector<256x128xf32>
      %88 = arith.mulf %86, %87 : vector<256x128xf32>
      %89 = arith.truncf %88 : vector<256x128xf32> to vector<256x128xbf16>
      %c0_43 = arith.constant 0 : index
      %c256_44 = arith.constant 256 : index
      %90 = vector.load %arg8[%c0_43, %c256_44] : memref<256x512xbf16, #tpu.memory_space<vmem>>, vector<256x128xbf16>
      tpu.vector_store %arg8[%c0_43, %c256_44], %89 {strides = array<i32>} : memref<256x512xbf16, #tpu.memory_space<vmem>>, vector<256x128xbf16>,
      %c0_45 = arith.constant 0 : index
      %c384 = arith.constant 384 : index
      %91 = vector.load %arg11[%c0_45, %c384] : memref<256x1024xf32, #tpu.memory_space<vmem>>, vector<256x128xf32>
      %92 = arith.mulf %91, %91 : vector<256x128xf32>
      %cst_46 = arith.constant dense<0.000000e+00> : vector<256xf32>
      %93 = vector.multi_reduction <add>, %92, %cst_46 [1] : vector<256x128xf32> to vector<256xf32>
      %94 = vector.shape_cast %93 : vector<256xf32> to vector<256x1xf32>
      %cst_47 = arith.constant 1.280000e+02 : f32
      %95 = vector.broadcast %cst_47 : f32 to vector<256x1xf32>
      %96 = arith.divf %94, %95 : vector<256x1xf32>
      %cst_48 = arith.constant 9.99999997E-7 : f32
      %97 = vector.broadcast %cst_48 : f32 to vector<256x1xf32>
      %98 = arith.addf %96, %97 : vector<256x1xf32>
      %99 = math.rsqrt %98 : vector<256x1xf32>
      %100 = vector.broadcast %99 : vector<256x1xf32> to vector<256x128xf32>
      %101 = arith.mulf %91, %100 : vector<256x128xf32>
      %102 = vector.broadcast %20 : vector<1x128xf32> to vector<256x128xf32>
      %103 = arith.mulf %101, %102 : vector<256x128xf32>
      %104 = arith.mulf %103, %12 : vector<256x128xf32>
      %c64_i32_49 = arith.constant 64 : i32
      %105 = tpu.dynamic_rotate %103 by %c64_i32_49 dim 1 : vector<256x128xf32>, i32 -> vector<256x128xf32>
      %106 = arith.mulf %105, %13 : vector<256x128xf32>
      %107 = vector.broadcast %19 : vector<1x128xf32> to vector<256x128xf32>
      %108 = arith.mulf %106, %107 : vector<256x128xf32>
      %109 = arith.addf %104, %108 : vector<256x128xf32>
      %cst_50 = arith.constant 0.0883883461 : f32
      %110 = vector.broadcast %cst_50 : f32 to vector<256x128xf32>
      %111 = arith.mulf %109, %110 : vector<256x128xf32>
      %112 = arith.truncf %111 : vector<256x128xf32> to vector<256x128xbf16>
      %c0_51 = arith.constant 0 : index
      %c384_52 = arith.constant 384 : index
      %113 = vector.load %arg8[%c0_51, %c384_52] : memref<256x512xbf16, #tpu.memory_space<vmem>>, vector<256x128xbf16>
      tpu.vector_store %arg8[%c0_51, %c384_52], %112 {strides = array<i32>} : memref<256x512xbf16, #tpu.memory_space<vmem>>, vector<256x128xbf16>,
      %c0_53 = arith.constant 0 : index
      %c512 = arith.constant 512 : index
      %114 = vector.load %arg11[%c0_53, %c512] : memref<256x1024xf32, #tpu.memory_space<vmem>>, vector<256x128xf32>
      %115 = arith.mulf %114, %114 : vector<256x128xf32>
      %cst_54 = arith.constant dense<0.000000e+00> : vector<256xf32>
      %116 = vector.multi_reduction <add>, %115, %cst_54 [1] : vector<256x128xf32> to vector<256xf32>
      %117 = vector.shape_cast %116 : vector<256xf32> to vector<256x1xf32>
      %cst_55 = arith.constant 1.280000e+02 : f32
      %118 = vector.broadcast %cst_55 : f32 to vector<256x1xf32>
      %119 = arith.divf %117, %118 : vector<256x1xf32>
      %cst_56 = arith.constant 9.99999997E-7 : f32
      %120 = vector.broadcast %cst_56 : f32 to vector<256x1xf32>
      %121 = arith.addf %119, %120 : vector<256x1xf32>
      %122 = math.rsqrt %121 : vector<256x1xf32>
      %123 = vector.broadcast %122 : vector<256x1xf32> to vector<256x128xf32>
      %124 = arith.mulf %114, %123 : vector<256x128xf32>
      %125 = vector.broadcast %21 : vector<1x128xf32> to vector<256x128xf32>
      %126 = arith.mulf %124, %125 : vector<256x128xf32>
      %127 = arith.mulf %126, %12 : vector<256x128xf32>
      %c64_i32_57 = arith.constant 64 : i32
      %128 = tpu.dynamic_rotate %126 by %c64_i32_57 dim 1 : vector<256x128xf32>, i32 -> vector<256x128xf32>
      %129 = arith.mulf %128, %13 : vector<256x128xf32>
      %130 = vector.broadcast %19 : vector<1x128xf32> to vector<256x128xf32>
      %131 = arith.mulf %129, %130 : vector<256x128xf32>
      %132 = arith.addf %127, %131 : vector<256x128xf32>
      %133 = arith.truncf %132 : vector<256x128xf32> to vector<256x128xbf16>
      %c0_58 = arith.constant 0 : index
      %c0_59 = arith.constant 0 : index
      %134 = vector.load %arg9[%c0_58, %c0_59] : memref<256x256xbf16, #tpu.memory_space<vmem>>, vector<256x128xbf16>
      tpu.vector_store %arg9[%c0_58, %c0_59], %133 {strides = array<i32>} : memref<256x256xbf16, #tpu.memory_space<vmem>>, vector<256x128xbf16>,
      %c0_60 = arith.constant 0 : index
      %c640 = arith.constant 640 : index
      %135 = vector.load %arg11[%c0_60, %c640] : memref<256x1024xf32, #tpu.memory_space<vmem>>, vector<256x128xf32>
      %136 = arith.mulf %135, %135 : vector<256x128xf32>
      %cst_61 = arith.constant dense<0.000000e+00> : vector<256xf32>
      %137 = vector.multi_reduction <add>, %136, %cst_61 [1] : vector<256x128xf32> to vector<256xf32>
      %138 = vector.shape_cast %137 : vector<256xf32> to vector<256x1xf32>
      %cst_62 = arith.constant 1.280000e+02 : f32
      %139 = vector.broadcast %cst_62 : f32 to vector<256x1xf32>
      %140 = arith.divf %138, %139 : vector<256x1xf32>
      %cst_63 = arith.constant 9.99999997E-7 : f32
      %141 = vector.broadcast %cst_63 : f32 to vector<256x1xf32>
      %142 = arith.addf %140, %141 : vector<256x1xf32>
      %143 = math.rsqrt %142 : vector<256x1xf32>
      %144 = vector.broadcast %143 : vector<256x1xf32> to vector<256x128xf32>
      %145 = arith.mulf %135, %144 : vector<256x128xf32>
      %146 = vector.broadcast %21 : vector<1x128xf32> to vector<256x128xf32>
      %147 = arith.mulf %145, %146 : vector<256x128xf32>
      %148 = arith.mulf %147, %12 : vector<256x128xf32>
      %c64_i32_64 = arith.constant 64 : i32
      %149 = tpu.dynamic_rotate %147 by %c64_i32_64 dim 1 : vector<256x128xf32>, i32 -> vector<256x128xf32>
      %150 = arith.mulf %149, %13 : vector<256x128xf32>
      %151 = vector.broadcast %19 : vector<1x128xf32> to vector<256x128xf32>
      %152 = arith.mulf %150, %151 : vector<256x128xf32>
      %153 = arith.addf %148, %152 : vector<256x128xf32>
      %154 = arith.truncf %153 : vector<256x128xf32> to vector<256x128xbf16>
      %c0_65 = arith.constant 0 : index
      %c128_66 = arith.constant 128 : index
      %155 = vector.load %arg9[%c0_65, %c128_66] : memref<256x256xbf16, #tpu.memory_space<vmem>>, vector<256x128xbf16>
      tpu.vector_store %arg9[%c0_65, %c128_66], %154 {strides = array<i32>} : memref<256x256xbf16, #tpu.memory_space<vmem>>, vector<256x128xbf16>,
      %c0_67 = arith.constant 0 : index
      %c768 = arith.constant 768 : index
      %156 = vector.load %arg11[%c0_67, %c768] : memref<256x1024xf32, #tpu.memory_space<vmem>>, vector<256x128xf32>
      %157 = arith.truncf %156 : vector<256x128xf32> to vector<256x128xbf16>
      %c0_68 = arith.constant 0 : index
      %c0_69 = arith.constant 0 : index
      %158 = vector.load %arg10[%c0_68, %c0_69] : memref<256x256xbf16, #tpu.memory_space<vmem>>, vector<256x128xbf16>
      tpu.vector_store %arg10[%c0_68, %c0_69], %157 {strides = array<i32>} : memref<256x256xbf16, #tpu.memory_space<vmem>>, vector<256x128xbf16>,
      %c0_70 = arith.constant 0 : index
      %c896 = arith.constant 896 : index
      %159 = vector.load %arg11[%c0_70, %c896] : memref<256x1024xf32, #tpu.memory_space<vmem>>, vector<256x128xf32>
      %160 = arith.truncf %159 : vector<256x128xf32> to vector<256x128xbf16>
      %c0_71 = arith.constant 0 : index
      %c128_72 = arith.constant 128 : index
      %161 = vector.load %arg10[%c0_71, %c128_72] : memref<256x256xbf16, #tpu.memory_space<vmem>>, vector<256x128xbf16>
      tpu.vector_store %arg10[%c0_71, %c128_72], %160 {strides = array<i32>} : memref<256x256xbf16, #tpu.memory_space<vmem>>, vector<256x128xbf16>,
    } else {
    }
    return
  }
  func.func @transform_0(%arg0: i32, %arg1: i32) -> (i32, i32) {
    %c0_i32 = arith.constant 0 : i32
    return %arg0, %arg1 : i32, i32
  }
  func.func @transform_1(%arg0: i32, %arg1: i32) -> (i32, i32) {
    %c0_i32 = arith.constant 0 : i32
    %c0_i32_0 = arith.constant 0 : i32
    return %arg1, %c0_i32 : i32, i32
  }
  func.func @transform_2(%arg0: i32, %arg1: i32) -> (i32, i32) {
    %c0_i32 = arith.constant 0 : i32
    %c0_i32_0 = arith.constant 0 : i32
    %c0_i32_1 = arith.constant 0 : i32
    return %c0_i32, %c0_i32_0 : i32, i32
  }
  func.func @transform_3(%arg0: i32, %arg1: i32) -> (i32, i32) {
    %c0_i32 = arith.constant 0 : i32
    %c0_i32_0 = arith.constant 0 : i32
    %c0_i32_1 = arith.constant 0 : i32
    return %c0_i32, %c0_i32_0 : i32, i32
  }
  func.func @transform_4(%arg0: i32, %arg1: i32) -> (i32, i32) {
    %c0_i32 = arith.constant 0 : i32
    %c0_i32_0 = arith.constant 0 : i32
    return %arg0, %c0_i32 : i32, i32
  }
  func.func @transform_5(%arg0: i32, %arg1: i32) -> (i32, i32) {
    %c0_i32 = arith.constant 0 : i32
    %c0_i32_0 = arith.constant 0 : i32
    return %arg0, %c0_i32 : i32, i32
  }
  func.func @transform_6(%arg0: i32, %arg1: i32) -> (i32, i32) {
    %c0_i32 = arith.constant 0 : i32
    %c0_i32_0 = arith.constant 0 : i32
    return %arg0, %c0_i32 : i32, i32
  }
  func.func @transform_7(%arg0: i32, %arg1: i32) -> (i32, i32) {
    %c0_i32 = arith.constant 0 : i32
    %c0_i32_0 = arith.constant 0 : i32
    return %arg0, %c0_i32 : i32, i32
  }
  func.func @transform_8(%arg0: i32, %arg1: i32) -> (i32, i32) {
    %c0_i32 = arith.constant 0 : i32
    %c0_i32_0 = arith.constant 0 : i32
    return %arg0, %c0_i32 : i32, i32
  }
}

</mosaic_0001>

<llo_original>
// kernel: tpu_custom_call.1
$region0: #{tpu_custom_call.1}
  #allocation0 [shape = 'u32[]', space=smem, size = 0x4, offset = 0x4, fixed_abs, tag = 'smem constant byte address 0x4 - core index']
  #allocation1 [shape = 'u32[144,128]{1,0:T(1,128)}', space=vmem, size = 0x12000, scoped, tag = 'internal scratch']
  #allocation2 [shape = 'f32[256,1024]{1,0:T(8,128)}', space=vmem, size = 0x100000, scoped, tag = 'scratch operand']
  %s0 = inlined_call_operand.hbm [shape: bf16[256,512], index: 0, kind: input, shape index: {}]
  %s1 = inlined_call_operand.hbm [shape: bf16[512,1024], index: 1, kind: input, shape index: {}]
  %s2 = inlined_call_operand.vmem [shape: f32[1,128], index: 2, kind: input, shape index: {}]
  %s3 = inlined_call_operand.vmem [shape: f32[1,128], index: 3, kind: input, shape index: {}]
  %s4 = inlined_call_operand.hbm [shape: f32[256,128], index: 4, kind: input, shape index: {}]
  %s5 = inlined_call_operand.hbm [shape: f32[256,128], index: 5, kind: input, shape index: {}]
  %s6 = inlined_call_operand.hbm [shape: bf16[256,512], index: 6, kind: output, shape index: {0}]
  %s7 = inlined_call_operand.hbm [shape: bf16[256,256], index: 7, kind: output, shape index: {1}]
  %s8 = inlined_call_operand.hbm [shape: bf16[256,256], index: 8, kind: output, shape index: {2}]
  %9 = xla_tuple %s6, %s7, %s8
  %s10 = sld [smem:[#allocation0]]
  $region74: #{tpu_custom_call.1} parent=0
    _
  %s12 = ssub.s32 1, %s10
  %s13 = scalar_select 0, %s12, %s10
  $region1: #{tpu_custom_call.1} parent=0
    #allocation3 [shape = 'u8[262144]{0}', space=vmem, size = 0x40000, scoped, tag = 'input window, operand 0, single buffered']
    #allocation4 [shape = 's32[1]{0}', space=sflag, size = 0x4, scoped, tag = 'scoped memory for tpu_custom_call.1']
    #allocation5 [shape = 's32[1]{0}', space=sflag, size = 0x4, scoped, tag = 'scoped memory for tpu_custom_call.1']
    #allocation6 [shape = 'u8[1048576]{0}', space=vmem, size = 0x100000, scoped, tag = 'input window, operand 1, single buffered']
    #allocation7 [shape = 's32[1]{0}', space=sflag, size = 0x4, scoped, tag = 'scoped memory for tpu_custom_call.1']
    #allocation8 [shape = 'u8[131072]{0}', space=vmem, size = 0x20000, scoped, tag = 'input window, operand 4, single buffered']
    #allocation9 [shape = 'u8[131072]{0}', space=vmem, size = 0x20000, scoped, tag = 'input window, operand 5, single buffered']
    #allocation10 [shape = 's32[1]{0}', space=sflag, size = 0x4, scoped, tag = 'scoped memory for tpu_custom_call.1']
    #allocation11 [shape = 'u8[262144]{0}', space=vmem, size = 0x40000, scoped, tag = 'output window, operand 0, single buffered']
    #allocation12 [shape = 'u8[131072]{0}', space=vmem, size = 0x20000, scoped, tag = 'output window, operand 1, single buffered']
    #allocation13 [shape = 's32[1]{0}', space=sflag, size = 0x4, scoped, tag = 'scoped memory for tpu_custom_call.1']
    #allocation14 [shape = 'u8[131072]{0}', space=vmem, size = 0x20000, scoped, tag = 'output window, operand 2, single buffered']
    %14 = vsyncpa [#allocation4], 0
    %15 = vsyncpa [#allocation7], 0
    %16 = vsyncpa [#allocation10], 0
    %17 = vsyncpa [#allocation5], 0
    %18 = vsyncpa [#allocation13], 0
    // Predicated region
    $region2: #{tpu_custom_call.1} parent=1 // pred_check
      _
    $region3: #{tpu_custom_call.1} parent=1 // pred_check_branch
      %20 = sbr.rel (0) target = $region5
    $region4: #{tpu_custom_call.1} parent=1 // pred_region
      %s22 = ssub.s32 8192, 8192
      %23 = vsyncadd [#allocation4], %s22
      %s24 = sshll.u32 [#allocation3], 4
      %s25 = int_to_ptr.vmem [resolvable:$true] %s24
      %30 = dma.hbm_to_vmem [thread:$0]  %s0, 8192, %s25, [#allocation4], 256, 256, 16
    $region5: #{tpu_custom_call.1} parent=1 // pred_fallthru
      _
    // Predicated region
    $region6: #{tpu_custom_call.1} parent=1 // pred_check
      _
    $region7: #{tpu_custom_call.1} parent=1 // pred_check_branch
      %32 = sbr.rel (0) target = $region9
    $region8: #{tpu_custom_call.1} parent=1 // pred_region
      %s34 = ssub.s32 32768, 32768
      %35 = vsyncadd [#allocation7], %s34
      %s36 = sshll.u32 [#allocation6], 4
      %s37 = int_to_ptr.vmem [resolvable:$true] %s36
      %42 = dma.hbm_to_vmem [thread:$0]  %s1, 32768, %s37, [#allocation7], 512, 512, 32
    $region9: #{tpu_custom_call.1} parent=1 // pred_fallthru
      _
    // Predicated region
    $region10: #{tpu_custom_call.1} parent=1 // pred_check
      _
    $region11: #{tpu_custom_call.1} parent=1 // pred_check_branch
      %44 = sbr.rel (0) target = $region13
    $region12: #{tpu_custom_call.1} parent=1 // pred_region
      _
    $region13: #{tpu_custom_call.1} parent=1 // pred_fallthru
      _
    // Predicated region
    $region14: #{tpu_custom_call.1} parent=1 // pred_check
      _
    $region15: #{tpu_custom_call.1} parent=1 // pred_check_branch
      %46 = sbr.rel (0) target = $region17
    $region16: #{tpu_custom_call.1} parent=1 // pred_region
      _
    $region17: #{tpu_custom_call.1} parent=1 // pred_fallthru
      _
    // Predicated region
    $region18: #{tpu_custom_call.1} parent=1 // pred_check
      _
    $region19: #{tpu_custom_call.1} parent=1 // pred_check_branch
      %48 = sbr.rel (0) target = $region21
    $region20: #{tpu_custom_call.1} parent=1 // pred_region
      %s50 = ssub.s32 4096, 4096
      %51 = vsyncadd [#allocation7], %s50
      %s52 = sshll.u32 [#allocation8], 4
      %s53 = int_to_ptr.vmem [resolvable:$true] %s52
      %58 = dma.hbm_to_vmem [thread:$0]  %s4, 4096, %s53, [#allocation7], 128, 128, 8
    $region21: #{tpu_custom_call.1} parent=1 // pred_fallthru
      _
    // Predicated region
    $region22: #{tpu_custom_call.1} parent=1 // pred_check
      _
    $region23: #{tpu_custom_call.1} parent=1 // pred_check_branch
      %60 = sbr.rel (0) target = $region25
    $region24: #{tpu_custom_call.1} parent=1 // pred_region
      %s62 = ssub.s32 4096, 4096
      %63 = vsyncadd [#allocation10], %s62
      %s64 = sshll.u32 [#allocation9], 4
      %s65 = int_to_ptr.vmem [resolvable:$true] %s64
      %70 = dma.hbm_to_vmem [thread:$0]  %s5, 4096, %s65, [#allocation10], 128, 128, 8
    $region25: #{tpu_custom_call.1} parent=1 // pred_fallthru
      _
    // Predicated region
    $region26: #{tpu_custom_call.1} parent=1 // pred_check
      _
    $region27: #{tpu_custom_call.1} parent=1 // pred_check_branch
      %72 = sbr.rel (0) target = $region29
    $region28: #{tpu_custom_call.1} parent=1 // pred_region
      %73 = dma.done [#allocation4], 8192
    $region29: #{tpu_custom_call.1} parent=1 // pred_fallthru
      _
    // Predicated region
    $region30: #{tpu_custom_call.1} parent=1 // pred_check
      _
    $region31: #{tpu_custom_call.1} parent=1 // pred_check_branch
      %75 = sbr.rel (0) target = $region33
    $region32: #{tpu_custom_call.1} parent=1 // pred_region
      %76 = dma.done [#allocation7], 32768
    $region33: #{tpu_custom_call.1} parent=1 // pred_fallthru
      _
    // Predicated region
    $region34: #{tpu_custom_call.1} parent=1 // pred_check
      _
    $region35: #{tpu_custom_call.1} parent=1 // pred_check_branch
      %78 = sbr.rel (0) target = $region37
    $region36: #{tpu_custom_call.1} parent=1 // pred_region
      %79 = dma.done [#allocation7], 4096
    $region37: #{tpu_custom_call.1} parent=1 // pred_fallthru
      _
    // Predicated region
    $region38: #{tpu_custom_call.1} parent=1 // pred_check
      _
    $region39: #{tpu_custom_call.1} parent=1 // pred_check_branch
      %81 = sbr.rel (0) target = $region41
    $region40: #{tpu_custom_call.1} parent=1 // pred_region
      %82 = dma.done [#allocation10], 4096
    $region41: #{tpu_custom_call.1} parent=1 // pred_fallthru
      _
    %p83 = scmp.eq.s32.totalorder 0, 0
    // Predicated region
    $region42: #{tpu_custom_call.1} parent=1 // pred_check
      %p84 = pneg %p83
    $region43: #{tpu_custom_call.1} parent=1 // pred_check_branch
      %86 = sbr.rel (%p84) target = $region45
    $region44: #{tpu_custom_call.1} parent=1 // pred_region
      %87 = vst [vmem:[#allocation2] sm:$0xff] 0.0
      %88 = vst [vmem:[#allocation2 + $0x8] sm:$0xff] 0.0
      %89 = vst [vmem:[#allocation2 + $0x10] sm:$0xff] 0.0
      %90 = vst [vmem:[#allocation2 + $0x18] sm:$0xff] 0.0
      %91 = vst [vmem:[#allocation2 + $0x20] sm:$0xff] 0.0
      %92 = vst [vmem:[#allocation2 + $0x28] sm:$0xff] 0.0
      %93 = vst [vmem:[#allocation2 + $0x30] sm:$0xff] 0.0
      %94 = vst [vmem:[#allocation2 + $0x38] sm:$0xff] 0.0
      %95 = vst [vmem:[#allocation2 + $0x40] sm:$0xff] 0.0
      %96 = vst [vmem:[#allocation2 + $0x48] sm:$0xff] 0.0
      %97 = vst [vmem:[#allocation2 + $0x50] sm:$0xff] 0.0
      %98 = vst [vmem:[#allocation2 + $0x58] sm:$0xff] 0.0
      %99 = vst [vmem:[#allocation2 + $0x60] sm:$0xff] 0.0
      %100 = vst [vmem:[#allocation2 + $0x68] sm:$0xff] 0.0
      %101 = vst [vmem:[#allocation2 + $0x70] sm:$0xff] 0.0
      %102 = vst [vmem:[#allocation2 + $0x78] sm:$0xff] 0.0
      %103 = vst [vmem:[#allocation2 + $0x80] sm:$0xff] 0.0
      %104 = vst [vmem:[#allocation2 + $0x88] sm:$0xff] 0.0
      %105 = vst [vmem:[#allocation2 + $0x90] sm:$0xff] 0.0
      %106 = vst [vmem:[#allocation2 + $0x98] sm:$0xff] 0.0
      %107 = vst [vmem:[#allocation2 + $0xa0] sm:$0xff] 0.0
      %108 = vst [vmem:[#allocation2 + $0xa8] sm:$0xff] 0.0
      %109 = vst [vmem:[#allocation2 + $0xb0] sm:$0xff] 0.0
      %110 = vst [vmem:[#allocation2 + $0xb8] sm:$0xff] 0.0
      %111 = vst [vmem:[#allocation2 + $0xc0] sm:$0xff] 0.0
      %112 = vst [vmem:[#allocation2 + $0xc8] sm:$0xff] 0.0
      %113 = vst [vmem:[#allocation2 + $0xd0] sm:$0xff] 0.0
      %114 = vst [vmem:[#allocation2 + $0xd8] sm:$0xff] 0.0
      %115 = vst [vmem:[#allocation2 + $0xe0] sm:$0xff] 0.0
      %116 = vst [vmem:[#allocation2 + $0xe8] sm:$0xff] 0.0
      %117 = vst [vmem:[#allocation2 + $0xf0] sm:$0xff] 0.0
      %118 = vst [vmem:[#allocation2 + $0xf8] sm:$0xff] 0.0
      %119 = vst [vmem:[#allocation2 + $0x100] sm:$0xff] 0.0
      %120 = vst [vmem:[#allocation2 + $0x108] sm:$0xff] 0.0
      %121 = vst [vmem:[#allocation2 + $0x110] sm:$0xff] 0.0
      %122 = vst [vmem:[#allocation2 + $0x118] sm:$0xff] 0.0
      %123 = vst [vmem:[#allocation2 + $0x120] sm:$0xff] 0.0
      %124 = vst [vmem:[#allocation2 + $0x128] sm:$0xff] 0.0
      %125 = vst [vmem:[#allocation2 + $0x130] sm:$0xff] 0.0
      %126 = vst [vmem:[#allocation2 + $0x138] sm:$0xff] 0.0
      %127 = vst [vmem:[#allocation2 + $0x140] sm:$0xff] 0.0
      %128 = vst [vmem:[#allocation2 + $0x148] sm:$0xff] 0.0
      %129 = vst [vmem:[#allocation2 + $0x150] sm:$0xff] 0.0
      %130 = vst [vmem:[#allocation2 + $0x158] sm:$0xff] 0.0
      %131 = vst [vmem:[#allocation2 + $0x160] sm:$0xff] 0.0
      %132 = vst [vmem:[#allocation2 + $0x168] sm:$0xff] 0.0
      %133 = vst [vmem:[#allocation2 + $0x170] sm:$0xff] 0.0
      %134 = vst [vmem:[#allocation2 + $0x178] sm:$0xff] 0.0
      %135 = vst [vmem:[#allocation2 + $0x180] sm:$0xff] 0.0
      %136 = vst [vmem:[#allocation2 + $0x188] sm:$0xff] 0.0
      %137 = vst [vmem:[#allocation2 + $0x190] sm:$0xff] 0.0
      %138 = vst [vmem:[#allocation2 + $0x198] sm:$0xff] 0.0
      %139 = vst [vmem:[#allocation2 + $0x1a0] sm:$0xff] 0.0
      %140 = vst [vmem:[#allocation2 + $0x1a8] sm:$0xff] 0.0
      %141 = vst [vmem:[#allocation2 + $0x1b0] sm:$0xff] 0.0
      %142 = vst [vmem:[#allocation2 + $0x1b8] sm:$0xff] 0.0
      %143 = vst [vmem:[#allocation2 + $0x1c0] sm:$0xff] 0.0
      %144 = vst [vmem:[#allocation2 + $0x1c8] sm:$0xff] 0.0
      %145 = vst [vmem:[#allocation2 + $0x1d0] sm:$0xff] 0.0
      %146 = vst [vmem:[#allocation2 + $0x1d8] sm:$0xff] 0.0
      %147 = vst [vmem:[#allocation2 + $0x1e0] sm:$0xff] 0.0
      %148 = vst [vmem:[#allocation2 + $0x1e8] sm:$0xff] 0.0
      %149 = vst [vmem:[#allocation2 + $0x1f0] sm:$0xff] 0.0
      %150 = vst [vmem:[#allocation2 + $0x1f8] sm:$0xff] 0.0
      %151 = vst [vmem:[#allocation2 + $0x200] sm:$0xff] 0.0
      %152 = vst [vmem:[#allocation2 + $0x208] sm:$0xff] 0.0
      %153 = vst [vmem:[#allocation2 + $0x210] sm:$0xff] 0.0
      %154 = vst [vmem:[#allocation2 + $0x218] sm:$0xff] 0.0
      %155 = vst [vmem:[#allocation2 + $0x220] sm:$0xff] 0.0
      %156 = vst [vmem:[#allocation2 + $0x228] sm:$0xff] 0.0
      %157 = vst [vmem:[#allocation2 + $0x230] sm:$0xff] 0.0
      %158 = vst [vmem:[#allocation2 + $0x238] sm:$0xff] 0.0
      %159 = vst [vmem:[#allocation2 + $0x240] sm:$0xff] 0.0
      %160 = vst [vmem:[#allocation2 + $0x248] sm:$0xff] 0.0
      %161 = vst [vmem:[#allocation2 + $0x250] sm:$0xff] 0.0
      %162 = vst [vmem:[#allocation2 + $0x258] sm:$0xff] 0.0
      %163 = vst [vmem:[#allocation2 + $0x260] sm:$0xff] 0.0
      %164 = vst [vmem:[#allocation2 + $0x268] sm:$0xff] 0.0
      %165 = vst [vmem:[#allocation2 + $0x270] sm:$0xff] 0.0
      %166 = vst [vmem:[#allocation2 + $0x278] sm:$0xff] 0.0
      %167 = vst [vmem:[#allocation2 + $0x280] sm:$0xff] 0.0
      %168 = vst [vmem:[#allocation2 + $0x288] sm:$0xff] 0.0
      %169 = vst [vmem:[#allocation2 + $0x290] sm:$0xff] 0.0
      %170 = vst [vmem:[#allocation2 + $0x298] sm:$0xff] 0.0
      %171 = vst [vmem:[#allocation2 + $0x2a0] sm:$0xff] 0.0
      %172 = vst [vmem:[#allocation2 + $0x2a8] sm:$0xff] 0.0
      %173 = vst [vmem:[#allocation2 + $0x2b0] sm:$0xff] 0.0
      %174 = vst [vmem:[#allocation2 + $0x2b8] sm:$0xff] 0.0
      %175 = vst [vmem:[#allocation2 + $0x2c0] sm:$0xff] 0.0
      %176 = vst [vmem:[#allocation2 + $0x2c8] sm:$0xff] 0.0
      %177 = vst [vmem:[#allocation2 + $0x2d0] sm:$0xff] 0.0
      %178 = vst [vmem:[#allocation2 + $0x2d8] sm:$0xff] 0.0
      %179 = vst [vmem:[#allocation2 + $0x2e0] sm:$0xff] 0.0
      %180 = vst [vmem:[#allocation2 + $0x2e8] sm:$0xff] 0.0
      %181 = vst [vmem:[#allocation2 + $0x2f0] sm:$0xff] 0.0
      %182 = vst [vmem:[#allocation2 + $0x2f8] sm:$0xff] 0.0
      %183 = vst [vmem:[#allocation2 + $0x300] sm:$0xff] 0.0
      %184 = vst [vmem:[#allocation2 + $0x308] sm:$0xff] 0.0
      %185 = vst [vmem:[#allocation2 + $0x310] sm:$0xff] 0.0
      %186 = vst [vmem:[#allocation2 + $0x318] sm:$0xff] 0.0
      %187 = vst [vmem:[#allocation2 + $0x320] sm:$0xff] 0.0
      %188 = vst [vmem:[#allocation2 + $0x328] sm:$0xff] 0.0
      %189 = vst [vmem:[#allocation2 + $0x330] sm:$0xff] 0.0
      %190 = vst [vmem:[#allocation2 + $0x338] sm:$0xff] 0.0
      %191 = vst [vmem:[#allocation2 + $0x340] sm:$0xff] 0.0
      %192 = vst [vmem:[#allocation2 + $0x348] sm:$0xff] 0.0
      %193 = vst [vmem:[#allocation2 + $0x350] sm:$0xff] 0.0
      %194 = vst [vmem:[#allocation2 + $0x358] sm:$0xff] 0.0
      %195 = vst [vmem:[#allocation2 + $0x360] sm:$0xff] 0.0
      %196 = vst [vmem:[#allocation2 + $0x368] sm:$0xff] 0.0
      %197 = vst [vmem:[#allocation2 + $0x370] sm:$0xff] 0.0
      %198 = vst [vmem:[#allocation2 + $0x378] sm:$0xff] 0.0
      %199 = vst [vmem:[#allocation2 + $0x380] sm:$0xff] 0.0
      %200 = vst [vmem:[#allocation2 + $0x388] sm:$0xff] 0.0
      %201 = vst [vmem:[#allocation2 + $0x390] sm:$0xff] 0.0
      %202 = vst [vmem:[#allocation2 + $0x398] sm:$0xff] 0.0
      %203 = vst [vmem:[#allocation2 + $0x3a0] sm:$0xff] 0.0
      %204 = vst [vmem:[#allocation2 + $0x3a8] sm:$0xff] 0.0
      %205 = vst [vmem:[#allocation2 + $0x3b0] sm:$0xff] 0.0
      %206 = vst [vmem:[#allocation2 + $0x3b8] sm:$0xff] 0.0
      %207 = vst [vmem:[#allocation2 + $0x3c0] sm:$0xff] 0.0
      %208 = vst [vmem:[#allocation2 + $0x3c8] sm:$0xff] 0.0
      %209 = vst [vmem:[#allocation2 + $0x3d0] sm:$0xff] 0.0
      %210 = vst [vmem:[#allocation2 + $0x3d8] sm:$0xff] 0.0
      %211 = vst [vmem:[#allocation2 + $0x3e0] sm:$0xff] 0.0
      %212 = vst [vmem:[#allocation2 + $0x3e8] sm:$0xff] 0.0
      %213 = vst [vmem:[#allocation2 + $0x3f0] sm:$0xff] 0.0
      %214 = vst [vmem:[#allocation2 + $0x3f8] sm:$0xff] 0.0
      %215 = vst [vmem:[#allocation2 + $0x400] sm:$0xff] 0.0
      %216 = vst [vmem:[#allocation2 + $0x408] sm:$0xff] 0.0
      %217 = vst [vmem:[#allocation2 + $0x410] sm:$0xff] 0.0
      %218 = vst [vmem:[#allocation2 + $0x418] sm:$0xff] 0.0
      %219 = vst [vmem:[#allocation2 + $0x420] sm:$0xff] 0.0
      %220 = vst [vmem:[#allocation2 + $0x428] sm:$0xff] 0.0
      %221 = vst [vmem:[#allocation2 + $0x430] sm:$0xff] 0.0
      %222 = vst [vmem:[#allocation2 + $0x438] sm:$0xff] 0.0
      %223 = vst [vmem:[#allocation2 + $0x440] sm:$0xff] 0.0
      %224 = vst [vmem:[#allocation2 + $0x448] sm:$0xff] 0.0
      %225 = vst [vmem:[#allocation2 + $0x450] sm:$0xff] 0.0
      %226 = vst [vmem:[#allocation2 + $0x458] sm:$0xff] 0.0
      %227 = vst [vmem:[#allocation2 + $0x460] sm:$0xff] 0.0
      %228 = vst [vmem:[#allocation2 + $0x468] sm:$0xff] 0.0
      %229 = vst [vmem:[#allocation2 + $0x470] sm:$0xff] 0.0
      %230 = vst [vmem:[#allocation2 + $0x478] sm:$0xff] 0.0
      %231 = vst [vmem:[#allocation2 + $0x480] sm:$0xff] 0.0
      %232 = vst [vmem:[#allocation2 + $0x488] sm:$0xff] 0.0
      %233 = vst [vmem:[#allocation2 + $0x490] sm:$0xff] 0.0
      %234 = vst [vmem:[#allocation2 + $0x498] sm:$0xff] 0.0
      %235 = vst [vmem:[#allocation2 + $0x4a0] sm:$0xff] 0.0
      %236 = vst [vmem:[#allocation2 + $0x4a8] sm:$0xff] 0.0
      %237 = vst [vmem:[#allocation2 + $0x4b0] sm:$0xff] 0.0
      %238 = vst [vmem:[#allocation2 + $0x4b8] sm:$0xff] 0.0
      %239 = vst [vmem:[#allocation2 + $0x4c0] sm:$0xff] 0.0
      %240 = vst [vmem:[#allocation2 + $0x4c8] sm:$0xff] 0.0
      %241 = vst [vmem:[#allocation2 + $0x4d0] sm:$0xff] 0.0
      %242 = vst [vmem:[#allocation2 + $0x4d8] sm:$0xff] 0.0
      %243 = vst [vmem:[#allocation2 + $0x4e0] sm:$0xff] 0.0
      %244 = vst [vmem:[#allocation2 + $0x4e8] sm:$0xff] 0.0
      %245 = vst [vmem:[#allocation2 + $0x4f0] sm:$0xff] 0.0
      %246 = vst [vmem:[#allocation2 + $0x4f8] sm:$0xff] 0.0
      %247 = vst [vmem:[#allocation2 + $0x500] sm:$0xff] 0.0
      %248 = vst [vmem:[#allocation2 + $0x508] sm:$0xff] 0.0
      %249 = vst [vmem:[#allocation2 + $0x510] sm:$0xff] 0.0
      %250 = vst [vmem:[#allocation2 + $0x518] sm:$0xff] 0.0
      %251 = vst [vmem:[#allocation2 + $0x520] sm:$0xff] 0.0
      %252 = vst [vmem:[#allocation2 + $0x528] sm:$0xff] 0.0
      %253 = vst [vmem:[#allocation2 + $0x530] sm:$0xff] 0.0
      %254 = vst [vmem:[#allocation2 + $0x538] sm:$0xff] 0.0
      %255 = vst [vmem:[#allocation2 + $0x540] sm:$0xff] 0.0
      %256 = vst [vmem:[#allocation2 + $0x548] sm:$0xff] 0.0
      %257 = vst [vmem:[#allocation2 + $0x550] sm:$0xff] 0.0
      %258 = vst [vmem:[#allocation2 + $0x558] sm:$0xff] 0.0
      %259 = vst [vmem:[#allocation2 + $0x560] sm:$0xff] 0.0
      %260 = vst [vmem:[#allocation2 + $0x568] sm:$0xff] 0.0
      %261 = vst [vmem:[#allocation2 + $0x570] sm:$0xff] 0.0
      %262 = vst [vmem:[#allocation2 + $0x578] sm:$0xff] 0.0
      %263 = vst [vmem:[#allocation2 + $0x580] sm:$0xff] 0.0
      %264 = vst [vmem:[#allocation2 + $0x588] sm:$0xff] 0.0
      %265 = vst [vmem:[#allocation2 + $0x590] sm:$0xff] 0.0
      %266 = vst [vmem:[#allocation2 + $0x598] sm:$0xff] 0.0
      %267 = vst [vmem:[#allocation2 + $0x5a0] sm:$0xff] 0.0
      %268 = vst [vmem:[#allocation2 + $0x5a8] sm:$0xff] 0.0
      %269 = vst [vmem:[#allocation2 + $0x5b0] sm:$0xff] 0.0
      %270 = vst [vmem:[#allocation2 + $0x5b8] sm:$0xff] 0.0
      %271 = vst [vmem:[#allocation2 + $0x5c0] sm:$0xff] 0.0
      %272 = vst [vmem:[#allocation2 + $0x5c8] sm:$0xff] 0.0
      %273 = vst [vmem:[#allocation2 + $0x5d0] sm:$0xff] 0.0
      %274 = vst [vmem:[#allocation2 + $0x5d8] sm:$0xff] 0.0
      %275 = vst [vmem:[#allocation2 + $0x5e0] sm:$0xff] 0.0
      %276 = vst [vmem:[#allocation2 + $0x5e8] sm:$0xff] 0.0
      %277 = vst [vmem:[#allocation2 + $0x5f0] sm:$0xff] 0.0
      %278 = vst [vmem:[#allocation2 + $0x5f8] sm:$0xff] 0.0
      %279 = vst [vmem:[#allocation2 + $0x600] sm:$0xff] 0.0
      %280 = vst [vmem:[#allocation2 + $0x608] sm:$0xff] 0.0
      %281 = vst [vmem:[#allocation2 + $0x610] sm:$0xff] 0.0
      %282 = vst [vmem:[#allocation2 + $0x618] sm:$0xff] 0.0
      %283 = vst [vmem:[#allocation2 + $0x620] sm:$0xff] 0.0
      %284 = vst [vmem:[#allocation2 + $0x628] sm:$0xff] 0.0
      %285 = vst [vmem:[#allocation2 + $0x630] sm:$0xff] 0.0
      %286 = vst [vmem:[#allocation2 + $0x638] sm:$0xff] 0.0
      %287 = vst [vmem:[#allocation2 + $0x640] sm:$0xff] 0.0
      %288 = vst [vmem:[#allocation2 + $0x648] sm:$0xff] 0.0
      %289 = vst [vmem:[#allocation2 + $0x650] sm:$0xff] 0.0
      %290 = vst [vmem:[#allocation2 + $0x658] sm:$0xff] 0.0
      %291 = vst [vmem:[#allocation2 + $0x660] sm:$0xff] 0.0
      %292 = vst [vmem:[#allocation2 + $0x668] sm:$0xff] 0.0
      %293 = vst [vmem:[#allocation2 + $0x670] sm:$0xff] 0.0
      %294 = vst [vmem:[#allocation2 + $0x678] sm:$0xff] 0.0
      %295 = vst [vmem:[#allocation2 + $0x680] sm:$0xff] 0.0
      %296 = vst [vmem:[#allocation2 + $0x688] sm:$0xff] 0.0
      %297 = vst [vmem:[#allocation2 + $0x690] sm:$0xff] 0.0
      %298 = vst [vmem:[#allocation2 + $0x698] sm:$0xff] 0.0
      %299 = vst [vmem:[#allocation2 + $0x6a0] sm:$0xff] 0.0
      %300 = vst [vmem:[#allocation2 + $0x6a8] sm:$0xff] 0.0
      %301 = vst [vmem:[#allocation2 + $0x6b0] sm:$0xff] 0.0
      %302 = vst [vmem:[#allocation2 + $0x6b8] sm:$0xff] 0.0
      %303 = vst [vmem:[#allocation2 + $0x6c0] sm:$0xff] 0.0
      %304 = vst [vmem:[#allocation2 + $0x6c8] sm:$0xff] 0.0
      %305 = vst [vmem:[#allocation2 + $0x6d0] sm:$0xff] 0.0
      %306 = vst [vmem:[#allocation2 + $0x6d8] sm:$0xff] 0.0
      %307 = vst [vmem:[#allocation2 + $0x6e0] sm:$0xff] 0.0
      %308 = vst [vmem:[#allocation2 + $0x6e8] sm:$0xff] 0.0
      %309 = vst [vmem:[#allocation2 + $0x6f0] sm:$0xff] 0.0
      %310 = vst [vmem:[#allocation2 + $0x6f8] sm:$0xff] 0.0
      %311 = vst [vmem:[#allocation2 + $0x700] sm:$0xff] 0.0
      %312 = vst [vmem:[#allocation2 + $0x708] sm:$0xff] 0.0
      %313 = vst [vmem:[#allocation2 + $0x710] sm:$0xff] 0.0
      %314 = vst [vmem:[#allocation2 + $0x718] sm:$0xff] 0.0
      %315 = vst [vmem:[#allocation2 + $0x720] sm:$0xff] 0.0
      %316 = vst [vmem:[#allocation2 + $0x728] sm:$0xff] 0.0
      %317 = vst [vmem:[#allocation2 + $0x730] sm:$0xff] 0.0
      %318 = vst [vmem:[#allocation2 + $0x738] sm:$0xff] 0.0
      %319 = vst [vmem:[#allocation2 + $0x740] sm:$0xff] 0.0
      %320 = vst [vmem:[#allocation2 + $0x748] sm:$0xff] 0.0
      %321 = vst [vmem:[#allocation2 + $0x750] sm:$0xff] 0.0
      %322 = vst [vmem:[#allocation2 + $0x758] sm:$0xff] 0.0
      %323 = vst [vmem:[#allocation2 + $0x760] sm:$0xff] 0.0
      %324 = vst [vmem:[#allocation2 + $0x768] sm:$0xff] 0.0
      %325 = vst [vmem:[#allocation2 + $0x770] sm:$0xff] 0.0
      %326 = vst [vmem:[#allocation2 + $0x778] sm:$0xff] 0.0
      %327 = vst [vmem:[#allocation2 + $0x780] sm:$0xff] 0.0
      %328 = vst [vmem:[#allocation2 + $0x788] sm:$0xff] 0.0
      %329 = vst [vmem:[#allocation2 + $0x790] sm:$0xff] 0.0
      %330 = vst [vmem:[#allocation2 + $0x798] sm:$0xff] 0.0
      %331 = vst [vmem:[#allocation2 + $0x7a0] sm:$0xff] 0.0
      %332 = vst [vmem:[#allocation2 + $0x7a8] sm:$0xff] 0.0
      %333 = vst [vmem:[#allocation2 + $0x7b0] sm:$0xff] 0.0
      %334 = vst [vmem:[#allocation2 + $0x7b8] sm:$0xff] 0.0
      %335 = vst [vmem:[#allocation2 + $0x7c0] sm:$0xff] 0.0
      %336 = vst [vmem:[#allocation2 + $0x7c8] sm:$0xff] 0.0
      %337 = vst [vmem:[#allocation2 + $0x7d0] sm:$0xff] 0.0
      %338 = vst [vmem:[#allocation2 + $0x7d8] sm:$0xff] 0.0
      %339 = vst [vmem:[#allocation2 + $0x7e0] sm:$0xff] 0.0
      %340 = vst [vmem:[#allocation2 + $0x7e8] sm:$0xff] 0.0
      %341 = vst [vmem:[#allocation2 + $0x7f0] sm:$0xff] 0.0
      %342 = vst [vmem:[#allocation2 + $0x7f8] sm:$0xff] 0.0
    $region45: #{tpu_custom_call.1} parent=1 // pred_fallthru
      _
    %v343 = vld [vmem:[#allocation2] sm:$0xff]
    %v344 = vld [vmem:[#allocation2 + $0x8] sm:$0xff]
    %v345 = vld [vmem:[#allocation2 + $0x10] sm:$0xff]
    %v346 = vld [vmem:[#allocation2 + $0x18] sm:$0xff]
    %v347 = vld [vmem:[#allocation2 + $0x20] sm:$0xff]
    %v348 = vld [vmem:[#allocation2 + $0x28] sm:$0xff]
    %v349 = vld [vmem:[#allocation2 + $0x30] sm:$0xff]
    %v350 = vld [vmem:[#allocation2 + $0x38] sm:$0xff]
    %v351 = vld [vmem:[#allocation2 + $0x40] sm:$0xff]
    %v352 = vld [vmem:[#allocation2 + $0x48] sm:$0xff]
    %v353 = vld [vmem:[#allocation2 + $0x50] sm:$0xff]
    %v354 = vld [vmem:[#allocation2 + $0x58] sm:$0xff]
    %v355 = vld [vmem:[#allocation2 + $0x60] sm:$0xff]
    %v356 = vld [vmem:[#allocation2 + $0x68] sm:$0xff]
    %v357 = vld [vmem:[#allocation2 + $0x70] sm:$0xff]
    %v358 = vld [vmem:[#allocation2 + $0x78] sm:$0xff]
    %v359 = vld [vmem:[#allocation2 + $0x80] sm:$0xff]
    %v360 = vld [vmem:[#allocation2 + $0x88] sm:$0xff]
    %v361 = vld [vmem:[#allocation2 + $0x90] sm:$0xff]
    %v362 = vld [vmem:[#allocation2 + $0x98] sm:$0xff]
    %v363 = vld [vmem:[#allocation2 + $0xa0] sm:$0xff]
    %v364 = vld [vmem:[#allocation2 + $0xa8] sm:$0xff]
    %v365 = vld [vmem:[#allocation2 + $0xb0] sm:$0xff]
    %v366 = vld [vmem:[#allocation2 + $0xb8] sm:$0xff]
    %v367 = vld [vmem:[#allocation2 + $0xc0] sm:$0xff]
    %v368 = vld [vmem:[#allocation2 + $0xc8] sm:$0xff]
    %v369 = vld [vmem:[#allocation2 + $0xd0] sm:$0xff]
    %v370 = vld [vmem:[#allocation2 + $0xd8] sm:$0xff]
    %v371 = vld [vmem:[#allocation2 + $0xe0] sm:$0xff]
    %v372 = vld [vmem:[#allocation2 + $0xe8] sm:$0xff]
    %v373 = vld [vmem:[#allocation2 + $0xf0] sm:$0xff]
    %v374 = vld [vmem:[#allocation2 + $0xf8] sm:$0xff]
    %v375 = vld [vmem:[#allocation2 + $0x100] sm:$0xff]
    %v376 = vld [vmem:[#allocation2 + $0x108] sm:$0xff]
    %v377 = vld [vmem:[#allocation2 + $0x110] sm:$0xff]
    %v378 = vld [vmem:[#allocation2 + $0x118] sm:$0xff]
    %v379 = vld [vmem:[#allocation2 + $0x120] sm:$0xff]
    %v380 = vld [vmem:[#allocation2 + $0x128] sm:$0xff]
    %v381 = vld [vmem:[#allocation2 + $0x130] sm:$0xff]
    %v382 = vld [vmem:[#allocation2 + $0x138] sm:$0xff]
    %v383 = vld [vmem:[#allocation2 + $0x140] sm:$0xff]
    %v384 = vld [vmem:[#allocation2 + $0x148] sm:$0xff]
    %v385 = vld [vmem:[#allocation2 + $0x150] sm:$0xff]
    %v386 = vld [vmem:[#allocation2 + $0x158] sm:$0xff]
    %v387 = vld [vmem:[#allocation2 + $0x160] sm:$0xff]
    %v388 = vld [vmem:[#allocation2 + $0x168] sm:$0xff]
    %v389 = vld [vmem:[#allocation2 + $0x170] sm:$0xff]
    %v390 = vld [vmem:[#allocation2 + $0x178] sm:$0xff]
    %v391 = vld [vmem:[#allocation2 + $0x180] sm:$0xff]
    %v392 = vld [vmem:[#allocation2 + $0x188] sm:$0xff]
    %v393 = vld [vmem:[#allocation2 + $0x190] sm:$0xff]
    %v394 = vld [vmem:[#allocation2 + $0x198] sm:$0xff]
    %v395 = vld [vmem:[#allocation2 + $0x1a0] sm:$0xff]
    %v396 = vld [vmem:[#allocation2 + $0x1a8] sm:$0xff]
    %v397 = vld [vmem:[#allocation2 + $0x1b0] sm:$0xff]
    %v398 = vld [vmem:[#allocation2 + $0x1b8] sm:$0xff]
    %v399 = vld [vmem:[#allocation2 + $0x1c0] sm:$0xff]
    %v400 = vld [vmem:[#allocation2 + $0x1c8] sm:$0xff]
    %v401 = vld [vmem:[#allocation2 + $0x1d0] sm:$0xff]
    %v402 = vld [vmem:[#allocation2 + $0x1d8] sm:$0xff]
    %v403 = vld [vmem:[#allocation2 + $0x1e0] sm:$0xff]
    %v404 = vld [vmem:[#allocation2 + $0x1e8] sm:$0xff]
    %v405 = vld [vmem:[#allocation2 + $0x1f0] sm:$0xff]
    %v406 = vld [vmem:[#allocation2 + $0x1f8] sm:$0xff]
    %v407 = vld [vmem:[#allocation2 + $0x200] sm:$0xff]
    %v408 = vld [vmem:[#allocation2 + $0x208] sm:$0xff]
    %v409 = vld [vmem:[#allocation2 + $0x210] sm:$0xff]
    %v410 = vld [vmem:[#allocation2 + $0x218] sm:$0xff]
    %v411 = vld [vmem:[#allocation2 + $0x220] sm:$0xff]
    %v412 = vld [vmem:[#allocation2 + $0x228] sm:$0xff]
    %v413 = vld [vmem:[#allocation2 + $0x230] sm:$0xff]
    %v414 = vld [vmem:[#allocation2 + $0x238] sm:$0xff]
    %v415 = vld [vmem:[#allocation2 + $0x240] sm:$0xff]
    %v416 = vld [vmem:[#allocation2 + $0x248] sm:$0xff]
    %v417 = vld [vmem:[#allocation2 + $0x250] sm:$0xff]
    %v418 = vld [vmem:[#allocation2 + $0x258] sm:$0xff]
    %v419 = vld [vmem:[#allocation2 + $0x260] sm:$0xff]
    %v420 = vld [vmem:[#allocation2 + $0x268] sm:$0xff]
    %v421 = vld [vmem:[#allocation2 + $0x270] sm:$0xff]
    %v422 = vld [vmem:[#allocation2 + $0x278] sm:$0xff]
    %v423 = vld [vmem:[#allocation2 + $0x280] sm:$0xff]
    %v424 = vld [vmem:[#allocation2 + $0x288] sm:$0xff]
    %v425 = vld [vmem:[#allocation2 + $0x290] sm:$0xff]
    %v426 = vld [vmem:[#allocation2 + $0x298] sm:$0xff]
    %v427 = vld [vmem:[#allocation2 + $0x2a0] sm:$0xff]
    %v428 = vld [vmem:[#allocation2 + $0x2a8] sm:$0xff]
    %v429 = vld [vmem:[#allocation2 + $0x2b0] sm:$0xff]
    %v430 = vld [vmem:[#allocation2 + $0x2b8] sm:$0xff]
    %v431 = vld [vmem:[#allocation2 + $0x2c0] sm:$0xff]
    %v432 = vld [vmem:[#allocation2 + $0x2c8] sm:$0xff]
    %v433 = vld [vmem:[#allocation2 + $0x2d0] sm:$0xff]
    %v434 = vld [vmem:[#allocation2 + $0x2d8] sm:$0xff]
    %v435 = vld [vmem:[#allocation2 + $0x2e0] sm:$0xff]
    %v436 = vld [vmem:[#allocation2 + $0x2e8] sm:$0xff]
    %v437 = vld [vmem:[#allocation2 + $0x2f0] sm:$0xff]
    %v438 = vld [vmem:[#allocation2 + $0x2f8] sm:$0xff]
    %v439 = vld [vmem:[#allocation2 + $0x300] sm:$0xff]
    %v440 = vld [vmem:[#allocation2 + $0x308] sm:$0xff]
    %v441 = vld [vmem:[#allocation2 + $0x310] sm:$0xff]
    %v442 = vld [vmem:[#allocation2 + $0x318] sm:$0xff]
    %v443 = vld [vmem:[#allocation2 + $0x320] sm:$0xff]
    %v444 = vld [vmem:[#allocation2 + $0x328] sm:$0xff]
    %v445 = vld [vmem:[#allocation2 + $0x330] sm:$0xff]
    %v446 = vld [vmem:[#allocation2 + $0x338] sm:$0xff]
    %v447 = vld [vmem:[#allocation2 + $0x340] sm:$0xff]
    %v448 = vld [vmem:[#allocation2 + $0x348] sm:$0xff]
    %v449 = vld [vmem:[#allocation2 + $0x350] sm:$0xff]
    %v450 = vld [vmem:[#allocation2 + $0x358] sm:$0xff]
    %v451 = vld [vmem:[#allocation2 + $0x360] sm:$0xff]
    %v452 = vld [vmem:[#allocation2 + $0x368] sm:$0xff]
    %v453 = vld [vmem:[#allocation2 + $0x370] sm:$0xff]
    %v454 = vld [vmem:[#allocation2 + $0x378] sm:$0xff]
    %v455 = vld [vmem:[#allocation2 + $0x380] sm:$0xff]
    %v456 = vld [vmem:[#allocation2 + $0x388] sm:$0xff]
    %v457 = vld [vmem:[#allocation2 + $0x390] sm:$0xff]
    %v458 = vld [vmem:[#allocation2 + $0x398] sm:$0xff]
    %v459 = vld [vmem:[#allocation2 + $0x3a0] sm:$0xff]
    %v460 = vld [vmem:[#allocation2 + $0x3a8] sm:$0xff]
    %v461 = vld [vmem:[#allocation2 + $0x3b0] sm:$0xff]
    %v462 = vld [vmem:[#allocation2 + $0x3b8] sm:$0xff]
    %v463 = vld [vmem:[#allocation2 + $0x3c0] sm:$0xff]
    %v464 = vld [vmem:[#allocation2 + $0x3c8] sm:$0xff]
    %v465 = vld [vmem:[#allocation2 + $0x3d0] sm:$0xff]
    %v466 = vld [vmem:[#allocation2 + $0x3d8] sm:$0xff]
    %v467 = vld [vmem:[#allocation2 + $0x3e0] sm:$0xff]
    %v468 = vld [vmem:[#allocation2 + $0x3e8] sm:$0xff]
    %v469 = vld [vmem:[#allocation2 + $0x3f0] sm:$0xff]
    %v470 = vld [vmem:[#allocation2 + $0x3f8] sm:$0xff]
    %v471 = vld [vmem:[#allocation2 + $0x400] sm:$0xff]
    %v472 = vld [vmem:[#allocation2 + $0x408] sm:$0xff]
    %v473 = vld [vmem:[#allocation2 + $0x410] sm:$0xff]
    %v474 = vld [vmem:[#allocation2 + $0x418] sm:$0xff]
    %v475 = vld [vmem:[#allocation2 + $0x420] sm:$0xff]
    %v476 = vld [vmem:[#allocation2 + $0x428] sm:$0xff]
    %v477 = vld [vmem:[#allocation2 + $0x430] sm:$0xff]
    %v478 = vld [vmem:[#allocation2 + $0x438] sm:$0xff]
    %v479 = vld [vmem:[#allocation2 + $0x440] sm:$0xff]
    %v480 = vld [vmem:[#allocation2 + $0x448] sm:$0xff]
    %v481 = vld [vmem:[#allocation2 + $0x450] sm:$0xff]
    %v482 = vld [vmem:[#allocation2 + $0x458] sm:$0xff]
    %v483 = vld [vmem:[#allocation2 + $0x460] sm:$0xff]
    %v484 = vld [vmem:[#allocation2 + $0x468] sm:$0xff]
    %v485 = vld [vmem:[#allocation2 + $0x470] sm:$0xff]
    %v486 = vld [vmem:[#allocation2 + $0x478] sm:$0xff]
    %v487 = vld [vmem:[#allocation2 + $0x480] sm:$0xff]
    %v488 = vld [vmem:[#allocation2 + $0x488] sm:$0xff]
    %v489 = vld [vmem:[#allocation2 + $0x490] sm:$0xff]
    %v490 = vld [vmem:[#allocation2 + $0x498] sm:$0xff]
    %v491 = vld [vmem:[#allocation2 + $0x4a0] sm:$0xff]
    %v492 = vld [vmem:[#allocation2 + $0x4a8] sm:$0xff]
    %v493 = vld [vmem:[#allocation2 + $0x4b0] sm:$0xff]
    %v494 = vld [vmem:[#allocation2 + $0x4b8] sm:$0xff]
    %v495 = vld [vmem:[#allocation2 + $0x4c0] sm:$0xff]
    %v496 = vld [vmem:[#allocation2 + $0x4c8] sm:$0xff]
    %v497 = vld [vmem:[#allocation2 + $0x4d0] sm:$0xff]
    %v498 = vld [vmem:[#allocation2 + $0x4d8] sm:$0xff]
    %v499 = vld [vmem:[#allocation2 + $0x4e0] sm:$0xff]
    %v500 = vld [vmem:[#allocation2 + $0x4e8] sm:$0xff]
    %v501 = vld [vmem:[#allocation2 + $0x4f0] sm:$0xff]
    %v502 = vld [vmem:[#allocation2 + $0x4f8] sm:$0xff]
    %v503 = vld [vmem:[#allocation2 + $0x500] sm:$0xff]
    %v504 = vld [vmem:[#allocation2 + $0x508] sm:$0xff]
    %v505 = vld [vmem:[#allocation2 + $0x510] sm:$0xff]
    %v506 = vld [vmem:[#allocation2 + $0x518] sm:$0xff]
    %v507 = vld [vmem:[#allocation2 + $0x520] sm:$0xff]
    %v508 = vld [vmem:[#allocation2 + $0x528] sm:$0xff]
    %v509 = vld [vmem:[#allocation2 + $0x530] sm:$0xff]
    %v510 = vld [vmem:[#allocation2 + $0x538] sm:$0xff]
    %v511 = vld [vmem:[#allocation2 + $0x540] sm:$0xff]
    %v512 = vld [vmem:[#allocation2 + $0x548] sm:$0xff]
    %v513 = vld [vmem:[#allocation2 + $0x550] sm:$0xff]
    %v514 = vld [vmem:[#allocation2 + $0x558] sm:$0xff]
    %v515 = vld [vmem:[#allocation2 + $0x560] sm:$0xff]
    %v516 = vld [vmem:[#allocation2 + $0x568] sm:$0xff]
    %v517 = vld [vmem:[#allocation2 + $0x570] sm:$0xff]
    %v518 = vld [vmem:[#allocation2 + $0x578] sm:$0xff]
    %v519 = vld [vmem:[#allocation2 + $0x580] sm:$0xff]
    %v520 = vld [vmem:[#allocation2 + $0x588] sm:$0xff]
    %v521 = vld [vmem:[#allocation2 + $0x590] sm:$0xff]
    %v522 = vld [vmem:[#allocation2 + $0x598] sm:$0xff]
    %v523 = vld [vmem:[#allocation2 + $0x5a0] sm:$0xff]
    %v524 = vld [vmem:[#allocation2 + $0x5a8] sm:$0xff]
    %v525 = vld [vmem:[#allocation2 + $0x5b0] sm:$0xff]
    %v526 = vld [vmem:[#allocation2 + $0x5b8] sm:$0xff]
    %v527 = vld [vmem:[#allocation2 + $0x5c0] sm:$0xff]
    %v528 = vld [vmem:[#allocation2 + $0x5c8] sm:$0xff]
    %v529 = vld [vmem:[#allocation2 + $0x5d0] sm:$0xff]
    %v530 = vld [vmem:[#allocation2 + $0x5d8] sm:$0xff]
    %v531 = vld [vmem:[#allocation2 + $0x5e0] sm:$0xff]
    %v532 = vld [vmem:[#allocation2 + $0x5e8] sm:$0xff]
    %v533 = vld [vmem:[#allocation2 + $0x5f0] sm:$0xff]
    %v534 = vld [vmem:[#allocation2 + $0x5f8] sm:$0xff]
    %v535 = vld [vmem:[#allocation2 + $0x600] sm:$0xff]
    %v536 = vld [vmem:[#allocation2 + $0x608] sm:$0xff]
    %v537 = vld [vmem:[#allocation2 + $0x610] sm:$0xff]
    %v538 = vld [vmem:[#allocation2 + $0x618] sm:$0xff]
    %v539 = vld [vmem:[#allocation2 + $0x620] sm:$0xff]
    %v540 = vld [vmem:[#allocation2 + $0x628] sm:$0xff]
    %v541 = vld [vmem:[#allocation2 + $0x630] sm:$0xff]
    %v542 = vld [vmem:[#allocation2 + $0x638] sm:$0xff]
    %v543 = vld [vmem:[#allocation2 + $0x640] sm:$0xff]
    %v544 = vld [vmem:[#allocation2 + $0x648] sm:$0xff]
    %v545 = vld [vmem:[#allocation2 + $0x650] sm:$0xff]
    %v546 = vld [vmem:[#allocation2 + $0x658] sm:$0xff]
    %v547 = vld [vmem:[#allocation2 + $0x660] sm:$0xff]
    %v548 = vld [vmem:[#allocation2 + $0x668] sm:$0xff]
    %v549 = vld [vmem:[#allocation2 + $0x670] sm:$0xff]
    %v550 = vld [vmem:[#allocation2 + $0x678] sm:$0xff]
    %v551 = vld [vmem:[#allocation2 + $0x680] sm:$0xff]
    %v552 = vld [vmem:[#allocation2 + $0x688] sm:$0xff]
    %v553 = vld [vmem:[#allocation2 + $0x690] sm:$0xff]
    %v554 = vld [vmem:[#allocation2 + $0x698] sm:$0xff]
    %v555 = vld [vmem:[#allocation2 + $0x6a0] sm:$0xff]
    %v556 = vld [vmem:[#allocation2 + $0x6a8] sm:$0xff]
    %v557 = vld [vmem:[#allocation2 + $0x6b0] sm:$0xff]
    %v558 = vld [vmem:[#allocation2 + $0x6b8] sm:$0xff]
    %v559 = vld [vmem:[#allocation2 + $0x6c0] sm:$0xff]
    %v560 = vld [vmem:[#allocation2 + $0x6c8] sm:$0xff]
    %v561 = vld [vmem:[#allocation2 + $0x6d0] sm:$0xff]
    %v562 = vld [vmem:[#allocation2 + $0x6d8] sm:$0xff]
    %v563 = vld [vmem:[#allocation2 + $0x6e0] sm:$0xff]
    %v564 = vld [vmem:[#allocation2 + $0x6e8] sm:$0xff]
    %v565 = vld [vmem:[#allocation2 + $0x6f0] sm:$0xff]
    %v566 = vld [vmem:[#allocation2 + $0x6f8] sm:$0xff]
    %v567 = vld [vmem:[#allocation2 + $0x700] sm:$0xff]
    %v568 = vld [vmem:[#allocation2 + $0x708] sm:$0xff]
    %v569 = vld [vmem:[#allocation2 + $0x710] sm:$0xff]
    %v570 = vld [vmem:[#allocation2 + $0x718] sm:$0xff]
    %v571 = vld [vmem:[#allocation2 + $0x720] sm:$0xff]
    %v572 = vld [vmem:[#allocation2 + $0x728] sm:$0xff]
    %v573 = vld [vmem:[#allocation2 + $0x730] sm:$0xff]
    %v574 = vld [vmem:[#allocation2 + $0x738] sm:$0xff]
    %v575 = vld [vmem:[#allocation2 + $0x740] sm:$0xff]
    %v576 = vld [vmem:[#allocation2 + $0x748] sm:$0xff]
    %v577 = vld [vmem:[#allocation2 + $0x750] sm:$0xff]
    %v578 = vld [vmem:[#allocation2 + $0x758] sm:$0xff]
    %v579 = vld [vmem:[#allocation2 + $0x760] sm:$0xff]
    %v580 = vld [vmem:[#allocation2 + $0x768] sm:$0xff]
    %v581 = vld [vmem:[#allocation2 + $0x770] sm:$0xff]
    %v582 = vld [vmem:[#allocation2 + $0x778] sm:$0xff]
    %v583 = vld [vmem:[#allocation2 + $0x780] sm:$0xff]
    %v584 = vld [vmem:[#allocation2 + $0x788] sm:$0xff]
    %v585 = vld [vmem:[#allocation2 + $0x790] sm:$0xff]
    %v586 = vld [vmem:[#allocation2 + $0x798] sm:$0xff]
    %v587 = vld [vmem:[#allocation2 + $0x7a0] sm:$0xff]
    %v588 = vld [vmem:[#allocation2 + $0x7a8] sm:$0xff]
    %v589 = vld [vmem:[#allocation2 + $0x7b0] sm:$0xff]
    %v590 = vld [vmem:[#allocation2 + $0x7b8] sm:$0xff]
    %v591 = vld [vmem:[#allocation2 + $0x7c0] sm:$0xff]
    %v592 = vld [vmem:[#allocation2 + $0x7c8] sm:$0xff]
    %v593 = vld [vmem:[#allocation2 + $0x7d0] sm:$0xff]
    %v594 = vld [vmem:[#allocation2 + $0x7d8] sm:$0xff]
    %v595 = vld [vmem:[#allocation2 + $0x7e0] sm:$0xff]
    %v596 = vld [vmem:[#allocation2 + $0x7e8] sm:$0xff]
    %v597 = vld [vmem:[#allocation2 + $0x7f0] sm:$0xff]
    %v598 = vld [vmem:[#allocation2 + $0x7f8] sm:$0xff]
    %v599 = vld [vmem:[#allocation3] sm:$0xff]
    %v600 = vld [vmem:[#allocation3 + $0x8] sm:$0xff]
    %v601 = vld [vmem:[#allocation3 + $0x10] sm:$0xff]
    %v602 = vld [vmem:[#allocation3 + $0x18] sm:$0xff]
    %v603 = vld [vmem:[#allocation3 + $0x20] sm:$0xff]
    %v604 = vld [vmem:[#allocation3 + $0x28] sm:$0xff]
    %v605 = vld [vmem:[#allocation3 + $0x30] sm:$0xff]
    %v606 = vld [vmem:[#allocation3 + $0x38] sm:$0xff]
    %v607 = vld [vmem:[#allocation3 + $0x40] sm:$0xff]
    %v608 = vld [vmem:[#allocation3 + $0x48] sm:$0xff]
    %v609 = vld [vmem:[#allocation3 + $0x50] sm:$0xff]
    %v610 = vld [vmem:[#allocation3 + $0x58] sm:$0xff]
    %v611 = vld [vmem:[#allocation3 + $0x60] sm:$0xff]
    %v612 = vld [vmem:[#allocation3 + $0x68] sm:$0xff]
    %v613 = vld [vmem:[#allocation3 + $0x70] sm:$0xff]
    %v614 = vld [vmem:[#allocation3 + $0x78] sm:$0xff]
    %v615 = vld [vmem:[#allocation3 + $0x80] sm:$0xff]
    %v616 = vld [vmem:[#allocation3 + $0x88] sm:$0xff]
    %v617 = vld [vmem:[#allocation3 + $0x90] sm:$0xff]
    %v618 = vld [vmem:[#allocation3 + $0x98] sm:$0xff]
    %v619 = vld [vmem:[#allocation3 + $0xa0] sm:$0xff]
    %v620 = vld [vmem:[#allocation3 + $0xa8] sm:$0xff]
    %v621 = vld [vmem:[#allocation3 + $0xb0] sm:$0xff]
    %v622 = vld [vmem:[#allocation3 + $0xb8] sm:$0xff]
    %v623 = vld [vmem:[#allocation3 + $0xc0] sm:$0xff]
    %v624 = vld [vmem:[#allocation3 + $0xc8] sm:$0xff]
    %v625 = vld [vmem:[#allocation3 + $0xd0] sm:$0xff]
    %v626 = vld [vmem:[#allocation3 + $0xd8] sm:$0xff]
    %v627 = vld [vmem:[#allocation3 + $0xe0] sm:$0xff]
    %v628 = vld [vmem:[#allocation3 + $0xe8] sm:$0xff]
    %v629 = vld [vmem:[#allocation3 + $0xf0] sm:$0xff]
    %v630 = vld [vmem:[#allocation3 + $0xf8] sm:$0xff]
    %v631 = vld [vmem:[#allocation3 + $0x100] sm:$0xff]
    %v632 = vld [vmem:[#allocation3 + $0x108] sm:$0xff]
    %v633 = vld [vmem:[#allocation3 + $0x110] sm:$0xff]
    %v634 = vld [vmem:[#allocation3 + $0x118] sm:$0xff]
    %v635 = vld [vmem:[#allocation3 + $0x120] sm:$0xff]
    %v636 = vld [vmem:[#allocation3 + $0x128] sm:$0xff]
    %v637 = vld [vmem:[#allocation3 + $0x130] sm:$0xff]
    %v638 = vld [vmem:[#allocation3 + $0x138] sm:$0xff]
    %v639 = vld [vmem:[#allocation3 + $0x140] sm:$0xff]
    %v640 = vld [vmem:[#allocation3 + $0x148] sm:$0xff]
    %v641 = vld [vmem:[#allocation3 + $0x150] sm:$0xff]
    %v642 = vld [vmem:[#allocation3 + $0x158] sm:$0xff]
    %v643 = vld [vmem:[#allocation3 + $0x160] sm:$0xff]
    %v644 = vld [vmem:[#allocation3 + $0x168] sm:$0xff]
    %v645 = vld [vmem:[#allocation3 + $0x170] sm:$0xff]
    %v646 = vld [vmem:[#allocation3 + $0x178] sm:$0xff]
    %v647 = vld [vmem:[#allocation3 + $0x180] sm:$0xff]
    %v648 = vld [vmem:[#allocation3 + $0x188] sm:$0xff]
    %v649 = vld [vmem:[#allocation3 + $0x190] sm:$0xff]
    %v650 = vld [vmem:[#allocation3 + $0x198] sm:$0xff]
    %v651 = vld [vmem:[#allocation3 + $0x1a0] sm:$0xff]
    %v652 = vld [vmem:[#allocation3 + $0x1a8] sm:$0xff]
    %v653 = vld [vmem:[#allocation3 + $0x1b0] sm:$0xff]
    %v654 = vld [vmem:[#allocation3 + $0x1b8] sm:$0xff]
    %v655 = vld [vmem:[#allocation3 + $0x1c0] sm:$0xff]
    %v656 = vld [vmem:[#allocation3 + $0x1c8] sm:$0xff]
    %v657 = vld [vmem:[#allocation3 + $0x1d0] sm:$0xff]
    %v658 = vld [vmem:[#allocation3 + $0x1d8] sm:$0xff]
    %v659 = vld [vmem:[#allocation3 + $0x1e0] sm:$0xff]
    %v660 = vld [vmem:[#allocation3 + $0x1e8] sm:$0xff]
    %v661 = vld [vmem:[#allocation3 + $0x1f0] sm:$0xff]
    %v662 = vld [vmem:[#allocation3 + $0x1f8] sm:$0xff]
    %v663 = vld [vmem:[#allocation6] sm:$0xff]
    %v664 = vld [vmem:[#allocation6 + $0x8] sm:$0xff]
    %v665 = vld [vmem:[#allocation6 + $0x10] sm:$0xff]
    %v666 = vld [vmem:[#allocation6 + $0x18] sm:$0xff]
    %v667 = vld [vmem:[#allocation6 + $0x20] sm:$0xff]
    %v668 = vld [vmem:[#allocation6 + $0x28] sm:$0xff]
    %v669 = vld [vmem:[#allocation6 + $0x30] sm:$0xff]
    %v670 = vld [vmem:[#allocation6 + $0x38] sm:$0xff]
    %v671 = vld [vmem:[#allocation6 + $0x40] sm:$0xff]
    %v672 = vld [vmem:[#allocation6 + $0x48] sm:$0xff]
    %v673 = vld [vmem:[#allocation6 + $0x50] sm:$0xff]
    %v674 = vld [vmem:[#allocation6 + $0x58] sm:$0xff]
    %v675 = vld [vmem:[#allocation6 + $0x60] sm:$0xff]
    %v676 = vld [vmem:[#allocation6 + $0x68] sm:$0xff]
    %v677 = vld [vmem:[#allocation6 + $0x70] sm:$0xff]
    %v678 = vld [vmem:[#allocation6 + $0x78] sm:$0xff]
    %v679 = vld [vmem:[#allocation6 + $0x80] sm:$0xff]
    %v680 = vld [vmem:[#allocation6 + $0x88] sm:$0xff]
    %v681 = vld [vmem:[#allocation6 + $0x90] sm:$0xff]
    %v682 = vld [vmem:[#allocation6 + $0x98] sm:$0xff]
    %v683 = vld [vmem:[#allocation6 + $0xa0] sm:$0xff]
    %v684 = vld [vmem:[#allocation6 + $0xa8] sm:$0xff]
    %v685 = vld [vmem:[#allocation6 + $0xb0] sm:$0xff]
    %v686 = vld [vmem:[#allocation6 + $0xb8] sm:$0xff]
    %v687 = vld [vmem:[#allocation6 + $0xc0] sm:$0xff]
    %v688 = vld [vmem:[#allocation6 + $0xc8] sm:$0xff]
    %v689 = vld [vmem:[#allocation6 + $0xd0] sm:$0xff]
    %v690 = vld [vmem:[#allocation6 + $0xd8] sm:$0xff]
    %v691 = vld [vmem:[#allocation6 + $0xe0] sm:$0xff]
    %v692 = vld [vmem:[#allocation6 + $0xe8] sm:$0xff]
    %v693 = vld [vmem:[#allocation6 + $0xf0] sm:$0xff]
    %v694 = vld [vmem:[#allocation6 + $0xf8] sm:$0xff]
    %v695 = vld [vmem:[#allocation6 + $0x100] sm:$0xff]
    %v696 = vld [vmem:[#allocation6 + $0x108] sm:$0xff]
    %v697 = vld [vmem:[#allocation6 + $0x110] sm:$0xff]
    %v698 = vld [vmem:[#allocation6 + $0x118] sm:$0xff]
    %v699 = vld [vmem:[#allocation6 + $0x120] sm:$0xff]
    %v700 = vld [vmem:[#allocation6 + $0x128] sm:$0xff]
    %v701 = vld [vmem:[#allocation6 + $0x130] sm:$0xff]
    %v702 = vld [vmem:[#allocation6 + $0x138] sm:$0xff]
    %v703 = vld [vmem:[#allocation6 + $0x140] sm:$0xff]
    %v704 = vld [vmem:[#allocation6 + $0x148] sm:$0xff]
    %v705 = vld [vmem:[#allocation6 + $0x150] sm:$0xff]
    %v706 = vld [vmem:[#allocation6 + $0x158] sm:$0xff]
    %v707 = vld [vmem:[#allocation6 + $0x160] sm:$0xff]
    %v708 = vld [vmem:[#allocation6 + $0x168] sm:$0xff]
    %v709 = vld [vmem:[#allocation6 + $0x170] sm:$0xff]
    %v710 = vld [vmem:[#allocation6 + $0x178] sm:$0xff]
    %v711 = vld [vmem:[#allocation6 + $0x180] sm:$0xff]
    %v712 = vld [vmem:[#allocation6 + $0x188] sm:$0xff]
    %v713 = vld [vmem:[#allocation6 + $0x190] sm:$0xff]
    %v714 = vld [vmem:[#allocation6 + $0x198] sm:$0xff]
    %v715 = vld [vmem:[#allocation6 + $0x1a0] sm:$0xff]
    %v716 = vld [vmem:[#allocation6 + $0x1a8] sm:$0xff]
    %v717 = vld [vmem:[#allocation6 + $0x1b0] sm:$0xff]
    %v718 = vld [vmem:[#allocation6 + $0x1b8] sm:$0xff]
    %v719 = vld [vmem:[#allocation6 + $0x1c0] sm:$0xff]
    %v720 = vld [vmem:[#allocation6 + $0x1c8] sm:$0xff]
    %v721 = vld [vmem:[#allocation6 + $0x1d0] sm:$0xff]
    %v722 = vld [vmem:[#allocation6 + $0x1d8] sm:$0xff]
    %v723 = vld [vmem:[#allocation6 + $0x1e0] sm:$0xff]
    %v724 = vld [vmem:[#allocation6 + $0x1e8] sm:$0xff]
    %v725 = vld [vmem:[#allocation6 + $0x1f0] sm:$0xff]
    %v726 = vld [vmem:[#allocation6 + $0x1f8] sm:$0xff]
    %v727 = vld [vmem:[#allocation6 + $0x200] sm:$0xff]
    %v728 = vld [vmem:[#allocation6 + $0x208] sm:$0xff]
    %v729 = vld [vmem:[#allocation6 + $0x210] sm:$0xff]
    %v730 = vld [vmem:[#allocation6 + $0x218] sm:$0xff]
    %v731 = vld [vmem:[#allocation6 + $0x220] sm:$0xff]
    %v732 = vld [vmem:[#allocation6 + $0x228] sm:$0xff]
    %v733 = vld [vmem:[#allocation6 + $0x230] sm:$0xff]
    %v734 = vld [vmem:[#allocation6 + $0x238] sm:$0xff]
    %v735 = vld [vmem:[#allocation6 + $0x240] sm:$0xff]
    %v736 = vld [vmem:[#allocation6 + $0x248] sm:$0xff]
    %v737 = vld [vmem:[#allocation6 + $0x250] sm:$0xff]
    %v738 = vld [vmem:[#allocation6 + $0x258] sm:$0xff]
    %v739 = vld [vmem:[#allocation6 + $0x260] sm:$0xff]
    %v740 = vld [vmem:[#allocation6 + $0x268] sm:$0xff]
    %v741 = vld [vmem:[#allocation6 + $0x270] sm:$0xff]
    %v742 = vld [vmem:[#allocation6 + $0x278] sm:$0xff]
    %v743 = vld [vmem:[#allocation6 + $0x280] sm:$0xff]
    %v744 = vld [vmem:[#allocation6 + $0x288] sm:$0xff]
    %v745 = vld [vmem:[#allocation6 + $0x290] sm:$0xff]
    %v746 = vld [vmem:[#allocation6 + $0x298] sm:$0xff]
    %v747 = vld [vmem:[#allocation6 + $0x2a0] sm:$0xff]
    %v748 = vld [vmem:[#allocation6 + $0x2a8] sm:$0xff]
    %v749 = vld [vmem:[#allocation6 + $0x2b0] sm:$0xff]
    %v750 = vld [vmem:[#allocation6 + $0x2b8] sm:$0xff]
    %v751 = vld [vmem:[#allocation6 + $0x2c0] sm:$0xff]
    %v752 = vld [vmem:[#allocation6 + $0x2c8] sm:$0xff]
    %v753 = vld [vmem:[#allocation6 + $0x2d0] sm:$0xff]
    %v754 = vld [vmem:[#allocation6 + $0x2d8] sm:$0xff]
    %v755 = vld [vmem:[#allocation6 + $0x2e0] sm:$0xff]
    %v756 = vld [vmem:[#allocation6 + $0x2e8] sm:$0xff]
    %v757 = vld [vmem:[#allocation6 + $0x2f0] sm:$0xff]
    %v758 = vld [vmem:[#allocation6 + $0x2f8] sm:$0xff]
    %v759 = vld [vmem:[#allocation6 + $0x300] sm:$0xff]
    %v760 = vld [vmem:[#allocation6 + $0x308] sm:$0xff]
    %v761 = vld [vmem:[#allocation6 + $0x310] sm:$0xff]
    %v762 = vld [vmem:[#allocation6 + $0x318] sm:$0xff]
    %v763 = vld [vmem:[#allocation6 + $0x320] sm:$0xff]
    %v764 = vld [vmem:[#allocation6 + $0x328] sm:$0xff]
    %v765 = vld [vmem:[#allocation6 + $0x330] sm:$0xff]
    %v766 = vld [vmem:[#allocation6 + $0x338] sm:$0xff]
    %v767 = vld [vmem:[#allocation6 + $0x340] sm:$0xff]
    %v768 = vld [vmem:[#allocation6 + $0x348] sm:$0xff]
    %v769 = vld [vmem:[#allocation6 + $0x350] sm:$0xff]
    %v770 = vld [vmem:[#allocation6 + $0x358] sm:$0xff]
    %v771 = vld [vmem:[#allocation6 + $0x360] sm:$0xff]
    %v772 = vld [vmem:[#allocation6 + $0x368] sm:$0xff]
    %v773 = vld [vmem:[#allocation6 + $0x370] sm:$0xff]
    %v774 = vld [vmem:[#allocation6 + $0x378] sm:$0xff]
    %v775 = vld [vmem:[#allocation6 + $0x380] sm:$0xff]
    %v776 = vld [vmem:[#allocation6 + $0x388] sm:$0xff]
    %v777 = vld [vmem:[#allocation6 + $0x390] sm:$0xff]
    %v778 = vld [vmem:[#allocation6 + $0x398] sm:$0xff]
    %v779 = vld [vmem:[#allocation6 + $0x3a0] sm:$0xff]
    %v780 = vld [vmem:[#allocation6 + $0x3a8] sm:$0xff]
    %v781 = vld [vmem:[#allocation6 + $0x3b0] sm:$0xff]
    %v782 = vld [vmem:[#allocation6 + $0x3b8] sm:$0xff]
    %v783 = vld [vmem:[#allocation6 + $0x3c0] sm:$0xff]
    %v784 = vld [vmem:[#allocation6 + $0x3c8] sm:$0xff]
    %v785 = vld [vmem:[#allocation6 + $0x3d0] sm:$0xff]
    %v786 = vld [vmem:[#allocation6 + $0x3d8] sm:$0xff]
    %v787 = vld [vmem:[#allocation6 + $0x3e0] sm:$0xff]
    %v788 = vld [vmem:[#allocation6 + $0x3e8] sm:$0xff]
    %v789 = vld [vmem:[#allocation6 + $0x3f0] sm:$0xff]
    %v790 = vld [vmem:[#allocation6 + $0x3f8] sm:$0xff]
    %v791 = vld [vmem:[#allocation6 + $0x400] sm:$0xff]
    %v792 = vld [vmem:[#allocation6 + $0x408] sm:$0xff]
    %v793 = vld [vmem:[#allocation6 + $0x410] sm:$0xff]
    %v794 = vld [vmem:[#allocation6 + $0x418] sm:$0xff]
    %v795 = vld [vmem:[#allocation6 + $0x420] sm:$0xff]
    %v796 = vld [vmem:[#allocation6 + $0x428] sm:$0xff]
    %v797 = vld [vmem:[#allocation6 + $0x430] sm:$0xff]
    %v798 = vld [vmem:[#allocation6 + $0x438] sm:$0xff]
    %v799 = vld [vmem:[#allocation6 + $0x440] sm:$0xff]
    %v800 = vld [vmem:[#allocation6 + $0x448] sm:$0xff]
    %v801 = vld [vmem:[#allocation6 + $0x450] sm:$0xff]
    %v802 = vld [vmem:[#allocation6 + $0x458] sm:$0xff]
    %v803 = vld [vmem:[#allocation6 + $0x460] sm:$0xff]
    %v804 = vld [vmem:[#allocation6 + $0x468] sm:$0xff]
    %v805 = vld [vmem:[#allocation6 + $0x470] sm:$0xff]
    %v806 = vld [vmem:[#allocation6 + $0x478] sm:$0xff]
    %v807 = vld [vmem:[#allocation6 + $0x480] sm:$0xff]
    %v808 = vld [vmem:[#allocation6 + $0x488] sm:$0xff]
    %v809 = vld [vmem:[#allocation6 + $0x490] sm:$0xff]
    %v810 = vld [vmem:[#allocation6 + $0x498] sm:$0xff]
    %v811 = vld [vmem:[#allocation6 + $0x4a0] sm:$0xff]
    %v812 = vld [vmem:[#allocation6 + $0x4a8] sm:$0xff]
    %v813 = vld [vmem:[#allocation6 + $0x4b0] sm:$0xff]
    %v814 = vld [vmem:[#allocation6 + $0x4b8] sm:$0xff]
    %v815 = vld [vmem:[#allocation6 + $0x4c0] sm:$0xff]
    %v816 = vld [vmem:[#allocation6 + $0x4c8] sm:$0xff]
    %v817 = vld [vmem:[#allocation6 + $0x4d0] sm:$0xff]
    %v818 = vld [vmem:[#allocation6 + $0x4d8] sm:$0xff]
    %v819 = vld [vmem:[#allocation6 + $0x4e0] sm:$0xff]
    %v820 = vld [vmem:[#allocation6 + $0x4e8] sm:$0xff]
    %v821 = vld [vmem:[#allocation6 + $0x4f0] sm:$0xff]
    %v822 = vld [vmem:[#allocation6 + $0x4f8] sm:$0xff]
    %v823 = vld [vmem:[#allocation6 + $0x500] sm:$0xff]
    %v824 = vld [vmem:[#allocation6 + $0x508] sm:$0xff]
    %v825 = vld [vmem:[#allocation6 + $0x510] sm:$0xff]
    %v826 = vld [vmem:[#allocation6 + $0x518] sm:$0xff]
    %v827 = vld [vmem:[#allocation6 + $0x520] sm:$0xff]
    %v828 = vld [vmem:[#allocation6 + $0x528] sm:$0xff]
    %v829 = vld [vmem:[#allocation6 + $0x530] sm:$0xff]
    %v830 = vld [vmem:[#allocation6 + $0x538] sm:$0xff]
    %v831 = vld [vmem:[#allocation6 + $0x540] sm:$0xff]
    %v832 = vld [vmem:[#allocation6 + $0x548] sm:$0xff]
    %v833 = vld [vmem:[#allocation6 + $0x550] sm:$0xff]
    %v834 = vld [vmem:[#allocation6 + $0x558] sm:$0xff]
    %v835 = vld [vmem:[#allocation6 + $0x560] sm:$0xff]
    %v836 = vld [vmem:[#allocation6 + $0x568] sm:$0xff]
    %v837 = vld [vmem:[#allocation6 + $0x570] sm:$0xff]
    %v838 = vld [vmem:[#allocation6 + $0x578] sm:$0xff]
    %v839 = vld [vmem:[#allocation6 + $0x580] sm:$0xff]
    %v840 = vld [vmem:[#allocation6 + $0x588] sm:$0xff]
    %v841 = vld [vmem:[#allocation6 + $0x590] sm:$0xff]
    %v842 = vld [vmem:[#allocation6 + $0x598] sm:$0xff]
    %v843 = vld [vmem:[#allocation6 + $0x5a0] sm:$0xff]
    %v844 = vld [vmem:[#allocation6 + $0x5a8] sm:$0xff]
    %v845 = vld [vmem:[#allocation6 + $0x5b0] sm:$0xff]
    %v846 = vld [vmem:[#allocation6 + $0x5b8] sm:$0xff]
    %v847 = vld [vmem:[#allocation6 + $0x5c0] sm:$0xff]
    %v848 = vld [vmem:[#allocation6 + $0x5c8] sm:$0xff]
    %v849 = vld [vmem:[#allocation6 + $0x5d0] sm:$0xff]
    %v850 = vld [vmem:[#allocation6 + $0x5d8] sm:$0xff]
    %v851 = vld [vmem:[#allocation6 + $0x5e0] sm:$0xff]
    %v852 = vld [vmem:[#allocation6 + $0x5e8] sm:$0xff]
    %v853 = vld [vmem:[#allocation6 + $0x5f0] sm:$0xff]
    %v854 = vld [vmem:[#allocation6 + $0x5f8] sm:$0xff]
    %v855 = vld [vmem:[#allocation6 + $0x600] sm:$0xff]
    %v856 = vld [vmem:[#allocation6 + $0x608] sm:$0xff]
    %v857 = vld [vmem:[#allocation6 + $0x610] sm:$0xff]
    %v858 = vld [vmem:[#allocation6 + $0x618] sm:$0xff]
    %v859 = vld [vmem:[#allocation6 + $0x620] sm:$0xff]
    %v860 = vld [vmem:[#allocation6 + $0x628] sm:$0xff]
    %v861 = vld [vmem:[#allocation6 + $0x630] sm:$0xff]
    %v862 = vld [vmem:[#allocation6 + $0x638] sm:$0xff]
    %v863 = vld [vmem:[#allocation6 + $0x640] sm:$0xff]
    %v864 = vld [vmem:[#allocation6 + $0x648] sm:$0xff]
    %v865 = vld [vmem:[#allocation6 + $0x650] sm:$0xff]
    %v866 = vld [vmem:[#allocation6 + $0x658] sm:$0xff]
    %v867 = vld [vmem:[#allocation6 + $0x660] sm:$0xff]
    %v868 = vld [vmem:[#allocation6 + $0x668] sm:$0xff]
    %v869 = vld [vmem:[#allocation6 + $0x670] sm:$0xff]
    %v870 = vld [vmem:[#allocation6 + $0x678] sm:$0xff]
    %v871 = vld [vmem:[#allocation6 + $0x680] sm:$0xff]
    %v872 = vld [vmem:[#allocation6 + $0x688] sm:$0xff]
    %v873 = vld [vmem:[#allocation6 + $0x690] sm:$0xff]
    %v874 = vld [vmem:[#allocation6 + $0x698] sm:$0xff]
    %v875 = vld [vmem:[#allocation6 + $0x6a0] sm:$0xff]
    %v876 = vld [vmem:[#allocation6 + $0x6a8] sm:$0xff]
    %v877 = vld [vmem:[#allocation6 + $0x6b0] sm:$0xff]
    %v878 = vld [vmem:[#allocation6 + $0x6b8] sm:$0xff]
    %v879 = vld [vmem:[#allocation6 + $0x6c0] sm:$0xff]
    %v880 = vld [vmem:[#allocation6 + $0x6c8] sm:$0xff]
    %v881 = vld [vmem:[#allocation6 + $0x6d0] sm:$0xff]
    %v882 = vld [vmem:[#allocation6 + $0x6d8] sm:$0xff]
    %v883 = vld [vmem:[#allocation6 + $0x6e0] sm:$0xff]
    %v884 = vld [vmem:[#allocation6 + $0x6e8] sm:$0xff]
    %v885 = vld [vmem:[#allocation6 + $0x6f0] sm:$0xff]
    %v886 = vld [vmem:[#allocation6 + $0x6f8] sm:$0xff]
    %v887 = vld [vmem:[#allocation6 + $0x700] sm:$0xff]
    %v888 = vld [vmem:[#allocation6 + $0x708] sm:$0xff]
    %v889 = vld [vmem:[#allocation6 + $0x710] sm:$0xff]
    %v890 = vld [vmem:[#allocation6 + $0x718] sm:$0xff]
    %v891 = vld [vmem:[#allocation6 + $0x720] sm:$0xff]
    %v892 = vld [vmem:[#allocation6 + $0x728] sm:$0xff]
    %v893 = vld [vmem:[#allocation6 + $0x730] sm:$0xff]
    %v894 = vld [vmem:[#allocation6 + $0x738] sm:$0xff]
    %v895 = vld [vmem:[#allocation6 + $0x740] sm:$0xff]
    %v896 = vld [vmem:[#allocation6 + $0x748] sm:$0xff]
    %v897 = vld [vmem:[#allocation6 + $0x750] sm:$0xff]
    %v898 = vld [vmem:[#allocation6 + $0x758] sm:$0xff]
    %v899 = vld [vmem:[#allocation6 + $0x760] sm:$0xff]
    %v900 = vld [vmem:[#allocation6 + $0x768] sm:$0xff]
    %v901 = vld [vmem:[#allocation6 + $0x770] sm:$0xff]
    %v902 = vld [vmem:[#allocation6 + $0x778] sm:$0xff]
    %v903 = vld [vmem:[#allocation6 + $0x780] sm:$0xff]
    %v904 = vld [vmem:[#allocation6 + $0x788] sm:$0xff]
    %v905 = vld [vmem:[#allocation6 + $0x790] sm:$0xff]
    %v906 = vld [vmem:[#allocation6 + $0x798] sm:$0xff]
    %v907 = vld [vmem:[#allocation6 + $0x7a0] sm:$0xff]
    %v908 = vld [vmem:[#allocation6 + $0x7a8] sm:$0xff]
    %v909 = vld [vmem:[#allocation6 + $0x7b0] sm:$0xff]
    %v910 = vld [vmem:[#allocation6 + $0x7b8] sm:$0xff]
    %v911 = vld [vmem:[#allocation6 + $0x7c0] sm:$0xff]
    %v912 = vld [vmem:[#allocation6 + $0x7c8] sm:$0xff]
    %v913 = vld [vmem:[#allocation6 + $0x7d0] sm:$0xff]
    %v914 = vld [vmem:[#allocation6 + $0x7d8] sm:$0xff]
    %v915 = vld [vmem:[#allocation6 + $0x7e0] sm:$0xff]
    %v916 = vld [vmem:[#allocation6 + $0x7e8] sm:$0xff]
    %v917 = vld [vmem:[#allocation6 + $0x7f0] sm:$0xff]
    %v918 = vld [vmem:[#allocation6 + $0x7f8] sm:$0xff]
    %v983 = vunpack.c.l.b16 %v599
    %v984 = vunpack.c.h.b16 %v599
    %v985 = vunpack.c.l.b16 %v600
    %v986 = vunpack.c.h.b16 %v600
    %v987 = vunpack.c.l.b16 %v601
    %v988 = vunpack.c.h.b16 %v601
    %v989 = vunpack.c.l.b16 %v602
    %v990 = vunpack.c.h.b16 %v602
    %v991 = vunpack.c.l.b16 %v603
    %v992 = vunpack.c.h.b16 %v603
    %v993 = vunpack.c.l.b16 %v604
    %v994 = vunpack.c.h.b16 %v604
    %v995 = vunpack.c.l.b16 %v605
    %v996 = vunpack.c.h.b16 %v605
    %v997 = vunpack.c.l.b16 %v606
    %v998 = vunpack.c.h.b16 %v606
    %v999 = vunpack.c.l.b16 %v607
    %v1000 = vunpack.c.h.b16 %v607
    %v1001 = vunpack.c.l.b16 %v608
    %v1002 = vunpack.c.h.b16 %v608
    %v1003 = vunpack.c.l.b16 %v609
    %v1004 = vunpack.c.h.b16 %v609
    %v1005 = vunpack.c.l.b16 %v610
    %v1006 = vunpack.c.h.b16 %v610
    %v1007 = vunpack.c.l.b16 %v611
    %v1008 = vunpack.c.h.b16 %v611
    %v1009 = vunpack.c.l.b16 %v612
    %v1010 = vunpack.c.h.b16 %v612
    %v1011 = vunpack.c.l.b16 %v613
    %v1012 = vunpack.c.h.b16 %v613
    %v1013 = vunpack.c.l.b16 %v614
    %v1014 = vunpack.c.h.b16 %v614
    %v1015 = vunpack.c.l.b16 %v615
    %v1016 = vunpack.c.h.b16 %v615
    %v1017 = vunpack.c.l.b16 %v616
    %v1018 = vunpack.c.h.b16 %v616
    %v1019 = vunpack.c.l.b16 %v617
    %v1020 = vunpack.c.h.b16 %v617
    %v1021 = vunpack.c.l.b16 %v618
    %v1022 = vunpack.c.h.b16 %v618
    %v1023 = vunpack.c.l.b16 %v619
    %v1024 = vunpack.c.h.b16 %v619
    %v1025 = vunpack.c.l.b16 %v620
    %v1026 = vunpack.c.h.b16 %v620
    %v1027 = vunpack.c.l.b16 %v621
    %v1028 = vunpack.c.h.b16 %v621
    %v1029 = vunpack.c.l.b16 %v622
    %v1030 = vunpack.c.h.b16 %v622
    %v1031 = vunpack.c.l.b16 %v623
    %v1032 = vunpack.c.h.b16 %v623
    %v1033 = vunpack.c.l.b16 %v624
    %v1034 = vunpack.c.h.b16 %v624
    %v1035 = vunpack.c.l.b16 %v625
    %v1036 = vunpack.c.h.b16 %v625
    %v1037 = vunpack.c.l.b16 %v626
    %v1038 = vunpack.c.h.b16 %v626
    %v1039 = vunpack.c.l.b16 %v627
    %v1040 = vunpack.c.h.b16 %v627
    %v1041 = vunpack.c.l.b16 %v628
    %v1042 = vunpack.c.h.b16 %v628
    %v1043 = vunpack.c.l.b16 %v629
    %v1044 = vunpack.c.h.b16 %v629
    %v1045 = vunpack.c.l.b16 %v630
    %v1046 = vunpack.c.h.b16 %v630
    %v1047 = vunpack.c.l.b16 %v631
    %v1048 = vunpack.c.h.b16 %v631
    %v1049 = vunpack.c.l.b16 %v632
    %v1050 = vunpack.c.h.b16 %v632
    %v1051 = vunpack.c.l.b16 %v633
    %v1052 = vunpack.c.h.b16 %v633
    %v1053 = vunpack.c.l.b16 %v634
    %v1054 = vunpack.c.h.b16 %v634
    %v1055 = vunpack.c.l.b16 %v635
    %v1056 = vunpack.c.h.b16 %v635
    %v1057 = vunpack.c.l.b16 %v636
    %v1058 = vunpack.c.h.b16 %v636
    %v1059 = vunpack.c.l.b16 %v637
    %v1060 = vunpack.c.h.b16 %v637
    %v1061 = vunpack.c.l.b16 %v638
    %v1062 = vunpack.c.h.b16 %v638
    %v1063 = vunpack.c.l.b16 %v639
    %v1064 = vunpack.c.h.b16 %v639
    %v1065 = vunpack.c.l.b16 %v640
    %v1066 = vunpack.c.h.b16 %v640
    %v1067 = vunpack.c.l.b16 %v641
    %v1068 = vunpack.c.h.b16 %v641
    %v1069 = vunpack.c.l.b16 %v642
    %v1070 = vunpack.c.h.b16 %v642
    %v1071 = vunpack.c.l.b16 %v643
    %v1072 = vunpack.c.h.b16 %v643
    %v1073 = vunpack.c.l.b16 %v644
    %v1074 = vunpack.c.h.b16 %v644
    %v1075 = vunpack.c.l.b16 %v645
    %v1076 = vunpack.c.h.b16 %v645
    %v1077 = vunpack.c.l.b16 %v646
    %v1078 = vunpack.c.h.b16 %v646
    %v1079 = vunpack.c.l.b16 %v647
    %v1080 = vunpack.c.h.b16 %v647
    %v1081 = vunpack.c.l.b16 %v648
    %v1082 = vunpack.c.h.b16 %v648
    %v1083 = vunpack.c.l.b16 %v649
    %v1084 = vunpack.c.h.b16 %v649
    %v1085 = vunpack.c.l.b16 %v650
    %v1086 = vunpack.c.h.b16 %v650
    %v1087 = vunpack.c.l.b16 %v651
    %v1088 = vunpack.c.h.b16 %v651
    %v1089 = vunpack.c.l.b16 %v652
    %v1090 = vunpack.c.h.b16 %v652
    %v1091 = vunpack.c.l.b16 %v653
    %v1092 = vunpack.c.h.b16 %v653
    %v1093 = vunpack.c.l.b16 %v654
    %v1094 = vunpack.c.h.b16 %v654
    %v1095 = vunpack.c.l.b16 %v655
    %v1096 = vunpack.c.h.b16 %v655
    %v1097 = vunpack.c.l.b16 %v656
    %v1098 = vunpack.c.h.b16 %v656
    %v1099 = vunpack.c.l.b16 %v657
    %v1100 = vunpack.c.h.b16 %v657
    %v1101 = vunpack.c.l.b16 %v658
    %v1102 = vunpack.c.h.b16 %v658
    %v1103 = vunpack.c.l.b16 %v659
    %v1104 = vunpack.c.h.b16 %v659
    %v1105 = vunpack.c.l.b16 %v660
    %v1106 = vunpack.c.h.b16 %v660
    %v1107 = vunpack.c.l.b16 %v661
    %v1108 = vunpack.c.h.b16 %v661
    %v1109 = vunpack.c.l.b16 %v662
    %v1110 = vunpack.c.h.b16 %v662
    %v1111 = vpack.c.b16 %v987, %v983
    %v1112 = vpack.c.b16 %v988, %v984
    %v1113 = vpack.c.b16 %v989, %v985
    %v1114 = vpack.c.b16 %v990, %v986
    %v1115 = vpack.c.b16 %v995, %v991
    %v1116 = vpack.c.b16 %v996, %v992
    %v1117 = vpack.c.b16 %v997, %v993
    %v1118 = vpack.c.b16 %v998, %v994
    %v1119 = vpack.c.b16 %v1003, %v999
    %v1120 = vpack.c.b16 %v1004, %v1000
    %v1121 = vpack.c.b16 %v1005, %v1001
    %v1122 = vpack.c.b16 %v1006, %v1002
    %v1123 = vpack.c.b16 %v1011, %v1007
    %v1124 = vpack.c.b16 %v1012, %v1008
    %v1125 = vpack.c.b16 %v1013, %v1009
    %v1126 = vpack.c.b16 %v1014, %v1010
    %v1127 = vpack.c.b16 %v1019, %v1015
    %v1128 = vpack.c.b16 %v1020, %v1016
    %v1129 = vpack.c.b16 %v1021, %v1017
    %v1130 = vpack.c.b16 %v1022, %v1018
    %v1131 = vpack.c.b16 %v1027, %v1023
    %v1132 = vpack.c.b16 %v1028, %v1024
    %v1133 = vpack.c.b16 %v1029, %v1025
    %v1134 = vpack.c.b16 %v1030, %v1026
    %v1135 = vpack.c.b16 %v1035, %v1031
    %v1136 = vpack.c.b16 %v1036, %v1032
    %v1137 = vpack.c.b16 %v1037, %v1033
    %v1138 = vpack.c.b16 %v1038, %v1034
    %v1139 = vpack.c.b16 %v1043, %v1039
    %v1140 = vpack.c.b16 %v1044, %v1040
    %v1141 = vpack.c.b16 %v1045, %v1041
    %v1142 = vpack.c.b16 %v1046, %v1042
    %v1143 = vpack.c.b16 %v1051, %v1047
    %v1144 = vpack.c.b16 %v1052, %v1048
    %v1145 = vpack.c.b16 %v1053, %v1049
    %v1146 = vpack.c.b16 %v1054, %v1050
    %v1147 = vpack.c.b16 %v1059, %v1055
    %v1148 = vpack.c.b16 %v1060, %v1056
    %v1149 = vpack.c.b16 %v1061, %v1057
    %v1150 = vpack.c.b16 %v1062, %v1058
    %v1151 = vpack.c.b16 %v1067, %v1063
    %v1152 = vpack.c.b16 %v1068, %v1064
    %v1153 = vpack.c.b16 %v1069, %v1065
    %v1154 = vpack.c.b16 %v1070, %v1066
    %v1155 = vpack.c.b16 %v1075, %v1071
    %v1156 = vpack.c.b16 %v1076, %v1072
    %v1157 = vpack.c.b16 %v1077, %v1073
    %v1158 = vpack.c.b16 %v1078, %v1074
    %v1159 = vpack.c.b16 %v1083, %v1079
    %v1160 = vpack.c.b16 %v1084, %v1080
    %v1161 = vpack.c.b16 %v1085, %v1081
    %v1162 = vpack.c.b16 %v1086, %v1082
    %v1163 = vpack.c.b16 %v1091, %v1087
    %v1164 = vpack.c.b16 %v1092, %v1088
    %v1165 = vpack.c.b16 %v1093, %v1089
    %v1166 = vpack.c.b16 %v1094, %v1090
    %v1167 = vpack.c.b16 %v1099, %v1095
    %v1168 = vpack.c.b16 %v1100, %v1096
    %v1169 = vpack.c.b16 %v1101, %v1097
    %v1170 = vpack.c.b16 %v1102, %v1098
    %v1171 = vpack.c.b16 %v1107, %v1103
    %v1172 = vpack.c.b16 %v1108, %v1104
    %v1173 = vpack.c.b16 %v1109, %v1105
    %v1174 = vpack.c.b16 %v1110, %v1106
    %v1495 = vunpack.c.l.b16 %v663
    %v1496 = vunpack.c.h.b16 %v663
    %v1497 = vunpack.c.l.b16 %v664
    %v1498 = vunpack.c.h.b16 %v664
    %v1499 = vunpack.c.l.b16 %v665
    %v1500 = vunpack.c.h.b16 %v665
    %v1501 = vunpack.c.l.b16 %v666
    %v1502 = vunpack.c.h.b16 %v666
    %v1503 = vunpack.c.l.b16 %v667
    %v1504 = vunpack.c.h.b16 %v667
    %v1505 = vunpack.c.l.b16 %v668
    %v1506 = vunpack.c.h.b16 %v668
    %v1507 = vunpack.c.l.b16 %v669
    %v1508 = vunpack.c.h.b16 %v669
    %v1509 = vunpack.c.l.b16 %v670
    %v1510 = vunpack.c.h.b16 %v670
    %v1511 = vunpack.c.l.b16 %v671
    %v1512 = vunpack.c.h.b16 %v671
    %v1513 = vunpack.c.l.b16 %v672
    %v1514 = vunpack.c.h.b16 %v672
    %v1515 = vunpack.c.l.b16 %v673
    %v1516 = vunpack.c.h.b16 %v673
    %v1517 = vunpack.c.l.b16 %v674
    %v1518 = vunpack.c.h.b16 %v674
    %v1519 = vunpack.c.l.b16 %v675
    %v1520 = vunpack.c.h.b16 %v675
    %v1521 = vunpack.c.l.b16 %v676
    %v1522 = vunpack.c.h.b16 %v676
    %v1523 = vunpack.c.l.b16 %v677
    %v1524 = vunpack.c.h.b16 %v677
    %v1525 = vunpack.c.l.b16 %v678
    %v1526 = vunpack.c.h.b16 %v678
    %v1527 = vunpack.c.l.b16 %v679
    %v1528 = vunpack.c.h.b16 %v679
    %v1529 = vunpack.c.l.b16 %v680
    %v1530 = vunpack.c.h.b16 %v680
    %v1531 = vunpack.c.l.b16 %v681
    %v1532 = vunpack.c.h.b16 %v681
    %v1533 = vunpack.c.l.b16 %v682
    %v1534 = vunpack.c.h.b16 %v682
    %v1535 = vunpack.c.l.b16 %v683
    %v1536 = vunpack.c.h.b16 %v683
    %v1537 = vunpack.c.l.b16 %v684
    %v1538 = vunpack.c.h.b16 %v684
    %v1539 = vunpack.c.l.b16 %v685
    %v1540 = vunpack.c.h.b16 %v685
    %v1541 = vunpack.c.l.b16 %v686
    %v1542 = vunpack.c.h.b16 %v686
    %v1543 = vunpack.c.l.b16 %v687
    %v1544 = vunpack.c.h.b16 %v687
    %v1545 = vunpack.c.l.b16 %v688
    %v1546 = vunpack.c.h.b16 %v688
    %v1547 = vunpack.c.l.b16 %v689
    %v1548 = vunpack.c.h.b16 %v689
    %v1549 = vunpack.c.l.b16 %v690
    %v1550 = vunpack.c.h.b16 %v690
    %v1551 = vunpack.c.l.b16 %v691
    %v1552 = vunpack.c.h.b16 %v691
    %v1553 = vunpack.c.l.b16 %v692
    %v1554 = vunpack.c.h.b16 %v692
    %v1555 = vunpack.c.l.b16 %v693
    %v1556 = vunpack.c.h.b16 %v693
    %v1557 = vunpack.c.l.b16 %v694
    %v1558 = vunpack.c.h.b16 %v694
    %v1559 = vunpack.c.l.b16 %v695
    %v1560 = vunpack.c.h.b16 %v695
    %v1561 = vunpack.c.l.b16 %v696
    %v1562 = vunpack.c.h.b16 %v696
    %v1563 = vunpack.c.l.b16 %v697
    %v1564 = vunpack.c.h.b16 %v697
    %v1565 = vunpack.c.l.b16 %v698
    %v1566 = vunpack.c.h.b16 %v698
    %v1567 = vunpack.c.l.b16 %v699
    %v1568 = vunpack.c.h.b16 %v699
    %v1569 = vunpack.c.l.b16 %v700
    %v1570 = vunpack.c.h.b16 %v700
    %v1571 = vunpack.c.l.b16 %v701
    %v1572 = vunpack.c.h.b16 %v701
    %v1573 = vunpack.c.l.b16 %v702
    %v1574 = vunpack.c.h.b16 %v702
    %v1575 = vunpack.c.l.b16 %v703
    %v1576 = vunpack.c.h.b16 %v703
    %v1577 = vunpack.c.l.b16 %v704
    %v1578 = vunpack.c.h.b16 %v704
    %v1579 = vunpack.c.l.b16 %v705
    %v1580 = vunpack.c.h.b16 %v705
    %v1581 = vunpack.c.l.b16 %v706
    %v1582 = vunpack.c.h.b16 %v706
    %v1583 = vunpack.c.l.b16 %v707
    %v1584 = vunpack.c.h.b16 %v707
    %v1585 = vunpack.c.l.b16 %v708
    %v1586 = vunpack.c.h.b16 %v708
    %v1587 = vunpack.c.l.b16 %v709
    %v1588 = vunpack.c.h.b16 %v709
    %v1589 = vunpack.c.l.b16 %v710
    %v1590 = vunpack.c.h.b16 %v710
    %v1591 = vunpack.c.l.b16 %v711
    %v1592 = vunpack.c.h.b16 %v711
    %v1593 = vunpack.c.l.b16 %v712
    %v1594 = vunpack.c.h.b16 %v712
    %v1595 = vunpack.c.l.b16 %v713
    %v1596 = vunpack.c.h.b16 %v713
    %v1597 = vunpack.c.l.b16 %v714
    %v1598 = vunpack.c.h.b16 %v714
    %v1599 = vunpack.c.l.b16 %v715
    %v1600 = vunpack.c.h.b16 %v715
    %v1601 = vunpack.c.l.b16 %v716
    %v1602 = vunpack.c.h.b16 %v716
    %v1603 = vunpack.c.l.b16 %v717
    %v1604 = vunpack.c.h.b16 %v717
    %v1605 = vunpack.c.l.b16 %v718
    %v1606 = vunpack.c.h.b16 %v718
    %v1607 = vunpack.c.l.b16 %v719
    %v1608 = vunpack.c.h.b16 %v719
    %v1609 = vunpack.c.l.b16 %v720
    %v1610 = vunpack.c.h.b16 %v720
    %v1611 = vunpack.c.l.b16 %v721
    %v1612 = vunpack.c.h.b16 %v721
    %v1613 = vunpack.c.l.b16 %v722
    %v1614 = vunpack.c.h.b16 %v722
    %v1615 = vunpack.c.l.b16 %v723
    %v1616 = vunpack.c.h.b16 %v723
    %v1617 = vunpack.c.l.b16 %v724
    %v1618 = vunpack.c.h.b16 %v724
    %v1619 = vunpack.c.l.b16 %v725
    %v1620 = vunpack.c.h.b16 %v725
    %v1621 = vunpack.c.l.b16 %v726
    %v1622 = vunpack.c.h.b16 %v726
    %v1623 = vunpack.c.l.b16 %v727
    %v1624 = vunpack.c.h.b16 %v727
    %v1625 = vunpack.c.l.b16 %v728
    %v1626 = vunpack.c.h.b16 %v728
    %v1627 = vunpack.c.l.b16 %v729
    %v1628 = vunpack.c.h.b16 %v729
    %v1629 = vunpack.c.l.b16 %v730
    %v1630 = vunpack.c.h.b16 %v730
    %v1631 = vunpack.c.l.b16 %v731
    %v1632 = vunpack.c.h.b16 %v731
    %v1633 = vunpack.c.l.b16 %v732
    %v1634 = vunpack.c.h.b16 %v732
    %v1635 = vunpack.c.l.b16 %v733
    %v1636 = vunpack.c.h.b16 %v733
    %v1637 = vunpack.c.l.b16 %v734
    %v1638 = vunpack.c.h.b16 %v734
    %v1639 = vunpack.c.l.b16 %v735
    %v1640 = vunpack.c.h.b16 %v735
    %v1641 = vunpack.c.l.b16 %v736
    %v1642 = vunpack.c.h.b16 %v736
    %v1643 = vunpack.c.l.b16 %v737
    %v1644 = vunpack.c.h.b16 %v737
    %v1645 = vunpack.c.l.b16 %v738
    %v1646 = vunpack.c.h.b16 %v738
    %v1647 = vunpack.c.l.b16 %v739
    %v1648 = vunpack.c.h.b16 %v739
    %v1649 = vunpack.c.l.b16 %v740
    %v1650 = vunpack.c.h.b16 %v740
    %v1651 = vunpack.c.l.b16 %v741
    %v1652 = vunpack.c.h.b16 %v741
    %v1653 = vunpack.c.l.b16 %v742
    %v1654 = vunpack.c.h.b16 %v742
    %v1655 = vunpack.c.l.b16 %v743
    %v1656 = vunpack.c.h.b16 %v743
    %v1657 = vunpack.c.l.b16 %v744
    %v1658 = vunpack.c.h.b16 %v744
    %v1659 = vunpack.c.l.b16 %v745
    %v1660 = vunpack.c.h.b16 %v745
    %v1661 = vunpack.c.l.b16 %v746
    %v1662 = vunpack.c.h.b16 %v746
    %v1663 = vunpack.c.l.b16 %v747
    %v1664 = vunpack.c.h.b16 %v747
    %v1665 = vunpack.c.l.b16 %v748
    %v1666 = vunpack.c.h.b16 %v748
    %v1667 = vunpack.c.l.b16 %v749
    %v1668 = vunpack.c.h.b16 %v749
    %v1669 = vunpack.c.l.b16 %v750
    %v1670 = vunpack.c.h.b16 %v750
    %v1671 = vunpack.c.l.b16 %v751
    %v1672 = vunpack.c.h.b16 %v751
    %v1673 = vunpack.c.l.b16 %v752
    %v1674 = vunpack.c.h.b16 %v752
    %v1675 = vunpack.c.l.b16 %v753
    %v1676 = vunpack.c.h.b16 %v753
    %v1677 = vunpack.c.l.b16 %v754
    %v1678 = vunpack.c.h.b16 %v754
    %v1679 = vunpack.c.l.b16 %v755
    %v1680 = vunpack.c.h.b16 %v755
    %v1681 = vunpack.c.l.b16 %v756
    %v1682 = vunpack.c.h.b16 %v756
    %v1683 = vunpack.c.l.b16 %v757
    %v1684 = vunpack.c.h.b16 %v757
    %v1685 = vunpack.c.l.b16 %v758
    %v1686 = vunpack.c.h.b16 %v758
    %v1687 = vunpack.c.l.b16 %v759
    %v1688 = vunpack.c.h.b16 %v759
    %v1689 = vunpack.c.l.b16 %v760
    %v1690 = vunpack.c.h.b16 %v760
    %v1691 = vunpack.c.l.b16 %v761
    %v1692 = vunpack.c.h.b16 %v761
    %v1693 = vunpack.c.l.b16 %v762
    %v1694 = vunpack.c.h.b16 %v762
    %v1695 = vunpack.c.l.b16 %v763
    %v1696 = vunpack.c.h.b16 %v763
    %v1697 = vunpack.c.l.b16 %v764
    %v1698 = vunpack.c.h.b16 %v764
    %v1699 = vunpack.c.l.b16 %v765
    %v1700 = vunpack.c.h.b16 %v765
    %v1701 = vunpack.c.l.b16 %v766
    %v1702 = vunpack.c.h.b16 %v766
    %v1703 = vunpack.c.l.b16 %v767
    %v1704 = vunpack.c.h.b16 %v767
    %v1705 = vunpack.c.l.b16 %v768
    %v1706 = vunpack.c.h.b16 %v768
    %v1707 = vunpack.c.l.b16 %v769
    %v1708 = vunpack.c.h.b16 %v769
    %v1709 = vunpack.c.l.b16 %v770
    %v1710 = vunpack.c.h.b16 %v770
    %v1711 = vunpack.c.l.b16 %v771
    %v1712 = vunpack.c.h.b16 %v771
    %v1713 = vunpack.c.l.b16 %v772
    %v1714 = vunpack.c.h.b16 %v772
    %v1715 = vunpack.c.l.b16 %v773
    %v1716 = vunpack.c.h.b16 %v773
    %v1717 = vunpack.c.l.b16 %v774
    %v1718 = vunpack.c.h.b16 %v774
    %v1719 = vunpack.c.l.b16 %v775
    %v1720 = vunpack.c.h.b16 %v775
    %v1721 = vunpack.c.l.b16 %v776
    %v1722 = vunpack.c.h.b16 %v776
    %v1723 = vunpack.c.l.b16 %v777
    %v1724 = vunpack.c.h.b16 %v777
    %v1725 = vunpack.c.l.b16 %v778
    %v1726 = vunpack.c.h.b16 %v778
    %v1727 = vunpack.c.l.b16 %v779
    %v1728 = vunpack.c.h.b16 %v779
    %v1729 = vunpack.c.l.b16 %v780
    %v1730 = vunpack.c.h.b16 %v780
    %v1731 = vunpack.c.l.b16 %v781
    %v1732 = vunpack.c.h.b16 %v781
    %v1733 = vunpack.c.l.b16 %v782
    %v1734 = vunpack.c.h.b16 %v782
    %v1735 = vunpack.c.l.b16 %v783
    %v1736 = vunpack.c.h.b16 %v783
    %v1737 = vunpack.c.l.b16 %v784
    %v1738 = vunpack.c.h.b16 %v784
    %v1739 = vunpack.c.l.b16 %v785
    %v1740 = vunpack.c.h.b16 %v785
    %v1741 = vunpack.c.l.b16 %v786
    %v1742 = vunpack.c.h.b16 %v786
    %v1743 = vunpack.c.l.b16 %v787
    %v1744 = vunpack.c.h.b16 %v787
    %v1745 = vunpack.c.l.b16 %v788
    %v1746 = vunpack.c.h.b16 %v788
    %v1747 = vunpack.c.l.b16 %v789
    %v1748 = vunpack.c.h.b16 %v789
    %v1749 = vunpack.c.l.b16 %v790
    %v1750 = vunpack.c.h.b16 %v790
    %v1751 = vunpack.c.l.b16 %v791
    %v1752 = vunpack.c.h.b16 %v791
    %v1753 = vunpack.c.l.b16 %v792
    %v1754 = vunpack.c.h.b16 %v792
    %v1755 = vunpack.c.l.b16 %v793
    %v1756 = vunpack.c.h.b16 %v793
    %v1757 = vunpack.c.l.b16 %v794
    %v1758 = vunpack.c.h.b16 %v794
    %v1759 = vunpack.c.l.b16 %v795
    %v1760 = vunpack.c.h.b16 %v795
    %v1761 = vunpack.c.l.b16 %v796
    %v1762 = vunpack.c.h.b16 %v796
    %v1763 = vunpack.c.l.b16 %v797
    %v1764 = vunpack.c.h.b16 %v797
    %v1765 = vunpack.c.l.b16 %v798
    %v1766 = vunpack.c.h.b16 %v798
    %v1767 = vunpack.c.l.b16 %v799
    %v1768 = vunpack.c.h.b16 %v799
    %v1769 = vunpack.c.l.b16 %v800
    %v1770 = vunpack.c.h.b16 %v800
    %v1771 = vunpack.c.l.b16 %v801
    %v1772 = vunpack.c.h.b16 %v801
    %v1773 = vunpack.c.l.b16 %v802
    %v1774 = vunpack.c.h.b16 %v802
    %v1775 = vunpack.c.l.b16 %v803
    %v1776 = vunpack.c.h.b16 %v803
    %v1777 = vunpack.c.l.b16 %v804
    %v1778 = vunpack.c.h.b16 %v804
    %v1779 = vunpack.c.l.b16 %v805
    %v1780 = vunpack.c.h.b16 %v805
    %v1781 = vunpack.c.l.b16 %v806
    %v1782 = vunpack.c.h.b16 %v806
    %v1783 = vunpack.c.l.b16 %v807
    %v1784 = vunpack.c.h.b16 %v807
    %v1785 = vunpack.c.l.b16 %v808
    %v1786 = vunpack.c.h.b16 %v808
    %v1787 = vunpack.c.l.b16 %v809
    %v1788 = vunpack.c.h.b16 %v809
    %v1789 = vunpack.c.l.b16 %v810
    %v1790 = vunpack.c.h.b16 %v810
    %v1791 = vunpack.c.l.b16 %v811
    %v1792 = vunpack.c.h.b16 %v811
    %v1793 = vunpack.c.l.b16 %v812
    %v1794 = vunpack.c.h.b16 %v812
    %v1795 = vunpack.c.l.b16 %v813
    %v1796 = vunpack.c.h.b16 %v813
    %v1797 = vunpack.c.l.b16 %v814
    %v1798 = vunpack.c.h.b16 %v814
    %v1799 = vunpack.c.l.b16 %v815
    %v1800 = vunpack.c.h.b16 %v815
    %v1801 = vunpack.c.l.b16 %v816
    %v1802 = vunpack.c.h.b16 %v816
    %v1803 = vunpack.c.l.b16 %v817
    %v1804 = vunpack.c.h.b16 %v817
    %v1805 = vunpack.c.l.b16 %v818
    %v1806 = vunpack.c.h.b16 %v818
    %v1807 = vunpack.c.l.b16 %v819
    %v1808 = vunpack.c.h.b16 %v819
    %v1809 = vunpack.c.l.b16 %v820
    %v1810 = vunpack.c.h.b16 %v820
    %v1811 = vunpack.c.l.b16 %v821
    %v1812 = vunpack.c.h.b16 %v821
    %v1813 = vunpack.c.l.b16 %v822
    %v1814 = vunpack.c.h.b16 %v822
    %v1815 = vunpack.c.l.b16 %v823
    %v1816 = vunpack.c.h.b16 %v823
    %v1817 = vunpack.c.l.b16 %v824
    %v1818 = vunpack.c.h.b16 %v824
    %v1819 = vunpack.c.l.b16 %v825
    %v1820 = vunpack.c.h.b16 %v825
    %v1821 = vunpack.c.l.b16 %v826
    %v1822 = vunpack.c.h.b16 %v826
    %v1823 = vunpack.c.l.b16 %v827
    %v1824 = vunpack.c.h.b16 %v827
    %v1825 = vunpack.c.l.b16 %v828
    %v1826 = vunpack.c.h.b16 %v828
    %v1827 = vunpack.c.l.b16 %v829
    %v1828 = vunpack.c.h.b16 %v829
    %v1829 = vunpack.c.l.b16 %v830
    %v1830 = vunpack.c.h.b16 %v830
    %v1831 = vunpack.c.l.b16 %v831
    %v1832 = vunpack.c.h.b16 %v831
    %v1833 = vunpack.c.l.b16 %v832
    %v1834 = vunpack.c.h.b16 %v832
    %v1835 = vunpack.c.l.b16 %v833
    %v1836 = vunpack.c.h.b16 %v833
    %v1837 = vunpack.c.l.b16 %v834
    %v1838 = vunpack.c.h.b16 %v834
    %v1839 = vunpack.c.l.b16 %v835
    %v1840 = vunpack.c.h.b16 %v835
    %v1841 = vunpack.c.l.b16 %v836
    %v1842 = vunpack.c.h.b16 %v836
    %v1843 = vunpack.c.l.b16 %v837
    %v1844 = vunpack.c.h.b16 %v837
    %v1845 = vunpack.c.l.b16 %v838
    %v1846 = vunpack.c.h.b16 %v838
    %v1847 = vunpack.c.l.b16 %v839
    %v1848 = vunpack.c.h.b16 %v839
    %v1849 = vunpack.c.l.b16 %v840
    %v1850 = vunpack.c.h.b16 %v840
    %v1851 = vunpack.c.l.b16 %v841
    %v1852 = vunpack.c.h.b16 %v841
    %v1853 = vunpack.c.l.b16 %v842
    %v1854 = vunpack.c.h.b16 %v842
    %v1855 = vunpack.c.l.b16 %v843
    %v1856 = vunpack.c.h.b16 %v843
    %v1857 = vunpack.c.l.b16 %v844
    %v1858 = vunpack.c.h.b16 %v844
    %v1859 = vunpack.c.l.b16 %v845
    %v1860 = vunpack.c.h.b16 %v845
    %v1861 = vunpack.c.l.b16 %v846
    %v1862 = vunpack.c.h.b16 %v846
    %v1863 = vunpack.c.l.b16 %v847
    %v1864 = vunpack.c.h.b16 %v847
    %v1865 = vunpack.c.l.b16 %v848
    %v1866 = vunpack.c.h.b16 %v848
    %v1867 = vunpack.c.l.b16 %v849
    %v1868 = vunpack.c.h.b16 %v849
    %v1869 = vunpack.c.l.b16 %v850
    %v1870 = vunpack.c.h.b16 %v850
    %v1871 = vunpack.c.l.b16 %v851
    %v1872 = vunpack.c.h.b16 %v851
    %v1873 = vunpack.c.l.b16 %v852
    %v1874 = vunpack.c.h.b16 %v852
    %v1875 = vunpack.c.l.b16 %v853
    %v1876 = vunpack.c.h.b16 %v853
    %v1877 = vunpack.c.l.b16 %v854
    %v1878 = vunpack.c.h.b16 %v854
    %v1879 = vunpack.c.l.b16 %v855
    %v1880 = vunpack.c.h.b16 %v855
    %v1881 = vunpack.c.l.b16 %v856
    %v1882 = vunpack.c.h.b16 %v856
    %v1883 = vunpack.c.l.b16 %v857
    %v1884 = vunpack.c.h.b16 %v857
    %v1885 = vunpack.c.l.b16 %v858
    %v1886 = vunpack.c.h.b16 %v858
    %v1887 = vunpack.c.l.b16 %v859
    %v1888 = vunpack.c.h.b16 %v859
    %v1889 = vunpack.c.l.b16 %v860
    %v1890 = vunpack.c.h.b16 %v860
    %v1891 = vunpack.c.l.b16 %v861
    %v1892 = vunpack.c.h.b16 %v861
    %v1893 = vunpack.c.l.b16 %v862
    %v1894 = vunpack.c.h.b16 %v862
    %v1895 = vunpack.c.l.b16 %v863
    %v1896 = vunpack.c.h.b16 %v863
    %v1897 = vunpack.c.l.b16 %v864
    %v1898 = vunpack.c.h.b16 %v864
    %v1899 = vunpack.c.l.b16 %v865
    %v1900 = vunpack.c.h.b16 %v865
    %v1901 = vunpack.c.l.b16 %v866
    %v1902 = vunpack.c.h.b16 %v866
    %v1903 = vunpack.c.l.b16 %v867
    %v1904 = vunpack.c.h.b16 %v867
    %v1905 = vunpack.c.l.b16 %v868
    %v1906 = vunpack.c.h.b16 %v868
    %v1907 = vunpack.c.l.b16 %v869
    %v1908 = vunpack.c.h.b16 %v869
    %v1909 = vunpack.c.l.b16 %v870
    %v1910 = vunpack.c.h.b16 %v870
    %v1911 = vunpack.c.l.b16 %v871
    %v1912 = vunpack.c.h.b16 %v871
    %v1913 = vunpack.c.l.b16 %v872
    %v1914 = vunpack.c.h.b16 %v872
    %v1915 = vunpack.c.l.b16 %v873
    %v1916 = vunpack.c.h.b16 %v873
    %v1917 = vunpack.c.l.b16 %v874
    %v1918 = vunpack.c.h.b16 %v874
    %v1919 = vunpack.c.l.b16 %v875
    %v1920 = vunpack.c.h.b16 %v875
    %v1921 = vunpack.c.l.b16 %v876
    %v1922 = vunpack.c.h.b16 %v876
    %v1923 = vunpack.c.l.b16 %v877
    %v1924 = vunpack.c.h.b16 %v877
    %v1925 = vunpack.c.l.b16 %v878
    %v1926 = vunpack.c.h.b16 %v878
    %v1927 = vunpack.c.l.b16 %v879
    %v1928 = vunpack.c.h.b16 %v879
    %v1929 = vunpack.c.l.b16 %v880
    %v1930 = vunpack.c.h.b16 %v880
    %v1931 = vunpack.c.l.b16 %v881
    %v1932 = vunpack.c.h.b16 %v881
    %v1933 = vunpack.c.l.b16 %v882
    %v1934 = vunpack.c.h.b16 %v882
    %v1935 = vunpack.c.l.b16 %v883
    %v1936 = vunpack.c.h.b16 %v883
    %v1937 = vunpack.c.l.b16 %v884
    %v1938 = vunpack.c.h.b16 %v884
    %v1939 = vunpack.c.l.b16 %v885
    %v1940 = vunpack.c.h.b16 %v885
    %v1941 = vunpack.c.l.b16 %v886
    %v1942 = vunpack.c.h.b16 %v886
    %v1943 = vunpack.c.l.b16 %v887
    %v1944 = vunpack.c.h.b16 %v887
    %v1945 = vunpack.c.l.b16 %v888
    %v1946 = vunpack.c.h.b16 %v888
    %v1947 = vunpack.c.l.b16 %v889
    %v1948 = vunpack.c.h.b16 %v889
    %v1949 = vunpack.c.l.b16 %v890
    %v1950 = vunpack.c.h.b16 %v890
    %v1951 = vunpack.c.l.b16 %v891
    %v1952 = vunpack.c.h.b16 %v891
    %v1953 = vunpack.c.l.b16 %v892
    %v1954 = vunpack.c.h.b16 %v892
    %v1955 = vunpack.c.l.b16 %v893
    %v1956 = vunpack.c.h.b16 %v893
    %v1957 = vunpack.c.l.b16 %v894
    %v1958 = vunpack.c.h.b16 %v894
    %v1959 = vunpack.c.l.b16 %v895
    %v1960 = vunpack.c.h.b16 %v895
    %v1961 = vunpack.c.l.b16 %v896
    %v1962 = vunpack.c.h.b16 %v896
    %v1963 = vunpack.c.l.b16 %v897
    %v1964 = vunpack.c.h.b16 %v897
    %v1965 = vunpack.c.l.b16 %v898
    %v1966 = vunpack.c.h.b16 %v898
    %v1967 = vunpack.c.l.b16 %v899
    %v1968 = vunpack.c.h.b16 %v899
    %v1969 = vunpack.c.l.b16 %v900
    %v1970 = vunpack.c.h.b16 %v900
    %v1971 = vunpack.c.l.b16 %v901
    %v1972 = vunpack.c.h.b16 %v901
    %v1973 = vunpack.c.l.b16 %v902
    %v1974 = vunpack.c.h.b16 %v902
    %v1975 = vunpack.c.l.b16 %v903
    %v1976 = vunpack.c.h.b16 %v903
    %v1977 = vunpack.c.l.b16 %v904
    %v1978 = vunpack.c.h.b16 %v904
    %v1979 = vunpack.c.l.b16 %v905
    %v1980 = vunpack.c.h.b16 %v905
    %v1981 = vunpack.c.l.b16 %v906
    %v1982 = vunpack.c.h.b16 %v906
    %v1983 = vunpack.c.l.b16 %v907
    %v1984 = vunpack.c.h.b16 %v907
    %v1985 = vunpack.c.l.b16 %v908
    %v1986 = vunpack.c.h.b16 %v908
    %v1987 = vunpack.c.l.b16 %v909
    %v1988 = vunpack.c.h.b16 %v909
    %v1989 = vunpack.c.l.b16 %v910
    %v1990 = vunpack.c.h.b16 %v910
    %v1991 = vunpack.c.l.b16 %v911
    %v1992 = vunpack.c.h.b16 %v911
    %v1993 = vunpack.c.l.b16 %v912
    %v1994 = vunpack.c.h.b16 %v912
    %v1995 = vunpack.c.l.b16 %v913
    %v1996 = vunpack.c.h.b16 %v913
    %v1997 = vunpack.c.l.b16 %v914
    %v1998 = vunpack.c.h.b16 %v914
    %v1999 = vunpack.c.l.b16 %v915
    %v2000 = vunpack.c.h.b16 %v915
    %v2001 = vunpack.c.l.b16 %v916
    %v2002 = vunpack.c.h.b16 %v916
    %v2003 = vunpack.c.l.b16 %v917
    %v2004 = vunpack.c.h.b16 %v917
    %v2005 = vunpack.c.l.b16 %v918
    %v2006 = vunpack.c.h.b16 %v918
    %v2007 = vpack.c.b16 %v1503, %v1495
    %v2008 = vpack.c.b16 %v1504, %v1496
    %v2009 = vpack.c.b16 %v1505, %v1497
    %v2010 = vpack.c.b16 %v1506, %v1498
    %v2011 = vpack.c.b16 %v1507, %v1499
    %v2012 = vpack.c.b16 %v1508, %v1500
    %v2013 = vpack.c.b16 %v1509, %v1501
    %v2014 = vpack.c.b16 %v1510, %v1502
    %v2015 = vpack.c.b16 %v1519, %v1511
    %v2016 = vpack.c.b16 %v1520, %v1512
    %v2017 = vpack.c.b16 %v1521, %v1513
    %v2018 = vpack.c.b16 %v1522, %v1514
    %v2019 = vpack.c.b16 %v1523, %v1515
    %v2020 = vpack.c.b16 %v1524, %v1516
    %v2021 = vpack.c.b16 %v1525, %v1517
    %v2022 = vpack.c.b16 %v1526, %v1518
    %v2023 = vpack.c.b16 %v1535, %v1527
    %v2024 = vpack.c.b16 %v1536, %v1528
    %v2025 = vpack.c.b16 %v1537, %v1529
    %v2026 = vpack.c.b16 %v1538, %v1530
    %v2027 = vpack.c.b16 %v1539, %v1531
    %v2028 = vpack.c.b16 %v1540, %v1532
    %v2029 = vpack.c.b16 %v1541, %v1533
    %v2030 = vpack.c.b16 %v1542, %v1534
    %v2031 = vpack.c.b16 %v1551, %v1543
    %v2032 = vpack.c.b16 %v1552, %v1544
    %v2033 = vpack.c.b16 %v1553, %v1545
    %v2034 = vpack.c.b16 %v1554, %v1546
    %v2035 = vpack.c.b16 %v1555, %v1547
    %v2036 = vpack.c.b16 %v1556, %v1548
    %v2037 = vpack.c.b16 %v1557, %v1549
    %v2038 = vpack.c.b16 %v1558, %v1550
    %v2039 = vpack.c.b16 %v1567, %v1559
    %v2040 = vpack.c.b16 %v1568, %v1560
    %v2041 = vpack.c.b16 %v1569, %v1561
    %v2042 = vpack.c.b16 %v1570, %v1562
    %v2043 = vpack.c.b16 %v1571, %v1563
    %v2044 = vpack.c.b16 %v1572, %v1564
    %v2045 = vpack.c.b16 %v1573, %v1565
    %v2046 = vpack.c.b16 %v1574, %v1566
    %v2047 = vpack.c.b16 %v1583, %v1575
    %v2048 = vpack.c.b16 %v1584, %v1576
    %v2049 = vpack.c.b16 %v1585, %v1577
    %v2050 = vpack.c.b16 %v1586, %v1578
    %v2051 = vpack.c.b16 %v1587, %v1579
    %v2052 = vpack.c.b16 %v1588, %v1580
    %v2053 = vpack.c.b16 %v1589, %v1581
    %v2054 = vpack.c.b16 %v1590, %v1582
    %v2055 = vpack.c.b16 %v1599, %v1591
    %v2056 = vpack.c.b16 %v1600, %v1592
    %v2057 = vpack.c.b16 %v1601, %v1593
    %v2058 = vpack.c.b16 %v1602, %v1594
    %v2059 = vpack.c.b16 %v1603, %v1595
    %v2060 = vpack.c.b16 %v1604, %v1596
    %v2061 = vpack.c.b16 %v1605, %v1597
    %v2062 = vpack.c.b16 %v1606, %v1598
    %v2063 = vpack.c.b16 %v1615, %v1607
    %v2064 = vpack.c.b16 %v1616, %v1608
    %v2065 = vpack.c.b16 %v1617, %v1609
    %v2066 = vpack.c.b16 %v1618, %v1610
    %v2067 = vpack.c.b16 %v1619, %v1611
    %v2068 = vpack.c.b16 %v1620, %v1612
    %v2069 = vpack.c.b16 %v1621, %v1613
    %v2070 = vpack.c.b16 %v1622, %v1614
    %v2071 = vpack.c.b16 %v1631, %v1623
    %v2072 = vpack.c.b16 %v1632, %v1624
    %v2073 = vpack.c.b16 %v1633, %v1625
    %v2074 = vpack.c.b16 %v1634, %v1626
    %v2075 = vpack.c.b16 %v1635, %v1627
    %v2076 = vpack.c.b16 %v1636, %v1628
    %v2077 = vpack.c.b16 %v1637, %v1629
    %v2078 = vpack.c.b16 %v1638, %v1630
    %v2079 = vpack.c.b16 %v1647, %v1639
    %v2080 = vpack.c.b16 %v1648, %v1640
    %v2081 = vpack.c.b16 %v1649, %v1641
    %v2082 = vpack.c.b16 %v1650, %v1642
    %v2083 = vpack.c.b16 %v1651, %v1643
    %v2084 = vpack.c.b16 %v1652, %v1644
    %v2085 = vpack.c.b16 %v1653, %v1645
    %v2086 = vpack.c.b16 %v1654, %v1646
    %v2087 = vpack.c.b16 %v1663, %v1655
    %v2088 = vpack.c.b16 %v1664, %v1656
    %v2089 = vpack.c.b16 %v1665, %v1657
    %v2090 = vpack.c.b16 %v1666, %v1658
    %v2091 = vpack.c.b16 %v1667, %v1659
    %v2092 = vpack.c.b16 %v1668, %v1660
    %v2093 = vpack.c.b16 %v1669, %v1661
    %v2094 = vpack.c.b16 %v1670, %v1662
    %v2095 = vpack.c.b16 %v1679, %v1671
    %v2096 = vpack.c.b16 %v1680, %v1672
    %v2097 = vpack.c.b16 %v1681, %v1673
    %v2098 = vpack.c.b16 %v1682, %v1674
    %v2099 = vpack.c.b16 %v1683, %v1675
    %v2100 = vpack.c.b16 %v1684, %v1676
    %v2101 = vpack.c.b16 %v1685, %v1677
    %v2102 = vpack.c.b16 %v1686, %v1678
    %v2103 = vpack.c.b16 %v1695, %v1687
    %v2104 = vpack.c.b16 %v1696, %v1688
    %v2105 = vpack.c.b16 %v1697, %v1689
    %v2106 = vpack.c.b16 %v1698, %v1690
    %v2107 = vpack.c.b16 %v1699, %v1691
    %v2108 = vpack.c.b16 %v1700, %v1692
    %v2109 = vpack.c.b16 %v1701, %v1693
    %v2110 = vpack.c.b16 %v1702, %v1694
    %v2111 = vpack.c.b16 %v1711, %v1703
    %v2112 = vpack.c.b16 %v1712, %v1704
    %v2113 = vpack.c.b16 %v1713, %v1705
    %v2114 = vpack.c.b16 %v1714, %v1706
    %v2115 = vpack.c.b16 %v1715, %v1707
    %v2116 = vpack.c.b16 %v1716, %v1708
    %v2117 = vpack.c.b16 %v1717, %v1709
    %v2118 = vpack.c.b16 %v1718, %v1710
    %v2119 = vpack.c.b16 %v1727, %v1719
    %v2120 = vpack.c.b16 %v1728, %v1720
    %v2121 = vpack.c.b16 %v1729, %v1721
    %v2122 = vpack.c.b16 %v1730, %v1722
    %v2123 = vpack.c.b16 %v1731, %v1723
    %v2124 = vpack.c.b16 %v1732, %v1724
    %v2125 = vpack.c.b16 %v1733, %v1725
    %v2126 = vpack.c.b16 %v1734, %v1726
    %v2127 = vpack.c.b16 %v1743, %v1735
    %v2128 = vpack.c.b16 %v1744, %v1736
    %v2129 = vpack.c.b16 %v1745, %v1737
    %v2130 = vpack.c.b16 %v1746, %v1738
    %v2131 = vpack.c.b16 %v1747, %v1739
    %v2132 = vpack.c.b16 %v1748, %v1740
    %v2133 = vpack.c.b16 %v1749, %v1741
    %v2134 = vpack.c.b16 %v1750, %v1742
    %v2135 = vpack.c.b16 %v1759, %v1751
    %v2136 = vpack.c.b16 %v1760, %v1752
    %v2137 = vpack.c.b16 %v1761, %v1753
    %v2138 = vpack.c.b16 %v1762, %v1754
    %v2139 = vpack.c.b16 %v1763, %v1755
    %v2140 = vpack.c.b16 %v1764, %v1756
    %v2141 = vpack.c.b16 %v1765, %v1757
    %v2142 = vpack.c.b16 %v1766, %v1758
    %v2143 = vpack.c.b16 %v1775, %v1767
    %v2144 = vpack.c.b16 %v1776, %v1768
    %v2145 = vpack.c.b16 %v1777, %v1769
    %v2146 = vpack.c.b16 %v1778, %v1770
    %v2147 = vpack.c.b16 %v1779, %v1771
    %v2148 = vpack.c.b16 %v1780, %v1772
    %v2149 = vpack.c.b16 %v1781, %v1773
    %v2150 = vpack.c.b16 %v1782, %v1774
    %v2151 = vpack.c.b16 %v1791, %v1783
    %v2152 = vpack.c.b16 %v1792, %v1784
    %v2153 = vpack.c.b16 %v1793, %v1785
    %v2154 = vpack.c.b16 %v1794, %v1786
    %v2155 = vpack.c.b16 %v1795, %v1787
    %v2156 = vpack.c.b16 %v1796, %v1788
    %v2157 = vpack.c.b16 %v1797, %v1789
    %v2158 = vpack.c.b16 %v1798, %v1790
    %v2159 = vpack.c.b16 %v1807, %v1799
    %v2160 = vpack.c.b16 %v1808, %v1800
    %v2161 = vpack.c.b16 %v1809, %v1801
    %v2162 = vpack.c.b16 %v1810, %v1802
    %v2163 = vpack.c.b16 %v1811, %v1803
    %v2164 = vpack.c.b16 %v1812, %v1804
    %v2165 = vpack.c.b16 %v1813, %v1805
    %v2166 = vpack.c.b16 %v1814, %v1806
    %v2167 = vpack.c.b16 %v1823, %v1815
    %v2168 = vpack.c.b16 %v1824, %v1816
    %v2169 = vpack.c.b16 %v1825, %v1817
    %v2170 = vpack.c.b16 %v1826, %v1818
    %v2171 = vpack.c.b16 %v1827, %v1819
    %v2172 = vpack.c.b16 %v1828, %v1820
    %v2173 = vpack.c.b16 %v1829, %v1821
    %v2174 = vpack.c.b16 %v1830, %v1822
    %v2175 = vpack.c.b16 %v1839, %v1831
    %v2176 = vpack.c.b16 %v1840, %v1832
    %v2177 = vpack.c.b16 %v1841, %v1833
    %v2178 = vpack.c.b16 %v1842, %v1834
    %v2179 = vpack.c.b16 %v1843, %v1835
    %v2180 = vpack.c.b16 %v1844, %v1836
    %v2181 = vpack.c.b16 %v1845, %v1837
    %v2182 = vpack.c.b16 %v1846, %v1838
    %v2183 = vpack.c.b16 %v1855, %v1847
    %v2184 = vpack.c.b16 %v1856, %v1848
    %v2185 = vpack.c.b16 %v1857, %v1849
    %v2186 = vpack.c.b16 %v1858, %v1850
    %v2187 = vpack.c.b16 %v1859, %v1851
    %v2188 = vpack.c.b16 %v1860, %v1852
    %v2189 = vpack.c.b16 %v1861, %v1853
    %v2190 = vpack.c.b16 %v1862, %v1854
    %v2191 = vpack.c.b16 %v1871, %v1863
    %v2192 = vpack.c.b16 %v1872, %v1864
    %v2193 = vpack.c.b16 %v1873, %v1865
    %v2194 = vpack.c.b16 %v1874, %v1866
    %v2195 = vpack.c.b16 %v1875, %v1867
    %v2196 = vpack.c.b16 %v1876, %v1868
    %v2197 = vpack.c.b16 %v1877, %v1869
    %v2198 = vpack.c.b16 %v1878, %v1870
    %v2199 = vpack.c.b16 %v1887, %v1879
    %v2200 = vpack.c.b16 %v1888, %v1880
    %v2201 = vpack.c.b16 %v1889, %v1881
    %v2202 = vpack.c.b16 %v1890, %v1882
    %v2203 = vpack.c.b16 %v1891, %v1883
    %v2204 = vpack.c.b16 %v1892, %v1884
    %v2205 = vpack.c.b16 %v1893, %v1885
    %v2206 = vpack.c.b16 %v1894, %v1886
    %v2207 = vpack.c.b16 %v1903, %v1895
    %v2208 = vpack.c.b16 %v1904, %v1896
    %v2209 = vpack.c.b16 %v1905, %v1897
    %v2210 = vpack.c.b16 %v1906, %v1898
    %v2211 = vpack.c.b16 %v1907, %v1899
    %v2212 = vpack.c.b16 %v1908, %v1900
    %v2213 = vpack.c.b16 %v1909, %v1901
    %v2214 = vpack.c.b16 %v1910, %v1902
    %v2215 = vpack.c.b16 %v1919, %v1911
    %v2216 = vpack.c.b16 %v1920, %v1912
    %v2217 = vpack.c.b16 %v1921, %v1913
    %v2218 = vpack.c.b16 %v1922, %v1914
    %v2219 = vpack.c.b16 %v1923, %v1915
    %v2220 = vpack.c.b16 %v1924, %v1916
    %v2221 = vpack.c.b16 %v1925, %v1917
    %v2222 = vpack.c.b16 %v1926, %v1918
    %v2223 = vpack.c.b16 %v1935, %v1927
    %v2224 = vpack.c.b16 %v1936, %v1928
    %v2225 = vpack.c.b16 %v1937, %v1929
    %v2226 = vpack.c.b16 %v1938, %v1930
    %v2227 = vpack.c.b16 %v1939, %v1931
    %v2228 = vpack.c.b16 %v1940, %v1932
    %v2229 = vpack.c.b16 %v1941, %v1933
    %v2230 = vpack.c.b16 %v1942, %v1934
    %v2231 = vpack.c.b16 %v1951, %v1943
    %v2232 = vpack.c.b16 %v1952, %v1944
    %v2233 = vpack.c.b16 %v1953, %v1945
    %v2234 = vpack.c.b16 %v1954, %v1946
    %v2235 = vpack.c.b16 %v1955, %v1947
    %v2236 = vpack.c.b16 %v1956, %v1948
    %v2237 = vpack.c.b16 %v1957, %v1949
    %v2238 = vpack.c.b16 %v1958, %v1950
    %v2239 = vpack.c.b16 %v1967, %v1959
    %v2240 = vpack.c.b16 %v1968, %v1960
    %v2241 = vpack.c.b16 %v1969, %v1961
    %v2242 = vpack.c.b16 %v1970, %v1962
    %v2243 = vpack.c.b16 %v1971, %v1963
    %v2244 = vpack.c.b16 %v1972, %v1964
    %v2245 = vpack.c.b16 %v1973, %v1965
    %v2246 = vpack.c.b16 %v1974, %v1966
    %v2247 = vpack.c.b16 %v1983, %v1975
    %v2248 = vpack.c.b16 %v1984, %v1976
    %v2249 = vpack.c.b16 %v1985, %v1977
    %v2250 = vpack.c.b16 %v1986, %v1978
    %v2251 = vpack.c.b16 %v1987, %v1979
    %v2252 = vpack.c.b16 %v1988, %v1980
    %v2253 = vpack.c.b16 %v1989, %v1981
    %v2254 = vpack.c.b16 %v1990, %v1982
    %v2255 = vpack.c.b16 %v1999, %v1991
    %v2256 = vpack.c.b16 %v2000, %v1992
    %v2257 = vpack.c.b16 %v2001, %v1993
    %v2258 = vpack.c.b16 %v2002, %v1994
    %v2259 = vpack.c.b16 %v2003, %v1995
    %v2260 = vpack.c.b16 %v2004, %v1996
    %v2261 = vpack.c.b16 %v2005, %v1997
    %v2262 = vpack.c.b16 %v2006, %v1998
    %2519 = vmatprep.subr.bf16.mxu0 %v2008
    %2520 = vmatpush1.bf16.msra.mxu0 %v2007
    %2521 = vmatprep.subr.bf16.mxu0 %v2016
    %2522 = vmatpush1.bf16.msra.mxu0 %v2015
    %2523 = vmatprep.subr.bf16.mxu0 %v2024
    %2524 = vmatpush1.bf16.msra.mxu0 %v2023
    %2525 = vmatprep.subr.bf16.mxu0 %v2032
    %2526 = vmatpush1.bf16.msra.mxu0 %v2031
    %2527 = vmatprep.subr.bf16.mxu0 %v2040
    %2528 = vmatpush1.bf16.msra.mxu0 %v2039
    %2529 = vmatprep.subr.bf16.mxu0 %v2048
    %2530 = vmatpush1.bf16.msra.mxu0 %v2047
    %2531 = vmatprep.subr.bf16.mxu0 %v2056
    %2532 = vmatpush1.bf16.msra.mxu0 %v2055
    %2533 = vmatprep.subr.bf16.mxu0 %v2064
    %2534 = vmatpush1.bf16.msra.mxu0 %v2063
    %2535 = vmatprep.subr.bf16.mxu0 %v2072
    %2536 = vmatpush1.bf16.msra.mxu0 %v2071
    %2537 = vmatprep.subr.bf16.mxu0 %v2080
    %2538 = vmatpush1.bf16.msra.mxu0 %v2079
    %2539 = vmatprep.subr.bf16.mxu0 %v2088
    %2540 = vmatpush1.bf16.msra.mxu0 %v2087
    %2541 = vmatprep.subr.bf16.mxu0 %v2096
    %2542 = vmatpush1.bf16.msra.mxu0 %v2095
    %2543 = vmatprep.subr.bf16.mxu0 %v2104
    %2544 = vmatpush1.bf16.msra.mxu0 %v2103
    %2545 = vmatprep.subr.bf16.mxu0 %v2112
    %2546 = vmatpush1.bf16.msra.mxu0 %v2111
    %2547 = vmatprep.subr.bf16.mxu0 %v2120
    %2548 = vmatpush1.bf16.msra.mxu0 %v2119
    %2549 = vmatprep.subr.bf16.mxu0 %v2128
    %2550 = vmatpush1.bf16.msra.mxu0 %v2127
    %2551 = vmatprep.mubr.bf16.mxu0 %v1112
    %2552 = vmatmul.mubr.bf16.gmra.mrb[0].mxu0 %v1111
    %v2553 = vpop.f32.mrb[0].mxu0
    %v2554 = vadd.f32 0.0, %v2553
    %v2555 = vpop.f32.mrb[0].mxu0
    %v2556 = vadd.f32 0.0, %v2555
    %v2557 = vpop.f32.mrb[0].mxu0
    %v2558 = vadd.f32 0.0, %v2557
    %v2559 = vpop.f32.mrb[0].mxu0
    %v2560 = vadd.f32 0.0, %v2559
    %2561 = vmatprep.mubr.bf16.mxu0 %v1116
    %2562 = vmatmul.mubr.bf16.gmra.mrb[0].mxu0 %v1115
    %v2563 = vpop.f32.mrb[0].mxu0
    %v2564 = vadd.f32 0.0, %v2563
    %v2565 = vpop.f32.mrb[0].mxu0
    %v2566 = vadd.f32 0.0, %v2565
    %v2567 = vpop.f32.mrb[0].mxu0
    %v2568 = vadd.f32 0.0, %v2567
    %v2569 = vpop.f32.mrb[0].mxu0
    %v2570 = vadd.f32 0.0, %v2569
    %2571 = vmatprep.mubr.bf16.mxu0 %v1120
    %2572 = vmatmul.mubr.bf16.gmra.mrb[0].mxu0 %v1119
    %v2573 = vpop.f32.mrb[0].mxu0
    %v2574 = vadd.f32 0.0, %v2573
    %v2575 = vpop.f32.mrb[0].mxu0
    %v2576 = vadd.f32 0.0, %v2575
    %v2577 = vpop.f32.mrb[0].mxu0
    %v2578 = vadd.f32 0.0, %v2577
    %v2579 = vpop.f32.mrb[0].mxu0
    %v2580 = vadd.f32 0.0, %v2579
    %2581 = vmatprep.mubr.bf16.mxu0 %v1124
    %2582 = vmatmul.mubr.bf16.gmra.mrb[0].mxu0 %v1123
    %v2583 = vpop.f32.mrb[0].mxu0
    %v2584 = vadd.f32 0.0, %v2583
    %v2585 = vpop.f32.mrb[0].mxu0
    %v2586 = vadd.f32 0.0, %v2585
    %v2587 = vpop.f32.mrb[0].mxu0
    %v2588 = vadd.f32 0.0, %v2587
    %v2589 = vpop.f32.mrb[0].mxu0
    %v2590 = vadd.f32 0.0, %v2589
    %2591 = vmatprep.mubr.bf16.mxu0 %v1128
    %2592 = vmatmul.mubr.bf16.gmra.mrb[0].mxu0 %v1127
    %v2593 = vpop.f32.mrb[0].mxu0
    %v2594 = vadd.f32 0.0, %v2593
    %v2595 = vpop.f32.mrb[0].mxu0
    %v2596 = vadd.f32 0.0, %v2595
    %v2597 = vpop.f32.mrb[0].mxu0
    %v2598 = vadd.f32 0.0, %v2597
    %v2599 = vpop.f32.mrb[0].mxu0
    %v2600 = vadd.f32 0.0, %v2599
    %2601 = vmatprep.mubr.bf16.mxu0 %v1132
    %2602 = vmatmul.mubr.bf16.gmra.mrb[0].mxu0 %v1131
    %v2603 = vpop.f32.mrb[0].mxu0
    %v2604 = vadd.f32 0.0, %v2603
    %v2605 = vpop.f32.mrb[0].mxu0
    %v2606 = vadd.f32 0.0, %v2605
    %v2607 = vpop.f32.mrb[0].mxu0
    %v2608 = vadd.f32 0.0, %v2607
    %v2609 = vpop.f32.mrb[0].mxu0
    %v2610 = vadd.f32 0.0, %v2609
    %2611 = vmatprep.mubr.bf16.mxu0 %v1136
    %2612 = vmatmul.mubr.bf16.gmra.mrb[0].mxu0 %v1135
    %v2613 = vpop.f32.mrb[0].mxu0
    %v2614 = vadd.f32 0.0, %v2613
    %v2615 = vpop.f32.mrb[0].mxu0
    %v2616 = vadd.f32 0.0, %v2615
    %v2617 = vpop.f32.mrb[0].mxu0
    %v2618 = vadd.f32 0.0, %v2617
    %v2619 = vpop.f32.mrb[0].mxu0
    %v2620 = vadd.f32 0.0, %v2619
    %2621 = vmatprep.mubr.bf16.mxu0 %v1140
    %2622 = vmatmul.mubr.bf16.gmra.mrb[0].mxu0 %v1139
    %v2623 = vpop.f32.mrb[0].mxu0
    %v2624 = vadd.f32 0.0, %v2623
    %v2625 = vpop.f32.mrb[0].mxu0
    %v2626 = vadd.f32 0.0, %v2625
    %v2627 = vpop.f32.mrb[0].mxu0
    %v2628 = vadd.f32 0.0, %v2627
    %v2629 = vpop.f32.mrb[0].mxu0
    %v2630 = vadd.f32 0.0, %v2629
    %2631 = vmatprep.mubr.bf16.mxu0 %v1144
    %2632 = vmatmul.mubr.bf16.gmra.mrb[0].mxu0 %v1143
    %v2633 = vpop.f32.mrb[0].mxu0
    %v2634 = vadd.f32 0.0, %v2633
    %v2635 = vpop.f32.mrb[0].mxu0
    %v2636 = vadd.f32 0.0, %v2635
    %v2637 = vpop.f32.mrb[0].mxu0
    %v2638 = vadd.f32 0.0, %v2637
    %v2639 = vpop.f32.mrb[0].mxu0
    %v2640 = vadd.f32 0.0, %v2639
    %2641 = vmatprep.mubr.bf16.mxu0 %v1148
    %2642 = vmatmul.mubr.bf16.gmra.mrb[0].mxu0 %v1147
    %v2643 = vpop.f32.mrb[0].mxu0
    %v2644 = vadd.f32 0.0, %v2643
    %v2645 = vpop.f32.mrb[0].mxu0
    %v2646 = vadd.f32 0.0, %v2645
    %v2647 = vpop.f32.mrb[0].mxu0
    %v2648 = vadd.f32 0.0, %v2647
    %v2649 = vpop.f32.mrb[0].mxu0
    %v2650 = vadd.f32 0.0, %v2649
    %2651 = vmatprep.mubr.bf16.mxu0 %v1152
    %2652 = vmatmul.mubr.bf16.gmra.mrb[0].mxu0 %v1151
    %v2653 = vpop.f32.mrb[0].mxu0
    %v2654 = vadd.f32 0.0, %v2653
    %v2655 = vpop.f32.mrb[0].mxu0
    %v2656 = vadd.f32 0.0, %v2655
    %v2657 = vpop.f32.mrb[0].mxu0
    %v2658 = vadd.f32 0.0, %v2657
    %v2659 = vpop.f32.mrb[0].mxu0
    %v2660 = vadd.f32 0.0, %v2659
    %2661 = vmatprep.mubr.bf16.mxu0 %v1156
    %2662 = vmatmul.mubr.bf16.gmra.mrb[0].mxu0 %v1155
    %v2663 = vpop.f32.mrb[0].mxu0
    %v2664 = vadd.f32 0.0, %v2663
    %v2665 = vpop.f32.mrb[0].mxu0
    %v2666 = vadd.f32 0.0, %v2665
    %v2667 = vpop.f32.mrb[0].mxu0
    %v2668 = vadd.f32 0.0, %v2667
    %v2669 = vpop.f32.mrb[0].mxu0
    %v2670 = vadd.f32 0.0, %v2669
    %2671 = vmatprep.mubr.bf16.mxu0 %v1160
    %2672 = vmatmul.mubr.bf16.gmra.mrb[0].mxu0 %v1159
    %v2673 = vpop.f32.mrb[0].mxu0
    %v2674 = vadd.f32 0.0, %v2673
    %v2675 = vpop.f32.mrb[0].mxu0
    %v2676 = vadd.f32 0.0, %v2675
    %v2677 = vpop.f32.mrb[0].mxu0
    %v2678 = vadd.f32 0.0, %v2677
    %v2679 = vpop.f32.mrb[0].mxu0
    %v2680 = vadd.f32 0.0, %v2679
    %2681 = vmatprep.mubr.bf16.mxu0 %v1164
    %2682 = vmatmul.mubr.bf16.gmra.mrb[0].mxu0 %v1163
    %v2683 = vpop.f32.mrb[0].mxu0
    %v2684 = vadd.f32 0.0, %v2683
    %v2685 = vpop.f32.mrb[0].mxu0
    %v2686 = vadd.f32 0.0, %v2685
    %v2687 = vpop.f32.mrb[0].mxu0
    %v2688 = vadd.f32 0.0, %v2687
    %v2689 = vpop.f32.mrb[0].mxu0
    %v2690 = vadd.f32 0.0, %v2689
    %2691 = vmatprep.mubr.bf16.mxu0 %v1168
    %2692 = vmatmul.mubr.bf16.gmra.mrb[0].mxu0 %v1167
    %v2693 = vpop.f32.mrb[0].mxu0
    %v2694 = vadd.f32 0.0, %v2693
    %v2695 = vpop.f32.mrb[0].mxu0
    %v2696 = vadd.f32 0.0, %v2695
    %v2697 = vpop.f32.mrb[0].mxu0
    %v2698 = vadd.f32 0.0, %v2697
    %v2699 = vpop.f32.mrb[0].mxu0
    %v2700 = vadd.f32 0.0, %v2699
    %2701 = vmatprep.mubr.bf16.mxu0 %v1172
    %2702 = vmatmul.mubr.bf16.gmra.mrb[0].mxu0 %v1171
    %v2703 = vpop.f32.mrb[0].mxu0
    %v2704 = vadd.f32 0.0, %v2703
    %v2705 = vpop.f32.mrb[0].mxu0
    %v2706 = vadd.f32 0.0, %v2705
    %v2707 = vpop.f32.mrb[0].mxu0
    %v2708 = vadd.f32 0.0, %v2707
    %v2709 = vpop.f32.mrb[0].mxu0
    %v2710 = vadd.f32 0.0, %v2709
    %2711 = vdwg.mxu0
    %2712 = vmatprep.subr.bf16.mxu0 %v2136
    %2713 = vmatpush1.bf16.msra.mxu0 %v2135
    %2714 = vmatprep.subr.bf16.mxu0 %v2144
    %2715 = vmatpush1.bf16.msra.mxu0 %v2143
    %2716 = vmatprep.subr.bf16.mxu0 %v2152
    %2717 = vmatpush1.bf16.msra.mxu0 %v2151
    %2718 = vmatprep.subr.bf16.mxu0 %v2160
    %2719 = vmatpush1.bf16.msra.mxu0 %v2159
    %2720 = vmatprep.subr.bf16.mxu0 %v2168
    %2721 = vmatpush1.bf16.msra.mxu0 %v2167
    %2722 = vmatprep.subr.bf16.mxu0 %v2176
    %2723 = vmatpush1.bf16.msra.mxu0 %v2175
    %2724 = vmatprep.subr.bf16.mxu0 %v2184
    %2725 = vmatpush1.bf16.msra.mxu0 %v2183
    %2726 = vmatprep.subr.bf16.mxu0 %v2192
    %2727 = vmatpush1.bf16.msra.mxu0 %v2191
    %2728 = vmatprep.subr.bf16.mxu0 %v2200
    %2729 = vmatpush1.bf16.msra.mxu0 %v2199
    %2730 = vmatprep.subr.bf16.mxu0 %v2208
    %2731 = vmatpush1.bf16.msra.mxu0 %v2207
    %2732 = vmatprep.subr.bf16.mxu0 %v2216
    %2733 = vmatpush1.bf16.msra.mxu0 %v2215
    %2734 = vmatprep.subr.bf16.mxu0 %v2224
    %2735 = vmatpush1.bf16.msra.mxu0 %v2223
    %2736 = vmatprep.subr.bf16.mxu0 %v2232
    %2737 = vmatpush1.bf16.msra.mxu0 %v2231
    %2738 = vmatprep.subr.bf16.mxu0 %v2240
    %2739 = vmatpush1.bf16.msra.mxu0 %v2239
    %2740 = vmatprep.subr.bf16.mxu0 %v2248
    %2741 = vmatpush1.bf16.msra.mxu0 %v2247
    %2742 = vmatprep.subr.bf16.mxu0 %v2256
    %2743 = vmatpush1.bf16.msra.mxu0 %v2255
    %2744 = vmatprep.mubr.bf16.mxu0 %v1114
    %2745 = vmatmul.mubr.bf16.gmra.mrb[0].mxu0 %v1113
    %v2746 = vpop.f32.mrb[0].mxu0
    %v2747 = vadd.f32 %v2554, %v2746
    %v2748 = vpop.f32.mrb[0].mxu0
    %v2749 = vadd.f32 %v2556, %v2748
    %v2750 = vpop.f32.mrb[0].mxu0
    %v2751 = vadd.f32 %v2558, %v2750
    %v2752 = vpop.f32.mrb[0].mxu0
    %v2753 = vadd.f32 %v2560, %v2752
    %2754 = vmatprep.mubr.bf16.mxu0 %v1118
    %2755 = vmatmul.mubr.bf16.gmra.mrb[0].mxu0 %v1117
    %v2756 = vpop.f32.mrb[0].mxu0
    %v2757 = vadd.f32 %v2564, %v2756
    %v2758 = vpop.f32.mrb[0].mxu0
    %v2759 = vadd.f32 %v2566, %v2758
    %v2760 = vpop.f32.mrb[0].mxu0
    %v2761 = vadd.f32 %v2568, %v2760
    %v2762 = vpop.f32.mrb[0].mxu0
    %v2763 = vadd.f32 %v2570, %v2762
    %2764 = vmatprep.mubr.bf16.mxu0 %v1122
    %2765 = vmatmul.mubr.bf16.gmra.mrb[0].mxu0 %v1121
    %v2766 = vpop.f32.mrb[0].mxu0
    %v2767 = vadd.f32 %v2574, %v2766
    %v2768 = vpop.f32.mrb[0].mxu0
    %v2769 = vadd.f32 %v2576, %v2768
    %v2770 = vpop.f32.mrb[0].mxu0
    %v2771 = vadd.f32 %v2578, %v2770
    %v2772 = vpop.f32.mrb[0].mxu0
    %v2773 = vadd.f32 %v2580, %v2772
    %2774 = vmatprep.mubr.bf16.mxu0 %v1126
    %2775 = vmatmul.mubr.bf16.gmra.mrb[0].mxu0 %v1125
    %v2776 = vpop.f32.mrb[0].mxu0
    %v2777 = vadd.f32 %v2584, %v2776
    %v2778 = vpop.f32.mrb[0].mxu0
    %v2779 = vadd.f32 %v2586, %v2778
    %v2780 = vpop.f32.mrb[0].mxu0
    %v2781 = vadd.f32 %v2588, %v2780
    %v2782 = vpop.f32.mrb[0].mxu0
    %v2783 = vadd.f32 %v2590, %v2782
    %2784 = vmatprep.mubr.bf16.mxu0 %v1130
    %2785 = vmatmul.mubr.bf16.gmra.mrb[0].mxu0 %v1129
    %v2786 = vpop.f32.mrb[0].mxu0
    %v2787 = vadd.f32 %v2594, %v2786
    %v2788 = vpop.f32.mrb[0].mxu0
    %v2789 = vadd.f32 %v2596, %v2788
    %v2790 = vpop.f32.mrb[0].mxu0
    %v2791 = vadd.f32 %v2598, %v2790
    %v2792 = vpop.f32.mrb[0].mxu0
    %v2793 = vadd.f32 %v2600, %v2792
    %2794 = vmatprep.mubr.bf16.mxu0 %v1134
    %2795 = vmatmul.mubr.bf16.gmra.mrb[0].mxu0 %v1133
    %v2796 = vpop.f32.mrb[0].mxu0
    %v2797 = vadd.f32 %v2604, %v2796
    %v2798 = vpop.f32.mrb[0].mxu0
    %v2799 = vadd.f32 %v2606, %v2798
    %v2800 = vpop.f32.mrb[0].mxu0
    %v2801 = vadd.f32 %v2608, %v2800
    %v2802 = vpop.f32.mrb[0].mxu0
    %v2803 = vadd.f32 %v2610, %v2802
    %2804 = vmatprep.mubr.bf16.mxu0 %v1138
    %2805 = vmatmul.mubr.bf16.gmra.mrb[0].mxu0 %v1137
    %v2806 = vpop.f32.mrb[0].mxu0
    %v2807 = vadd.f32 %v2614, %v2806
    %v2808 = vpop.f32.mrb[0].mxu0
    %v2809 = vadd.f32 %v2616, %v2808
    %v2810 = vpop.f32.mrb[0].mxu0
    %v2811 = vadd.f32 %v2618, %v2810
    %v2812 = vpop.f32.mrb[0].mxu0
    %v2813 = vadd.f32 %v2620, %v2812
    %2814 = vmatprep.mubr.bf16.mxu0 %v1142
    %2815 = vmatmul.mubr.bf16.gmra.mrb[0].mxu0 %v1141
    %v2816 = vpop.f32.mrb[0].mxu0
    %v2817 = vadd.f32 %v2624, %v2816
    %v2818 = vpop.f32.mrb[0].mxu0
    %v2819 = vadd.f32 %v2626, %v2818
    %v2820 = vpop.f32.mrb[0].mxu0
    %v2821 = vadd.f32 %v2628, %v2820
    %v2822 = vpop.f32.mrb[0].mxu0
    %v2823 = vadd.f32 %v2630, %v2822
    %2824 = vmatprep.mubr.bf16.mxu0 %v1146
    %2825 = vmatmul.mubr.bf16.gmra.mrb[0].mxu0 %v1145
    %v2826 = vpop.f32.mrb[0].mxu0
    %v2827 = vadd.f32 %v2634, %v2826
    %v2828 = vpop.f32.mrb[0].mxu0
    %v2829 = vadd.f32 %v2636, %v2828
    %v2830 = vpop.f32.mrb[0].mxu0
    %v2831 = vadd.f32 %v2638, %v2830
    %v2832 = vpop.f32.mrb[0].mxu0
    %v2833 = vadd.f32 %v2640, %v2832
    %2834 = vmatprep.mubr.bf16.mxu0 %v1150
    %2835 = vmatmul.mubr.bf16.gmra.mrb[0].mxu0 %v1149
    %v2836 = vpop.f32.mrb[0].mxu0
    %v2837 = vadd.f32 %v2644, %v2836
    %v2838 = vpop.f32.mrb[0].mxu0
    %v2839 = vadd.f32 %v2646, %v2838
    %v2840 = vpop.f32.mrb[0].mxu0
    %v2841 = vadd.f32 %v2648, %v2840
    %v2842 = vpop.f32.mrb[0].mxu0
    %v2843 = vadd.f32 %v2650, %v2842
    %2844 = vmatprep.mubr.bf16.mxu0 %v1154
    %2845 = vmatmul.mubr.bf16.gmra.mrb[0].mxu0 %v1153
    %v2846 = vpop.f32.mrb[0].mxu0
    %v2847 = vadd.f32 %v2654, %v2846
    %v2848 = vpop.f32.mrb[0].mxu0
    %v2849 = vadd.f32 %v2656, %v2848
    %v2850 = vpop.f32.mrb[0].mxu0
    %v2851 = vadd.f32 %v2658, %v2850
    %v2852 = vpop.f32.mrb[0].mxu0
    %v2853 = vadd.f32 %v2660, %v2852
    %2854 = vmatprep.mubr.bf16.mxu0 %v1158
    %2855 = vmatmul.mubr.bf16.gmra.mrb[0].mxu0 %v1157
    %v2856 = vpop.f32.mrb[0].mxu0
    %v2857 = vadd.f32 %v2664, %v2856
    %v2858 = vpop.f32.mrb[0].mxu0
    %v2859 = vadd.f32 %v2666, %v2858
    %v2860 = vpop.f32.mrb[0].mxu0
    %v2861 = vadd.f32 %v2668, %v2860
    %v2862 = vpop.f32.mrb[0].mxu0
    %v2863 = vadd.f32 %v2670, %v2862
    %2864 = vmatprep.mubr.bf16.mxu0 %v1162
    %2865 = vmatmul.mubr.bf16.gmra.mrb[0].mxu0 %v1161
    %v2866 = vpop.f32.mrb[0].mxu0
    %v2867 = vadd.f32 %v2674, %v2866
    %v2868 = vpop.f32.mrb[0].mxu0
    %v2869 = vadd.f32 %v2676, %v2868
    %v2870 = vpop.f32.mrb[0].mxu0
    %v2871 = vadd.f32 %v2678, %v2870
    %v2872 = vpop.f32.mrb[0].mxu0
    %v2873 = vadd.f32 %v2680, %v2872
    %2874 = vmatprep.mubr.bf16.mxu0 %v1166
    %2875 = vmatmul.mubr.bf16.gmra.mrb[0].mxu0 %v1165
    %v2876 = vpop.f32.mrb[0].mxu0
    %v2877 = vadd.f32 %v2684, %v2876
    %v2878 = vpop.f32.mrb[0].mxu0
    %v2879 = vadd.f32 %v2686, %v2878
    %v2880 = vpop.f32.mrb[0].mxu0
    %v2881 = vadd.f32 %v2688, %v2880
    %v2882 = vpop.f32.mrb[0].mxu0
    %v2883 = vadd.f32 %v2690, %v2882
    %2884 = vmatprep.mubr.bf16.mxu0 %v1170
    %2885 = vmatmul.mubr.bf16.gmra.mrb[0].mxu0 %v1169
    %v2886 = vpop.f32.mrb[0].mxu0
    %v2887 = vadd.f32 %v2694, %v2886
    %v2888 = vpop.f32.mrb[0].mxu0
    %v2889 = vadd.f32 %v2696, %v2888
    %v2890 = vpop.f32.mrb[0].mxu0
    %v2891 = vadd.f32 %v2698, %v2890
    %v2892 = vpop.f32.mrb[0].mxu0
    %v2893 = vadd.f32 %v2700, %v2892
    %2894 = vmatprep.mubr.bf16.mxu0 %v1174
    %2895 = vmatmul.mubr.bf16.gmra.mrb[0].mxu0 %v1173
    %v2896 = vpop.f32.mrb[0].mxu0
    %v2897 = vadd.f32 %v2704, %v2896
    %v2898 = vpop.f32.mrb[0].mxu0
    %v2899 = vadd.f32 %v2706, %v2898
    %v2900 = vpop.f32.mrb[0].mxu0
    %v2901 = vadd.f32 %v2708, %v2900
    %v2902 = vpop.f32.mrb[0].mxu0
    %v2903 = vadd.f32 %v2710, %v2902
    %2904 = vdwg.mxu0
    %2905 = vmatprep.subr.bf16.mxu0 %v2010
    %2906 = vmatpush1.bf16.msra.mxu0 %v2009
    %2907 = vmatprep.subr.bf16.mxu0 %v2018
    %2908 = vmatpush1.bf16.msra.mxu0 %v2017
    %2909 = vmatprep.subr.bf16.mxu0 %v2026
    %2910 = vmatpush1.bf16.msra.mxu0 %v2025
    %2911 = vmatprep.subr.bf16.mxu0 %v2034
    %2912 = vmatpush1.bf16.msra.mxu0 %v2033
    %2913 = vmatprep.subr.bf16.mxu0 %v2042
    %2914 = vmatpush1.bf16.msra.mxu0 %v2041
    %2915 = vmatprep.subr.bf16.mxu0 %v2050
    %2916 = vmatpush1.bf16.msra.mxu0 %v2049
    %2917 = vmatprep.subr.bf16.mxu0 %v2058
    %2918 = vmatpush1.bf16.msra.mxu0 %v2057
    %2919 = vmatprep.subr.bf16.mxu0 %v2066
    %2920 = vmatpush1.bf16.msra.mxu0 %v2065
    %2921 = vmatprep.subr.bf16.mxu0 %v2074
    %2922 = vmatpush1.bf16.msra.mxu0 %v2073
    %2923 = vmatprep.subr.bf16.mxu0 %v2082
    %2924 = vmatpush1.bf16.msra.mxu0 %v2081
    %2925 = vmatprep.subr.bf16.mxu0 %v2090
    %2926 = vmatpush1.bf16.msra.mxu0 %v2089
    %2927 = vmatprep.subr.bf16.mxu0 %v2098
    %2928 = vmatpush1.bf16.msra.mxu0 %v2097
    %2929 = vmatprep.subr.bf16.mxu0 %v2106
    %2930 = vmatpush1.bf16.msra.mxu0 %v2105
    %2931 = vmatprep.subr.bf16.mxu0 %v2114
    %2932 = vmatpush1.bf16.msra.mxu0 %v2113
    %2933 = vmatprep.subr.bf16.mxu0 %v2122
    %2934 = vmatpush1.bf16.msra.mxu0 %v2121
    %2935 = vmatprep.subr.bf16.mxu0 %v2130
    %2936 = vmatpush1.bf16.msra.mxu0 %v2129
    %2937 = vmatprep.mubr.bf16.mxu0 %v1112
    %2938 = vmatmul.mubr.bf16.gmra.mrb[0].mxu0 %v1111
    %v2939 = vpop.f32.mrb[0].mxu0
    %v2940 = vadd.f32 0.0, %v2939
    %v2941 = vpop.f32.mrb[0].mxu0
    %v2942 = vadd.f32 0.0, %v2941
    %v2943 = vpop.f32.mrb[0].mxu0
    %v2944 = vadd.f32 0.0, %v2943
    %v2945 = vpop.f32.mrb[0].mxu0
    %v2946 = vadd.f32 0.0, %v2945
    %2947 = vmatprep.mubr.bf16.mxu0 %v1116
    %2948 = vmatmul.mubr.bf16.gmra.mrb[0].mxu0 %v1115
    %v2949 = vpop.f32.mrb[0].mxu0
    %v2950 = vadd.f32 0.0, %v2949
    %v2951 = vpop.f32.mrb[0].mxu0
    %v2952 = vadd.f32 0.0, %v2951
    %v2953 = vpop.f32.mrb[0].mxu0
    %v2954 = vadd.f32 0.0, %v2953
    %v2955 = vpop.f32.mrb[0].mxu0
    %v2956 = vadd.f32 0.0, %v2955
    %2957 = vmatprep.mubr.bf16.mxu0 %v1120
    %2958 = vmatmul.mubr.bf16.gmra.mrb[0].mxu0 %v1119
    %v2959 = vpop.f32.mrb[0].mxu0
    %v2960 = vadd.f32 0.0, %v2959
    %v2961 = vpop.f32.mrb[0].mxu0
    %v2962 = vadd.f32 0.0, %v2961
    %v2963 = vpop.f32.mrb[0].mxu0
    %v2964 = vadd.f32 0.0, %v2963
    %v2965 = vpop.f32.mrb[0].mxu0
    %v2966 = vadd.f32 0.0, %v2965
    %2967 = vmatprep.mubr.bf16.mxu0 %v1124
    %2968 = vmatmul.mubr.bf16.gmra.mrb[0].mxu0 %v1123
    %v2969 = vpop.f32.mrb[0].mxu0
    %v2970 = vadd.f32 0.0, %v2969
    %v2971 = vpop.f32.mrb[0].mxu0
    %v2972 = vadd.f32 0.0, %v2971
    %v2973 = vpop.f32.mrb[0].mxu0
    %v2974 = vadd.f32 0.0, %v2973
    %v2975 = vpop.f32.mrb[0].mxu0
    %v2976 = vadd.f32 0.0, %v2975
    %2977 = vmatprep.mubr.bf16.mxu0 %v1128
    %2978 = vmatmul.mubr.bf16.gmra.mrb[0].mxu0 %v1127
    %v2979 = vpop.f32.mrb[0].mxu0
    %v2980 = vadd.f32 0.0, %v2979
    %v2981 = vpop.f32.mrb[0].mxu0
    %v2982 = vadd.f32 0.0, %v2981
    %v2983 = vpop.f32.mrb[0].mxu0
    %v2984 = vadd.f32 0.0, %v2983
    %v2985 = vpop.f32.mrb[0].mxu0
    %v2986 = vadd.f32 0.0, %v2985
    %2987 = vmatprep.mubr.bf16.mxu0 %v1132
    %2988 = vmatmul.mubr.bf16.gmra.mrb[0].mxu0 %v1131
    %v2989 = vpop.f32.mrb[0].mxu0
    %v2990 = vadd.f32 0.0, %v2989
    %v2991 = vpop.f32.mrb[0].mxu0
    %v2992 = vadd.f32 0.0, %v2991
    %v2993 = vpop.f32.mrb[0].mxu0
    %v2994 = vadd.f32 0.0, %v2993
    %v2995 = vpop.f32.mrb[0].mxu0
    %v2996 = vadd.f32 0.0, %v2995
    %2997 = vmatprep.mubr.bf16.mxu0 %v1136
    %2998 = vmatmul.mubr.bf16.gmra.mrb[0].mxu0 %v1135
    %v2999 = vpop.f32.mrb[0].mxu0
    %v3000 = vadd.f32 0.0, %v2999
    %v3001 = vpop.f32.mrb[0].mxu0
    %v3002 = vadd.f32 0.0, %v3001
    %v3003 = vpop.f32.mrb[0].mxu0
    %v3004 = vadd.f32 0.0, %v3003
    %v3005 = vpop.f32.mrb[0].mxu0
    %v3006 = vadd.f32 0.0, %v3005
    %3007 = vmatprep.mubr.bf16.mxu0 %v1140
    %3008 = vmatmul.mubr.bf16.gmra.mrb[0].mxu0 %v1139
    %v3009 = vpop.f32.mrb[0].mxu0
    %v3010 = vadd.f32 0.0, %v3009
    %v3011 = vpop.f32.mrb[0].mxu0
    %v3012 = vadd.f32 0.0, %v3011
    %v3013 = vpop.f32.mrb[0].mxu0
    %v3014 = vadd.f32 0.0, %v3013
    %v3015 = vpop.f32.mrb[0].mxu0
    %v3016 = vadd.f32 0.0, %v3015
    %3017 = vmatprep.mubr.bf16.mxu0 %v1144
    %3018 = vmatmul.mubr.bf16.gmra.mrb[0].mxu0 %v1143
    %v3019 = vpop.f32.mrb[0].mxu0
    %v3020 = vadd.f32 0.0, %v3019
    %v3021 = vpop.f32.mrb[0].mxu0
    %v3022 = vadd.f32 0.0, %v3021
    %v3023 = vpop.f32.mrb[0].mxu0
    %v3024 = vadd.f32 0.0, %v3023
    %v3025 = vpop.f32.mrb[0].mxu0
    %v3026 = vadd.f32 0.0, %v3025
    %3027 = vmatprep.mubr.bf16.mxu0 %v1148
    %3028 = vmatmul.mubr.bf16.gmra.mrb[0].mxu0 %v1147
    %v3029 = vpop.f32.mrb[0].mxu0
    %v3030 = vadd.f32 0.0, %v3029
    %v3031 = vpop.f32.mrb[0].mxu0
    %v3032 = vadd.f32 0.0, %v3031
    %v3033 = vpop.f32.mrb[0].mxu0
    %v3034 = vadd.f32 0.0, %v3033
    %v3035 = vpop.f32.mrb[0].mxu0
    %v3036 = vadd.f32 0.0, %v3035
    %3037 = vmatprep.mubr.bf16.mxu0 %v1152
    %3038 = vmatmul.mubr.bf16.gmra.mrb[0].mxu0 %v1151
    %v3039 = vpop.f32.mrb[0].mxu0
    %v3040 = vadd.f32 0.0, %v3039
    %v3041 = vpop.f32.mrb[0].mxu0
    %v3042 = vadd.f32 0.0, %v3041
    %v3043 = vpop.f32.mrb[0].mxu0
    %v3044 = vadd.f32 0.0, %v3043
    %v3045 = vpop.f32.mrb[0].mxu0
    %v3046 = vadd.f32 0.0, %v3045
    %3047 = vmatprep.mubr.bf16.mxu0 %v1156
    %3048 = vmatmul.mubr.bf16.gmra.mrb[0].mxu0 %v1155
    %v3049 = vpop.f32.mrb[0].mxu0
    %v3050 = vadd.f32 0.0, %v3049
    %v3051 = vpop.f32.mrb[0].mxu0
    %v3052 = vadd.f32 0.0, %v3051
    %v3053 = vpop.f32.mrb[0].mxu0
    %v3054 = vadd.f32 0.0, %v3053
    %v3055 = vpop.f32.mrb[0].mxu0
    %v3056 = vadd.f32 0.0, %v3055
    %3057 = vmatprep.mubr.bf16.mxu0 %v1160
    %3058 = vmatmul.mubr.bf16.gmra.mrb[0].mxu0 %v1159
    %v3059 = vpop.f32.mrb[0].mxu0
    %v3060 = vadd.f32 0.0, %v3059
    %v3061 = vpop.f32.mrb[0].mxu0
    %v3062 = vadd.f32 0.0, %v3061
    %v3063 = vpop.f32.mrb[0].mxu0
    %v3064 = vadd.f32 0.0, %v3063
    %v3065 = vpop.f32.mrb[0].mxu0
    %v3066 = vadd.f32 0.0, %v3065
    %3067 = vmatprep.mubr.bf16.mxu0 %v1164
    %3068 = vmatmul.mubr.bf16.gmra.mrb[0].mxu0 %v1163
    %v3069 = vpop.f32.mrb[0].mxu0
    %v3070 = vadd.f32 0.0, %v3069
    %v3071 = vpop.f32.mrb[0].mxu0
    %v3072 = vadd.f32 0.0, %v3071
    %v3073 = vpop.f32.mrb[0].mxu0
    %v3074 = vadd.f32 0.0, %v3073
    %v3075 = vpop.f32.mrb[0].mxu0
    %v3076 = vadd.f32 0.0, %v3075
    %3077 = vmatprep.mubr.bf16.mxu0 %v1168
    %3078 = vmatmul.mubr.bf16.gmra.mrb[0].mxu0 %v1167
    %v3079 = vpop.f32.mrb[0].mxu0
    %v3080 = vadd.f32 0.0, %v3079
    %v3081 = vpop.f32.mrb[0].mxu0
    %v3082 = vadd.f32 0.0, %v3081
    %v3083 = vpop.f32.mrb[0].mxu0
    %v3084 = vadd.f32 0.0, %v3083
    %v3085 = vpop.f32.mrb[0].mxu0
    %v3086 = vadd.f32 0.0, %v3085
    %3087 = vmatprep.mubr.bf16.mxu0 %v1172
    %3088 = vmatmul.mubr.bf16.gmra.mrb[0].mxu0 %v1171
    %v3089 = vpop.f32.mrb[0].mxu0
    %v3090 = vadd.f32 0.0, %v3089
    %v3091 = vpop.f32.mrb[0].mxu0
    %v3092 = vadd.f32 0.0, %v3091
    %v3093 = vpop.f32.mrb[0].mxu0
    %v3094 = vadd.f32 0.0, %v3093
    %v3095 = vpop.f32.mrb[0].mxu0
    %v3096 = vadd.f32 0.0, %v3095
    %3097 = vdwg.mxu0
    %3098 = vmatprep.subr.bf16.mxu0 %v2138
    %3099 = vmatpush1.bf16.msra.mxu0 %v2137
    %3100 = vmatprep.subr.bf16.mxu0 %v2146
    %3101 = vmatpush1.bf16.msra.mxu0 %v2145
    %3102 = vmatprep.subr.bf16.mxu0 %v2154
    %3103 = vmatpush1.bf16.msra.mxu0 %v2153
    %3104 = vmatprep.subr.bf16.mxu0 %v2162
    %3105 = vmatpush1.bf16.msra.mxu0 %v2161
    %3106 = vmatprep.subr.bf16.mxu0 %v2170
    %3107 = vmatpush1.bf16.msra.mxu0 %v2169
    %3108 = vmatprep.subr.bf16.mxu0 %v2178
    %3109 = vmatpush1.bf16.msra.mxu0 %v2177
    %3110 = vmatprep.subr.bf16.mxu0 %v2186
    %3111 = vmatpush1.bf16.msra.mxu0 %v2185
    %3112 = vmatprep.subr.bf16.mxu0 %v2194
    %3113 = vmatpush1.bf16.msra.mxu0 %v2193
    %3114 = vmatprep.subr.bf16.mxu0 %v2202
    %3115 = vmatpush1.bf16.msra.mxu0 %v2201
    %3116 = vmatprep.subr.bf16.mxu0 %v2210
    %3117 = vmatpush1.bf16.msra.mxu0 %v2209
    %3118 = vmatprep.subr.bf16.mxu0 %v2218
    %3119 = vmatpush1.bf16.msra.mxu0 %v2217
    %3120 = vmatprep.subr.bf16.mxu0 %v2226
    %3121 = vmatpush1.bf16.msra.mxu0 %v2225
    %3122 = vmatprep.subr.bf16.mxu0 %v2234
    %3123 = vmatpush1.bf16.msra.mxu0 %v2233
    %3124 = vmatprep.subr.bf16.mxu0 %v2242
    %3125 = vmatpush1.bf16.msra.mxu0 %v2241
    %3126 = vmatprep.subr.bf16.mxu0 %v2250
    %3127 = vmatpush1.bf16.msra.mxu0 %v2249
    %3128 = vmatprep.subr.bf16.mxu0 %v2258
    %3129 = vmatpush1.bf16.msra.mxu0 %v2257
    %3130 = vmatprep.mubr.bf16.mxu0 %v1114
    %3131 = vmatmul.mubr.bf16.gmra.mrb[0].mxu0 %v1113
    %v3132 = vpop.f32.mrb[0].mxu0
    %v3133 = vadd.f32 %v2940, %v3132
    %v3134 = vpop.f32.mrb[0].mxu0
    %v3135 = vadd.f32 %v2942, %v3134
    %v3136 = vpop.f32.mrb[0].mxu0
    %v3137 = vadd.f32 %v2944, %v3136
    %v3138 = vpop.f32.mrb[0].mxu0
    %v3139 = vadd.f32 %v2946, %v3138
    %3140 = vmatprep.mubr.bf16.mxu0 %v1118
    %3141 = vmatmul.mubr.bf16.gmra.mrb[0].mxu0 %v1117
    %v3142 = vpop.f32.mrb[0].mxu0
    %v3143 = vadd.f32 %v2950, %v3142
    %v3144 = vpop.f32.mrb[0].mxu0
    %v3145 = vadd.f32 %v2952, %v3144
    %v3146 = vpop.f32.mrb[0].mxu0
    %v3147 = vadd.f32 %v2954, %v3146
    %v3148 = vpop.f32.mrb[0].mxu0
    %v3149 = vadd.f32 %v2956, %v3148
    %3150 = vmatprep.mubr.bf16.mxu0 %v1122
    %3151 = vmatmul.mubr.bf16.gmra.mrb[0].mxu0 %v1121
    %v3152 = vpop.f32.mrb[0].mxu0
    %v3153 = vadd.f32 %v2960, %v3152
    %v3154 = vpop.f32.mrb[0].mxu0
    %v3155 = vadd.f32 %v2962, %v3154
    %v3156 = vpop.f32.mrb[0].mxu0
    %v3157 = vadd.f32 %v2964, %v3156
    %v3158 = vpop.f32.mrb[0].mxu0
    %v3159 = vadd.f32 %v2966, %v3158
    %3160 = vmatprep.mubr.bf16.mxu0 %v1126
    %3161 = vmatmul.mubr.bf16.gmra.mrb[0].mxu0 %v1125
    %v3162 = vpop.f32.mrb[0].mxu0
    %v3163 = vadd.f32 %v2970, %v3162
    %v3164 = vpop.f32.mrb[0].mxu0
    %v3165 = vadd.f32 %v2972, %v3164
    %v3166 = vpop.f32.mrb[0].mxu0
    %v3167 = vadd.f32 %v2974, %v3166
    %v3168 = vpop.f32.mrb[0].mxu0
    %v3169 = vadd.f32 %v2976, %v3168
    %3170 = vmatprep.mubr.bf16.mxu0 %v1130
    %3171 = vmatmul.mubr.bf16.gmra.mrb[0].mxu0 %v1129
    %v3172 = vpop.f32.mrb[0].mxu0
    %v3173 = vadd.f32 %v2980, %v3172
    %v3174 = vpop.f32.mrb[0].mxu0
    %v3175 = vadd.f32 %v2982, %v3174
    %v3176 = vpop.f32.mrb[0].mxu0
    %v3177 = vadd.f32 %v2984, %v3176
    %v3178 = vpop.f32.mrb[0].mxu0
    %v3179 = vadd.f32 %v2986, %v3178
    %3180 = vmatprep.mubr.bf16.mxu0 %v1134
    %3181 = vmatmul.mubr.bf16.gmra.mrb[0].mxu0 %v1133
    %v3182 = vpop.f32.mrb[0].mxu0
    %v3183 = vadd.f32 %v2990, %v3182
    %v3184 = vpop.f32.mrb[0].mxu0
    %v3185 = vadd.f32 %v2992, %v3184
    %v3186 = vpop.f32.mrb[0].mxu0
    %v3187 = vadd.f32 %v2994, %v3186
    %v3188 = vpop.f32.mrb[0].mxu0
    %v3189 = vadd.f32 %v2996, %v3188
    %3190 = vmatprep.mubr.bf16.mxu0 %v1138
    %3191 = vmatmul.mubr.bf16.gmra.mrb[0].mxu0 %v1137
    %v3192 = vpop.f32.mrb[0].mxu0
    %v3193 = vadd.f32 %v3000, %v3192
    %v3194 = vpop.f32.mrb[0].mxu0
    %v3195 = vadd.f32 %v3002, %v3194
    %v3196 = vpop.f32.mrb[0].mxu0
    %v3197 = vadd.f32 %v3004, %v3196
    %v3198 = vpop.f32.mrb[0].mxu0
    %v3199 = vadd.f32 %v3006, %v3198
    %3200 = vmatprep.mubr.bf16.mxu0 %v1142
    %3201 = vmatmul.mubr.bf16.gmra.mrb[0].mxu0 %v1141
    %v3202 = vpop.f32.mrb[0].mxu0
    %v3203 = vadd.f32 %v3010, %v3202
    %v3204 = vpop.f32.mrb[0].mxu0
    %v3205 = vadd.f32 %v3012, %v3204
    %v3206 = vpop.f32.mrb[0].mxu0
    %v3207 = vadd.f32 %v3014, %v3206
    %v3208 = vpop.f32.mrb[0].mxu0
    %v3209 = vadd.f32 %v3016, %v3208
    %3210 = vmatprep.mubr.bf16.mxu0 %v1146
    %3211 = vmatmul.mubr.bf16.gmra.mrb[0].mxu0 %v1145
    %v3212 = vpop.f32.mrb[0].mxu0
    %v3213 = vadd.f32 %v3020, %v3212
    %v3214 = vpop.f32.mrb[0].mxu0
    %v3215 = vadd.f32 %v3022, %v3214
    %v3216 = vpop.f32.mrb[0].mxu0
    %v3217 = vadd.f32 %v3024, %v3216
    %v3218 = vpop.f32.mrb[0].mxu0
    %v3219 = vadd.f32 %v3026, %v3218
    %3220 = vmatprep.mubr.bf16.mxu0 %v1150
    %3221 = vmatmul.mubr.bf16.gmra.mrb[0].mxu0 %v1149
    %v3222 = vpop.f32.mrb[0].mxu0
    %v3223 = vadd.f32 %v3030, %v3222
    %v3224 = vpop.f32.mrb[0].mxu0
    %v3225 = vadd.f32 %v3032, %v3224
    %v3226 = vpop.f32.mrb[0].mxu0
    %v3227 = vadd.f32 %v3034, %v3226
    %v3228 = vpop.f32.mrb[0].mxu0
    %v3229 = vadd.f32 %v3036, %v3228
    %3230 = vmatprep.mubr.bf16.mxu0 %v1154
    %3231 = vmatmul.mubr.bf16.gmra.mrb[0].mxu0 %v1153
    %v3232 = vpop.f32.mrb[0].mxu0
    %v3233 = vadd.f32 %v3040, %v3232
    %v3234 = vpop.f32.mrb[0].mxu0
    %v3235 = vadd.f32 %v3042, %v3234
    %v3236 = vpop.f32.mrb[0].mxu0
    %v3237 = vadd.f32 %v3044, %v3236
    %v3238 = vpop.f32.mrb[0].mxu0
    %v3239 = vadd.f32 %v3046, %v3238
    %3240 = vmatprep.mubr.bf16.mxu0 %v1158
    %3241 = vmatmul.mubr.bf16.gmra.mrb[0].mxu0 %v1157
    %v3242 = vpop.f32.mrb[0].mxu0
    %v3243 = vadd.f32 %v3050, %v3242
    %v3244 = vpop.f32.mrb[0].mxu0
    %v3245 = vadd.f32 %v3052, %v3244
    %v3246 = vpop.f32.mrb[0].mxu0
    %v3247 = vadd.f32 %v3054, %v3246
    %v3248 = vpop.f32.mrb[0].mxu0
    %v3249 = vadd.f32 %v3056, %v3248
    %3250 = vmatprep.mubr.bf16.mxu0 %v1162
    %3251 = vmatmul.mubr.bf16.gmra.mrb[0].mxu0 %v1161
    %v3252 = vpop.f32.mrb[0].mxu0
    %v3253 = vadd.f32 %v3060, %v3252
    %v3254 = vpop.f32.mrb[0].mxu0
    %v3255 = vadd.f32 %v3062, %v3254
    %v3256 = vpop.f32.mrb[0].mxu0
    %v3257 = vadd.f32 %v3064, %v3256
    %v3258 = vpop.f32.mrb[0].mxu0
    %v3259 = vadd.f32 %v3066, %v3258
    %3260 = vmatprep.mubr.bf16.mxu0 %v1166
    %3261 = vmatmul.mubr.bf16.gmra.mrb[0].mxu0 %v1165
    %v3262 = vpop.f32.mrb[0].mxu0
    %v3263 = vadd.f32 %v3070, %v3262
    %v3264 = vpop.f32.mrb[0].mxu0
    %v3265 = vadd.f32 %v3072, %v3264
    %v3266 = vpop.f32.mrb[0].mxu0
    %v3267 = vadd.f32 %v3074, %v3266
    %v3268 = vpop.f32.mrb[0].mxu0
    %v3269 = vadd.f32 %v3076, %v3268
    %3270 = vmatprep.mubr.bf16.mxu0 %v1170
    %3271 = vmatmul.mubr.bf16.gmra.mrb[0].mxu0 %v1169
    %v3272 = vpop.f32.mrb[0].mxu0
    %v3273 = vadd.f32 %v3080, %v3272
    %v3274 = vpop.f32.mrb[0].mxu0
    %v3275 = vadd.f32 %v3082, %v3274
    %v3276 = vpop.f32.mrb[0].mxu0
    %v3277 = vadd.f32 %v3084, %v3276
    %v3278 = vpop.f32.mrb[0].mxu0
    %v3279 = vadd.f32 %v3086, %v3278
    %3280 = vmatprep.mubr.bf16.mxu0 %v1174
    %3281 = vmatmul.mubr.bf16.gmra.mrb[0].mxu0 %v1173
    %v3282 = vpop.f32.mrb[0].mxu0
    %v3283 = vadd.f32 %v3090, %v3282
    %v3284 = vpop.f32.mrb[0].mxu0
    %v3285 = vadd.f32 %v3092, %v3284
    %v3286 = vpop.f32.mrb[0].mxu0
    %v3287 = vadd.f32 %v3094, %v3286
    %v3288 = vpop.f32.mrb[0].mxu0
    %v3289 = vadd.f32 %v3096, %v3288
    %3290 = vdwg.mxu0
    %3291 = vmatprep.subr.bf16.mxu0 %v2012
    %3292 = vmatpush1.bf16.msra.mxu0 %v2011
    %3293 = vmatprep.subr.bf16.mxu0 %v2020
    %3294 = vmatpush1.bf16.msra.mxu0 %v2019
    %3295 = vmatprep.subr.bf16.mxu0 %v2028
    %3296 = vmatpush1.bf16.msra.mxu0 %v2027
    %3297 = vmatprep.subr.bf16.mxu0 %v2036
    %3298 = vmatpush1.bf16.msra.mxu0 %v2035
    %3299 = vmatprep.subr.bf16.mxu0 %v2044
    %3300 = vmatpush1.bf16.msra.mxu0 %v2043
    %3301 = vmatprep.subr.bf16.mxu0 %v2052
    %3302 = vmatpush1.bf16.msra.mxu0 %v2051
    %3303 = vmatprep.subr.bf16.mxu0 %v2060
    %3304 = vmatpush1.bf16.msra.mxu0 %v2059
    %3305 = vmatprep.subr.bf16.mxu0 %v2068
    %3306 = vmatpush1.bf16.msra.mxu0 %v2067
    %3307 = vmatprep.subr.bf16.mxu0 %v2076
    %3308 = vmatpush1.bf16.msra.mxu0 %v2075
    %3309 = vmatprep.subr.bf16.mxu0 %v2084
    %3310 = vmatpush1.bf16.msra.mxu0 %v2083
    %3311 = vmatprep.subr.bf16.mxu0 %v2092
    %3312 = vmatpush1.bf16.msra.mxu0 %v2091
    %3313 = vmatprep.subr.bf16.mxu0 %v2100
    %3314 = vmatpush1.bf16.msra.mxu0 %v2099
    %3315 = vmatprep.subr.bf16.mxu0 %v2108
    %3316 = vmatpush1.bf16.msra.mxu0 %v2107
    %3317 = vmatprep.subr.bf16.mxu0 %v2116
    %3318 = vmatpush1.bf16.msra.mxu0 %v2115
    %3319 = vmatprep.subr.bf16.mxu0 %v2124
    %3320 = vmatpush1.bf16.msra.mxu0 %v2123
    %3321 = vmatprep.subr.bf16.mxu0 %v2132
    %3322 = vmatpush1.bf16.msra.mxu0 %v2131
    %3323 = vmatprep.mubr.bf16.mxu0 %v1112
    %3324 = vmatmul.mubr.bf16.gmra.mrb[0].mxu0 %v1111
    %v3325 = vpop.f32.mrb[0].mxu0
    %v3326 = vadd.f32 0.0, %v3325
    %v3327 = vpop.f32.mrb[0].mxu0
    %v3328 = vadd.f32 0.0, %v3327
    %v3329 = vpop.f32.mrb[0].mxu0
    %v3330 = vadd.f32 0.0, %v3329
    %v3331 = vpop.f32.mrb[0].mxu0
    %v3332 = vadd.f32 0.0, %v3331
    %3333 = vmatprep.mubr.bf16.mxu0 %v1116
    %3334 = vmatmul.mubr.bf16.gmra.mrb[0].mxu0 %v1115
    %v3335 = vpop.f32.mrb[0].mxu0
    %v3336 = vadd.f32 0.0, %v3335
    %v3337 = vpop.f32.mrb[0].mxu0
    %v3338 = vadd.f32 0.0, %v3337
    %v3339 = vpop.f32.mrb[0].mxu0
    %v3340 = vadd.f32 0.0, %v3339
    %v3341 = vpop.f32.mrb[0].mxu0
    %v3342 = vadd.f32 0.0, %v3341
    %3343 = vmatprep.mubr.bf16.mxu0 %v1120
    %3344 = vmatmul.mubr.bf16.gmra.mrb[0].mxu0 %v1119
    %v3345 = vpop.f32.mrb[0].mxu0
    %v3346 = vadd.f32 0.0, %v3345
    %v3347 = vpop.f32.mrb[0].mxu0
    %v3348 = vadd.f32 0.0, %v3347
    %v3349 = vpop.f32.mrb[0].mxu0
    %v3350 = vadd.f32 0.0, %v3349
    %v3351 = vpop.f32.mrb[0].mxu0
    %v3352 = vadd.f32 0.0, %v3351
    %3353 = vmatprep.mubr.bf16.mxu0 %v1124
    %3354 = vmatmul.mubr.bf16.gmra.mrb[0].mxu0 %v1123
    %v3355 = vpop.f32.mrb[0].mxu0
    %v3356 = vadd.f32 0.0, %v3355
    %v3357 = vpop.f32.mrb[0].mxu0
    %v3358 = vadd.f32 0.0, %v3357
    %v3359 = vpop.f32.mrb[0].mxu0
    %v3360 = vadd.f32 0.0, %v3359
    %v3361 = vpop.f32.mrb[0].mxu0
    %v3362 = vadd.f32 0.0, %v3361
    %3363 = vmatprep.mubr.bf16.mxu0 %v1128
    %3364 = vmatmul.mubr.bf16.gmra.mrb[0].mxu0 %v1127
    %v3365 = vpop.f32.mrb[0].mxu0
    %v3366 = vadd.f32 0.0, %v3365
    %v3367 = vpop.f32.mrb[0].mxu0
    %v3368 = vadd.f32 0.0, %v3367
    %v3369 = vpop.f32.mrb[0].mxu0
    %v3370 = vadd.f32 0.0, %v3369
    %v3371 = vpop.f32.mrb[0].mxu0
    %v3372 = vadd.f32 0.0, %v3371
    %3373 = vmatprep.mubr.bf16.mxu0 %v1132
    %3374 = vmatmul.mubr.bf16.gmra.mrb[0].mxu0 %v1131
    %v3375 = vpop.f32.mrb[0].mxu0
    %v3376 = vadd.f32 0.0, %v3375
    %v3377 = vpop.f32.mrb[0].mxu0
    %v3378 = vadd.f32 0.0, %v3377
    %v3379 = vpop.f32.mrb[0].mxu0
    %v3380 = vadd.f32 0.0, %v3379
    %v3381 = vpop.f32.mrb[0].mxu0
    %v3382 = vadd.f32 0.0, %v3381
    %3383 = vmatprep.mubr.bf16.mxu0 %v1136
    %3384 = vmatmul.mubr.bf16.gmra.mrb[0].mxu0 %v1135
    %v3385 = vpop.f32.mrb[0].mxu0
    %v3386 = vadd.f32 0.0, %v3385
    %v3387 = vpop.f32.mrb[0].mxu0
    %v3388 = vadd.f32 0.0, %v3387
    %v3389 = vpop.f32.mrb[0].mxu0
    %v3390 = vadd.f32 0.0, %v3389
    %v3391 = vpop.f32.mrb[0].mxu0
    %v3392 = vadd.f32 0.0, %v3391
    %3393 = vmatprep.mubr.bf16.mxu0 %v1140
    %3394 = vmatmul.mubr.bf16.gmra.mrb[0].mxu0 %v1139
    %v3395 = vpop.f32.mrb[0].mxu0
    %v3396 = vadd.f32 0.0, %v3395
    %v3397 = vpop.f32.mrb[0].mxu0
    %v3398 = vadd.f32 0.0, %v3397
    %v3399 = vpop.f32.mrb[0].mxu0
    %v3400 = vadd.f32 0.0, %v3399
    %v3401 = vpop.f32.mrb[0].mxu0
    %v3402 = vadd.f32 0.0, %v3401
    %3403 = vmatprep.mubr.bf16.mxu0 %v1144
    %3404 = vmatmul.mubr.bf16.gmra.mrb[0].mxu0 %v1143
    %v3405 = vpop.f32.mrb[0].mxu0
    %v3406 = vadd.f32 0.0, %v3405
    %v3407 = vpop.f32.mrb[0].mxu0
    %v3408 = vadd.f32 0.0, %v3407
    %v3409 = vpop.f32.mrb[0].mxu0
    %v3410 = vadd.f32 0.0, %v3409
    %v3411 = vpop.f32.mrb[0].mxu0
    %v3412 = vadd.f32 0.0, %v3411
    %3413 = vmatprep.mubr.bf16.mxu0 %v1148
    %3414 = vmatmul.mubr.bf16.gmra.mrb[0].mxu0 %v1147
    %v3415 = vpop.f32.mrb[0].mxu0
    %v3416 = vadd.f32 0.0, %v3415
    %v3417 = vpop.f32.mrb[0].mxu0
    %v3418 = vadd.f32 0.0, %v3417
    %v3419 = vpop.f32.mrb[0].mxu0
    %v3420 = vadd.f32 0.0, %v3419
    %v3421 = vpop.f32.mrb[0].mxu0
    %v3422 = vadd.f32 0.0, %v3421
    %3423 = vmatprep.mubr.bf16.mxu0 %v1152
    %3424 = vmatmul.mubr.bf16.gmra.mrb[0].mxu0 %v1151
    %v3425 = vpop.f32.mrb[0].mxu0
    %v3426 = vadd.f32 0.0, %v3425
    %v3427 = vpop.f32.mrb[0].mxu0
    %v3428 = vadd.f32 0.0, %v3427
    %v3429 = vpop.f32.mrb[0].mxu0
    %v3430 = vadd.f32 0.0, %v3429
    %v3431 = vpop.f32.mrb[0].mxu0
    %v3432 = vadd.f32 0.0, %v3431
    %3433 = vmatprep.mubr.bf16.mxu0 %v1156
    %3434 = vmatmul.mubr.bf16.gmra.mrb[0].mxu0 %v1155
    %v3435 = vpop.f32.mrb[0].mxu0
    %v3436 = vadd.f32 0.0, %v3435
    %v3437 = vpop.f32.mrb[0].mxu0
    %v3438 = vadd.f32 0.0, %v3437
    %v3439 = vpop.f32.mrb[0].mxu0
    %v3440 = vadd.f32 0.0, %v3439
    %v3441 = vpop.f32.mrb[0].mxu0
    %v3442 = vadd.f32 0.0, %v3441
    %3443 = vmatprep.mubr.bf16.mxu0 %v1160
    %3444 = vmatmul.mubr.bf16.gmra.mrb[0].mxu0 %v1159
    %v3445 = vpop.f32.mrb[0].mxu0
    %v3446 = vadd.f32 0.0, %v3445
    %v3447 = vpop.f32.mrb[0].mxu0
    %v3448 = vadd.f32 0.0, %v3447
    %v3449 = vpop.f32.mrb[0].mxu0
    %v3450 = vadd.f32 0.0, %v3449
    %v3451 = vpop.f32.mrb[0].mxu0
    %v3452 = vadd.f32 0.0, %v3451
    %3453 = vmatprep.mubr.bf16.mxu0 %v1164
    %3454 = vmatmul.mubr.bf16.gmra.mrb[0].mxu0 %v1163
    %v3455 = vpop.f32.mrb[0].mxu0
    %v3456 = vadd.f32 0.0, %v3455
    %v3457 = vpop.f32.mrb[0].mxu0
    %v3458 = vadd.f32 0.0, %v3457
    %v3459 = vpop.f32.mrb[0].mxu0
    %v3460 = vadd.f32 0.0, %v3459
    %v3461 = vpop.f32.mrb[0].mxu0
    %v3462 = vadd.f32 0.0, %v3461
    %3463 = vmatprep.mubr.bf16.mxu0 %v1168
    %3464 = vmatmul.mubr.bf16.gmra.mrb[0].mxu0 %v1167
    %v3465 = vpop.f32.mrb[0].mxu0
    %v3466 = vadd.f32 0.0, %v3465
    %v3467 = vpop.f32.mrb[0].mxu0
    %v3468 = vadd.f32 0.0, %v3467
    %v3469 = vpop.f32.mrb[0].mxu0
    %v3470 = vadd.f32 0.0, %v3469
    %v3471 = vpop.f32.mrb[0].mxu0
    %v3472 = vadd.f32 0.0, %v3471
    %3473 = vmatprep.mubr.bf16.mxu0 %v1172
    %3474 = vmatmul.mubr.bf16.gmra.mrb[0].mxu0 %v1171
    %v3475 = vpop.f32.mrb[0].mxu0
    %v3476 = vadd.f32 0.0, %v3475
    %v3477 = vpop.f32.mrb[0].mxu0
    %v3478 = vadd.f32 0.0, %v3477
    %v3479 = vpop.f32.mrb[0].mxu0
    %v3480 = vadd.f32 0.0, %v3479
    %v3481 = vpop.f32.mrb[0].mxu0
    %v3482 = vadd.f32 0.0, %v3481
    %3483 = vdwg.mxu0
    %3484 = vmatprep.subr.bf16.mxu0 %v2140
    %3485 = vmatpush1.bf16.msra.mxu0 %v2139
    %3486 = vmatprep.subr.bf16.mxu0 %v2148
    %3487 = vmatpush1.bf16.msra.mxu0 %v2147
    %3488 = vmatprep.subr.bf16.mxu0 %v2156
    %3489 = vmatpush1.bf16.msra.mxu0 %v2155
    %3490 = vmatprep.subr.bf16.mxu0 %v2164
    %3491 = vmatpush1.bf16.msra.mxu0 %v2163
    %3492 = vmatprep.subr.bf16.mxu0 %v2172
    %3493 = vmatpush1.bf16.msra.mxu0 %v2171
    %3494 = vmatprep.subr.bf16.mxu0 %v2180
    %3495 = vmatpush1.bf16.msra.mxu0 %v2179
    %3496 = vmatprep.subr.bf16.mxu0 %v2188
    %3497 = vmatpush1.bf16.msra.mxu0 %v2187
    %3498 = vmatprep.subr.bf16.mxu0 %v2196
    %3499 = vmatpush1.bf16.msra.mxu0 %v2195
    %3500 = vmatprep.subr.bf16.mxu0 %v2204
    %3501 = vmatpush1.bf16.msra.mxu0 %v2203
    %3502 = vmatprep.subr.bf16.mxu0 %v2212
    %3503 = vmatpush1.bf16.msra.mxu0 %v2211
    %3504 = vmatprep.subr.bf16.mxu0 %v2220
    %3505 = vmatpush1.bf16.msra.mxu0 %v2219
    %3506 = vmatprep.subr.bf16.mxu0 %v2228
    %3507 = vmatpush1.bf16.msra.mxu0 %v2227
    %3508 = vmatprep.subr.bf16.mxu0 %v2236
    %3509 = vmatpush1.bf16.msra.mxu0 %v2235
    %3510 = vmatprep.subr.bf16.mxu0 %v2244
    %3511 = vmatpush1.bf16.msra.mxu0 %v2243
    %3512 = vmatprep.subr.bf16.mxu0 %v2252
    %3513 = vmatpush1.bf16.msra.mxu0 %v2251
    %3514 = vmatprep.subr.bf16.mxu0 %v2260
    %3515 = vmatpush1.bf16.msra.mxu0 %v2259
    %3516 = vmatprep.mubr.bf16.mxu0 %v1114
    %3517 = vmatmul.mubr.bf16.gmra.mrb[0].mxu0 %v1113
    %v3518 = vpop.f32.mrb[0].mxu0
    %v3519 = vadd.f32 %v3326, %v3518
    %v3520 = vpop.f32.mrb[0].mxu0
    %v3521 = vadd.f32 %v3328, %v3520
    %v3522 = vpop.f32.mrb[0].mxu0
    %v3523 = vadd.f32 %v3330, %v3522
    %v3524 = vpop.f32.mrb[0].mxu0
    %v3525 = vadd.f32 %v3332, %v3524
    %3526 = vmatprep.mubr.bf16.mxu0 %v1118
    %3527 = vmatmul.mubr.bf16.gmra.mrb[0].mxu0 %v1117
    %v3528 = vpop.f32.mrb[0].mxu0
    %v3529 = vadd.f32 %v3336, %v3528
    %v3530 = vpop.f32.mrb[0].mxu0
    %v3531 = vadd.f32 %v3338, %v3530
    %v3532 = vpop.f32.mrb[0].mxu0
    %v3533 = vadd.f32 %v3340, %v3532
    %v3534 = vpop.f32.mrb[0].mxu0
    %v3535 = vadd.f32 %v3342, %v3534
    %3536 = vmatprep.mubr.bf16.mxu0 %v1122
    %3537 = vmatmul.mubr.bf16.gmra.mrb[0].mxu0 %v1121
    %v3538 = vpop.f32.mrb[0].mxu0
    %v3539 = vadd.f32 %v3346, %v3538
    %v3540 = vpop.f32.mrb[0].mxu0
    %v3541 = vadd.f32 %v3348, %v3540
    %v3542 = vpop.f32.mrb[0].mxu0
    %v3543 = vadd.f32 %v3350, %v3542
    %v3544 = vpop.f32.mrb[0].mxu0
    %v3545 = vadd.f32 %v3352, %v3544
    %3546 = vmatprep.mubr.bf16.mxu0 %v1126
    %3547 = vmatmul.mubr.bf16.gmra.mrb[0].mxu0 %v1125
    %v3548 = vpop.f32.mrb[0].mxu0
    %v3549 = vadd.f32 %v3356, %v3548
    %v3550 = vpop.f32.mrb[0].mxu0
    %v3551 = vadd.f32 %v3358, %v3550
    %v3552 = vpop.f32.mrb[0].mxu0
    %v3553 = vadd.f32 %v3360, %v3552
    %v3554 = vpop.f32.mrb[0].mxu0
    %v3555 = vadd.f32 %v3362, %v3554
    %3556 = vmatprep.mubr.bf16.mxu0 %v1130
    %3557 = vmatmul.mubr.bf16.gmra.mrb[0].mxu0 %v1129
    %v3558 = vpop.f32.mrb[0].mxu0
    %v3559 = vadd.f32 %v3366, %v3558
    %v3560 = vpop.f32.mrb[0].mxu0
    %v3561 = vadd.f32 %v3368, %v3560
    %v3562 = vpop.f32.mrb[0].mxu0
    %v3563 = vadd.f32 %v3370, %v3562
    %v3564 = vpop.f32.mrb[0].mxu0
    %v3565 = vadd.f32 %v3372, %v3564
    %3566 = vmatprep.mubr.bf16.mxu0 %v1134
    %3567 = vmatmul.mubr.bf16.gmra.mrb[0].mxu0 %v1133
    %v3568 = vpop.f32.mrb[0].mxu0
    %v3569 = vadd.f32 %v3376, %v3568
    %v3570 = vpop.f32.mrb[0].mxu0
    %v3571 = vadd.f32 %v3378, %v3570
    %v3572 = vpop.f32.mrb[0].mxu0
    %v3573 = vadd.f32 %v3380, %v3572
    %v3574 = vpop.f32.mrb[0].mxu0
    %v3575 = vadd.f32 %v3382, %v3574
    %3576 = vmatprep.mubr.bf16.mxu0 %v1138
    %3577 = vmatmul.mubr.bf16.gmra.mrb[0].mxu0 %v1137
    %v3578 = vpop.f32.mrb[0].mxu0
    %v3579 = vadd.f32 %v3386, %v3578
    %v3580 = vpop.f32.mrb[0].mxu0
    %v3581 = vadd.f32 %v3388, %v3580
    %v3582 = vpop.f32.mrb[0].mxu0
    %v3583 = vadd.f32 %v3390, %v3582
    %v3584 = vpop.f32.mrb[0].mxu0
    %v3585 = vadd.f32 %v3392, %v3584
    %3586 = vmatprep.mubr.bf16.mxu0 %v1142
    %3587 = vmatmul.mubr.bf16.gmra.mrb[0].mxu0 %v1141
    %v3588 = vpop.f32.mrb[0].mxu0
    %v3589 = vadd.f32 %v3396, %v3588
    %v3590 = vpop.f32.mrb[0].mxu0
    %v3591 = vadd.f32 %v3398, %v3590
    %v3592 = vpop.f32.mrb[0].mxu0
    %v3593 = vadd.f32 %v3400, %v3592
    %v3594 = vpop.f32.mrb[0].mxu0
    %v3595 = vadd.f32 %v3402, %v3594
    %3596 = vmatprep.mubr.bf16.mxu0 %v1146
    %3597 = vmatmul.mubr.bf16.gmra.mrb[0].mxu0 %v1145
    %v3598 = vpop.f32.mrb[0].mxu0
    %v3599 = vadd.f32 %v3406, %v3598
    %v3600 = vpop.f32.mrb[0].mxu0
    %v3601 = vadd.f32 %v3408, %v3600
    %v3602 = vpop.f32.mrb[0].mxu0
    %v3603 = vadd.f32 %v3410, %v3602
    %v3604 = vpop.f32.mrb[0].mxu0
    %v3605 = vadd.f32 %v3412, %v3604
    %3606 = vmatprep.mubr.bf16.mxu0 %v1150
    %3607 = vmatmul.mubr.bf16.gmra.mrb[0].mxu0 %v1149
    %v3608 = vpop.f32.mrb[0].mxu0
    %v3609 = vadd.f32 %v3416, %v3608
    %v3610 = vpop.f32.mrb[0].mxu0
    %v3611 = vadd.f32 %v3418, %v3610
    %v3612 = vpop.f32.mrb[0].mxu0
    %v3613 = vadd.f32 %v3420, %v3612
    %v3614 = vpop.f32.mrb[0].mxu0
    %v3615 = vadd.f32 %v3422, %v3614
    %3616 = vmatprep.mubr.bf16.mxu0 %v1154
    %3617 = vmatmul.mubr.bf16.gmra.mrb[0].mxu0 %v1153
    %v3618 = vpop.f32.mrb[0].mxu0
    %v3619 = vadd.f32 %v3426, %v3618
    %v3620 = vpop.f32.mrb[0].mxu0
    %v3621 = vadd.f32 %v3428, %v3620
    %v3622 = vpop.f32.mrb[0].mxu0
    %v3623 = vadd.f32 %v3430, %v3622
    %v3624 = vpop.f32.mrb[0].mxu0
    %v3625 = vadd.f32 %v3432, %v3624
    %3626 = vmatprep.mubr.bf16.mxu0 %v1158
    %3627 = vmatmul.mubr.bf16.gmra.mrb[0].mxu0 %v1157
    %v3628 = vpop.f32.mrb[0].mxu0
    %v3629 = vadd.f32 %v3436, %v3628
    %v3630 = vpop.f32.mrb[0].mxu0
    %v3631 = vadd.f32 %v3438, %v3630
    %v3632 = vpop.f32.mrb[0].mxu0
    %v3633 = vadd.f32 %v3440, %v3632
    %v3634 = vpop.f32.mrb[0].mxu0
    %v3635 = vadd.f32 %v3442, %v3634
    %3636 = vmatprep.mubr.bf16.mxu0 %v1162
    %3637 = vmatmul.mubr.bf16.gmra.mrb[0].mxu0 %v1161
    %v3638 = vpop.f32.mrb[0].mxu0
    %v3639 = vadd.f32 %v3446, %v3638
    %v3640 = vpop.f32.mrb[0].mxu0
    %v3641 = vadd.f32 %v3448, %v3640
    %v3642 = vpop.f32.mrb[0].mxu0
    %v3643 = vadd.f32 %v3450, %v3642
    %v3644 = vpop.f32.mrb[0].mxu0
    %v3645 = vadd.f32 %v3452, %v3644
    %3646 = vmatprep.mubr.bf16.mxu0 %v1166
    %3647 = vmatmul.mubr.bf16.gmra.mrb[0].mxu0 %v1165
    %v3648 = vpop.f32.mrb[0].mxu0
    %v3649 = vadd.f32 %v3456, %v3648
    %v3650 = vpop.f32.mrb[0].mxu0
    %v3651 = vadd.f32 %v3458, %v3650
    %v3652 = vpop.f32.mrb[0].mxu0
    %v3653 = vadd.f32 %v3460, %v3652
    %v3654 = vpop.f32.mrb[0].mxu0
    %v3655 = vadd.f32 %v3462, %v3654
    %3656 = vmatprep.mubr.bf16.mxu0 %v1170
    %3657 = vmatmul.mubr.bf16.gmra.mrb[0].mxu0 %v1169
    %v3658 = vpop.f32.mrb[0].mxu0
    %v3659 = vadd.f32 %v3466, %v3658
    %v3660 = vpop.f32.mrb[0].mxu0
    %v3661 = vadd.f32 %v3468, %v3660
    %v3662 = vpop.f32.mrb[0].mxu0
    %v3663 = vadd.f32 %v3470, %v3662
    %v3664 = vpop.f32.mrb[0].mxu0
    %v3665 = vadd.f32 %v3472, %v3664
    %3666 = vmatprep.mubr.bf16.mxu0 %v1174
    %3667 = vmatmul.mubr.bf16.gmra.mrb[0].mxu0 %v1173
    %v3668 = vpop.f32.mrb[0].mxu0
    %v3669 = vadd.f32 %v3476, %v3668
    %v3670 = vpop.f32.mrb[0].mxu0
    %v3671 = vadd.f32 %v3478, %v3670
    %v3672 = vpop.f32.mrb[0].mxu0
    %v3673 = vadd.f32 %v3480, %v3672
    %v3674 = vpop.f32.mrb[0].mxu0
    %v3675 = vadd.f32 %v3482, %v3674
    %3676 = vdwg.mxu0
    %3677 = vmatprep.subr.bf16.mxu0 %v2014
    %3678 = vmatpush1.bf16.msra.mxu0 %v2013
    %3679 = vmatprep.subr.bf16.mxu0 %v2022
    %3680 = vmatpush1.bf16.msra.mxu0 %v2021
    %3681 = vmatprep.subr.bf16.mxu0 %v2030
    %3682 = vmatpush1.bf16.msra.mxu0 %v2029
    %3683 = vmatprep.subr.bf16.mxu0 %v2038
    %3684 = vmatpush1.bf16.msra.mxu0 %v2037
    %3685 = vmatprep.subr.bf16.mxu0 %v2046
    %3686 = vmatpush1.bf16.msra.mxu0 %v2045
    %3687 = vmatprep.subr.bf16.mxu0 %v2054
    %3688 = vmatpush1.bf16.msra.mxu0 %v2053
    %3689 = vmatprep.subr.bf16.mxu0 %v2062
    %3690 = vmatpush1.bf16.msra.mxu0 %v2061
    %3691 = vmatprep.subr.bf16.mxu0 %v2070
    %3692 = vmatpush1.bf16.msra.mxu0 %v2069
    %3693 = vmatprep.subr.bf16.mxu0 %v2078
    %3694 = vmatpush1.bf16.msra.mxu0 %v2077
    %3695 = vmatprep.subr.bf16.mxu0 %v2086
    %3696 = vmatpush1.bf16.msra.mxu0 %v2085
    %3697 = vmatprep.subr.bf16.mxu0 %v2094
    %3698 = vmatpush1.bf16.msra.mxu0 %v2093
    %3699 = vmatprep.subr.bf16.mxu0 %v2102
    %3700 = vmatpush1.bf16.msra.mxu0 %v2101
    %3701 = vmatprep.subr.bf16.mxu0 %v2110
    %3702 = vmatpush1.bf16.msra.mxu0 %v2109
    %3703 = vmatprep.subr.bf16.mxu0 %v2118
    %3704 = vmatpush1.bf16.msra.mxu0 %v2117
    %3705 = vmatprep.subr.bf16.mxu0 %v2126
    %3706 = vmatpush1.bf16.msra.mxu0 %v2125
    %3707 = vmatprep.subr.bf16.mxu0 %v2134
    %3708 = vmatpush1.bf16.msra.mxu0 %v2133
    %3709 = vmatprep.mubr.bf16.mxu0 %v1112
    %3710 = vmatmul.mubr.bf16.gmra.mrb[0].mxu0 %v1111
    %v3711 = vpop.f32.mrb[0].mxu0
    %v3712 = vadd.f32 0.0, %v3711
    %v3713 = vpop.f32.mrb[0].mxu0
    %v3714 = vadd.f32 0.0, %v3713
    %v3715 = vpop.f32.mrb[0].mxu0
    %v3716 = vadd.f32 0.0, %v3715
    %v3717 = vpop.f32.mrb[0].mxu0
    %v3718 = vadd.f32 0.0, %v3717
    %3719 = vmatprep.mubr.bf16.mxu0 %v1116
    %3720 = vmatmul.mubr.bf16.gmra.mrb[0].mxu0 %v1115
    %v3721 = vpop.f32.mrb[0].mxu0
    %v3722 = vadd.f32 0.0, %v3721
    %v3723 = vpop.f32.mrb[0].mxu0
    %v3724 = vadd.f32 0.0, %v3723
    %v3725 = vpop.f32.mrb[0].mxu0
    %v3726 = vadd.f32 0.0, %v3725
    %v3727 = vpop.f32.mrb[0].mxu0
    %v3728 = vadd.f32 0.0, %v3727
    %3729 = vmatprep.mubr.bf16.mxu0 %v1120
    %3730 = vmatmul.mubr.bf16.gmra.mrb[0].mxu0 %v1119
    %v3731 = vpop.f32.mrb[0].mxu0
    %v3732 = vadd.f32 0.0, %v3731
    %v3733 = vpop.f32.mrb[0].mxu0
    %v3734 = vadd.f32 0.0, %v3733
    %v3735 = vpop.f32.mrb[0].mxu0
    %v3736 = vadd.f32 0.0, %v3735
    %v3737 = vpop.f32.mrb[0].mxu0
    %v3738 = vadd.f32 0.0, %v3737
    %3739 = vmatprep.mubr.bf16.mxu0 %v1124
    %3740 = vmatmul.mubr.bf16.gmra.mrb[0].mxu0 %v1123
    %v3741 = vpop.f32.mrb[0].mxu0
    %v3742 = vadd.f32 0.0, %v3741
    %v3743 = vpop.f32.mrb[0].mxu0
    %v3744 = vadd.f32 0.0, %v3743
    %v3745 = vpop.f32.mrb[0].mxu0
    %v3746 = vadd.f32 0.0, %v3745
    %v3747 = vpop.f32.mrb[0].mxu0
    %v3748 = vadd.f32 0.0, %v3747
    %3749 = vmatprep.mubr.bf16.mxu0 %v1128
    %3750 = vmatmul.mubr.bf16.gmra.mrb[0].mxu0 %v1127
    %v3751 = vpop.f32.mrb[0].mxu0
    %v3752 = vadd.f32 0.0, %v3751
    %v3753 = vpop.f32.mrb[0].mxu0
    %v3754 = vadd.f32 0.0, %v3753
    %v3755 = vpop.f32.mrb[0].mxu0
    %v3756 = vadd.f32 0.0, %v3755
    %v3757 = vpop.f32.mrb[0].mxu0
    %v3758 = vadd.f32 0.0, %v3757
    %3759 = vmatprep.mubr.bf16.mxu0 %v1132
    %3760 = vmatmul.mubr.bf16.gmra.mrb[0].mxu0 %v1131
    %v3761 = vpop.f32.mrb[0].mxu0
    %v3762 = vadd.f32 0.0, %v3761
    %v3763 = vpop.f32.mrb[0].mxu0
    %v3764 = vadd.f32 0.0, %v3763
    %v3765 = vpop.f32.mrb[0].mxu0
    %v3766 = vadd.f32 0.0, %v3765
    %v3767 = vpop.f32.mrb[0].mxu0
    %v3768 = vadd.f32 0.0, %v3767
    %3769 = vmatprep.mubr.bf16.mxu0 %v1136
    %3770 = vmatmul.mubr.bf16.gmra.mrb[0].mxu0 %v1135
    %v3771 = vpop.f32.mrb[0].mxu0
    %v3772 = vadd.f32 0.0, %v3771
    %v3773 = vpop.f32.mrb[0].mxu0
    %v3774 = vadd.f32 0.0, %v3773
    %v3775 = vpop.f32.mrb[0].mxu0
    %v3776 = vadd.f32 0.0, %v3775
    %v3777 = vpop.f32.mrb[0].mxu0
    %v3778 = vadd.f32 0.0, %v3777
    %3779 = vmatprep.mubr.bf16.mxu0 %v1140
    %3780 = vmatmul.mubr.bf16.gmra.mrb[0].mxu0 %v1139
    %v3781 = vpop.f32.mrb[0].mxu0
    %v3782 = vadd.f32 0.0, %v3781
    %v3783 = vpop.f32.mrb[0].mxu0
    %v3784 = vadd.f32 0.0, %v3783
    %v3785 = vpop.f32.mrb[0].mxu0
    %v3786 = vadd.f32 0.0, %v3785
    %v3787 = vpop.f32.mrb[0].mxu0
    %v3788 = vadd.f32 0.0, %v3787
    %3789 = vmatprep.mubr.bf16.mxu0 %v1144
    %3790 = vmatmul.mubr.bf16.gmra.mrb[0].mxu0 %v1143
    %v3791 = vpop.f32.mrb[0].mxu0
    %v3792 = vadd.f32 0.0, %v3791
    %v3793 = vpop.f32.mrb[0].mxu0
    %v3794 = vadd.f32 0.0, %v3793
    %v3795 = vpop.f32.mrb[0].mxu0
    %v3796 = vadd.f32 0.0, %v3795
    %v3797 = vpop.f32.mrb[0].mxu0
    %v3798 = vadd.f32 0.0, %v3797
    %3799 = vmatprep.mubr.bf16.mxu0 %v1148
    %3800 = vmatmul.mubr.bf16.gmra.mrb[0].mxu0 %v1147
    %v3801 = vpop.f32.mrb[0].mxu0
    %v3802 = vadd.f32 0.0, %v3801
    %v3803 = vpop.f32.mrb[0].mxu0
    %v3804 = vadd.f32 0.0, %v3803
    %v3805 = vpop.f32.mrb[0].mxu0
    %v3806 = vadd.f32 0.0, %v3805
    %v3807 = vpop.f32.mrb[0].mxu0
    %v3808 = vadd.f32 0.0, %v3807
    %3809 = vmatprep.mubr.bf16.mxu0 %v1152
    %3810 = vmatmul.mubr.bf16.gmra.mrb[0].mxu0 %v1151
    %v3811 = vpop.f32.mrb[0].mxu0
    %v3812 = vadd.f32 0.0, %v3811
    %v3813 = vpop.f32.mrb[0].mxu0
    %v3814 = vadd.f32 0.0, %v3813
    %v3815 = vpop.f32.mrb[0].mxu0
    %v3816 = vadd.f32 0.0, %v3815
    %v3817 = vpop.f32.mrb[0].mxu0
    %v3818 = vadd.f32 0.0, %v3817
    %3819 = vmatprep.mubr.bf16.mxu0 %v1156
    %3820 = vmatmul.mubr.bf16.gmra.mrb[0].mxu0 %v1155
    %v3821 = vpop.f32.mrb[0].mxu0
    %v3822 = vadd.f32 0.0, %v3821
    %v3823 = vpop.f32.mrb[0].mxu0
    %v3824 = vadd.f32 0.0, %v3823
    %v3825 = vpop.f32.mrb[0].mxu0
    %v3826 = vadd.f32 0.0, %v3825
    %v3827 = vpop.f32.mrb[0].mxu0
    %v3828 = vadd.f32 0.0, %v3827
    %3829 = vmatprep.mubr.bf16.mxu0 %v1160
    %3830 = vmatmul.mubr.bf16.gmra.mrb[0].mxu0 %v1159
    %v3831 = vpop.f32.mrb[0].mxu0
    %v3832 = vadd.f32 0.0, %v3831
    %v3833 = vpop.f32.mrb[0].mxu0
    %v3834 = vadd.f32 0.0, %v3833
    %v3835 = vpop.f32.mrb[0].mxu0
    %v3836 = vadd.f32 0.0, %v3835
    %v3837 = vpop.f32.mrb[0].mxu0
    %v3838 = vadd.f32 0.0, %v3837
    %3839 = vmatprep.mubr.bf16.mxu0 %v1164
    %3840 = vmatmul.mubr.bf16.gmra.mrb[0].mxu0 %v1163
    %v3841 = vpop.f32.mrb[0].mxu0
    %v3842 = vadd.f32 0.0, %v3841
    %v3843 = vpop.f32.mrb[0].mxu0
    %v3844 = vadd.f32 0.0, %v3843
    %v3845 = vpop.f32.mrb[0].mxu0
    %v3846 = vadd.f32 0.0, %v3845
    %v3847 = vpop.f32.mrb[0].mxu0
    %v3848 = vadd.f32 0.0, %v3847
    %3849 = vmatprep.mubr.bf16.mxu0 %v1168
    %3850 = vmatmul.mubr.bf16.gmra.mrb[0].mxu0 %v1167
    %v3851 = vpop.f32.mrb[0].mxu0
    %v3852 = vadd.f32 0.0, %v3851
    %v3853 = vpop.f32.mrb[0].mxu0
    %v3854 = vadd.f32 0.0, %v3853
    %v3855 = vpop.f32.mrb[0].mxu0
    %v3856 = vadd.f32 0.0, %v3855
    %v3857 = vpop.f32.mrb[0].mxu0
    %v3858 = vadd.f32 0.0, %v3857
    %3859 = vmatprep.mubr.bf16.mxu0 %v1172
    %3860 = vmatmul.mubr.bf16.gmra.mrb[0].mxu0 %v1171
    %v3861 = vpop.f32.mrb[0].mxu0
    %v3862 = vadd.f32 0.0, %v3861
    %v3863 = vpop.f32.mrb[0].mxu0
    %v3864 = vadd.f32 0.0, %v3863
    %v3865 = vpop.f32.mrb[0].mxu0
    %v3866 = vadd.f32 0.0, %v3865
    %v3867 = vpop.f32.mrb[0].mxu0
    %v3868 = vadd.f32 0.0, %v3867
    %3869 = vdwg.mxu0
    %3870 = vmatprep.subr.bf16.mxu0 %v2142
    %3871 = vmatpush1.bf16.msra.mxu0 %v2141
    %3872 = vmatprep.subr.bf16.mxu0 %v2150
    %3873 = vmatpush1.bf16.msra.mxu0 %v2149
    %3874 = vmatprep.subr.bf16.mxu0 %v2158
    %3875 = vmatpush1.bf16.msra.mxu0 %v2157
    %3876 = vmatprep.subr.bf16.mxu0 %v2166
    %3877 = vmatpush1.bf16.msra.mxu0 %v2165
    %3878 = vmatprep.subr.bf16.mxu0 %v2174
    %3879 = vmatpush1.bf16.msra.mxu0 %v2173
    %3880 = vmatprep.subr.bf16.mxu0 %v2182
    %3881 = vmatpush1.bf16.msra.mxu0 %v2181
    %3882 = vmatprep.subr.bf16.mxu0 %v2190
    %3883 = vmatpush1.bf16.msra.mxu0 %v2189
    %3884 = vmatprep.subr.bf16.mxu0 %v2198
    %3885 = vmatpush1.bf16.msra.mxu0 %v2197
    %3886 = vmatprep.subr.bf16.mxu0 %v2206
    %3887 = vmatpush1.bf16.msra.mxu0 %v2205
    %3888 = vmatprep.subr.bf16.mxu0 %v2214
    %3889 = vmatpush1.bf16.msra.mxu0 %v2213
    %3890 = vmatprep.subr.bf16.mxu0 %v2222
    %3891 = vmatpush1.bf16.msra.mxu0 %v2221
    %3892 = vmatprep.subr.bf16.mxu0 %v2230
    %3893 = vmatpush1.bf16.msra.mxu0 %v2229
    %3894 = vmatprep.subr.bf16.mxu0 %v2238
    %3895 = vmatpush1.bf16.msra.mxu0 %v2237
    %3896 = vmatprep.subr.bf16.mxu0 %v2246
    %3897 = vmatpush1.bf16.msra.mxu0 %v2245
    %3898 = vmatprep.subr.bf16.mxu0 %v2254
    %3899 = vmatpush1.bf16.msra.mxu0 %v2253
    %3900 = vmatprep.subr.bf16.mxu0 %v2262
    %3901 = vmatpush1.bf16.msra.mxu0 %v2261
    %3902 = vmatprep.mubr.bf16.mxu0 %v1114
    %3903 = vmatmul.mubr.bf16.gmra.mrb[0].mxu0 %v1113
    %v3904 = vpop.f32.mrb[0].mxu0
    %v3905 = vadd.f32 %v3712, %v3904
    %v3906 = vpop.f32.mrb[0].mxu0
    %v3907 = vadd.f32 %v3714, %v3906
    %v3908 = vpop.f32.mrb[0].mxu0
    %v3909 = vadd.f32 %v3716, %v3908
    %v3910 = vpop.f32.mrb[0].mxu0
    %v3911 = vadd.f32 %v3718, %v3910
    %3912 = vmatprep.mubr.bf16.mxu0 %v1118
    %3913 = vmatmul.mubr.bf16.gmra.mrb[0].mxu0 %v1117
    %v3914 = vpop.f32.mrb[0].mxu0
    %v3915 = vadd.f32 %v3722, %v3914
    %v3916 = vpop.f32.mrb[0].mxu0
    %v3917 = vadd.f32 %v3724, %v3916
    %v3918 = vpop.f32.mrb[0].mxu0
    %v3919 = vadd.f32 %v3726, %v3918
    %v3920 = vpop.f32.mrb[0].mxu0
    %v3921 = vadd.f32 %v3728, %v3920
    %3922 = vmatprep.mubr.bf16.mxu0 %v1122
    %3923 = vmatmul.mubr.bf16.gmra.mrb[0].mxu0 %v1121
    %v3924 = vpop.f32.mrb[0].mxu0
    %v3925 = vadd.f32 %v3732, %v3924
    %v3926 = vpop.f32.mrb[0].mxu0
    %v3927 = vadd.f32 %v3734, %v3926
    %v3928 = vpop.f32.mrb[0].mxu0
    %v3929 = vadd.f32 %v3736, %v3928
    %v3930 = vpop.f32.mrb[0].mxu0
    %v3931 = vadd.f32 %v3738, %v3930
    %3932 = vmatprep.mubr.bf16.mxu0 %v1126
    %3933 = vmatmul.mubr.bf16.gmra.mrb[0].mxu0 %v1125
    %v3934 = vpop.f32.mrb[0].mxu0
    %v3935 = vadd.f32 %v3742, %v3934
    %v3936 = vpop.f32.mrb[0].mxu0
    %v3937 = vadd.f32 %v3744, %v3936
    %v3938 = vpop.f32.mrb[0].mxu0
    %v3939 = vadd.f32 %v3746, %v3938
    %v3940 = vpop.f32.mrb[0].mxu0
    %v3941 = vadd.f32 %v3748, %v3940
    %3942 = vmatprep.mubr.bf16.mxu0 %v1130
    %3943 = vmatmul.mubr.bf16.gmra.mrb[0].mxu0 %v1129
    %v3944 = vpop.f32.mrb[0].mxu0
    %v3945 = vadd.f32 %v3752, %v3944
    %v3946 = vpop.f32.mrb[0].mxu0
    %v3947 = vadd.f32 %v3754, %v3946
    %v3948 = vpop.f32.mrb[0].mxu0
    %v3949 = vadd.f32 %v3756, %v3948
    %v3950 = vpop.f32.mrb[0].mxu0
    %v3951 = vadd.f32 %v3758, %v3950
    %3952 = vmatprep.mubr.bf16.mxu0 %v1134
    %3953 = vmatmul.mubr.bf16.gmra.mrb[0].mxu0 %v1133
    %v3954 = vpop.f32.mrb[0].mxu0
    %v3955 = vadd.f32 %v3762, %v3954
    %v3956 = vpop.f32.mrb[0].mxu0
    %v3957 = vadd.f32 %v3764, %v3956
    %v3958 = vpop.f32.mrb[0].mxu0
    %v3959 = vadd.f32 %v3766, %v3958
    %v3960 = vpop.f32.mrb[0].mxu0
    %v3961 = vadd.f32 %v3768, %v3960
    %3962 = vmatprep.mubr.bf16.mxu0 %v1138
    %3963 = vmatmul.mubr.bf16.gmra.mrb[0].mxu0 %v1137
    %v3964 = vpop.f32.mrb[0].mxu0
    %v3965 = vadd.f32 %v3772, %v3964
    %v3966 = vpop.f32.mrb[0].mxu0
    %v3967 = vadd.f32 %v3774, %v3966
    %v3968 = vpop.f32.mrb[0].mxu0
    %v3969 = vadd.f32 %v3776, %v3968
    %v3970 = vpop.f32.mrb[0].mxu0
    %v3971 = vadd.f32 %v3778, %v3970
    %3972 = vmatprep.mubr.bf16.mxu0 %v1142
    %3973 = vmatmul.mubr.bf16.gmra.mrb[0].mxu0 %v1141
    %v3974 = vpop.f32.mrb[0].mxu0
    %v3975 = vadd.f32 %v3782, %v3974
    %v3976 = vpop.f32.mrb[0].mxu0
    %v3977 = vadd.f32 %v3784, %v3976
    %v3978 = vpop.f32.mrb[0].mxu0
    %v3979 = vadd.f32 %v3786, %v3978
    %v3980 = vpop.f32.mrb[0].mxu0
    %v3981 = vadd.f32 %v3788, %v3980
    %3982 = vmatprep.mubr.bf16.mxu0 %v1146
    %3983 = vmatmul.mubr.bf16.gmra.mrb[0].mxu0 %v1145
    %v3984 = vpop.f32.mrb[0].mxu0
    %v3985 = vadd.f32 %v3792, %v3984
    %v3986 = vpop.f32.mrb[0].mxu0
    %v3987 = vadd.f32 %v3794, %v3986
    %v3988 = vpop.f32.mrb[0].mxu0
    %v3989 = vadd.f32 %v3796, %v3988
    %v3990 = vpop.f32.mrb[0].mxu0
    %v3991 = vadd.f32 %v3798, %v3990
    %3992 = vmatprep.mubr.bf16.mxu0 %v1150
    %3993 = vmatmul.mubr.bf16.gmra.mrb[0].mxu0 %v1149
    %v3994 = vpop.f32.mrb[0].mxu0
    %v3995 = vadd.f32 %v3802, %v3994
    %v3996 = vpop.f32.mrb[0].mxu0
    %v3997 = vadd.f32 %v3804, %v3996
    %v3998 = vpop.f32.mrb[0].mxu0
    %v3999 = vadd.f32 %v3806, %v3998
    %v4000 = vpop.f32.mrb[0].mxu0
    %v4001 = vadd.f32 %v3808, %v4000
    %4002 = vmatprep.mubr.bf16.mxu0 %v1154
    %4003 = vmatmul.mubr.bf16.gmra.mrb[0].mxu0 %v1153
    %v4004 = vpop.f32.mrb[0].mxu0
    %v4005 = vadd.f32 %v3812, %v4004
    %v4006 = vpop.f32.mrb[0].mxu0
    %v4007 = vadd.f32 %v3814, %v4006
    %v4008 = vpop.f32.mrb[0].mxu0
    %v4009 = vadd.f32 %v3816, %v4008
    %v4010 = vpop.f32.mrb[0].mxu0
    %v4011 = vadd.f32 %v3818, %v4010
    %4012 = vmatprep.mubr.bf16.mxu0 %v1158
    %4013 = vmatmul.mubr.bf16.gmra.mrb[0].mxu0 %v1157
    %v4014 = vpop.f32.mrb[0].mxu0
    %v4015 = vadd.f32 %v3822, %v4014
    %v4016 = vpop.f32.mrb[0].mxu0
    %v4017 = vadd.f32 %v3824, %v4016
    %v4018 = vpop.f32.mrb[0].mxu0
    %v4019 = vadd.f32 %v3826, %v4018
    %v4020 = vpop.f32.mrb[0].mxu0
    %v4021 = vadd.f32 %v3828, %v4020
    %4022 = vmatprep.mubr.bf16.mxu0 %v1162
    %4023 = vmatmul.mubr.bf16.gmra.mrb[0].mxu0 %v1161
    %v4024 = vpop.f32.mrb[0].mxu0
    %v4025 = vadd.f32 %v3832, %v4024
    %v4026 = vpop.f32.mrb[0].mxu0
    %v4027 = vadd.f32 %v3834, %v4026
    %v4028 = vpop.f32.mrb[0].mxu0
    %v4029 = vadd.f32 %v3836, %v4028
    %v4030 = vpop.f32.mrb[0].mxu0
    %v4031 = vadd.f32 %v3838, %v4030
    %4032 = vmatprep.mubr.bf16.mxu0 %v1166
    %4033 = vmatmul.mubr.bf16.gmra.mrb[0].mxu0 %v1165
    %v4034 = vpop.f32.mrb[0].mxu0
    %v4035 = vadd.f32 %v3842, %v4034
    %v4036 = vpop.f32.mrb[0].mxu0
    %v4037 = vadd.f32 %v3844, %v4036
    %v4038 = vpop.f32.mrb[0].mxu0
    %v4039 = vadd.f32 %v3846, %v4038
    %v4040 = vpop.f32.mrb[0].mxu0
    %v4041 = vadd.f32 %v3848, %v4040
    %4042 = vmatprep.mubr.bf16.mxu0 %v1170
    %4043 = vmatmul.mubr.bf16.gmra.mrb[0].mxu0 %v1169
    %v4044 = vpop.f32.mrb[0].mxu0
    %v4045 = vadd.f32 %v3852, %v4044
    %v4046 = vpop.f32.mrb[0].mxu0
    %v4047 = vadd.f32 %v3854, %v4046
    %v4048 = vpop.f32.mrb[0].mxu0
    %v4049 = vadd.f32 %v3856, %v4048
    %v4050 = vpop.f32.mrb[0].mxu0
    %v4051 = vadd.f32 %v3858, %v4050
    %4052 = vmatprep.mubr.bf16.mxu0 %v1174
    %4053 = vmatmul.mubr.bf16.gmra.mrb[0].mxu0 %v1173
    %v4054 = vpop.f32.mrb[0].mxu0
    %v4055 = vadd.f32 %v3862, %v4054
    %v4056 = vpop.f32.mrb[0].mxu0
    %v4057 = vadd.f32 %v3864, %v4056
    %v4058 = vpop.f32.mrb[0].mxu0
    %v4059 = vadd.f32 %v3866, %v4058
    %v4060 = vpop.f32.mrb[0].mxu0
    %v4061 = vadd.f32 %v3868, %v4060
    %4062 = vdwg.mxu0
    %v4063 = vadd.f32 %v343, %v2747
    %v4064 = vadd.f32 %v344, %v2749
    %v4065 = vadd.f32 %v345, %v3133
    %v4066 = vadd.f32 %v346, %v3135
    %v4067 = vadd.f32 %v347, %v3519
    %v4068 = vadd.f32 %v348, %v3521
    %v4069 = vadd.f32 %v349, %v3905
    %v4070 = vadd.f32 %v350, %v3907
    %v4071 = vadd.f32 %v351, %v2751
    %v4072 = vadd.f32 %v352, %v2753
    %v4073 = vadd.f32 %v353, %v3137
    %v4074 = vadd.f32 %v354, %v3139
    %v4075 = vadd.f32 %v355, %v3523
    %v4076 = vadd.f32 %v356, %v3525
    %v4077 = vadd.f32 %v357, %v3909
    %v4078 = vadd.f32 %v358, %v3911
    %v4079 = vadd.f32 %v359, %v2757
    %v4080 = vadd.f32 %v360, %v2759
    %v4081 = vadd.f32 %v361, %v3143
    %v4082 = vadd.f32 %v362, %v3145
    %v4083 = vadd.f32 %v363, %v3529
    %v4084 = vadd.f32 %v364, %v3531
    %v4085 = vadd.f32 %v365, %v3915
    %v4086 = vadd.f32 %v366, %v3917
    %v4087 = vadd.f32 %v367, %v2761
    %v4088 = vadd.f32 %v368, %v2763
    %v4089 = vadd.f32 %v369, %v3147
    %v4090 = vadd.f32 %v370, %v3149
    %v4091 = vadd.f32 %v371, %v3533
    %v4092 = vadd.f32 %v372, %v3535
    %v4093 = vadd.f32 %v373, %v3919
    %v4094 = vadd.f32 %v374, %v3921
    %v4095 = vadd.f32 %v375, %v2767
    %v4096 = vadd.f32 %v376, %v2769
    %v4097 = vadd.f32 %v377, %v3153
    %v4098 = vadd.f32 %v378, %v3155
    %v4099 = vadd.f32 %v379, %v3539
    %v4100 = vadd.f32 %v380, %v3541
    %v4101 = vadd.f32 %v381, %v3925
    %v4102 = vadd.f32 %v382, %v3927
    %v4103 = vadd.f32 %v383, %v2771
    %v4104 = vadd.f32 %v384, %v2773
    %v4105 = vadd.f32 %v385, %v3157
    %v4106 = vadd.f32 %v386, %v3159
    %v4107 = vadd.f32 %v387, %v3543
    %v4108 = vadd.f32 %v388, %v3545
    %v4109 = vadd.f32 %v389, %v3929
    %v4110 = vadd.f32 %v390, %v3931
    %v4111 = vadd.f32 %v391, %v2777
    %v4112 = vadd.f32 %v392, %v2779
    %v4113 = vadd.f32 %v393, %v3163
    %v4114 = vadd.f32 %v394, %v3165
    %v4115 = vadd.f32 %v395, %v3549
    %v4116 = vadd.f32 %v396, %v3551
    %v4117 = vadd.f32 %v397, %v3935
    %v4118 = vadd.f32 %v398, %v3937
    %v4119 = vadd.f32 %v399, %v2781
    %v4120 = vadd.f32 %v400, %v2783
    %v4121 = vadd.f32 %v401, %v3167
    %v4122 = vadd.f32 %v402, %v3169
    %v4123 = vadd.f32 %v403, %v3553
    %v4124 = vadd.f32 %v404, %v3555
    %v4125 = vadd.f32 %v405, %v3939
    %v4126 = vadd.f32 %v406, %v3941
    %v4127 = vadd.f32 %v407, %v2787
    %v4128 = vadd.f32 %v408, %v2789
    %v4129 = vadd.f32 %v409, %v3173
    %v4130 = vadd.f32 %v410, %v3175
    %v4131 = vadd.f32 %v411, %v3559
    %v4132 = vadd.f32 %v412, %v3561
    %v4133 = vadd.f32 %v413, %v3945
    %v4134 = vadd.f32 %v414, %v3947
    %v4135 = vadd.f32 %v415, %v2791
    %v4136 = vadd.f32 %v416, %v2793
    %v4137 = vadd.f32 %v417, %v3177
    %v4138 = vadd.f32 %v418, %v3179
    %v4139 = vadd.f32 %v419, %v3563
    %v4140 = vadd.f32 %v420, %v3565
    %v4141 = vadd.f32 %v421, %v3949
    %v4142 = vadd.f32 %v422, %v3951
    %v4143 = vadd.f32 %v423, %v2797
    %v4144 = vadd.f32 %v424, %v2799
    %v4145 = vadd.f32 %v425, %v3183
    %v4146 = vadd.f32 %v426, %v3185
    %v4147 = vadd.f32 %v427, %v3569
    %v4148 = vadd.f32 %v428, %v3571
    %v4149 = vadd.f32 %v429, %v3955
    %v4150 = vadd.f32 %v430, %v3957
    %v4151 = vadd.f32 %v431, %v2801
    %v4152 = vadd.f32 %v432, %v2803
    %v4153 = vadd.f32 %v433, %v3187
    %v4154 = vadd.f32 %v434, %v3189
    %v4155 = vadd.f32 %v435, %v3573
    %v4156 = vadd.f32 %v436, %v3575
    %v4157 = vadd.f32 %v437, %v3959
    %v4158 = vadd.f32 %v438, %v3961
    %v4159 = vadd.f32 %v439, %v2807
    %v4160 = vadd.f32 %v440, %v2809
    %v4161 = vadd.f32 %v441, %v3193
    %v4162 = vadd.f32 %v442, %v3195
    %v4163 = vadd.f32 %v443, %v3579
    %v4164 = vadd.f32 %v444, %v3581
    %v4165 = vadd.f32 %v445, %v3965
    %v4166 = vadd.f32 %v446, %v3967
    %v4167 = vadd.f32 %v447, %v2811
    %v4168 = vadd.f32 %v448, %v2813
    %v4169 = vadd.f32 %v449, %v3197
    %v4170 = vadd.f32 %v450, %v3199
    %v4171 = vadd.f32 %v451, %v3583
    %v4172 = vadd.f32 %v452, %v3585
    %v4173 = vadd.f32 %v453, %v3969
    %v4174 = vadd.f32 %v454, %v3971
    %v4175 = vadd.f32 %v455, %v2817
    %v4176 = vadd.f32 %v456, %v2819
    %v4177 = vadd.f32 %v457, %v3203
    %v4178 = vadd.f32 %v458, %v3205
    %v4179 = vadd.f32 %v459, %v3589
    %v4180 = vadd.f32 %v460, %v3591
    %v4181 = vadd.f32 %v461, %v3975
    %v4182 = vadd.f32 %v462, %v3977
    %v4183 = vadd.f32 %v463, %v2821
    %v4184 = vadd.f32 %v464, %v2823
    %v4185 = vadd.f32 %v465, %v3207
    %v4186 = vadd.f32 %v466, %v3209
    %v4187 = vadd.f32 %v467, %v3593
    %v4188 = vadd.f32 %v468, %v3595
    %v4189 = vadd.f32 %v469, %v3979
    %v4190 = vadd.f32 %v470, %v3981
    %v4191 = vadd.f32 %v471, %v2827
    %v4192 = vadd.f32 %v472, %v2829
    %v4193 = vadd.f32 %v473, %v3213
    %v4194 = vadd.f32 %v474, %v3215
    %v4195 = vadd.f32 %v475, %v3599
    %v4196 = vadd.f32 %v476, %v3601
    %v4197 = vadd.f32 %v477, %v3985
    %v4198 = vadd.f32 %v478, %v3987
    %v4199 = vadd.f32 %v479, %v2831
    %v4200 = vadd.f32 %v480, %v2833
    %v4201 = vadd.f32 %v481, %v3217
    %v4202 = vadd.f32 %v482, %v3219
    %v4203 = vadd.f32 %v483, %v3603
    %v4204 = vadd.f32 %v484, %v3605
    %v4205 = vadd.f32 %v485, %v3989
    %v4206 = vadd.f32 %v486, %v3991
    %v4207 = vadd.f32 %v487, %v2837
    %v4208 = vadd.f32 %v488, %v2839
    %v4209 = vadd.f32 %v489, %v3223
    %v4210 = vadd.f32 %v490, %v3225
    %v4211 = vadd.f32 %v491, %v3609
    %v4212 = vadd.f32 %v492, %v3611
    %v4213 = vadd.f32 %v493, %v3995
    %v4214 = vadd.f32 %v494, %v3997
    %v4215 = vadd.f32 %v495, %v2841
    %v4216 = vadd.f32 %v496, %v2843
    %v4217 = vadd.f32 %v497, %v3227
    %v4218 = vadd.f32 %v498, %v3229
    %v4219 = vadd.f32 %v499, %v3613
    %v4220 = vadd.f32 %v500, %v3615
    %v4221 = vadd.f32 %v501, %v3999
    %v4222 = vadd.f32 %v502, %v4001
    %v4223 = vadd.f32 %v503, %v2847
    %v4224 = vadd.f32 %v504, %v2849
    %v4225 = vadd.f32 %v505, %v3233
    %v4226 = vadd.f32 %v506, %v3235
    %v4227 = vadd.f32 %v507, %v3619
    %v4228 = vadd.f32 %v508, %v3621
    %v4229 = vadd.f32 %v509, %v4005
    %v4230 = vadd.f32 %v510, %v4007
    %v4231 = vadd.f32 %v511, %v2851
    %v4232 = vadd.f32 %v512, %v2853
    %v4233 = vadd.f32 %v513, %v3237
    %v4234 = vadd.f32 %v514, %v3239
    %v4235 = vadd.f32 %v515, %v3623
    %v4236 = vadd.f32 %v516, %v3625
    %v4237 = vadd.f32 %v517, %v4009
    %v4238 = vadd.f32 %v518, %v4011
    %v4239 = vadd.f32 %v519, %v2857
    %v4240 = vadd.f32 %v520, %v2859
    %v4241 = vadd.f32 %v521, %v3243
    %v4242 = vadd.f32 %v522, %v3245
    %v4243 = vadd.f32 %v523, %v3629
    %v4244 = vadd.f32 %v524, %v3631
    %v4245 = vadd.f32 %v525, %v4015
    %v4246 = vadd.f32 %v526, %v4017
    %v4247 = vadd.f32 %v527, %v2861
    %v4248 = vadd.f32 %v528, %v2863
    %v4249 = vadd.f32 %v529, %v3247
    %v4250 = vadd.f32 %v530, %v3249
    %v4251 = vadd.f32 %v531, %v3633
    %v4252 = vadd.f32 %v532, %v3635
    %v4253 = vadd.f32 %v533, %v4019
    %v4254 = vadd.f32 %v534, %v4021
    %v4255 = vadd.f32 %v535, %v2867
    %v4256 = vadd.f32 %v536, %v2869
    %v4257 = vadd.f32 %v537, %v3253
    %v4258 = vadd.f32 %v538, %v3255
    %v4259 = vadd.f32 %v539, %v3639
    %v4260 = vadd.f32 %v540, %v3641
    %v4261 = vadd.f32 %v541, %v4025
    %v4262 = vadd.f32 %v542, %v4027
    %v4263 = vadd.f32 %v543, %v2871
    %v4264 = vadd.f32 %v544, %v2873
    %v4265 = vadd.f32 %v545, %v3257
    %v4266 = vadd.f32 %v546, %v3259
    %v4267 = vadd.f32 %v547, %v3643
    %v4268 = vadd.f32 %v548, %v3645
    %v4269 = vadd.f32 %v549, %v4029
    %v4270 = vadd.f32 %v550, %v4031
    %v4271 = vadd.f32 %v551, %v2877
    %v4272 = vadd.f32 %v552, %v2879
    %v4273 = vadd.f32 %v553, %v3263
    %v4274 = vadd.f32 %v554, %v3265
    %v4275 = vadd.f32 %v555, %v3649
    %v4276 = vadd.f32 %v556, %v3651
    %v4277 = vadd.f32 %v557, %v4035
    %v4278 = vadd.f32 %v558, %v4037
    %v4279 = vadd.f32 %v559, %v2881
    %v4280 = vadd.f32 %v560, %v2883
    %v4281 = vadd.f32 %v561, %v3267
    %v4282 = vadd.f32 %v562, %v3269
    %v4283 = vadd.f32 %v563, %v3653
    %v4284 = vadd.f32 %v564, %v3655
    %v4285 = vadd.f32 %v565, %v4039
    %v4286 = vadd.f32 %v566, %v4041
    %v4287 = vadd.f32 %v567, %v2887
    %v4288 = vadd.f32 %v568, %v2889
    %v4289 = vadd.f32 %v569, %v3273
    %v4290 = vadd.f32 %v570, %v3275
    %v4291 = vadd.f32 %v571, %v3659
    %v4292 = vadd.f32 %v572, %v3661
    %v4293 = vadd.f32 %v573, %v4045
    %v4294 = vadd.f32 %v574, %v4047
    %v4295 = vadd.f32 %v575, %v2891
    %v4296 = vadd.f32 %v576, %v2893
    %v4297 = vadd.f32 %v577, %v3277
    %v4298 = vadd.f32 %v578, %v3279
    %v4299 = vadd.f32 %v579, %v3663
    %v4300 = vadd.f32 %v580, %v3665
    %v4301 = vadd.f32 %v581, %v4049
    %v4302 = vadd.f32 %v582, %v4051
    %v4303 = vadd.f32 %v583, %v2897
    %v4304 = vadd.f32 %v584, %v2899
    %v4305 = vadd.f32 %v585, %v3283
    %v4306 = vadd.f32 %v586, %v3285
    %v4307 = vadd.f32 %v587, %v3669
    %v4308 = vadd.f32 %v588, %v3671
    %v4309 = vadd.f32 %v589, %v4055
    %v4310 = vadd.f32 %v590, %v4057
    %v4311 = vadd.f32 %v591, %v2901
    %v4312 = vadd.f32 %v592, %v2903
    %v4313 = vadd.f32 %v593, %v3287
    %v4314 = vadd.f32 %v594, %v3289
    %v4315 = vadd.f32 %v595, %v3673
    %v4316 = vadd.f32 %v596, %v3675
    %v4317 = vadd.f32 %v597, %v4059
    %v4318 = vadd.f32 %v598, %v4061
    %4319 = vst [vmem:[#allocation2] sm:$0xff] %v4063
    %4320 = vst [vmem:[#allocation2 + $0x8] sm:$0xff] %v4064
    %4321 = vst [vmem:[#allocation2 + $0x10] sm:$0xff] %v4065
    %4322 = vst [vmem:[#allocation2 + $0x18] sm:$0xff] %v4066
    %4323 = vst [vmem:[#allocation2 + $0x20] sm:$0xff] %v4067
    %4324 = vst [vmem:[#allocation2 + $0x28] sm:$0xff] %v4068
    %4325 = vst [vmem:[#allocation2 + $0x30] sm:$0xff] %v4069
    %4326 = vst [vmem:[#allocation2 + $0x38] sm:$0xff] %v4070
    %4327 = vst [vmem:[#allocation2 + $0x40] sm:$0xff] %v4071
    %4328 = vst [vmem:[#allocation2 + $0x48] sm:$0xff] %v4072
    %4329 = vst [vmem:[#allocation2 + $0x50] sm:$0xff] %v4073
    %4330 = vst [vmem:[#allocation2 + $0x58] sm:$0xff] %v4074
    %4331 = vst [vmem:[#allocation2 + $0x60] sm:$0xff] %v4075
    %4332 = vst [vmem:[#allocation2 + $0x68] sm:$0xff] %v4076
    %4333 = vst [vmem:[#allocation2 + $0x70] sm:$0xff] %v4077
    %4334 = vst [vmem:[#allocation2 + $0x78] sm:$0xff] %v4078
    %4335 = vst [vmem:[#allocation2 + $0x80] sm:$0xff] %v4079
    %4336 = vst [vmem:[#allocation2 + $0x88] sm:$0xff] %v4080
    %4337 = vst [vmem:[#allocation2 + $0x90] sm:$0xff] %v4081
    %4338 = vst [vmem:[#allocation2 + $0x98] sm:$0xff] %v4082
    %4339 = vst [vmem:[#allocation2 + $0xa0] sm:$0xff] %v4083
    %4340 = vst [vmem:[#allocation2 + $0xa8] sm:$0xff] %v4084
    %4341 = vst [vmem:[#allocation2 + $0xb0] sm:$0xff] %v4085
    %4342 = vst [vmem:[#allocation2 + $0xb8] sm:$0xff] %v4086
    %4343 = vst [vmem:[#allocation2 + $0xc0] sm:$0xff] %v4087
    %4344 = vst [vmem:[#allocation2 + $0xc8] sm:$0xff] %v4088
    %4345 = vst [vmem:[#allocation2 + $0xd0] sm:$0xff] %v4089
    %4346 = vst [vmem:[#allocation2 + $0xd8] sm:$0xff] %v4090
    %4347 = vst [vmem:[#allocation2 + $0xe0] sm:$0xff] %v4091
    %4348 = vst [vmem:[#allocation2 + $0xe8] sm:$0xff] %v4092
    %4349 = vst [vmem:[#allocation2 + $0xf0] sm:$0xff] %v4093
    %4350 = vst [vmem:[#allocation2 + $0xf8] sm:$0xff] %v4094
    %4351 = vst [vmem:[#allocation2 + $0x100] sm:$0xff] %v4095
    %4352 = vst [vmem:[#allocation2 + $0x108] sm:$0xff] %v4096
    %4353 = vst [vmem:[#allocation2 + $0x110] sm:$0xff] %v4097
    %4354 = vst [vmem:[#allocation2 + $0x118] sm:$0xff] %v4098
    %4355 = vst [vmem:[#allocation2 + $0x120] sm:$0xff] %v4099
    %4356 = vst [vmem:[#allocation2 + $0x128] sm:$0xff] %v4100
    %4357 = vst [vmem:[#allocation2 + $0x130] sm:$0xff] %v4101
    %4358 = vst [vmem:[#allocation2 + $0x138] sm:$0xff] %v4102
    %4359 = vst [vmem:[#allocation2 + $0x140] sm:$0xff] %v4103
    %4360 = vst [vmem:[#allocation2 + $0x148] sm:$0xff] %v4104
    %4361 = vst [vmem:[#allocation2 + $0x150] sm:$0xff] %v4105
    %4362 = vst [vmem:[#allocation2 + $0x158] sm:$0xff] %v4106
    %4363 = vst [vmem:[#allocation2 + $0x160] sm:$0xff] %v4107
    %4364 = vst [vmem:[#allocation2 + $0x168] sm:$0xff] %v4108
    %4365 = vst [vmem:[#allocation2 + $0x170] sm:$0xff] %v4109
    %4366 = vst [vmem:[#allocation2 + $0x178] sm:$0xff] %v4110
    %4367 = vst [vmem:[#allocation2 + $0x180] sm:$0xff] %v4111
    %4368 = vst [vmem:[#allocation2 + $0x188] sm:$0xff] %v4112
    %4369 = vst [vmem:[#allocation2 + $0x190] sm:$0xff] %v4113
    %4370 = vst [vmem:[#allocation2 + $0x198] sm:$0xff] %v4114
    %4371 = vst [vmem:[#allocation2 + $0x1a0] sm:$0xff] %v4115
    %4372 = vst [vmem:[#allocation2 + $0x1a8] sm:$0xff] %v4116
    %4373 = vst [vmem:[#allocation2 + $0x1b0] sm:$0xff] %v4117
    %4374 = vst [vmem:[#allocation2 + $0x1b8] sm:$0xff] %v4118
    %4375 = vst [vmem:[#allocation2 + $0x1c0] sm:$0xff] %v4119
    %4376 = vst [vmem:[#allocation2 + $0x1c8] sm:$0xff] %v4120
    %4377 = vst [vmem:[#allocation2 + $0x1d0] sm:$0xff] %v4121
    %4378 = vst [vmem:[#allocation2 + $0x1d8] sm:$0xff] %v4122
    %4379 = vst [vmem:[#allocation2 + $0x1e0] sm:$0xff] %v4123
    %4380 = vst [vmem:[#allocation2 + $0x1e8] sm:$0xff] %v4124
    %4381 = vst [vmem:[#allocation2 + $0x1f0] sm:$0xff] %v4125
    %4382 = vst [vmem:[#allocation2 + $0x1f8] sm:$0xff] %v4126
    %4383 = vst [vmem:[#allocation2 + $0x200] sm:$0xff] %v4127
    %4384 = vst [vmem:[#allocation2 + $0x208] sm:$0xff] %v4128
    %4385 = vst [vmem:[#allocation2 + $0x210] sm:$0xff] %v4129
    %4386 = vst [vmem:[#allocation2 + $0x218] sm:$0xff] %v4130
    %4387 = vst [vmem:[#allocation2 + $0x220] sm:$0xff] %v4131
    %4388 = vst [vmem:[#allocation2 + $0x228] sm:$0xff] %v4132
    %4389 = vst [vmem:[#allocation2 + $0x230] sm:$0xff] %v4133
    %4390 = vst [vmem:[#allocation2 + $0x238] sm:$0xff] %v4134
    %4391 = vst [vmem:[#allocation2 + $0x240] sm:$0xff] %v4135
    %4392 = vst [vmem:[#allocation2 + $0x248] sm:$0xff] %v4136
    %4393 = vst [vmem:[#allocation2 + $0x250] sm:$0xff] %v4137
    %4394 = vst [vmem:[#allocation2 + $0x258] sm:$0xff] %v4138
    %4395 = vst [vmem:[#allocation2 + $0x260] sm:$0xff] %v4139
    %4396 = vst [vmem:[#allocation2 + $0x268] sm:$0xff] %v4140
    %4397 = vst [vmem:[#allocation2 + $0x270] sm:$0xff] %v4141
    %4398 = vst [vmem:[#allocation2 + $0x278] sm:$0xff] %v4142
    %4399 = vst [vmem:[#allocation2 + $0x280] sm:$0xff] %v4143
    %4400 = vst [vmem:[#allocation2 + $0x288] sm:$0xff] %v4144
    %4401 = vst [vmem:[#allocation2 + $0x290] sm:$0xff] %v4145
    %4402 = vst [vmem:[#allocation2 + $0x298] sm:$0xff] %v4146
    %4403 = vst [vmem:[#allocation2 + $0x2a0] sm:$0xff] %v4147
    %4404 = vst [vmem:[#allocation2 + $0x2a8] sm:$0xff] %v4148
    %4405 = vst [vmem:[#allocation2 + $0x2b0] sm:$0xff] %v4149
    %4406 = vst [vmem:[#allocation2 + $0x2b8] sm:$0xff] %v4150
    %4407 = vst [vmem:[#allocation2 + $0x2c0] sm:$0xff] %v4151
    %4408 = vst [vmem:[#allocation2 + $0x2c8] sm:$0xff] %v4152
    %4409 = vst [vmem:[#allocation2 + $0x2d0] sm:$0xff] %v4153
    %4410 = vst [vmem:[#allocation2 + $0x2d8] sm:$0xff] %v4154
    %4411 = vst [vmem:[#allocation2 + $0x2e0] sm:$0xff] %v4155
    %4412 = vst [vmem:[#allocation2 + $0x2e8] sm:$0xff] %v4156
    %4413 = vst [vmem:[#allocation2 + $0x2f0] sm:$0xff] %v4157
    %4414 = vst [vmem:[#allocation2 + $0x2f8] sm:$0xff] %v4158
    %4415 = vst [vmem:[#allocation2 + $0x300] sm:$0xff] %v4159
    %4416 = vst [vmem:[#allocation2 + $0x308] sm:$0xff] %v4160
    %4417 = vst [vmem:[#allocation2 + $0x310] sm:$0xff] %v4161
    %4418 = vst [vmem:[#allocation2 + $0x318] sm:$0xff] %v4162
    %4419 = vst [vmem:[#allocation2 + $0x320] sm:$0xff] %v4163
    %4420 = vst [vmem:[#allocation2 + $0x328] sm:$0xff] %v4164
    %4421 = vst [vmem:[#allocation2 + $0x330] sm:$0xff] %v4165
    %4422 = vst [vmem:[#allocation2 + $0x338] sm:$0xff] %v4166
    %4423 = vst [vmem:[#allocation2 + $0x340] sm:$0xff] %v4167
    %4424 = vst [vmem:[#allocation2 + $0x348] sm:$0xff] %v4168
    %4425 = vst [vmem:[#allocation2 + $0x350] sm:$0xff] %v4169
    %4426 = vst [vmem:[#allocation2 + $0x358] sm:$0xff] %v4170
    %4427 = vst [vmem:[#allocation2 + $0x360] sm:$0xff] %v4171
    %4428 = vst [vmem:[#allocation2 + $0x368] sm:$0xff] %v4172
    %4429 = vst [vmem:[#allocation2 + $0x370] sm:$0xff] %v4173
    %4430 = vst [vmem:[#allocation2 + $0x378] sm:$0xff] %v4174
    %4431 = vst [vmem:[#allocation2 + $0x380] sm:$0xff] %v4175
    %4432 = vst [vmem:[#allocation2 + $0x388] sm:$0xff] %v4176
    %4433 = vst [vmem:[#allocation2 + $0x390] sm:$0xff] %v4177
    %4434 = vst [vmem:[#allocation2 + $0x398] sm:$0xff] %v4178
    %4435 = vst [vmem:[#allocation2 + $0x3a0] sm:$0xff] %v4179
    %4436 = vst [vmem:[#allocation2 + $0x3a8] sm:$0xff] %v4180
    %4437 = vst [vmem:[#allocation2 + $0x3b0] sm:$0xff] %v4181
    %4438 = vst [vmem:[#allocation2 + $0x3b8] sm:$0xff] %v4182
    %4439 = vst [vmem:[#allocation2 + $0x3c0] sm:$0xff] %v4183
    %4440 = vst [vmem:[#allocation2 + $0x3c8] sm:$0xff] %v4184
    %4441 = vst [vmem:[#allocation2 + $0x3d0] sm:$0xff] %v4185
    %4442 = vst [vmem:[#allocation2 + $0x3d8] sm:$0xff] %v4186
    %4443 = vst [vmem:[#allocation2 + $0x3e0] sm:$0xff] %v4187
    %4444 = vst [vmem:[#allocation2 + $0x3e8] sm:$0xff] %v4188
    %4445 = vst [vmem:[#allocation2 + $0x3f0] sm:$0xff] %v4189
    %4446 = vst [vmem:[#allocation2 + $0x3f8] sm:$0xff] %v4190
    %4447 = vst [vmem:[#allocation2 + $0x400] sm:$0xff] %v4191
    %4448 = vst [vmem:[#allocation2 + $0x408] sm:$0xff] %v4192
    %4449 = vst [vmem:[#allocation2 + $0x410] sm:$0xff] %v4193
    %4450 = vst [vmem:[#allocation2 + $0x418] sm:$0xff] %v4194
    %4451 = vst [vmem:[#allocation2 + $0x420] sm:$0xff] %v4195
    %4452 = vst [vmem:[#allocation2 + $0x428] sm:$0xff] %v4196
    %4453 = vst [vmem:[#allocation2 + $0x430] sm:$0xff] %v4197
    %4454 = vst [vmem:[#allocation2 + $0x438] sm:$0xff] %v4198
    %4455 = vst [vmem:[#allocation2 + $0x440] sm:$0xff] %v4199
    %4456 = vst [vmem:[#allocation2 + $0x448] sm:$0xff] %v4200
    %4457 = vst [vmem:[#allocation2 + $0x450] sm:$0xff] %v4201
    %4458 = vst [vmem:[#allocation2 + $0x458] sm:$0xff] %v4202
    %4459 = vst [vmem:[#allocation2 + $0x460] sm:$0xff] %v4203
    %4460 = vst [vmem:[#allocation2 + $0x468] sm:$0xff] %v4204
    %4461 = vst [vmem:[#allocation2 + $0x470] sm:$0xff] %v4205
    %4462 = vst [vmem:[#allocation2 + $0x478] sm:$0xff] %v4206
    %4463 = vst [vmem:[#allocation2 + $0x480] sm:$0xff] %v4207
    %4464 = vst [vmem:[#allocation2 + $0x488] sm:$0xff] %v4208
    %4465 = vst [vmem:[#allocation2 + $0x490] sm:$0xff] %v4209
    %4466 = vst [vmem:[#allocation2 + $0x498] sm:$0xff] %v4210
    %4467 = vst [vmem:[#allocation2 + $0x4a0] sm:$0xff] %v4211
    %4468 = vst [vmem:[#allocation2 + $0x4a8] sm:$0xff] %v4212
    %4469 = vst [vmem:[#allocation2 + $0x4b0] sm:$0xff] %v4213
    %4470 = vst [vmem:[#allocation2 + $0x4b8] sm:$0xff] %v4214
    %4471 = vst [vmem:[#allocation2 + $0x4c0] sm:$0xff] %v4215
    %4472 = vst [vmem:[#allocation2 + $0x4c8] sm:$0xff] %v4216
    %4473 = vst [vmem:[#allocation2 + $0x4d0] sm:$0xff] %v4217
    %4474 = vst [vmem:[#allocation2 + $0x4d8] sm:$0xff] %v4218
    %4475 = vst [vmem:[#allocation2 + $0x4e0] sm:$0xff] %v4219
    %4476 = vst [vmem:[#allocation2 + $0x4e8] sm:$0xff] %v4220
    %4477 = vst [vmem:[#allocation2 + $0x4f0] sm:$0xff] %v4221
    %4478 = vst [vmem:[#allocation2 + $0x4f8] sm:$0xff] %v4222
    %4479 = vst [vmem:[#allocation2 + $0x500] sm:$0xff] %v4223
    %4480 = vst [vmem:[#allocation2 + $0x508] sm:$0xff] %v4224
    %4481 = vst [vmem:[#allocation2 + $0x510] sm:$0xff] %v4225
    %4482 = vst [vmem:[#allocation2 + $0x518] sm:$0xff] %v4226
    %4483 = vst [vmem:[#allocation2 + $0x520] sm:$0xff] %v4227
    %4484 = vst [vmem:[#allocation2 + $0x528] sm:$0xff] %v4228
    %4485 = vst [vmem:[#allocation2 + $0x530] sm:$0xff] %v4229
    %4486 = vst [vmem:[#allocation2 + $0x538] sm:$0xff] %v4230
    %4487 = vst [vmem:[#allocation2 + $0x540] sm:$0xff] %v4231
    %4488 = vst [vmem:[#allocation2 + $0x548] sm:$0xff] %v4232
    %4489 = vst [vmem:[#allocation2 + $0x550] sm:$0xff] %v4233
    %4490 = vst [vmem:[#allocation2 + $0x558] sm:$0xff] %v4234
    %4491 = vst [vmem:[#allocation2 + $0x560] sm:$0xff] %v4235
    %4492 = vst [vmem:[#allocation2 + $0x568] sm:$0xff] %v4236
    %4493 = vst [vmem:[#allocation2 + $0x570] sm:$0xff] %v4237
    %4494 = vst [vmem:[#allocation2 + $0x578] sm:$0xff] %v4238
    %4495 = vst [vmem:[#allocation2 + $0x580] sm:$0xff] %v4239
    %4496 = vst [vmem:[#allocation2 + $0x588] sm:$0xff] %v4240
    %4497 = vst [vmem:[#allocation2 + $0x590] sm:$0xff] %v4241
    %4498 = vst [vmem:[#allocation2 + $0x598] sm:$0xff] %v4242
    %4499 = vst [vmem:[#allocation2 + $0x5a0] sm:$0xff] %v4243
    %4500 = vst [vmem:[#allocation2 + $0x5a8] sm:$0xff] %v4244
    %4501 = vst [vmem:[#allocation2 + $0x5b0] sm:$0xff] %v4245
    %4502 = vst [vmem:[#allocation2 + $0x5b8] sm:$0xff] %v4246
    %4503 = vst [vmem:[#allocation2 + $0x5c0] sm:$0xff] %v4247
    %4504 = vst [vmem:[#allocation2 + $0x5c8] sm:$0xff] %v4248
    %4505 = vst [vmem:[#allocation2 + $0x5d0] sm:$0xff] %v4249
    %4506 = vst [vmem:[#allocation2 + $0x5d8] sm:$0xff] %v4250
    %4507 = vst [vmem:[#allocation2 + $0x5e0] sm:$0xff] %v4251
    %4508 = vst [vmem:[#allocation2 + $0x5e8] sm:$0xff] %v4252
    %4509 = vst [vmem:[#allocation2 + $0x5f0] sm:$0xff] %v4253
    %4510 = vst [vmem:[#allocation2 + $0x5f8] sm:$0xff] %v4254
    %4511 = vst [vmem:[#allocation2 + $0x600] sm:$0xff] %v4255
    %4512 = vst [vmem:[#allocation2 + $0x608] sm:$0xff] %v4256
    %4513 = vst [vmem:[#allocation2 + $0x610] sm:$0xff] %v4257
    %4514 = vst [vmem:[#allocation2 + $0x618] sm:$0xff] %v4258
    %4515 = vst [vmem:[#allocation2 + $0x620] sm:$0xff] %v4259
    %4516 = vst [vmem:[#allocation2 + $0x628] sm:$0xff] %v4260
    %4517 = vst [vmem:[#allocation2 + $0x630] sm:$0xff] %v4261
    %4518 = vst [vmem:[#allocation2 + $0x638] sm:$0xff] %v4262
    %4519 = vst [vmem:[#allocation2 + $0x640] sm:$0xff] %v4263
    %4520 = vst [vmem:[#allocation2 + $0x648] sm:$0xff] %v4264
    %4521 = vst [vmem:[#allocation2 + $0x650] sm:$0xff] %v4265
    %4522 = vst [vmem:[#allocation2 + $0x658] sm:$0xff] %v4266
    %4523 = vst [vmem:[#allocation2 + $0x660] sm:$0xff] %v4267
    %4524 = vst [vmem:[#allocation2 + $0x668] sm:$0xff] %v4268
    %4525 = vst [vmem:[#allocation2 + $0x670] sm:$0xff] %v4269
    %4526 = vst [vmem:[#allocation2 + $0x678] sm:$0xff] %v4270
    %4527 = vst [vmem:[#allocation2 + $0x680] sm:$0xff] %v4271
    %4528 = vst [vmem:[#allocation2 + $0x688] sm:$0xff] %v4272
    %4529 = vst [vmem:[#allocation2 + $0x690] sm:$0xff] %v4273
    %4530 = vst [vmem:[#allocation2 + $0x698] sm:$0xff] %v4274
    %4531 = vst [vmem:[#allocation2 + $0x6a0] sm:$0xff] %v4275
    %4532 = vst [vmem:[#allocation2 + $0x6a8] sm:$0xff] %v4276
    %4533 = vst [vmem:[#allocation2 + $0x6b0] sm:$0xff] %v4277
    %4534 = vst [vmem:[#allocation2 + $0x6b8] sm:$0xff] %v4278
    %4535 = vst [vmem:[#allocation2 + $0x6c0] sm:$0xff] %v4279
    %4536 = vst [vmem:[#allocation2 + $0x6c8] sm:$0xff] %v4280
    %4537 = vst [vmem:[#allocation2 + $0x6d0] sm:$0xff] %v4281
    %4538 = vst [vmem:[#allocation2 + $0x6d8] sm:$0xff] %v4282
    %4539 = vst [vmem:[#allocation2 + $0x6e0] sm:$0xff] %v4283
    %4540 = vst [vmem:[#allocation2 + $0x6e8] sm:$0xff] %v4284
    %4541 = vst [vmem:[#allocation2 + $0x6f0] sm:$0xff] %v4285
    %4542 = vst [vmem:[#allocation2 + $0x6f8] sm:$0xff] %v4286
    %4543 = vst [vmem:[#allocation2 + $0x700] sm:$0xff] %v4287
    %4544 = vst [vmem:[#allocation2 + $0x708] sm:$0xff] %v4288
    %4545 = vst [vmem:[#allocation2 + $0x710] sm:$0xff] %v4289
    %4546 = vst [vmem:[#allocation2 + $0x718] sm:$0xff] %v4290
    %4547 = vst [vmem:[#allocation2 + $0x720] sm:$0xff] %v4291
    %4548 = vst [vmem:[#allocation2 + $0x728] sm:$0xff] %v4292
    %4549 = vst [vmem:[#allocation2 + $0x730] sm:$0xff] %v4293
    %4550 = vst [vmem:[#allocation2 + $0x738] sm:$0xff] %v4294
    %4551 = vst [vmem:[#allocation2 + $0x740] sm:$0xff] %v4295
    %4552 = vst [vmem:[#allocation2 + $0x748] sm:$0xff] %v4296
    %4553 = vst [vmem:[#allocation2 + $0x750] sm:$0xff] %v4297
    %4554 = vst [vmem:[#allocation2 + $0x758] sm:$0xff] %v4298
    %4555 = vst [vmem:[#allocation2 + $0x760] sm:$0xff] %v4299
    %4556 = vst [vmem:[#allocation2 + $0x768] sm:$0xff] %v4300
    %4557 = vst [vmem:[#allocation2 + $0x770] sm:$0xff] %v4301
    %4558 = vst [vmem:[#allocation2 + $0x778] sm:$0xff] %v4302
    %4559 = vst [vmem:[#allocation2 + $0x780] sm:$0xff] %v4303
    %4560 = vst [vmem:[#allocation2 + $0x788] sm:$0xff] %v4304
    %4561 = vst [vmem:[#allocation2 + $0x790] sm:$0xff] %v4305
    %4562 = vst [vmem:[#allocation2 + $0x798] sm:$0xff] %v4306
    %4563 = vst [vmem:[#allocation2 + $0x7a0] sm:$0xff] %v4307
    %4564 = vst [vmem:[#allocation2 + $0x7a8] sm:$0xff] %v4308
    %4565 = vst [vmem:[#allocation2 + $0x7b0] sm:$0xff] %v4309
    %4566 = vst [vmem:[#allocation2 + $0x7b8] sm:$0xff] %v4310
    %4567 = vst [vmem:[#allocation2 + $0x7c0] sm:$0xff] %v4311
    %4568 = vst [vmem:[#allocation2 + $0x7c8] sm:$0xff] %v4312
    %4569 = vst [vmem:[#allocation2 + $0x7d0] sm:$0xff] %v4313
    %4570 = vst [vmem:[#allocation2 + $0x7d8] sm:$0xff] %v4314
    %4571 = vst [vmem:[#allocation2 + $0x7e0] sm:$0xff] %v4315
    %4572 = vst [vmem:[#allocation2 + $0x7e8] sm:$0xff] %v4316
    %4573 = vst [vmem:[#allocation2 + $0x7f0] sm:$0xff] %v4317
    %4574 = vst [vmem:[#allocation2 + $0x7f8] sm:$0xff] %v4318
    // Predicated region
    $region46: #{tpu_custom_call.1} parent=1 // pred_check
      %p4575 = pneg %p83
    $region47: #{tpu_custom_call.1} parent=1 // pred_check_branch
      %4577 = sbr.rel (%p4575) target = $region49
    $region48: #{tpu_custom_call.1} parent=1 // pred_region
      %v4578 = vld [vmem:[#allocation8] sm:$0xff]
      %v4579 = vld [vmem:[#allocation8 + $0x8] sm:$0xff]
      %v4580 = vld [vmem:[#allocation8 + $0x10] sm:$0xff]
      %v4581 = vld [vmem:[#allocation8 + $0x18] sm:$0xff]
      %v4582 = vld [vmem:[#allocation8 + $0x20] sm:$0xff]
      %v4583 = vld [vmem:[#allocation8 + $0x28] sm:$0xff]
      %v4584 = vld [vmem:[#allocation8 + $0x30] sm:$0xff]
      %v4585 = vld [vmem:[#allocation8 + $0x38] sm:$0xff]
      %v4586 = vld [vmem:[#allocation8 + $0x40] sm:$0xff]
      %v4587 = vld [vmem:[#allocation8 + $0x48] sm:$0xff]
      %v4588 = vld [vmem:[#allocation8 + $0x50] sm:$0xff]
      %v4589 = vld [vmem:[#allocation8 + $0x58] sm:$0xff]
      %v4590 = vld [vmem:[#allocation8 + $0x60] sm:$0xff]
      %v4591 = vld [vmem:[#allocation8 + $0x68] sm:$0xff]
      %v4592 = vld [vmem:[#allocation8 + $0x70] sm:$0xff]
      %v4593 = vld [vmem:[#allocation8 + $0x78] sm:$0xff]
      %v4594 = vld [vmem:[#allocation8 + $0x80] sm:$0xff]
      %v4595 = vld [vmem:[#allocation8 + $0x88] sm:$0xff]
      %v4596 = vld [vmem:[#allocation8 + $0x90] sm:$0xff]
      %v4597 = vld [vmem:[#allocation8 + $0x98] sm:$0xff]
      %v4598 = vld [vmem:[#allocation8 + $0xa0] sm:$0xff]
      %v4599 = vld [vmem:[#allocation8 + $0xa8] sm:$0xff]
      %v4600 = vld [vmem:[#allocation8 + $0xb0] sm:$0xff]
      %v4601 = vld [vmem:[#allocation8 + $0xb8] sm:$0xff]
      %v4602 = vld [vmem:[#allocation8 + $0xc0] sm:$0xff]
      %v4603 = vld [vmem:[#allocation8 + $0xc8] sm:$0xff]
      %v4604 = vld [vmem:[#allocation8 + $0xd0] sm:$0xff]
      %v4605 = vld [vmem:[#allocation8 + $0xd8] sm:$0xff]
      %v4606 = vld [vmem:[#allocation8 + $0xe0] sm:$0xff]
      %v4607 = vld [vmem:[#allocation8 + $0xe8] sm:$0xff]
      %v4608 = vld [vmem:[#allocation8 + $0xf0] sm:$0xff]
      %v4609 = vld [vmem:[#allocation8 + $0xf8] sm:$0xff]
      %v4610 = vld [vmem:[#allocation9] sm:$0xff]
      %v4611 = vld [vmem:[#allocation9 + $0x8] sm:$0xff]
      %v4612 = vld [vmem:[#allocation9 + $0x10] sm:$0xff]
      %v4613 = vld [vmem:[#allocation9 + $0x18] sm:$0xff]
      %v4614 = vld [vmem:[#allocation9 + $0x20] sm:$0xff]
      %v4615 = vld [vmem:[#allocation9 + $0x28] sm:$0xff]
      %v4616 = vld [vmem:[#allocation9 + $0x30] sm:$0xff]
      %v4617 = vld [vmem:[#allocation9 + $0x38] sm:$0xff]
      %v4618 = vld [vmem:[#allocation9 + $0x40] sm:$0xff]
      %v4619 = vld [vmem:[#allocation9 + $0x48] sm:$0xff]
      %v4620 = vld [vmem:[#allocation9 + $0x50] sm:$0xff]
      %v4621 = vld [vmem:[#allocation9 + $0x58] sm:$0xff]
      %v4622 = vld [vmem:[#allocation9 + $0x60] sm:$0xff]
      %v4623 = vld [vmem:[#allocation9 + $0x68] sm:$0xff]
      %v4624 = vld [vmem:[#allocation9 + $0x70] sm:$0xff]
      %v4625 = vld [vmem:[#allocation9 + $0x78] sm:$0xff]
      %v4626 = vld [vmem:[#allocation9 + $0x80] sm:$0xff]
      %v4627 = vld [vmem:[#allocation9 + $0x88] sm:$0xff]
      %v4628 = vld [vmem:[#allocation9 + $0x90] sm:$0xff]
      %v4629 = vld [vmem:[#allocation9 + $0x98] sm:$0xff]
      %v4630 = vld [vmem:[#allocation9 + $0xa0] sm:$0xff]
      %v4631 = vld [vmem:[#allocation9 + $0xa8] sm:$0xff]
      %v4632 = vld [vmem:[#allocation9 + $0xb0] sm:$0xff]
      %v4633 = vld [vmem:[#allocation9 + $0xb8] sm:$0xff]
      %v4634 = vld [vmem:[#allocation9 + $0xc0] sm:$0xff]
      %v4635 = vld [vmem:[#allocation9 + $0xc8] sm:$0xff]
      %v4636 = vld [vmem:[#allocation9 + $0xd0] sm:$0xff]
      %v4637 = vld [vmem:[#allocation9 + $0xd8] sm:$0xff]
      %v4638 = vld [vmem:[#allocation9 + $0xe0] sm:$0xff]
      %v4639 = vld [vmem:[#allocation9 + $0xe8] sm:$0xff]
      %v4640 = vld [vmem:[#allocation9 + $0xf0] sm:$0xff]
      %v4641 = vld [vmem:[#allocation9 + $0xf8] sm:$0xff]
      %v4642 = vlaneseq
      %v4643 = vand.u32 %v4642, 127
      %vm4644 = vcmp.lt.s32.totalorder %v4643, 64
      %v4645 = vsel %vm4644, -1.0, 1.0
      %v4646 = vld [vmem:[%s2] sm:$0x1]
      %v4647 = vld [vmem:[%s3] sm:$0x1]
      %v4648 = vld [vmem:[#allocation2] sm:$0xff]
      %v4649 = vld [vmem:[#allocation2 + $0x40] sm:$0xff]
      %v4650 = vld [vmem:[#allocation2 + $0x80] sm:$0xff]
      %v4651 = vld [vmem:[#allocation2 + $0xc0] sm:$0xff]
      %v4652 = vld [vmem:[#allocation2 + $0x100] sm:$0xff]
      %v4653 = vld [vmem:[#allocation2 + $0x140] sm:$0xff]
      %v4654 = vld [vmem:[#allocation2 + $0x180] sm:$0xff]
      %v4655 = vld [vmem:[#allocation2 + $0x1c0] sm:$0xff]
      %v4656 = vld [vmem:[#allocation2 + $0x200] sm:$0xff]
      %v4657 = vld [vmem:[#allocation2 + $0x240] sm:$0xff]
      %v4658 = vld [vmem:[#allocation2 + $0x280] sm:$0xff]
      %v4659 = vld [vmem:[#allocation2 + $0x2c0] sm:$0xff]
      %v4660 = vld [vmem:[#allocation2 + $0x300] sm:$0xff]
      %v4661 = vld [vmem:[#allocation2 + $0x340] sm:$0xff]
      %v4662 = vld [vmem:[#allocation2 + $0x380] sm:$0xff]
      %v4663 = vld [vmem:[#allocation2 + $0x3c0] sm:$0xff]
      %v4664 = vld [vmem:[#allocation2 + $0x400] sm:$0xff]
      %v4665 = vld [vmem:[#allocation2 + $0x440] sm:$0xff]
      %v4666 = vld [vmem:[#allocation2 + $0x480] sm:$0xff]
      %v4667 = vld [vmem:[#allocation2 + $0x4c0] sm:$0xff]
      %v4668 = vld [vmem:[#allocation2 + $0x500] sm:$0xff]
      %v4669 = vld [vmem:[#allocation2 + $0x540] sm:$0xff]
      %v4670 = vld [vmem:[#allocation2 + $0x580] sm:$0xff]
      %v4671 = vld [vmem:[#allocation2 + $0x5c0] sm:$0xff]
      %v4672 = vld [vmem:[#allocation2 + $0x600] sm:$0xff]
      %v4673 = vld [vmem:[#allocation2 + $0x640] sm:$0xff]
      %v4674 = vld [vmem:[#allocation2 + $0x680] sm:$0xff]
      %v4675 = vld [vmem:[#allocation2 + $0x6c0] sm:$0xff]
      %v4676 = vld [vmem:[#allocation2 + $0x700] sm:$0xff]
      %v4677 = vld [vmem:[#allocation2 + $0x740] sm:$0xff]
      %v4678 = vld [vmem:[#allocation2 + $0x780] sm:$0xff]
      %v4679 = vld [vmem:[#allocation2 + $0x7c0] sm:$0xff]
      %v4680 = vmul.f32 %v4648, %v4648
      %v4681 = vmul.f32 %v4649, %v4649
      %v4682 = vmul.f32 %v4650, %v4650
      %v4683 = vmul.f32 %v4651, %v4651
      %v4684 = vmul.f32 %v4652, %v4652
      %v4685 = vmul.f32 %v4653, %v4653
      %v4686 = vmul.f32 %v4654, %v4654
      %v4687 = vmul.f32 %v4655, %v4655
      %v4688 = vmul.f32 %v4656, %v4656
      %v4689 = vmul.f32 %v4657, %v4657
      %v4690 = vmul.f32 %v4658, %v4658
      %v4691 = vmul.f32 %v4659, %v4659
      %v4692 = vmul.f32 %v4660, %v4660
      %v4693 = vmul.f32 %v4661, %v4661
      %v4694 = vmul.f32 %v4662, %v4662
      %v4695 = vmul.f32 %v4663, %v4663
      %v4696 = vmul.f32 %v4664, %v4664
      %v4697 = vmul.f32 %v4665, %v4665
      %v4698 = vmul.f32 %v4666, %v4666
      %v4699 = vmul.f32 %v4667, %v4667
      %v4700 = vmul.f32 %v4668, %v4668
      %v4701 = vmul.f32 %v4669, %v4669
      %v4702 = vmul.f32 %v4670, %v4670
      %v4703 = vmul.f32 %v4671, %v4671
      %v4704 = vmul.f32 %v4672, %v4672
      %v4705 = vmul.f32 %v4673, %v4673
      %v4706 = vmul.f32 %v4674, %v4674
      %v4707 = vmul.f32 %v4675, %v4675
      %v4708 = vmul.f32 %v4676, %v4676
      %v4709 = vmul.f32 %v4677, %v4677
      %v4710 = vmul.f32 %v4678, %v4678
      %v4711 = vmul.f32 %v4679, %v4679
      %4712 = vadd.xlane.f32.xlu0 %v4680
      %v4713 = vpop.xlane.xlu0 %4712
      %4714 = vadd.xlane.f32.xlu0 %v4681
      %v4715 = vpop.xlane.xlu0 %4714
      %4716 = vadd.xlane.f32.xlu0 %v4682
      %v4717 = vpop.xlane.xlu0 %4716
      %4718 = vadd.xlane.f32.xlu0 %v4683
      %v4719 = vpop.xlane.xlu0 %4718
      %4720 = vadd.xlane.f32.xlu0 %v4684
      %v4721 = vpop.xlane.xlu0 %4720
      %4722 = vadd.xlane.f32.xlu0 %v4685
      %v4723 = vpop.xlane.xlu0 %4722
      %4724 = vadd.xlane.f32.xlu0 %v4686
      %v4725 = vpop.xlane.xlu0 %4724
      %4726 = vadd.xlane.f32.xlu0 %v4687
      %v4727 = vpop.xlane.xlu0 %4726
      %4728 = vadd.xlane.f32.xlu0 %v4688
      %v4729 = vpop.xlane.xlu0 %4728
      %4730 = vadd.xlane.f32.xlu0 %v4689
      %v4731 = vpop.xlane.xlu0 %4730
      %4732 = vadd.xlane.f32.xlu0 %v4690
      %v4733 = vpop.xlane.xlu0 %4732
      %4734 = vadd.xlane.f32.xlu0 %v4691
      %v4735 = vpop.xlane.xlu0 %4734
      %4736 = vadd.xlane.f32.xlu0 %v4692
      %v4737 = vpop.xlane.xlu0 %4736
      %4738 = vadd.xlane.f32.xlu0 %v4693
      %v4739 = vpop.xlane.xlu0 %4738
      %4740 = vadd.xlane.f32.xlu0 %v4694
      %v4741 = vpop.xlane.xlu0 %4740
      %4742 = vadd.xlane.f32.xlu0 %v4695
      %v4743 = vpop.xlane.xlu0 %4742
      %4744 = vadd.xlane.f32.xlu0 %v4696
      %v4745 = vpop.xlane.xlu0 %4744
      %4746 = vadd.xlane.f32.xlu0 %v4697
      %v4747 = vpop.xlane.xlu0 %4746
      %4748 = vadd.xlane.f32.xlu0 %v4698
      %v4749 = vpop.xlane.xlu0 %4748
      %4750 = vadd.xlane.f32.xlu0 %v4699
      %v4751 = vpop.xlane.xlu0 %4750
      %4752 = vadd.xlane.f32.xlu0 %v4700
      %v4753 = vpop.xlane.xlu0 %4752
      %4754 = vadd.xlane.f32.xlu0 %v4701
      %v4755 = vpop.xlane.xlu0 %4754
      %4756 = vadd.xlane.f32.xlu0 %v4702
      %v4757 = vpop.xlane.xlu0 %4756
      %4758 = vadd.xlane.f32.xlu0 %v4703
      %v4759 = vpop.xlane.xlu0 %4758
      %4760 = vadd.xlane.f32.xlu0 %v4704
      %v4761 = vpop.xlane.xlu0 %4760
      %4762 = vadd.xlane.f32.xlu0 %v4705
      %v4763 = vpop.xlane.xlu0 %4762
      %4764 = vadd.xlane.f32.xlu0 %v4706
      %v4765 = vpop.xlane.xlu0 %4764
      %4766 = vadd.xlane.f32.xlu0 %v4707
      %v4767 = vpop.xlane.xlu0 %4766
      %4768 = vadd.xlane.f32.xlu0 %v4708
      %v4769 = vpop.xlane.xlu0 %4768
      %4770 = vadd.xlane.f32.xlu0 %v4709
      %v4771 = vpop.xlane.xlu0 %4770
      %4772 = vadd.xlane.f32.xlu0 %v4710
      %v4773 = vpop.xlane.xlu0 %4772
      %4774 = vadd.xlane.f32.xlu0 %v4711
      %v4775 = vpop.xlane.xlu0 %4774
      %v4776 = vrcp.pop 128.0
      %v4777 = vmul.f32 %v4713, %v4776
      %v4778 = vmul.f32 %v4715, %v4776
      %v4779 = vmul.f32 %v4717, %v4776
      %v4780 = vmul.f32 %v4719, %v4776
      %v4781 = vmul.f32 %v4721, %v4776
      %v4782 = vmul.f32 %v4723, %v4776
      %v4783 = vmul.f32 %v4725, %v4776
      %v4784 = vmul.f32 %v4727, %v4776
      %v4785 = vmul.f32 %v4729, %v4776
      %v4786 = vmul.f32 %v4731, %v4776
      %v4787 = vmul.f32 %v4733, %v4776
      %v4788 = vmul.f32 %v4735, %v4776
      %v4789 = vmul.f32 %v4737, %v4776
      %v4790 = vmul.f32 %v4739, %v4776
      %v4791 = vmul.f32 %v4741, %v4776
      %v4792 = vmul.f32 %v4743, %v4776
      %v4793 = vmul.f32 %v4745, %v4776
      %v4794 = vmul.f32 %v4747, %v4776
      %v4795 = vmul.f32 %v4749, %v4776
      %v4796 = vmul.f32 %v4751, %v4776
      %v4797 = vmul.f32 %v4753, %v4776
      %v4798 = vmul.f32 %v4755, %v4776
      %v4799 = vmul.f32 %v4757, %v4776
      %v4800 = vmul.f32 %v4759, %v4776
      %v4801 = vmul.f32 %v4761, %v4776
      %v4802 = vmul.f32 %v4763, %v4776
      %v4803 = vmul.f32 %v4765, %v4776
      %v4804 = vmul.f32 %v4767, %v4776
      %v4805 = vmul.f32 %v4769, %v4776
      %v4806 = vmul.f32 %v4771, %v4776
      %v4807 = vmul.f32 %v4773, %v4776
      %v4808 = vmul.f32 %v4775, %v4776
      %v4809 = vadd.f32 %v4777, 1e-06
      %v4810 = vadd.f32 %v4778, 1e-06
      %v4811 = vadd.f32 %v4779, 1e-06
      %v4812 = vadd.f32 %v4780, 1e-06
      %v4813 = vadd.f32 %v4781, 1e-06
      %v4814 = vadd.f32 %v4782, 1e-06
      %v4815 = vadd.f32 %v4783, 1e-06
      %v4816 = vadd.f32 %v4784, 1e-06
      %v4817 = vadd.f32 %v4785, 1e-06
      %v4818 = vadd.f32 %v4786, 1e-06
      %v4819 = vadd.f32 %v4787, 1e-06
      %v4820 = vadd.f32 %v4788, 1e-06
      %v4821 = vadd.f32 %v4789, 1e-06
      %v4822 = vadd.f32 %v4790, 1e-06
      %v4823 = vadd.f32 %v4791, 1e-06
      %v4824 = vadd.f32 %v4792, 1e-06
      %v4825 = vadd.f32 %v4793, 1e-06
      %v4826 = vadd.f32 %v4794, 1e-06
      %v4827 = vadd.f32 %v4795, 1e-06
      %v4828 = vadd.f32 %v4796, 1e-06
      %v4829 = vadd.f32 %v4797, 1e-06
      %v4830 = vadd.f32 %v4798, 1e-06
      %v4831 = vadd.f32 %v4799, 1e-06
      %v4832 = vadd.f32 %v4800, 1e-06
      %v4833 = vadd.f32 %v4801, 1e-06
      %v4834 = vadd.f32 %v4802, 1e-06
      %v4835 = vadd.f32 %v4803, 1e-06
      %v4836 = vadd.f32 %v4804, 1e-06
      %v4837 = vadd.f32 %v4805, 1e-06
      %v4838 = vadd.f32 %v4806, 1e-06
      %v4839 = vadd.f32 %v4807, 1e-06
      %v4840 = vadd.f32 %v4808, 1e-06
      %v4841 = vrsqrt.pop %v4809
      %v4842 = vrsqrt.pop %v4810
      %v4843 = vrsqrt.pop %v4811
      %v4844 = vrsqrt.pop %v4812
      %v4845 = vrsqrt.pop %v4813
      %v4846 = vrsqrt.pop %v4814
      %v4847 = vrsqrt.pop %v4815
      %v4848 = vrsqrt.pop %v4816
      %v4849 = vrsqrt.pop %v4817
      %v4850 = vrsqrt.pop %v4818
      %v4851 = vrsqrt.pop %v4819
      %v4852 = vrsqrt.pop %v4820
      %v4853 = vrsqrt.pop %v4821
      %v4854 = vrsqrt.pop %v4822
      %v4855 = vrsqrt.pop %v4823
      %v4856 = vrsqrt.pop %v4824
      %v4857 = vrsqrt.pop %v4825
      %v4858 = vrsqrt.pop %v4826
      %v4859 = vrsqrt.pop %v4827
      %v4860 = vrsqrt.pop %v4828
      %v4861 = vrsqrt.pop %v4829
      %v4862 = vrsqrt.pop %v4830
      %v4863 = vrsqrt.pop %v4831
      %v4864 = vrsqrt.pop %v4832
      %v4865 = vrsqrt.pop %v4833
      %v4866 = vrsqrt.pop %v4834
      %v4867 = vrsqrt.pop %v4835
      %v4868 = vrsqrt.pop %v4836
      %v4869 = vrsqrt.pop %v4837
      %v4870 = vrsqrt.pop %v4838
      %v4871 = vrsqrt.pop %v4839
      %v4872 = vrsqrt.pop %v4840
      %v4873 = vmul.f32 %v4648, %v4841
      %v4874 = vmul.f32 %v4649, %v4842
      %v4875 = vmul.f32 %v4650, %v4843
      %v4876 = vmul.f32 %v4651, %v4844
      %v4877 = vmul.f32 %v4652, %v4845
      %v4878 = vmul.f32 %v4653, %v4846
      %v4879 = vmul.f32 %v4654, %v4847
      %v4880 = vmul.f32 %v4655, %v4848
      %v4881 = vmul.f32 %v4656, %v4849
      %v4882 = vmul.f32 %v4657, %v4850
      %v4883 = vmul.f32 %v4658, %v4851
      %v4884 = vmul.f32 %v4659, %v4852
      %v4885 = vmul.f32 %v4660, %v4853
      %v4886 = vmul.f32 %v4661, %v4854
      %v4887 = vmul.f32 %v4662, %v4855
      %v4888 = vmul.f32 %v4663, %v4856
      %v4889 = vmul.f32 %v4664, %v4857
      %v4890 = vmul.f32 %v4665, %v4858
      %v4891 = vmul.f32 %v4666, %v4859
      %v4892 = vmul.f32 %v4667, %v4860
      %v4893 = vmul.f32 %v4668, %v4861
      %v4894 = vmul.f32 %v4669, %v4862
      %v4895 = vmul.f32 %v4670, %v4863
      %v4896 = vmul.f32 %v4671, %v4864
      %v4897 = vmul.f32 %v4672, %v4865
      %v4898 = vmul.f32 %v4673, %v4866
      %v4899 = vmul.f32 %v4674, %v4867
      %v4900 = vmul.f32 %v4675, %v4868
      %v4901 = vmul.f32 %v4676, %v4869
      %v4902 = vmul.f32 %v4677, %v4870
      %v4903 = vmul.f32 %v4678, %v4871
      %v4904 = vmul.f32 %v4679, %v4872
      %v4906 = vlaneseq
      %v4907 = vshrl.u32 %v4906, 7
      %v4908 = vsub.s32 0, %v4907
      %v4909 = vrot.slane %v4646, %v4908
      %v4911 = vmul.f32 %v4873, %v4909
      %v4912 = vmul.f32 %v4874, %v4909
      %v4913 = vmul.f32 %v4875, %v4909
      %v4914 = vmul.f32 %v4876, %v4909
      %v4915 = vmul.f32 %v4877, %v4909
      %v4916 = vmul.f32 %v4878, %v4909
      %v4917 = vmul.f32 %v4879, %v4909
      %v4918 = vmul.f32 %v4880, %v4909
      %v4919 = vmul.f32 %v4881, %v4909
      %v4920 = vmul.f32 %v4882, %v4909
      %v4921 = vmul.f32 %v4883, %v4909
      %v4922 = vmul.f32 %v4884, %v4909
      %v4923 = vmul.f32 %v4885, %v4909
      %v4924 = vmul.f32 %v4886, %v4909
      %v4925 = vmul.f32 %v4887, %v4909
      %v4926 = vmul.f32 %v4888, %v4909
      %v4927 = vmul.f32 %v4889, %v4909
      %v4928 = vmul.f32 %v4890, %v4909
      %v4929 = vmul.f32 %v4891, %v4909
      %v4930 = vmul.f32 %v4892, %v4909
      %v4931 = vmul.f32 %v4893, %v4909
      %v4932 = vmul.f32 %v4894, %v4909
      %v4933 = vmul.f32 %v4895, %v4909
      %v4934 = vmul.f32 %v4896, %v4909
      %v4935 = vmul.f32 %v4897, %v4909
      %v4936 = vmul.f32 %v4898, %v4909
      %v4937 = vmul.f32 %v4899, %v4909
      %v4938 = vmul.f32 %v4900, %v4909
      %v4939 = vmul.f32 %v4901, %v4909
      %v4940 = vmul.f32 %v4902, %v4909
      %v4941 = vmul.f32 %v4903, %v4909
      %v4942 = vmul.f32 %v4904, %v4909
      %v4943 = vmul.f32 %v4911, %v4578
      %v4944 = vmul.f32 %v4912, %v4579
      %v4945 = vmul.f32 %v4913, %v4580
      %v4946 = vmul.f32 %v4914, %v4581
      %v4947 = vmul.f32 %v4915, %v4582
      %v4948 = vmul.f32 %v4916, %v4583
      %v4949 = vmul.f32 %v4917, %v4584
      %v4950 = vmul.f32 %v4918, %v4585
      %v4951 = vmul.f32 %v4919, %v4586
      %v4952 = vmul.f32 %v4920, %v4587
      %v4953 = vmul.f32 %v4921, %v4588
      %v4954 = vmul.f32 %v4922, %v4589
      %v4955 = vmul.f32 %v4923, %v4590
      %v4956 = vmul.f32 %v4924, %v4591
      %v4957 = vmul.f32 %v4925, %v4592
      %v4958 = vmul.f32 %v4926, %v4593
      %v4959 = vmul.f32 %v4927, %v4594
      %v4960 = vmul.f32 %v4928, %v4595
      %v4961 = vmul.f32 %v4929, %v4596
      %v4962 = vmul.f32 %v4930, %v4597
      %v4963 = vmul.f32 %v4931, %v4598
      %v4964 = vmul.f32 %v4932, %v4599
      %v4965 = vmul.f32 %v4933, %v4600
      %v4966 = vmul.f32 %v4934, %v4601
      %v4967 = vmul.f32 %v4935, %v4602
      %v4968 = vmul.f32 %v4936, %v4603
      %v4969 = vmul.f32 %v4937, %v4604
      %v4970 = vmul.f32 %v4938, %v4605
      %v4971 = vmul.f32 %v4939, %v4606
      %v4972 = vmul.f32 %v4940, %v4607
      %v4973 = vmul.f32 %v4941, %v4608
      %v4974 = vmul.f32 %v4942, %v4609
      %4975 = vrot.lane.b32.xlu0 %v4911, 64
      %v4976 = vpop.permute.xlu0 %4975
      %4977 = vrot.lane.b32.xlu0 %v4912, 64
      %v4978 = vpop.permute.xlu0 %4977
      %4979 = vrot.lane.b32.xlu0 %v4913, 64
      %v4980 = vpop.permute.xlu0 %4979
      %4981 = vrot.lane.b32.xlu0 %v4914, 64
      %v4982 = vpop.permute.xlu0 %4981
      %4983 = vrot.lane.b32.xlu0 %v4915, 64
      %v4984 = vpop.permute.xlu0 %4983
      %4985 = vrot.lane.b32.xlu0 %v4916, 64
      %v4986 = vpop.permute.xlu0 %4985
      %4987 = vrot.lane.b32.xlu0 %v4917, 64
      %v4988 = vpop.permute.xlu0 %4987
      %4989 = vrot.lane.b32.xlu0 %v4918, 64
      %v4990 = vpop.permute.xlu0 %4989
      %4991 = vrot.lane.b32.xlu0 %v4919, 64
      %v4992 = vpop.permute.xlu0 %4991
      %4993 = vrot.lane.b32.xlu0 %v4920, 64
      %v4994 = vpop.permute.xlu0 %4993
      %4995 = vrot.lane.b32.xlu0 %v4921, 64
      %v4996 = vpop.permute.xlu0 %4995
      %4997 = vrot.lane.b32.xlu0 %v4922, 64
      %v4998 = vpop.permute.xlu0 %4997
      %4999 = vrot.lane.b32.xlu0 %v4923, 64
      %v5000 = vpop.permute.xlu0 %4999
      %5001 = vrot.lane.b32.xlu0 %v4924, 64
      %v5002 = vpop.permute.xlu0 %5001
      %5003 = vrot.lane.b32.xlu0 %v4925, 64
      %v5004 = vpop.permute.xlu0 %5003
      %5005 = vrot.lane.b32.xlu0 %v4926, 64
      %v5006 = vpop.permute.xlu0 %5005
      %5007 = vrot.lane.b32.xlu0 %v4927, 64
      %v5008 = vpop.permute.xlu0 %5007
      %5009 = vrot.lane.b32.xlu0 %v4928, 64
      %v5010 = vpop.permute.xlu0 %5009
      %5011 = vrot.lane.b32.xlu0 %v4929, 64
      %v5012 = vpop.permute.xlu0 %5011
      %5013 = vrot.lane.b32.xlu0 %v4930, 64
      %v5014 = vpop.permute.xlu0 %5013
      %5015 = vrot.lane.b32.xlu0 %v4931, 64
      %v5016 = vpop.permute.xlu0 %5015
      %5017 = vrot.lane.b32.xlu0 %v4932, 64
      %v5018 = vpop.permute.xlu0 %5017
      %5019 = vrot.lane.b32.xlu0 %v4933, 64
      %v5020 = vpop.permute.xlu0 %5019
      %5021 = vrot.lane.b32.xlu0 %v4934, 64
      %v5022 = vpop.permute.xlu0 %5021
      %5023 = vrot.lane.b32.xlu0 %v4935, 64
      %v5024 = vpop.permute.xlu0 %5023
      %5025 = vrot.lane.b32.xlu0 %v4936, 64
      %v5026 = vpop.permute.xlu0 %5025
      %5027 = vrot.lane.b32.xlu0 %v4937, 64
      %v5028 = vpop.permute.xlu0 %5027
      %5029 = vrot.lane.b32.xlu0 %v4938, 64
      %v5030 = vpop.permute.xlu0 %5029
      %5031 = vrot.lane.b32.xlu0 %v4939, 64
      %v5032 = vpop.permute.xlu0 %5031
      %5033 = vrot.lane.b32.xlu0 %v4940, 64
      %v5034 = vpop.permute.xlu0 %5033
      %5035 = vrot.lane.b32.xlu0 %v4941, 64
      %v5036 = vpop.permute.xlu0 %5035
      %5037 = vrot.lane.b32.xlu0 %v4942, 64
      %v5038 = vpop.permute.xlu0 %5037
      %v5039 = vmul.f32 %v4976, %v4610
      %v5040 = vmul.f32 %v4978, %v4611
      %v5041 = vmul.f32 %v4980, %v4612
      %v5042 = vmul.f32 %v4982, %v4613
      %v5043 = vmul.f32 %v4984, %v4614
      %v5044 = vmul.f32 %v4986, %v4615
      %v5045 = vmul.f32 %v4988, %v4616
      %v5046 = vmul.f32 %v4990, %v4617
      %v5047 = vmul.f32 %v4992, %v4618
      %v5048 = vmul.f32 %v4994, %v4619
      %v5049 = vmul.f32 %v4996, %v4620
      %v5050 = vmul.f32 %v4998, %v4621
      %v5051 = vmul.f32 %v5000, %v4622
      %v5052 = vmul.f32 %v5002, %v4623
      %v5053 = vmul.f32 %v5004, %v4624
      %v5054 = vmul.f32 %v5006, %v4625
      %v5055 = vmul.f32 %v5008, %v4626
      %v5056 = vmul.f32 %v5010, %v4627
      %v5057 = vmul.f32 %v5012, %v4628
      %v5058 = vmul.f32 %v5014, %v4629
      %v5059 = vmul.f32 %v5016, %v4630
      %v5060 = vmul.f32 %v5018, %v4631
      %v5061 = vmul.f32 %v5020, %v4632
      %v5062 = vmul.f32 %v5022, %v4633
      %v5063 = vmul.f32 %v5024, %v4634
      %v5064 = vmul.f32 %v5026, %v4635
      %v5065 = vmul.f32 %v5028, %v4636
      %v5066 = vmul.f32 %v5030, %v4637
      %v5067 = vmul.f32 %v5032, %v4638
      %v5068 = vmul.f32 %v5034, %v4639
      %v5069 = vmul.f32 %v5036, %v4640
      %v5070 = vmul.f32 %v5038, %v4641
      %v5071 = vmul.f32 %v5039, %v4645
      %v5072 = vmul.f32 %v5040, %v4645
      %v5073 = vmul.f32 %v5041, %v4645
      %v5074 = vmul.f32 %v5042, %v4645
      %v5075 = vmul.f32 %v5043, %v4645
      %v5076 = vmul.f32 %v5044, %v4645
      %v5077 = vmul.f32 %v5045, %v4645
      %v5078 = vmul.f32 %v5046, %v4645
      %v5079 = vmul.f32 %v5047, %v4645
      %v5080 = vmul.f32 %v5048, %v4645
      %v5081 = vmul.f32 %v5049, %v4645
      %v5082 = vmul.f32 %v5050, %v4645
      %v5083 = vmul.f32 %v5051, %v4645
      %v5084 = vmul.f32 %v5052, %v4645
      %v5085 = vmul.f32 %v5053, %v4645
      %v5086 = vmul.f32 %v5054, %v4645
      %v5087 = vmul.f32 %v5055, %v4645
      %v5088 = vmul.f32 %v5056, %v4645
      %v5089 = vmul.f32 %v5057, %v4645
      %v5090 = vmul.f32 %v5058, %v4645
      %v5091 = vmul.f32 %v5059, %v4645
      %v5092 = vmul.f32 %v5060, %v4645
      %v5093 = vmul.f32 %v5061, %v4645
      %v5094 = vmul.f32 %v5062, %v4645
      %v5095 = vmul.f32 %v5063, %v4645
      %v5096 = vmul.f32 %v5064, %v4645
      %v5097 = vmul.f32 %v5065, %v4645
      %v5098 = vmul.f32 %v5066, %v4645
      %v5099 = vmul.f32 %v5067, %v4645
      %v5100 = vmul.f32 %v5068, %v4645
      %v5101 = vmul.f32 %v5069, %v4645
      %v5102 = vmul.f32 %v5070, %v4645
      %v5103 = vadd.f32 %v4943, %v5071
      %v5104 = vadd.f32 %v4944, %v5072
      %v5105 = vadd.f32 %v4945, %v5073
      %v5106 = vadd.f32 %v4946, %v5074
      %v5107 = vadd.f32 %v4947, %v5075
      %v5108 = vadd.f32 %v4948, %v5076
      %v5109 = vadd.f32 %v4949, %v5077
      %v5110 = vadd.f32 %v4950, %v5078
      %v5111 = vadd.f32 %v4951, %v5079
      %v5112 = vadd.f32 %v4952, %v5080
      %v5113 = vadd.f32 %v4953, %v5081
      %v5114 = vadd.f32 %v4954, %v5082
      %v5115 = vadd.f32 %v4955, %v5083
      %v5116 = vadd.f32 %v4956, %v5084
      %v5117 = vadd.f32 %v4957, %v5085
      %v5118 = vadd.f32 %v4958, %v5086
      %v5119 = vadd.f32 %v4959, %v5087
      %v5120 = vadd.f32 %v4960, %v5088
      %v5121 = vadd.f32 %v4961, %v5089
      %v5122 = vadd.f32 %v4962, %v5090
      %v5123 = vadd.f32 %v4963, %v5091
      %v5124 = vadd.f32 %v4964, %v5092
      %v5125 = vadd.f32 %v4965, %v5093
      %v5126 = vadd.f32 %v4966, %v5094
      %v5127 = vadd.f32 %v4967, %v5095
      %v5128 = vadd.f32 %v4968, %v5096
      %v5129 = vadd.f32 %v4969, %v5097
      %v5130 = vadd.f32 %v4970, %v5098
      %v5131 = vadd.f32 %v4971, %v5099
      %v5132 = vadd.f32 %v4972, %v5100
      %v5133 = vadd.f32 %v4973, %v5101
      %v5134 = vadd.f32 %v4974, %v5102
      %v5135 = vmul.f32 %v5103, 0.088388346
      %v5136 = vmul.f32 %v5104, 0.088388346
      %v5137 = vmul.f32 %v5105, 0.088388346
      %v5138 = vmul.f32 %v5106, 0.088388346
      %v5139 = vmul.f32 %v5107, 0.088388346
      %v5140 = vmul.f32 %v5108, 0.088388346
      %v5141 = vmul.f32 %v5109, 0.088388346
      %v5142 = vmul.f32 %v5110, 0.088388346
      %v5143 = vmul.f32 %v5111, 0.088388346
      %v5144 = vmul.f32 %v5112, 0.088388346
      %v5145 = vmul.f32 %v5113, 0.088388346
      %v5146 = vmul.f32 %v5114, 0.088388346
      %v5147 = vmul.f32 %v5115, 0.088388346
      %v5148 = vmul.f32 %v5116, 0.088388346
      %v5149 = vmul.f32 %v5117, 0.088388346
      %v5150 = vmul.f32 %v5118, 0.088388346
      %v5151 = vmul.f32 %v5119, 0.088388346
      %v5152 = vmul.f32 %v5120, 0.088388346
      %v5153 = vmul.f32 %v5121, 0.088388346
      %v5154 = vmul.f32 %v5122, 0.088388346
      %v5155 = vmul.f32 %v5123, 0.088388346
      %v5156 = vmul.f32 %v5124, 0.088388346
      %v5157 = vmul.f32 %v5125, 0.088388346
      %v5158 = vmul.f32 %v5126, 0.088388346
      %v5159 = vmul.f32 %v5127, 0.088388346
      %v5160 = vmul.f32 %v5128, 0.088388346
      %v5161 = vmul.f32 %v5129, 0.088388346
      %v5162 = vmul.f32 %v5130, 0.088388346
      %v5163 = vmul.f32 %v5131, 0.088388346
      %v5164 = vmul.f32 %v5132, 0.088388346
      %v5165 = vmul.f32 %v5133, 0.088388346
      %v5166 = vmul.f32 %v5134, 0.088388346
      %v5167 = vpack.c.bf16 %v5136, %v5135
      %v5168 = vpack.c.bf16 %v5138, %v5137
      %v5169 = vpack.c.bf16 %v5140, %v5139
      %v5170 = vpack.c.bf16 %v5142, %v5141
      %v5171 = vpack.c.bf16 %v5144, %v5143
      %v5172 = vpack.c.bf16 %v5146, %v5145
      %v5173 = vpack.c.bf16 %v5148, %v5147
      %v5174 = vpack.c.bf16 %v5150, %v5149
      %v5175 = vpack.c.bf16 %v5152, %v5151
      %v5176 = vpack.c.bf16 %v5154, %v5153
      %v5177 = vpack.c.bf16 %v5156, %v5155
      %v5178 = vpack.c.bf16 %v5158, %v5157
      %v5179 = vpack.c.bf16 %v5160, %v5159
      %v5180 = vpack.c.bf16 %v5162, %v5161
      %v5181 = vpack.c.bf16 %v5164, %v5163
      %v5182 = vpack.c.bf16 %v5166, %v5165
      %v5199 = vunpack.c.l.b16 %v5167
      %v5200 = vunpack.c.h.b16 %v5167
      %v5201 = vunpack.c.l.b16 %v5168
      %v5202 = vunpack.c.h.b16 %v5168
      %v5203 = vunpack.c.l.b16 %v5169
      %v5204 = vunpack.c.h.b16 %v5169
      %v5205 = vunpack.c.l.b16 %v5170
      %v5206 = vunpack.c.h.b16 %v5170
      %v5207 = vunpack.c.l.b16 %v5171
      %v5208 = vunpack.c.h.b16 %v5171
      %v5209 = vunpack.c.l.b16 %v5172
      %v5210 = vunpack.c.h.b16 %v5172
      %v5211 = vunpack.c.l.b16 %v5173
      %v5212 = vunpack.c.h.b16 %v5173
      %v5213 = vunpack.c.l.b16 %v5174
      %v5214 = vunpack.c.h.b16 %v5174
      %v5215 = vunpack.c.l.b16 %v5175
      %v5216 = vunpack.c.h.b16 %v5175
      %v5217 = vunpack.c.l.b16 %v5176
      %v5218 = vunpack.c.h.b16 %v5176
      %v5219 = vunpack.c.l.b16 %v5177
      %v5220 = vunpack.c.h.b16 %v5177
      %v5221 = vunpack.c.l.b16 %v5178
      %v5222 = vunpack.c.h.b16 %v5178
      %v5223 = vunpack.c.l.b16 %v5179
      %v5224 = vunpack.c.h.b16 %v5179
      %v5225 = vunpack.c.l.b16 %v5180
      %v5226 = vunpack.c.h.b16 %v5180
      %v5227 = vunpack.c.l.b16 %v5181
      %v5228 = vunpack.c.h.b16 %v5181
      %v5229 = vunpack.c.l.b16 %v5182
      %v5230 = vunpack.c.h.b16 %v5182
      %v5231 = vpack.c.b16 %v5199, %v5199
      %v5232 = vpack.c.b16 %v5200, %v5200
      %v5233 = vpack.c.b16 %v5201, %v5201
      %v5234 = vpack.c.b16 %v5202, %v5202
      %v5235 = vpack.c.b16 %v5203, %v5203
      %v5236 = vpack.c.b16 %v5204, %v5204
      %v5237 = vpack.c.b16 %v5205, %v5205
      %v5238 = vpack.c.b16 %v5206, %v5206
      %v5239 = vpack.c.b16 %v5207, %v5207
      %v5240 = vpack.c.b16 %v5208, %v5208
      %v5241 = vpack.c.b16 %v5209, %v5209
      %v5242 = vpack.c.b16 %v5210, %v5210
      %v5243 = vpack.c.b16 %v5211, %v5211
      %v5244 = vpack.c.b16 %v5212, %v5212
      %v5245 = vpack.c.b16 %v5213, %v5213
      %v5246 = vpack.c.b16 %v5214, %v5214
      %v5247 = vpack.c.b16 %v5215, %v5215
      %v5248 = vpack.c.b16 %v5216, %v5216
      %v5249 = vpack.c.b16 %v5217, %v5217
      %v5250 = vpack.c.b16 %v5218, %v5218
      %v5251 = vpack.c.b16 %v5219, %v5219
      %v5252 = vpack.c.b16 %v5220, %v5220
      %v5253 = vpack.c.b16 %v5221, %v5221
      %v5254 = vpack.c.b16 %v5222, %v5222
      %v5255 = vpack.c.b16 %v5223, %v5223
      %v5256 = vpack.c.b16 %v5224, %v5224
      %v5257 = vpack.c.b16 %v5225, %v5225
      %v5258 = vpack.c.b16 %v5226, %v5226
      %v5259 = vpack.c.b16 %v5227, %v5227
      %v5260 = vpack.c.b16 %v5228, %v5228
      %v5261 = vpack.c.b16 %v5229, %v5229
      %v5262 = vpack.c.b16 %v5230, %v5230
      %5295 = vst [vmem:[#allocation11] sm:$0xf] %v5231
      %5296 = vst [vmem:[#allocation11 + $0x10] sm:$0xf] %v5232
      %5297 = vst [vmem:[#allocation11 + $0x20] sm:$0xf] %v5233
      %5298 = vst [vmem:[#allocation11 + $0x30] sm:$0xf] %v5234
      %5299 = vst [vmem:[#allocation11 + $0x40] sm:$0xf] %v5235
      %5300 = vst [vmem:[#allocation11 + $0x50] sm:$0xf] %v5236
      %5301 = vst [vmem:[#allocation11 + $0x60] sm:$0xf] %v5237
      %5302 = vst [vmem:[#allocation11 + $0x70] sm:$0xf] %v5238
      %5303 = vst [vmem:[#allocation11 + $0x80] sm:$0xf] %v5239
      %5304 = vst [vmem:[#allocation11 + $0x90] sm:$0xf] %v5240
      %5305 = vst [vmem:[#allocation11 + $0xa0] sm:$0xf] %v5241
      %5306 = vst [vmem:[#allocation11 + $0xb0] sm:$0xf] %v5242
      %5307 = vst [vmem:[#allocation11 + $0xc0] sm:$0xf] %v5243
      %5308 = vst [vmem:[#allocation11 + $0xd0] sm:$0xf] %v5244
      %5309 = vst [vmem:[#allocation11 + $0xe0] sm:$0xf] %v5245
      %5310 = vst [vmem:[#allocation11 + $0xf0] sm:$0xf] %v5246
      %5311 = vst [vmem:[#allocation11 + $0x100] sm:$0xf] %v5247
      %5312 = vst [vmem:[#allocation11 + $0x110] sm:$0xf] %v5248
      %5313 = vst [vmem:[#allocation11 + $0x120] sm:$0xf] %v5249
      %5314 = vst [vmem:[#allocation11 + $0x130] sm:$0xf] %v5250
      %5315 = vst [vmem:[#allocation11 + $0x140] sm:$0xf] %v5251
      %5316 = vst [vmem:[#allocation11 + $0x150] sm:$0xf] %v5252
      %5317 = vst [vmem:[#allocation11 + $0x160] sm:$0xf] %v5253
      %5318 = vst [vmem:[#allocation11 + $0x170] sm:$0xf] %v5254
      %5319 = vst [vmem:[#allocation11 + $0x180] sm:$0xf] %v5255
      %5320 = vst [vmem:[#allocation11 + $0x190] sm:$0xf] %v5256
      %5321 = vst [vmem:[#allocation11 + $0x1a0] sm:$0xf] %v5257
      %5322 = vst [vmem:[#allocation11 + $0x1b0] sm:$0xf] %v5258
      %5323 = vst [vmem:[#allocation11 + $0x1c0] sm:$0xf] %v5259
      %5324 = vst [vmem:[#allocation11 + $0x1d0] sm:$0xf] %v5260
      %5325 = vst [vmem:[#allocation11 + $0x1e0] sm:$0xf] %v5261
      %5326 = vst [vmem:[#allocation11 + $0x1f0] sm:$0xf] %v5262
      %v5327 = vld [vmem:[#allocation2 + $0x8] sm:$0xff]
      %v5328 = vld [vmem:[#allocation2 + $0x48] sm:$0xff]
      %v5329 = vld [vmem:[#allocation2 + $0x88] sm:$0xff]
      %v5330 = vld [vmem:[#allocation2 + $0xc8] sm:$0xff]
      %v5331 = vld [vmem:[#allocation2 + $0x108] sm:$0xff]
      %v5332 = vld [vmem:[#allocation2 + $0x148] sm:$0xff]
      %v5333 = vld [vmem:[#allocation2 + $0x188] sm:$0xff]
      %v5334 = vld [vmem:[#allocation2 + $0x1c8] sm:$0xff]
      %v5335 = vld [vmem:[#allocation2 + $0x208] sm:$0xff]
      %v5336 = vld [vmem:[#allocation2 + $0x248] sm:$0xff]
      %v5337 = vld [vmem:[#allocation2 + $0x288] sm:$0xff]
      %v5338 = vld [vmem:[#allocation2 + $0x2c8] sm:$0xff]
      %v5339 = vld [vmem:[#allocation2 + $0x308] sm:$0xff]
      %v5340 = vld [vmem:[#allocation2 + $0x348] sm:$0xff]
      %v5341 = vld [vmem:[#allocation2 + $0x388] sm:$0xff]
      %v5342 = vld [vmem:[#allocation2 + $0x3c8] sm:$0xff]
      %v5343 = vld [vmem:[#allocation2 + $0x408] sm:$0xff]
      %v5344 = vld [vmem:[#allocation2 + $0x448] sm:$0xff]
      %v5345 = vld [vmem:[#allocation2 + $0x488] sm:$0xff]
      %v5346 = vld [vmem:[#allocation2 + $0x4c8] sm:$0xff]
      %v5347 = vld [vmem:[#allocation2 + $0x508] sm:$0xff]
      %v5348 = vld [vmem:[#allocation2 + $0x548] sm:$0xff]
      %v5349 = vld [vmem:[#allocation2 + $0x588] sm:$0xff]
      %v5350 = vld [vmem:[#allocation2 + $0x5c8] sm:$0xff]
      %v5351 = vld [vmem:[#allocation2 + $0x608] sm:$0xff]
      %v5352 = vld [vmem:[#allocation2 + $0x648] sm:$0xff]
      %v5353 = vld [vmem:[#allocation2 + $0x688] sm:$0xff]
      %v5354 = vld [vmem:[#allocation2 + $0x6c8] sm:$0xff]
      %v5355 = vld [vmem:[#allocation2 + $0x708] sm:$0xff]
      %v5356 = vld [vmem:[#allocation2 + $0x748] sm:$0xff]
      %v5357 = vld [vmem:[#allocation2 + $0x788] sm:$0xff]
      %v5358 = vld [vmem:[#allocation2 + $0x7c8] sm:$0xff]
      %v5359 = vmul.f32 %v5327, %v5327
      %v5360 = vmul.f32 %v5328, %v5328
      %v5361 = vmul.f32 %v5329, %v5329
      %v5362 = vmul.f32 %v5330, %v5330
      %v5363 = vmul.f32 %v5331, %v5331
      %v5364 = vmul.f32 %v5332, %v5332
      %v5365 = vmul.f32 %v5333, %v5333
      %v5366 = vmul.f32 %v5334, %v5334
      %v5367 = vmul.f32 %v5335, %v5335
      %v5368 = vmul.f32 %v5336, %v5336
      %v5369 = vmul.f32 %v5337, %v5337
      %v5370 = vmul.f32 %v5338, %v5338
      %v5371 = vmul.f32 %v5339, %v5339
      %v5372 = vmul.f32 %v5340, %v5340
      %v5373 = vmul.f32 %v5341, %v5341
      %v5374 = vmul.f32 %v5342, %v5342
      %v5375 = vmul.f32 %v5343, %v5343
      %v5376 = vmul.f32 %v5344, %v5344
      %v5377 = vmul.f32 %v5345, %v5345
      %v5378 = vmul.f32 %v5346, %v5346
      %v5379 = vmul.f32 %v5347, %v5347
      %v5380 = vmul.f32 %v5348, %v5348
      %v5381 = vmul.f32 %v5349, %v5349
      %v5382 = vmul.f32 %v5350, %v5350
      %v5383 = vmul.f32 %v5351, %v5351
      %v5384 = vmul.f32 %v5352, %v5352
      %v5385 = vmul.f32 %v5353, %v5353
      %v5386 = vmul.f32 %v5354, %v5354
      %v5387 = vmul.f32 %v5355, %v5355
      %v5388 = vmul.f32 %v5356, %v5356
      %v5389 = vmul.f32 %v5357, %v5357
      %v5390 = vmul.f32 %v5358, %v5358
      %5391 = vadd.xlane.f32.xlu0 %v5359
      %v5392 = vpop.xlane.xlu0 %5391
      %5393 = vadd.xlane.f32.xlu0 %v5360
      %v5394 = vpop.xlane.xlu0 %5393
      %5395 = vadd.xlane.f32.xlu0 %v5361
      %v5396 = vpop.xlane.xlu0 %5395
      %5397 = vadd.xlane.f32.xlu0 %v5362
      %v5398 = vpop.xlane.xlu0 %5397
      %5399 = vadd.xlane.f32.xlu0 %v5363
      %v5400 = vpop.xlane.xlu0 %5399
      %5401 = vadd.xlane.f32.xlu0 %v5364
      %v5402 = vpop.xlane.xlu0 %5401
      %5403 = vadd.xlane.f32.xlu0 %v5365
      %v5404 = vpop.xlane.xlu0 %5403
      %5405 = vadd.xlane.f32.xlu0 %v5366
      %v5406 = vpop.xlane.xlu0 %5405
      %5407 = vadd.xlane.f32.xlu0 %v5367
      %v5408 = vpop.xlane.xlu0 %5407
      %5409 = vadd.xlane.f32.xlu0 %v5368
      %v5410 = vpop.xlane.xlu0 %5409
      %5411 = vadd.xlane.f32.xlu0 %v5369
      %v5412 = vpop.xlane.xlu0 %5411
      %5413 = vadd.xlane.f32.xlu0 %v5370
      %v5414 = vpop.xlane.xlu0 %5413
      %5415 = vadd.xlane.f32.xlu0 %v5371
      %v5416 = vpop.xlane.xlu0 %5415
      %5417 = vadd.xlane.f32.xlu0 %v5372
      %v5418 = vpop.xlane.xlu0 %5417
      %5419 = vadd.xlane.f32.xlu0 %v5373
      %v5420 = vpop.xlane.xlu0 %5419
      %5421 = vadd.xlane.f32.xlu0 %v5374
      %v5422 = vpop.xlane.xlu0 %5421
      %5423 = vadd.xlane.f32.xlu0 %v5375
      %v5424 = vpop.xlane.xlu0 %5423
      %5425 = vadd.xlane.f32.xlu0 %v5376
      %v5426 = vpop.xlane.xlu0 %5425
      %5427 = vadd.xlane.f32.xlu0 %v5377
      %v5428 = vpop.xlane.xlu0 %5427
      %5429 = vadd.xlane.f32.xlu0 %v5378
      %v5430 = vpop.xlane.xlu0 %5429
      %5431 = vadd.xlane.f32.xlu0 %v5379
      %v5432 = vpop.xlane.xlu0 %5431
      %5433 = vadd.xlane.f32.xlu0 %v5380
      %v5434 = vpop.xlane.xlu0 %5433
      %5435 = vadd.xlane.f32.xlu0 %v5381
      %v5436 = vpop.xlane.xlu0 %5435
      %5437 = vadd.xlane.f32.xlu0 %v5382
      %v5438 = vpop.xlane.xlu0 %5437
      %5439 = vadd.xlane.f32.xlu0 %v5383
      %v5440 = vpop.xlane.xlu0 %5439
      %5441 = vadd.xlane.f32.xlu0 %v5384
      %v5442 = vpop.xlane.xlu0 %5441
      %5443 = vadd.xlane.f32.xlu0 %v5385
      %v5444 = vpop.xlane.xlu0 %5443
      %5445 = vadd.xlane.f32.xlu0 %v5386
      %v5446 = vpop.xlane.xlu0 %5445
      %5447 = vadd.xlane.f32.xlu0 %v5387
      %v5448 = vpop.xlane.xlu0 %5447
      %5449 = vadd.xlane.f32.xlu0 %v5388
      %v5450 = vpop.xlane.xlu0 %5449
      %5451 = vadd.xlane.f32.xlu0 %v5389
      %v5452 = vpop.xlane.xlu0 %5451
      %5453 = vadd.xlane.f32.xlu0 %v5390
      %v5454 = vpop.xlane.xlu0 %5453
      %v5455 = vmul.f32 %v5392, %v4776
      %v5456 = vmul.f32 %v5394, %v4776
      %v5457 = vmul.f32 %v5396, %v4776
      %v5458 = vmul.f32 %v5398, %v4776
      %v5459 = vmul.f32 %v5400, %v4776
      %v5460 = vmul.f32 %v5402, %v4776
      %v5461 = vmul.f32 %v5404, %v4776
      %v5462 = vmul.f32 %v5406, %v4776
      %v5463 = vmul.f32 %v5408, %v4776
      %v5464 = vmul.f32 %v5410, %v4776
      %v5465 = vmul.f32 %v5412, %v4776
      %v5466 = vmul.f32 %v5414, %v4776
      %v5467 = vmul.f32 %v5416, %v4776
      %v5468 = vmul.f32 %v5418, %v4776
      %v5469 = vmul.f32 %v5420, %v4776
      %v5470 = vmul.f32 %v5422, %v4776
      %v5471 = vmul.f32 %v5424, %v4776
      %v5472 = vmul.f32 %v5426, %v4776
      %v5473 = vmul.f32 %v5428, %v4776
      %v5474 = vmul.f32 %v5430, %v4776
      %v5475 = vmul.f32 %v5432, %v4776
      %v5476 = vmul.f32 %v5434, %v4776
      %v5477 = vmul.f32 %v5436, %v4776
      %v5478 = vmul.f32 %v5438, %v4776
      %v5479 = vmul.f32 %v5440, %v4776
      %v5480 = vmul.f32 %v5442, %v4776
      %v5481 = vmul.f32 %v5444, %v4776
      %v5482 = vmul.f32 %v5446, %v4776
      %v5483 = vmul.f32 %v5448, %v4776
      %v5484 = vmul.f32 %v5450, %v4776
      %v5485 = vmul.f32 %v5452, %v4776
      %v5486 = vmul.f32 %v5454, %v4776
      %v5487 = vadd.f32 %v5455, 1e-06
      %v5488 = vadd.f32 %v5456, 1e-06
      %v5489 = vadd.f32 %v5457, 1e-06
      %v5490 = vadd.f32 %v5458, 1e-06
      %v5491 = vadd.f32 %v5459, 1e-06
      %v5492 = vadd.f32 %v5460, 1e-06
      %v5493 = vadd.f32 %v5461, 1e-06
      %v5494 = vadd.f32 %v5462, 1e-06
      %v5495 = vadd.f32 %v5463, 1e-06
      %v5496 = vadd.f32 %v5464, 1e-06
      %v5497 = vadd.f32 %v5465, 1e-06
      %v5498 = vadd.f32 %v5466, 1e-06
      %v5499 = vadd.f32 %v5467, 1e-06
      %v5500 = vadd.f32 %v5468, 1e-06
      %v5501 = vadd.f32 %v5469, 1e-06
      %v5502 = vadd.f32 %v5470, 1e-06
      %v5503 = vadd.f32 %v5471, 1e-06
      %v5504 = vadd.f32 %v5472, 1e-06
      %v5505 = vadd.f32 %v5473, 1e-06
      %v5506 = vadd.f32 %v5474, 1e-06
      %v5507 = vadd.f32 %v5475, 1e-06
      %v5508 = vadd.f32 %v5476, 1e-06
      %v5509 = vadd.f32 %v5477, 1e-06
      %v5510 = vadd.f32 %v5478, 1e-06
      %v5511 = vadd.f32 %v5479, 1e-06
      %v5512 = vadd.f32 %v5480, 1e-06
      %v5513 = vadd.f32 %v5481, 1e-06
      %v5514 = vadd.f32 %v5482, 1e-06
      %v5515 = vadd.f32 %v5483, 1e-06
      %v5516 = vadd.f32 %v5484, 1e-06
      %v5517 = vadd.f32 %v5485, 1e-06
      %v5518 = vadd.f32 %v5486, 1e-06
      %v5519 = vrsqrt.pop %v5487
      %v5520 = vrsqrt.pop %v5488
      %v5521 = vrsqrt.pop %v5489
      %v5522 = vrsqrt.pop %v5490
      %v5523 = vrsqrt.pop %v5491
      %v5524 = vrsqrt.pop %v5492
      %v5525 = vrsqrt.pop %v5493
      %v5526 = vrsqrt.pop %v5494
      %v5527 = vrsqrt.pop %v5495
      %v5528 = vrsqrt.pop %v5496
      %v5529 = vrsqrt.pop %v5497
      %v5530 = vrsqrt.pop %v5498
      %v5531 = vrsqrt.pop %v5499
      %v5532 = vrsqrt.pop %v5500
      %v5533 = vrsqrt.pop %v5501
      %v5534 = vrsqrt.pop %v5502
      %v5535 = vrsqrt.pop %v5503
      %v5536 = vrsqrt.pop %v5504
      %v5537 = vrsqrt.pop %v5505
      %v5538 = vrsqrt.pop %v5506
      %v5539 = vrsqrt.pop %v5507
      %v5540 = vrsqrt.pop %v5508
      %v5541 = vrsqrt.pop %v5509
      %v5542 = vrsqrt.pop %v5510
      %v5543 = vrsqrt.pop %v5511
      %v5544 = vrsqrt.pop %v5512
      %v5545 = vrsqrt.pop %v5513
      %v5546 = vrsqrt.pop %v5514
      %v5547 = vrsqrt.pop %v5515
      %v5548 = vrsqrt.pop %v5516
      %v5549 = vrsqrt.pop %v5517
      %v5550 = vrsqrt.pop %v5518
      %v5551 = vmul.f32 %v5327, %v5519
      %v5552 = vmul.f32 %v5328, %v5520
      %v5553 = vmul.f32 %v5329, %v5521
      %v5554 = vmul.f32 %v5330, %v5522
      %v5555 = vmul.f32 %v5331, %v5523
      %v5556 = vmul.f32 %v5332, %v5524
      %v5557 = vmul.f32 %v5333, %v5525
      %v5558 = vmul.f32 %v5334, %v5526
      %v5559 = vmul.f32 %v5335, %v5527
      %v5560 = vmul.f32 %v5336, %v5528
      %v5561 = vmul.f32 %v5337, %v5529
      %v5562 = vmul.f32 %v5338, %v5530
      %v5563 = vmul.f32 %v5339, %v5531
      %v5564 = vmul.f32 %v5340, %v5532
      %v5565 = vmul.f32 %v5341, %v5533
      %v5566 = vmul.f32 %v5342, %v5534
      %v5567 = vmul.f32 %v5343, %v5535
      %v5568 = vmul.f32 %v5344, %v5536
      %v5569 = vmul.f32 %v5345, %v5537
      %v5570 = vmul.f32 %v5346, %v5538
      %v5571 = vmul.f32 %v5347, %v5539
      %v5572 = vmul.f32 %v5348, %v5540
      %v5573 = vmul.f32 %v5349, %v5541
      %v5574 = vmul.f32 %v5350, %v5542
      %v5575 = vmul.f32 %v5351, %v5543
      %v5576 = vmul.f32 %v5352, %v5544
      %v5577 = vmul.f32 %v5353, %v5545
      %v5578 = vmul.f32 %v5354, %v5546
      %v5579 = vmul.f32 %v5355, %v5547
      %v5580 = vmul.f32 %v5356, %v5548
      %v5581 = vmul.f32 %v5357, %v5549
      %v5582 = vmul.f32 %v5358, %v5550
      %v5583 = vmul.f32 %v5551, %v4909
      %v5584 = vmul.f32 %v5552, %v4909
      %v5585 = vmul.f32 %v5553, %v4909
      %v5586 = vmul.f32 %v5554, %v4909
      %v5587 = vmul.f32 %v5555, %v4909
      %v5588 = vmul.f32 %v5556, %v4909
      %v5589 = vmul.f32 %v5557, %v4909
      %v5590 = vmul.f32 %v5558, %v4909
      %v5591 = vmul.f32 %v5559, %v4909
      %v5592 = vmul.f32 %v5560, %v4909
      %v5593 = vmul.f32 %v5561, %v4909
      %v5594 = vmul.f32 %v5562, %v4909
      %v5595 = vmul.f32 %v5563, %v4909
      %v5596 = vmul.f32 %v5564, %v4909
      %v5597 = vmul.f32 %v5565, %v4909
      %v5598 = vmul.f32 %v5566, %v4909
      %v5599 = vmul.f32 %v5567, %v4909
      %v5600 = vmul.f32 %v5568, %v4909
      %v5601 = vmul.f32 %v5569, %v4909
      %v5602 = vmul.f32 %v5570, %v4909
      %v5603 = vmul.f32 %v5571, %v4909
      %v5604 = vmul.f32 %v5572, %v4909
      %v5605 = vmul.f32 %v5573, %v4909
      %v5606 = vmul.f32 %v5574, %v4909
      %v5607 = vmul.f32 %v5575, %v4909
      %v5608 = vmul.f32 %v5576, %v4909
      %v5609 = vmul.f32 %v5577, %v4909
      %v5610 = vmul.f32 %v5578, %v4909
      %v5611 = vmul.f32 %v5579, %v4909
      %v5612 = vmul.f32 %v5580, %v4909
      %v5613 = vmul.f32 %v5581, %v4909
      %v5614 = vmul.f32 %v5582, %v4909
      %v5615 = vmul.f32 %v5583, %v4578
      %v5616 = vmul.f32 %v5584, %v4579
      %v5617 = vmul.f32 %v5585, %v4580
      %v5618 = vmul.f32 %v5586, %v4581
      %v5619 = vmul.f32 %v5587, %v4582
      %v5620 = vmul.f32 %v5588, %v4583
      %v5621 = vmul.f32 %v5589, %v4584
      %v5622 = vmul.f32 %v5590, %v4585
      %v5623 = vmul.f32 %v5591, %v4586
      %v5624 = vmul.f32 %v5592, %v4587
      %v5625 = vmul.f32 %v5593, %v4588
      %v5626 = vmul.f32 %v5594, %v4589
      %v5627 = vmul.f32 %v5595, %v4590
      %v5628 = vmul.f32 %v5596, %v4591
      %v5629 = vmul.f32 %v5597, %v4592
      %v5630 = vmul.f32 %v5598, %v4593
      %v5631 = vmul.f32 %v5599, %v4594
      %v5632 = vmul.f32 %v5600, %v4595
      %v5633 = vmul.f32 %v5601, %v4596
      %v5634 = vmul.f32 %v5602, %v4597
      %v5635 = vmul.f32 %v5603, %v4598
      %v5636 = vmul.f32 %v5604, %v4599
      %v5637 = vmul.f32 %v5605, %v4600
      %v5638 = vmul.f32 %v5606, %v4601
      %v5639 = vmul.f32 %v5607, %v4602
      %v5640 = vmul.f32 %v5608, %v4603
      %v5641 = vmul.f32 %v5609, %v4604
      %v5642 = vmul.f32 %v5610, %v4605
      %v5643 = vmul.f32 %v5611, %v4606
      %v5644 = vmul.f32 %v5612, %v4607
      %v5645 = vmul.f32 %v5613, %v4608
      %v5646 = vmul.f32 %v5614, %v4609
      %5647 = vrot.lane.b32.xlu0 %v5583, 64
      %v5648 = vpop.permute.xlu0 %5647
      %5649 = vrot.lane.b32.xlu0 %v5584, 64
      %v5650 = vpop.permute.xlu0 %5649
      %5651 = vrot.lane.b32.xlu0 %v5585, 64
      %v5652 = vpop.permute.xlu0 %5651
      %5653 = vrot.lane.b32.xlu0 %v5586, 64
      %v5654 = vpop.permute.xlu0 %5653
      %5655 = vrot.lane.b32.xlu0 %v5587, 64
      %v5656 = vpop.permute.xlu0 %5655
      %5657 = vrot.lane.b32.xlu0 %v5588, 64
      %v5658 = vpop.permute.xlu0 %5657
      %5659 = vrot.lane.b32.xlu0 %v5589, 64
      %v5660 = vpop.permute.xlu0 %5659
      %5661 = vrot.lane.b32.xlu0 %v5590, 64
      %v5662 = vpop.permute.xlu0 %5661
      %5663 = vrot.lane.b32.xlu0 %v5591, 64
      %v5664 = vpop.permute.xlu0 %5663
      %5665 = vrot.lane.b32.xlu0 %v5592, 64
      %v5666 = vpop.permute.xlu0 %5665
      %5667 = vrot.lane.b32.xlu0 %v5593, 64
      %v5668 = vpop.permute.xlu0 %5667
      %5669 = vrot.lane.b32.xlu0 %v5594, 64
      %v5670 = vpop.permute.xlu0 %5669
      %5671 = vrot.lane.b32.xlu0 %v5595, 64
      %v5672 = vpop.permute.xlu0 %5671
      %5673 = vrot.lane.b32.xlu0 %v5596, 64
      %v5674 = vpop.permute.xlu0 %5673
      %5675 = vrot.lane.b32.xlu0 %v5597, 64
      %v5676 = vpop.permute.xlu0 %5675
      %5677 = vrot.lane.b32.xlu0 %v5598, 64
      %v5678 = vpop.permute.xlu0 %5677
      %5679 = vrot.lane.b32.xlu0 %v5599, 64
      %v5680 = vpop.permute.xlu0 %5679
      %5681 = vrot.lane.b32.xlu0 %v5600, 64
      %v5682 = vpop.permute.xlu0 %5681
      %5683 = vrot.lane.b32.xlu0 %v5601, 64
      %v5684 = vpop.permute.xlu0 %5683
      %5685 = vrot.lane.b32.xlu0 %v5602, 64
      %v5686 = vpop.permute.xlu0 %5685
      %5687 = vrot.lane.b32.xlu0 %v5603, 64
      %v5688 = vpop.permute.xlu0 %5687
      %5689 = vrot.lane.b32.xlu0 %v5604, 64
      %v5690 = vpop.permute.xlu0 %5689
      %5691 = vrot.lane.b32.xlu0 %v5605, 64
      %v5692 = vpop.permute.xlu0 %5691
      %5693 = vrot.lane.b32.xlu0 %v5606, 64
      %v5694 = vpop.permute.xlu0 %5693
      %5695 = vrot.lane.b32.xlu0 %v5607, 64
      %v5696 = vpop.permute.xlu0 %5695
      %5697 = vrot.lane.b32.xlu0 %v5608, 64
      %v5698 = vpop.permute.xlu0 %5697
      %5699 = vrot.lane.b32.xlu0 %v5609, 64
      %v5700 = vpop.permute.xlu0 %5699
      %5701 = vrot.lane.b32.xlu0 %v5610, 64
      %v5702 = vpop.permute.xlu0 %5701
      %5703 = vrot.lane.b32.xlu0 %v5611, 64
      %v5704 = vpop.permute.xlu0 %5703
      %5705 = vrot.lane.b32.xlu0 %v5612, 64
      %v5706 = vpop.permute.xlu0 %5705
      %5707 = vrot.lane.b32.xlu0 %v5613, 64
      %v5708 = vpop.permute.xlu0 %5707
      %5709 = vrot.lane.b32.xlu0 %v5614, 64
      %v5710 = vpop.permute.xlu0 %5709
      %v5711 = vmul.f32 %v5648, %v4610
      %v5712 = vmul.f32 %v5650, %v4611
      %v5713 = vmul.f32 %v5652, %v4612
      %v5714 = vmul.f32 %v5654, %v4613
      %v5715 = vmul.f32 %v5656, %v4614
      %v5716 = vmul.f32 %v5658, %v4615
      %v5717 = vmul.f32 %v5660, %v4616
      %v5718 = vmul.f32 %v5662, %v4617
      %v5719 = vmul.f32 %v5664, %v4618
      %v5720 = vmul.f32 %v5666, %v4619
      %v5721 = vmul.f32 %v5668, %v4620
      %v5722 = vmul.f32 %v5670, %v4621
      %v5723 = vmul.f32 %v5672, %v4622
      %v5724 = vmul.f32 %v5674, %v4623
      %v5725 = vmul.f32 %v5676, %v4624
      %v5726 = vmul.f32 %v5678, %v4625
      %v5727 = vmul.f32 %v5680, %v4626
      %v5728 = vmul.f32 %v5682, %v4627
      %v5729 = vmul.f32 %v5684, %v4628
      %v5730 = vmul.f32 %v5686, %v4629
      %v5731 = vmul.f32 %v5688, %v4630
      %v5732 = vmul.f32 %v5690, %v4631
      %v5733 = vmul.f32 %v5692, %v4632
      %v5734 = vmul.f32 %v5694, %v4633
      %v5735 = vmul.f32 %v5696, %v4634
      %v5736 = vmul.f32 %v5698, %v4635
      %v5737 = vmul.f32 %v5700, %v4636
      %v5738 = vmul.f32 %v5702, %v4637
      %v5739 = vmul.f32 %v5704, %v4638
      %v5740 = vmul.f32 %v5706, %v4639
      %v5741 = vmul.f32 %v5708, %v4640
      %v5742 = vmul.f32 %v5710, %v4641
      %v5743 = vmul.f32 %v5711, %v4645
      %v5744 = vmul.f32 %v5712, %v4645
      %v5745 = vmul.f32 %v5713, %v4645
      %v5746 = vmul.f32 %v5714, %v4645
      %v5747 = vmul.f32 %v5715, %v4645
      %v5748 = vmul.f32 %v5716, %v4645
      %v5749 = vmul.f32 %v5717, %v4645
      %v5750 = vmul.f32 %v5718, %v4645
      %v5751 = vmul.f32 %v5719, %v4645
      %v5752 = vmul.f32 %v5720, %v4645
      %v5753 = vmul.f32 %v5721, %v4645
      %v5754 = vmul.f32 %v5722, %v4645
      %v5755 = vmul.f32 %v5723, %v4645
      %v5756 = vmul.f32 %v5724, %v4645
      %v5757 = vmul.f32 %v5725, %v4645
      %v5758 = vmul.f32 %v5726, %v4645
      %v5759 = vmul.f32 %v5727, %v4645
      %v5760 = vmul.f32 %v5728, %v4645
      %v5761 = vmul.f32 %v5729, %v4645
      %v5762 = vmul.f32 %v5730, %v4645
      %v5763 = vmul.f32 %v5731, %v4645
      %v5764 = vmul.f32 %v5732, %v4645
      %v5765 = vmul.f32 %v5733, %v4645
      %v5766 = vmul.f32 %v5734, %v4645
      %v5767 = vmul.f32 %v5735, %v4645
      %v5768 = vmul.f32 %v5736, %v4645
      %v5769 = vmul.f32 %v5737, %v4645
      %v5770 = vmul.f32 %v5738, %v4645
      %v5771 = vmul.f32 %v5739, %v4645
      %v5772 = vmul.f32 %v5740, %v4645
      %v5773 = vmul.f32 %v5741, %v4645
      %v5774 = vmul.f32 %v5742, %v4645
      %v5775 = vadd.f32 %v5615, %v5743
      %v5776 = vadd.f32 %v5616, %v5744
      %v5777 = vadd.f32 %v5617, %v5745
      %v5778 = vadd.f32 %v5618, %v5746
      %v5779 = vadd.f32 %v5619, %v5747
      %v5780 = vadd.f32 %v5620, %v5748
      %v5781 = vadd.f32 %v5621, %v5749
      %v5782 = vadd.f32 %v5622, %v5750
      %v5783 = vadd.f32 %v5623, %v5751
      %v5784 = vadd.f32 %v5624, %v5752
      %v5785 = vadd.f32 %v5625, %v5753
      %v5786 = vadd.f32 %v5626, %v5754
      %v5787 = vadd.f32 %v5627, %v5755
      %v5788 = vadd.f32 %v5628, %v5756
      %v5789 = vadd.f32 %v5629, %v5757
      %v5790 = vadd.f32 %v5630, %v5758
      %v5791 = vadd.f32 %v5631, %v5759
      %v5792 = vadd.f32 %v5632, %v5760
      %v5793 = vadd.f32 %v5633, %v5761
      %v5794 = vadd.f32 %v5634, %v5762
      %v5795 = vadd.f32 %v5635, %v5763
      %v5796 = vadd.f32 %v5636, %v5764
      %v5797 = vadd.f32 %v5637, %v5765
      %v5798 = vadd.f32 %v5638, %v5766
      %v5799 = vadd.f32 %v5639, %v5767
      %v5800 = vadd.f32 %v5640, %v5768
      %v5801 = vadd.f32 %v5641, %v5769
      %v5802 = vadd.f32 %v5642, %v5770
      %v5803 = vadd.f32 %v5643, %v5771
      %v5804 = vadd.f32 %v5644, %v5772
      %v5805 = vadd.f32 %v5645, %v5773
      %v5806 = vadd.f32 %v5646, %v5774
      %v5807 = vmul.f32 %v5775, 0.088388346
      %v5808 = vmul.f32 %v5776, 0.088388346
      %v5809 = vmul.f32 %v5777, 0.088388346
      %v5810 = vmul.f32 %v5778, 0.088388346
      %v5811 = vmul.f32 %v5779, 0.088388346
      %v5812 = vmul.f32 %v5780, 0.088388346
      %v5813 = vmul.f32 %v5781, 0.088388346
      %v5814 = vmul.f32 %v5782, 0.088388346
      %v5815 = vmul.f32 %v5783, 0.088388346
      %v5816 = vmul.f32 %v5784, 0.088388346
      %v5817 = vmul.f32 %v5785, 0.088388346
      %v5818 = vmul.f32 %v5786, 0.088388346
      %v5819 = vmul.f32 %v5787, 0.088388346
      %v5820 = vmul.f32 %v5788, 0.088388346
      %v5821 = vmul.f32 %v5789, 0.088388346
      %v5822 = vmul.f32 %v5790, 0.088388346
      %v5823 = vmul.f32 %v5791, 0.088388346
      %v5824 = vmul.f32 %v5792, 0.088388346
      %v5825 = vmul.f32 %v5793, 0.088388346
      %v5826 = vmul.f32 %v5794, 0.088388346
      %v5827 = vmul.f32 %v5795, 0.088388346
      %v5828 = vmul.f32 %v5796, 0.088388346
      %v5829 = vmul.f32 %v5797, 0.088388346
      %v5830 = vmul.f32 %v5798, 0.088388346
      %v5831 = vmul.f32 %v5799, 0.088388346
      %v5832 = vmul.f32 %v5800, 0.088388346
      %v5833 = vmul.f32 %v5801, 0.088388346
      %v5834 = vmul.f32 %v5802, 0.088388346
      %v5835 = vmul.f32 %v5803, 0.088388346
      %v5836 = vmul.f32 %v5804, 0.088388346
      %v5837 = vmul.f32 %v5805, 0.088388346
      %v5838 = vmul.f32 %v5806, 0.088388346
      %v5839 = vpack.c.bf16 %v5808, %v5807
      %v5840 = vpack.c.bf16 %v5810, %v5809
      %v5841 = vpack.c.bf16 %v5812, %v5811
      %v5842 = vpack.c.bf16 %v5814, %v5813
      %v5843 = vpack.c.bf16 %v5816, %v5815
      %v5844 = vpack.c.bf16 %v5818, %v5817
      %v5845 = vpack.c.bf16 %v5820, %v5819
      %v5846 = vpack.c.bf16 %v5822, %v5821
      %v5847 = vpack.c.bf16 %v5824, %v5823
      %v5848 = vpack.c.bf16 %v5826, %v5825
      %v5849 = vpack.c.bf16 %v5828, %v5827
      %v5850 = vpack.c.bf16 %v5830, %v5829
      %v5851 = vpack.c.bf16 %v5832, %v5831
      %v5852 = vpack.c.bf16 %v5834, %v5833
      %v5853 = vpack.c.bf16 %v5836, %v5835
      %v5854 = vpack.c.bf16 %v5838, %v5837
      %v5871 = vunpack.c.l.b16 %v5839
      %v5872 = vunpack.c.h.b16 %v5839
      %v5873 = vunpack.c.l.b16 %v5840
      %v5874 = vunpack.c.h.b16 %v5840
      %v5875 = vunpack.c.l.b16 %v5841
      %v5876 = vunpack.c.h.b16 %v5841
      %v5877 = vunpack.c.l.b16 %v5842
      %v5878 = vunpack.c.h.b16 %v5842
      %v5879 = vunpack.c.l.b16 %v5843
      %v5880 = vunpack.c.h.b16 %v5843
      %v5881 = vunpack.c.l.b16 %v5844
      %v5882 = vunpack.c.h.b16 %v5844
      %v5883 = vunpack.c.l.b16 %v5845
      %v5884 = vunpack.c.h.b16 %v5845
      %v5885 = vunpack.c.l.b16 %v5846
      %v5886 = vunpack.c.h.b16 %v5846
      %v5887 = vunpack.c.l.b16 %v5847
      %v5888 = vunpack.c.h.b16 %v5847
      %v5889 = vunpack.c.l.b16 %v5848
      %v5890 = vunpack.c.h.b16 %v5848
      %v5891 = vunpack.c.l.b16 %v5849
      %v5892 = vunpack.c.h.b16 %v5849
      %v5893 = vunpack.c.l.b16 %v5850
      %v5894 = vunpack.c.h.b16 %v5850
      %v5895 = vunpack.c.l.b16 %v5851
      %v5896 = vunpack.c.h.b16 %v5851
      %v5897 = vunpack.c.l.b16 %v5852
      %v5898 = vunpack.c.h.b16 %v5852
      %v5899 = vunpack.c.l.b16 %v5853
      %v5900 = vunpack.c.h.b16 %v5853
      %v5901 = vunpack.c.l.b16 %v5854
      %v5902 = vunpack.c.h.b16 %v5854
      %v5903 = vpack.c.b16 %v5871, %v5871
      %v5904 = vpack.c.b16 %v5872, %v5872
      %v5905 = vpack.c.b16 %v5873, %v5873
      %v5906 = vpack.c.b16 %v5874, %v5874
      %v5907 = vpack.c.b16 %v5875, %v5875
      %v5908 = vpack.c.b16 %v5876, %v5876
      %v5909 = vpack.c.b16 %v5877, %v5877
      %v5910 = vpack.c.b16 %v5878, %v5878
      %v5911 = vpack.c.b16 %v5879, %v5879
      %v5912 = vpack.c.b16 %v5880, %v5880
      %v5913 = vpack.c.b16 %v5881, %v5881
      %v5914 = vpack.c.b16 %v5882, %v5882
      %v5915 = vpack.c.b16 %v5883, %v5883
      %v5916 = vpack.c.b16 %v5884, %v5884
      %v5917 = vpack.c.b16 %v5885, %v5885
      %v5918 = vpack.c.b16 %v5886, %v5886
      %v5919 = vpack.c.b16 %v5887, %v5887
      %v5920 = vpack.c.b16 %v5888, %v5888
      %v5921 = vpack.c.b16 %v5889, %v5889
      %v5922 = vpack.c.b16 %v5890, %v5890
      %v5923 = vpack.c.b16 %v5891, %v5891
      %v5924 = vpack.c.b16 %v5892, %v5892
      %v5925 = vpack.c.b16 %v5893, %v5893
      %v5926 = vpack.c.b16 %v5894, %v5894
      %v5927 = vpack.c.b16 %v5895, %v5895
      %v5928 = vpack.c.b16 %v5896, %v5896
      %v5929 = vpack.c.b16 %v5897, %v5897
      %v5930 = vpack.c.b16 %v5898, %v5898
      %v5931 = vpack.c.b16 %v5899, %v5899
      %v5932 = vpack.c.b16 %v5900, %v5900
      %v5933 = vpack.c.b16 %v5901, %v5901
      %v5934 = vpack.c.b16 %v5902, %v5902
      %5967 = vst [vmem:[#allocation11 + $0x4] sm:$0xf] %v5903
      %5968 = vst [vmem:[#allocation11 + $0x14] sm:$0xf] %v5904
      %5969 = vst [vmem:[#allocation11 + $0x24] sm:$0xf] %v5905
      %5970 = vst [vmem:[#allocation11 + $0x34] sm:$0xf] %v5906
      %5971 = vst [vmem:[#allocation11 + $0x44] sm:$0xf] %v5907
      %5972 = vst [vmem:[#allocation11 + $0x54] sm:$0xf] %v5908
      %5973 = vst [vmem:[#allocation11 + $0x64] sm:$0xf] %v5909
      %5974 = vst [vmem:[#allocation11 + $0x74] sm:$0xf] %v5910
      %5975 = vst [vmem:[#allocation11 + $0x84] sm:$0xf] %v5911
      %5976 = vst [vmem:[#allocation11 + $0x94] sm:$0xf] %v5912
      %5977 = vst [vmem:[#allocation11 + $0xa4] sm:$0xf] %v5913
      %5978 = vst [vmem:[#allocation11 + $0xb4] sm:$0xf] %v5914
      %5979 = vst [vmem:[#allocation11 + $0xc4] sm:$0xf] %v5915
      %5980 = vst [vmem:[#allocation11 + $0xd4] sm:$0xf] %v5916
      %5981 = vst [vmem:[#allocation11 + $0xe4] sm:$0xf] %v5917
      %5982 = vst [vmem:[#allocation11 + $0xf4] sm:$0xf] %v5918
      %5983 = vst [vmem:[#allocation11 + $0x104] sm:$0xf] %v5919
      %5984 = vst [vmem:[#allocation11 + $0x114] sm:$0xf] %v5920
      %5985 = vst [vmem:[#allocation11 + $0x124] sm:$0xf] %v5921
      %5986 = vst [vmem:[#allocation11 + $0x134] sm:$0xf] %v5922
      %5987 = vst [vmem:[#allocation11 + $0x144] sm:$0xf] %v5923
      %5988 = vst [vmem:[#allocation11 + $0x154] sm:$0xf] %v5924
      %5989 = vst [vmem:[#allocation11 + $0x164] sm:$0xf] %v5925
      %5990 = vst [vmem:[#allocation11 + $0x174] sm:$0xf] %v5926
      %5991 = vst [vmem:[#allocation11 + $0x184] sm:$0xf] %v5927
      %5992 = vst [vmem:[#allocation11 + $0x194] sm:$0xf] %v5928
      %5993 = vst [vmem:[#allocation11 + $0x1a4] sm:$0xf] %v5929
      %5994 = vst [vmem:[#allocation11 + $0x1b4] sm:$0xf] %v5930
      %5995 = vst [vmem:[#allocation11 + $0x1c4] sm:$0xf] %v5931
      %5996 = vst [vmem:[#allocation11 + $0x1d4] sm:$0xf] %v5932
      %5997 = vst [vmem:[#allocation11 + $0x1e4] sm:$0xf] %v5933
      %5998 = vst [vmem:[#allocation11 + $0x1f4] sm:$0xf] %v5934
      %v5999 = vld [vmem:[#allocation2 + $0x10] sm:$0xff]
      %v6000 = vld [vmem:[#allocation2 + $0x50] sm:$0xff]
      %v6001 = vld [vmem:[#allocation2 + $0x90] sm:$0xff]
      %v6002 = vld [vmem:[#allocation2 + $0xd0] sm:$0xff]
      %v6003 = vld [vmem:[#allocation2 + $0x110] sm:$0xff]
      %v6004 = vld [vmem:[#allocation2 + $0x150] sm:$0xff]
      %v6005 = vld [vmem:[#allocation2 + $0x190] sm:$0xff]
      %v6006 = vld [vmem:[#allocation2 + $0x1d0] sm:$0xff]
      %v6007 = vld [vmem:[#allocation2 + $0x210] sm:$0xff]
      %v6008 = vld [vmem:[#allocation2 + $0x250] sm:$0xff]
      %v6009 = vld [vmem:[#allocation2 + $0x290] sm:$0xff]
      %v6010 = vld [vmem:[#allocation2 + $0x2d0] sm:$0xff]
      %v6011 = vld [vmem:[#allocation2 + $0x310] sm:$0xff]
      %v6012 = vld [vmem:[#allocation2 + $0x350] sm:$0xff]
      %v6013 = vld [vmem:[#allocation2 + $0x390] sm:$0xff]
      %v6014 = vld [vmem:[#allocation2 + $0x3d0] sm:$0xff]
      %v6015 = vld [vmem:[#allocation2 + $0x410] sm:$0xff]
      %v6016 = vld [vmem:[#allocation2 + $0x450] sm:$0xff]
      %v6017 = vld [vmem:[#allocation2 + $0x490] sm:$0xff]
      %v6018 = vld [vmem:[#allocation2 + $0x4d0] sm:$0xff]
      %v6019 = vld [vmem:[#allocation2 + $0x510] sm:$0xff]
      %v6020 = vld [vmem:[#allocation2 + $0x550] sm:$0xff]
      %v6021 = vld [vmem:[#allocation2 + $0x590] sm:$0xff]
      %v6022 = vld [vmem:[#allocation2 + $0x5d0] sm:$0xff]
      %v6023 = vld [vmem:[#allocation2 + $0x610] sm:$0xff]
      %v6024 = vld [vmem:[#allocation2 + $0x650] sm:$0xff]
      %v6025 = vld [vmem:[#allocation2 + $0x690] sm:$0xff]
      %v6026 = vld [vmem:[#allocation2 + $0x6d0] sm:$0xff]
      %v6027 = vld [vmem:[#allocation2 + $0x710] sm:$0xff]
      %v6028 = vld [vmem:[#allocation2 + $0x750] sm:$0xff]
      %v6029 = vld [vmem:[#allocation2 + $0x790] sm:$0xff]
      %v6030 = vld [vmem:[#allocation2 + $0x7d0] sm:$0xff]
      %v6031 = vmul.f32 %v5999, %v5999
      %v6032 = vmul.f32 %v6000, %v6000
      %v6033 = vmul.f32 %v6001, %v6001
      %v6034 = vmul.f32 %v6002, %v6002
      %v6035 = vmul.f32 %v6003, %v6003
      %v6036 = vmul.f32 %v6004, %v6004
      %v6037 = vmul.f32 %v6005, %v6005
      %v6038 = vmul.f32 %v6006, %v6006
      %v6039 = vmul.f32 %v6007, %v6007
      %v6040 = vmul.f32 %v6008, %v6008
      %v6041 = vmul.f32 %v6009, %v6009
      %v6042 = vmul.f32 %v6010, %v6010
      %v6043 = vmul.f32 %v6011, %v6011
      %v6044 = vmul.f32 %v6012, %v6012
      %v6045 = vmul.f32 %v6013, %v6013
      %v6046 = vmul.f32 %v6014, %v6014
      %v6047 = vmul.f32 %v6015, %v6015
      %v6048 = vmul.f32 %v6016, %v6016
      %v6049 = vmul.f32 %v6017, %v6017
      %v6050 = vmul.f32 %v6018, %v6018
      %v6051 = vmul.f32 %v6019, %v6019
      %v6052 = vmul.f32 %v6020, %v6020
      %v6053 = vmul.f32 %v6021, %v6021
      %v6054 = vmul.f32 %v6022, %v6022
      %v6055 = vmul.f32 %v6023, %v6023
      %v6056 = vmul.f32 %v6024, %v6024
      %v6057 = vmul.f32 %v6025, %v6025
      %v6058 = vmul.f32 %v6026, %v6026
      %v6059 = vmul.f32 %v6027, %v6027
      %v6060 = vmul.f32 %v6028, %v6028
      %v6061 = vmul.f32 %v6029, %v6029
      %v6062 = vmul.f32 %v6030, %v6030
      %6063 = vadd.xlane.f32.xlu0 %v6031
      %v6064 = vpop.xlane.xlu0 %6063
      %6065 = vadd.xlane.f32.xlu0 %v6032
      %v6066 = vpop.xlane.xlu0 %6065
      %6067 = vadd.xlane.f32.xlu0 %v6033
      %v6068 = vpop.xlane.xlu0 %6067
      %6069 = vadd.xlane.f32.xlu0 %v6034
      %v6070 = vpop.xlane.xlu0 %6069
      %6071 = vadd.xlane.f32.xlu0 %v6035
      %v6072 = vpop.xlane.xlu0 %6071
      %6073 = vadd.xlane.f32.xlu0 %v6036
      %v6074 = vpop.xlane.xlu0 %6073
      %6075 = vadd.xlane.f32.xlu0 %v6037
      %v6076 = vpop.xlane.xlu0 %6075
      %6077 = vadd.xlane.f32.xlu0 %v6038
      %v6078 = vpop.xlane.xlu0 %6077
      %6079 = vadd.xlane.f32.xlu0 %v6039
      %v6080 = vpop.xlane.xlu0 %6079
      %6081 = vadd.xlane.f32.xlu0 %v6040
      %v6082 = vpop.xlane.xlu0 %6081
      %6083 = vadd.xlane.f32.xlu0 %v6041
      %v6084 = vpop.xlane.xlu0 %6083
      %6085 = vadd.xlane.f32.xlu0 %v6042
      %v6086 = vpop.xlane.xlu0 %6085
      %6087 = vadd.xlane.f32.xlu0 %v6043
      %v6088 = vpop.xlane.xlu0 %6087
      %6089 = vadd.xlane.f32.xlu0 %v6044
      %v6090 = vpop.xlane.xlu0 %6089
      %6091 = vadd.xlane.f32.xlu0 %v6045
      %v6092 = vpop.xlane.xlu0 %6091
      %6093 = vadd.xlane.f32.xlu0 %v6046
      %v6094 = vpop.xlane.xlu0 %6093
      %6095 = vadd.xlane.f32.xlu0 %v6047
      %v6096 = vpop.xlane.xlu0 %6095
      %6097 = vadd.xlane.f32.xlu0 %v6048
      %v6098 = vpop.xlane.xlu0 %6097
      %6099 = vadd.xlane.f32.xlu0 %v6049
      %v6100 = vpop.xlane.xlu0 %6099
      %6101 = vadd.xlane.f32.xlu0 %v6050
      %v6102 = vpop.xlane.xlu0 %6101
      %6103 = vadd.xlane.f32.xlu0 %v6051
      %v6104 = vpop.xlane.xlu0 %6103
      %6105 = vadd.xlane.f32.xlu0 %v6052
      %v6106 = vpop.xlane.xlu0 %6105
      %6107 = vadd.xlane.f32.xlu0 %v6053
      %v6108 = vpop.xlane.xlu0 %6107
      %6109 = vadd.xlane.f32.xlu0 %v6054
      %v6110 = vpop.xlane.xlu0 %6109
      %6111 = vadd.xlane.f32.xlu0 %v6055
      %v6112 = vpop.xlane.xlu0 %6111
      %6113 = vadd.xlane.f32.xlu0 %v6056
      %v6114 = vpop.xlane.xlu0 %6113
      %6115 = vadd.xlane.f32.xlu0 %v6057
      %v6116 = vpop.xlane.xlu0 %6115
      %6117 = vadd.xlane.f32.xlu0 %v6058
      %v6118 = vpop.xlane.xlu0 %6117
      %6119 = vadd.xlane.f32.xlu0 %v6059
      %v6120 = vpop.xlane.xlu0 %6119
      %6121 = vadd.xlane.f32.xlu0 %v6060
      %v6122 = vpop.xlane.xlu0 %6121
      %6123 = vadd.xlane.f32.xlu0 %v6061
      %v6124 = vpop.xlane.xlu0 %6123
      %6125 = vadd.xlane.f32.xlu0 %v6062
      %v6126 = vpop.xlane.xlu0 %6125
      %v6127 = vmul.f32 %v6064, %v4776
      %v6128 = vmul.f32 %v6066, %v4776
      %v6129 = vmul.f32 %v6068, %v4776
      %v6130 = vmul.f32 %v6070, %v4776
      %v6131 = vmul.f32 %v6072, %v4776
      %v6132 = vmul.f32 %v6074, %v4776
      %v6133 = vmul.f32 %v6076, %v4776
      %v6134 = vmul.f32 %v6078, %v4776
      %v6135 = vmul.f32 %v6080, %v4776
      %v6136 = vmul.f32 %v6082, %v4776
      %v6137 = vmul.f32 %v6084, %v4776
      %v6138 = vmul.f32 %v6086, %v4776
      %v6139 = vmul.f32 %v6088, %v4776
      %v6140 = vmul.f32 %v6090, %v4776
      %v6141 = vmul.f32 %v6092, %v4776
      %v6142 = vmul.f32 %v6094, %v4776
      %v6143 = vmul.f32 %v6096, %v4776
      %v6144 = vmul.f32 %v6098, %v4776
      %v6145 = vmul.f32 %v6100, %v4776
      %v6146 = vmul.f32 %v6102, %v4776
      %v6147 = vmul.f32 %v6104, %v4776
      %v6148 = vmul.f32 %v6106, %v4776
      %v6149 = vmul.f32 %v6108, %v4776
      %v6150 = vmul.f32 %v6110, %v4776
      %v6151 = vmul.f32 %v6112, %v4776
      %v6152 = vmul.f32 %v6114, %v4776
      %v6153 = vmul.f32 %v6116, %v4776
      %v6154 = vmul.f32 %v6118, %v4776
      %v6155 = vmul.f32 %v6120, %v4776
      %v6156 = vmul.f32 %v6122, %v4776
      %v6157 = vmul.f32 %v6124, %v4776
      %v6158 = vmul.f32 %v6126, %v4776
      %v6159 = vadd.f32 %v6127, 1e-06
      %v6160 = vadd.f32 %v6128, 1e-06
      %v6161 = vadd.f32 %v6129, 1e-06
      %v6162 = vadd.f32 %v6130, 1e-06
      %v6163 = vadd.f32 %v6131, 1e-06
      %v6164 = vadd.f32 %v6132, 1e-06
      %v6165 = vadd.f32 %v6133, 1e-06
      %v6166 = vadd.f32 %v6134, 1e-06
      %v6167 = vadd.f32 %v6135, 1e-06
      %v6168 = vadd.f32 %v6136, 1e-06
      %v6169 = vadd.f32 %v6137, 1e-06
      %v6170 = vadd.f32 %v6138, 1e-06
      %v6171 = vadd.f32 %v6139, 1e-06
      %v6172 = vadd.f32 %v6140, 1e-06
      %v6173 = vadd.f32 %v6141, 1e-06
      %v6174 = vadd.f32 %v6142, 1e-06
      %v6175 = vadd.f32 %v6143, 1e-06
      %v6176 = vadd.f32 %v6144, 1e-06
      %v6177 = vadd.f32 %v6145, 1e-06
      %v6178 = vadd.f32 %v6146, 1e-06
      %v6179 = vadd.f32 %v6147, 1e-06
      %v6180 = vadd.f32 %v6148, 1e-06
      %v6181 = vadd.f32 %v6149, 1e-06
      %v6182 = vadd.f32 %v6150, 1e-06
      %v6183 = vadd.f32 %v6151, 1e-06
      %v6184 = vadd.f32 %v6152, 1e-06
      %v6185 = vadd.f32 %v6153, 1e-06
      %v6186 = vadd.f32 %v6154, 1e-06
      %v6187 = vadd.f32 %v6155, 1e-06
      %v6188 = vadd.f32 %v6156, 1e-06
      %v6189 = vadd.f32 %v6157, 1e-06
      %v6190 = vadd.f32 %v6158, 1e-06
      %v6191 = vrsqrt.pop %v6159
      %v6192 = vrsqrt.pop %v6160
      %v6193 = vrsqrt.pop %v6161
      %v6194 = vrsqrt.pop %v6162
      %v6195 = vrsqrt.pop %v6163
      %v6196 = vrsqrt.pop %v6164
      %v6197 = vrsqrt.pop %v6165
      %v6198 = vrsqrt.pop %v6166
      %v6199 = vrsqrt.pop %v6167
      %v6200 = vrsqrt.pop %v6168
      %v6201 = vrsqrt.pop %v6169
      %v6202 = vrsqrt.pop %v6170
      %v6203 = vrsqrt.pop %v6171
      %v6204 = vrsqrt.pop %v6172
      %v6205 = vrsqrt.pop %v6173
      %v6206 = vrsqrt.pop %v6174
      %v6207 = vrsqrt.pop %v6175
      %v6208 = vrsqrt.pop %v6176
      %v6209 = vrsqrt.pop %v6177
      %v6210 = vrsqrt.pop %v6178
      %v6211 = vrsqrt.pop %v6179
      %v6212 = vrsqrt.pop %v6180
      %v6213 = vrsqrt.pop %v6181
      %v6214 = vrsqrt.pop %v6182
      %v6215 = vrsqrt.pop %v6183
      %v6216 = vrsqrt.pop %v6184
      %v6217 = vrsqrt.pop %v6185
      %v6218 = vrsqrt.pop %v6186
      %v6219 = vrsqrt.pop %v6187
      %v6220 = vrsqrt.pop %v6188
      %v6221 = vrsqrt.pop %v6189
      %v6222 = vrsqrt.pop %v6190
      %v6223 = vmul.f32 %v5999, %v6191
      %v6224 = vmul.f32 %v6000, %v6192
      %v6225 = vmul.f32 %v6001, %v6193
      %v6226 = vmul.f32 %v6002, %v6194
      %v6227 = vmul.f32 %v6003, %v6195
      %v6228 = vmul.f32 %v6004, %v6196
      %v6229 = vmul.f32 %v6005, %v6197
      %v6230 = vmul.f32 %v6006, %v6198
      %v6231 = vmul.f32 %v6007, %v6199
      %v6232 = vmul.f32 %v6008, %v6200
      %v6233 = vmul.f32 %v6009, %v6201
      %v6234 = vmul.f32 %v6010, %v6202
      %v6235 = vmul.f32 %v6011, %v6203
      %v6236 = vmul.f32 %v6012, %v6204
      %v6237 = vmul.f32 %v6013, %v6205
      %v6238 = vmul.f32 %v6014, %v6206
      %v6239 = vmul.f32 %v6015, %v6207
      %v6240 = vmul.f32 %v6016, %v6208
      %v6241 = vmul.f32 %v6017, %v6209
      %v6242 = vmul.f32 %v6018, %v6210
      %v6243 = vmul.f32 %v6019, %v6211
      %v6244 = vmul.f32 %v6020, %v6212
      %v6245 = vmul.f32 %v6021, %v6213
      %v6246 = vmul.f32 %v6022, %v6214
      %v6247 = vmul.f32 %v6023, %v6215
      %v6248 = vmul.f32 %v6024, %v6216
      %v6249 = vmul.f32 %v6025, %v6217
      %v6250 = vmul.f32 %v6026, %v6218
      %v6251 = vmul.f32 %v6027, %v6219
      %v6252 = vmul.f32 %v6028, %v6220
      %v6253 = vmul.f32 %v6029, %v6221
      %v6254 = vmul.f32 %v6030, %v6222
      %v6255 = vmul.f32 %v6223, %v4909
      %v6256 = vmul.f32 %v6224, %v4909
      %v6257 = vmul.f32 %v6225, %v4909
      %v6258 = vmul.f32 %v6226, %v4909
      %v6259 = vmul.f32 %v6227, %v4909
      %v6260 = vmul.f32 %v6228, %v4909
      %v6261 = vmul.f32 %v6229, %v4909
      %v6262 = vmul.f32 %v6230, %v4909
      %v6263 = vmul.f32 %v6231, %v4909
      %v6264 = vmul.f32 %v6232, %v4909
      %v6265 = vmul.f32 %v6233, %v4909
      %v6266 = vmul.f32 %v6234, %v4909
      %v6267 = vmul.f32 %v6235, %v4909
      %v6268 = vmul.f32 %v6236, %v4909
      %v6269 = vmul.f32 %v6237, %v4909
      %v6270 = vmul.f32 %v6238, %v4909
      %v6271 = vmul.f32 %v6239, %v4909
      %v6272 = vmul.f32 %v6240, %v4909
      %v6273 = vmul.f32 %v6241, %v4909
      %v6274 = vmul.f32 %v6242, %v4909
      %v6275 = vmul.f32 %v6243, %v4909
      %v6276 = vmul.f32 %v6244, %v4909
      %v6277 = vmul.f32 %v6245, %v4909
      %v6278 = vmul.f32 %v6246, %v4909
      %v6279 = vmul.f32 %v6247, %v4909
      %v6280 = vmul.f32 %v6248, %v4909
      %v6281 = vmul.f32 %v6249, %v4909
      %v6282 = vmul.f32 %v6250, %v4909
      %v6283 = vmul.f32 %v6251, %v4909
      %v6284 = vmul.f32 %v6252, %v4909
      %v6285 = vmul.f32 %v6253, %v4909
      %v6286 = vmul.f32 %v6254, %v4909
      %v6287 = vmul.f32 %v6255, %v4578
      %v6288 = vmul.f32 %v6256, %v4579
      %v6289 = vmul.f32 %v6257, %v4580
      %v6290 = vmul.f32 %v6258, %v4581
      %v6291 = vmul.f32 %v6259, %v4582
      %v6292 = vmul.f32 %v6260, %v4583
      %v6293 = vmul.f32 %v6261, %v4584
      %v6294 = vmul.f32 %v6262, %v4585
      %v6295 = vmul.f32 %v6263, %v4586
      %v6296 = vmul.f32 %v6264, %v4587
      %v6297 = vmul.f32 %v6265, %v4588
      %v6298 = vmul.f32 %v6266, %v4589
      %v6299 = vmul.f32 %v6267, %v4590
      %v6300 = vmul.f32 %v6268, %v4591
      %v6301 = vmul.f32 %v6269, %v4592
      %v6302 = vmul.f32 %v6270, %v4593
      %v6303 = vmul.f32 %v6271, %v4594
      %v6304 = vmul.f32 %v6272, %v4595
      %v6305 = vmul.f32 %v6273, %v4596
      %v6306 = vmul.f32 %v6274, %v4597
      %v6307 = vmul.f32 %v6275, %v4598
      %v6308 = vmul.f32 %v6276, %v4599
      %v6309 = vmul.f32 %v6277, %v4600
      %v6310 = vmul.f32 %v6278, %v4601
      %v6311 = vmul.f32 %v6279, %v4602
      %v6312 = vmul.f32 %v6280, %v4603
      %v6313 = vmul.f32 %v6281, %v4604
      %v6314 = vmul.f32 %v6282, %v4605
      %v6315 = vmul.f32 %v6283, %v4606
      %v6316 = vmul.f32 %v6284, %v4607
      %v6317 = vmul.f32 %v6285, %v4608
      %v6318 = vmul.f32 %v6286, %v4609
      %6319 = vrot.lane.b32.xlu0 %v6255, 64
      %v6320 = vpop.permute.xlu0 %6319
      %6321 = vrot.lane.b32.xlu0 %v6256, 64
      %v6322 = vpop.permute.xlu0 %6321
      %6323 = vrot.lane.b32.xlu0 %v6257, 64
      %v6324 = vpop.permute.xlu0 %6323
      %6325 = vrot.lane.b32.xlu0 %v6258, 64
      %v6326 = vpop.permute.xlu0 %6325
      %6327 = vrot.lane.b32.xlu0 %v6259, 64
      %v6328 = vpop.permute.xlu0 %6327
      %6329 = vrot.lane.b32.xlu0 %v6260, 64
      %v6330 = vpop.permute.xlu0 %6329
      %6331 = vrot.lane.b32.xlu0 %v6261, 64
      %v6332 = vpop.permute.xlu0 %6331
      %6333 = vrot.lane.b32.xlu0 %v6262, 64
      %v6334 = vpop.permute.xlu0 %6333
      %6335 = vrot.lane.b32.xlu0 %v6263, 64
      %v6336 = vpop.permute.xlu0 %6335
      %6337 = vrot.lane.b32.xlu0 %v6264, 64
      %v6338 = vpop.permute.xlu0 %6337
      %6339 = vrot.lane.b32.xlu0 %v6265, 64
      %v6340 = vpop.permute.xlu0 %6339
      %6341 = vrot.lane.b32.xlu0 %v6266, 64
      %v6342 = vpop.permute.xlu0 %6341
      %6343 = vrot.lane.b32.xlu0 %v6267, 64
      %v6344 = vpop.permute.xlu0 %6343
      %6345 = vrot.lane.b32.xlu0 %v6268, 64
      %v6346 = vpop.permute.xlu0 %6345
      %6347 = vrot.lane.b32.xlu0 %v6269, 64
      %v6348 = vpop.permute.xlu0 %6347
      %6349 = vrot.lane.b32.xlu0 %v6270, 64
      %v6350 = vpop.permute.xlu0 %6349
      %6351 = vrot.lane.b32.xlu0 %v6271, 64
      %v6352 = vpop.permute.xlu0 %6351
      %6353 = vrot.lane.b32.xlu0 %v6272, 64
      %v6354 = vpop.permute.xlu0 %6353
      %6355 = vrot.lane.b32.xlu0 %v6273, 64
      %v6356 = vpop.permute.xlu0 %6355
      %6357 = vrot.lane.b32.xlu0 %v6274, 64
      %v6358 = vpop.permute.xlu0 %6357
      %6359 = vrot.lane.b32.xlu0 %v6275, 64
      %v6360 = vpop.permute.xlu0 %6359
      %6361 = vrot.lane.b32.xlu0 %v6276, 64
      %v6362 = vpop.permute.xlu0 %6361
      %6363 = vrot.lane.b32.xlu0 %v6277, 64
      %v6364 = vpop.permute.xlu0 %6363
      %6365 = vrot.lane.b32.xlu0 %v6278, 64
      %v6366 = vpop.permute.xlu0 %6365
      %6367 = vrot.lane.b32.xlu0 %v6279, 64
      %v6368 = vpop.permute.xlu0 %6367
      %6369 = vrot.lane.b32.xlu0 %v6280, 64
      %v6370 = vpop.permute.xlu0 %6369
      %6371 = vrot.lane.b32.xlu0 %v6281, 64
      %v6372 = vpop.permute.xlu0 %6371
      %6373 = vrot.lane.b32.xlu0 %v6282, 64
      %v6374 = vpop.permute.xlu0 %6373
      %6375 = vrot.lane.b32.xlu0 %v6283, 64
      %v6376 = vpop.permute.xlu0 %6375
      %6377 = vrot.lane.b32.xlu0 %v6284, 64
      %v6378 = vpop.permute.xlu0 %6377
      %6379 = vrot.lane.b32.xlu0 %v6285, 64
      %v6380 = vpop.permute.xlu0 %6379
      %6381 = vrot.lane.b32.xlu0 %v6286, 64
      %v6382 = vpop.permute.xlu0 %6381
      %v6383 = vmul.f32 %v6320, %v4610
      %v6384 = vmul.f32 %v6322, %v4611
      %v6385 = vmul.f32 %v6324, %v4612
      %v6386 = vmul.f32 %v6326, %v4613
      %v6387 = vmul.f32 %v6328, %v4614
      %v6388 = vmul.f32 %v6330, %v4615
      %v6389 = vmul.f32 %v6332, %v4616
      %v6390 = vmul.f32 %v6334, %v4617
      %v6391 = vmul.f32 %v6336, %v4618
      %v6392 = vmul.f32 %v6338, %v4619
      %v6393 = vmul.f32 %v6340, %v4620
      %v6394 = vmul.f32 %v6342, %v4621
      %v6395 = vmul.f32 %v6344, %v4622
      %v6396 = vmul.f32 %v6346, %v4623
      %v6397 = vmul.f32 %v6348, %v4624
      %v6398 = vmul.f32 %v6350, %v4625
      %v6399 = vmul.f32 %v6352, %v4626
      %v6400 = vmul.f32 %v6354, %v4627
      %v6401 = vmul.f32 %v6356, %v4628
      %v6402 = vmul.f32 %v6358, %v4629
      %v6403 = vmul.f32 %v6360, %v4630
      %v6404 = vmul.f32 %v6362, %v4631
      %v6405 = vmul.f32 %v6364, %v4632
      %v6406 = vmul.f32 %v6366, %v4633
      %v6407 = vmul.f32 %v6368, %v4634
      %v6408 = vmul.f32 %v6370, %v4635
      %v6409 = vmul.f32 %v6372, %v4636
      %v6410 = vmul.f32 %v6374, %v4637
      %v6411 = vmul.f32 %v6376, %v4638
      %v6412 = vmul.f32 %v6378, %v4639
      %v6413 = vmul.f32 %v6380, %v4640
      %v6414 = vmul.f32 %v6382, %v4641
      %v6415 = vmul.f32 %v6383, %v4645
      %v6416 = vmul.f32 %v6384, %v4645
      %v6417 = vmul.f32 %v6385, %v4645
      %v6418 = vmul.f32 %v6386, %v4645
      %v6419 = vmul.f32 %v6387, %v4645
      %v6420 = vmul.f32 %v6388, %v4645
      %v6421 = vmul.f32 %v6389, %v4645
      %v6422 = vmul.f32 %v6390, %v4645
      %v6423 = vmul.f32 %v6391, %v4645
      %v6424 = vmul.f32 %v6392, %v4645
      %v6425 = vmul.f32 %v6393, %v4645
      %v6426 = vmul.f32 %v6394, %v4645
      %v6427 = vmul.f32 %v6395, %v4645
      %v6428 = vmul.f32 %v6396, %v4645
      %v6429 = vmul.f32 %v6397, %v4645
      %v6430 = vmul.f32 %v6398, %v4645
      %v6431 = vmul.f32 %v6399, %v4645
      %v6432 = vmul.f32 %v6400, %v4645
      %v6433 = vmul.f32 %v6401, %v4645
      %v6434 = vmul.f32 %v6402, %v4645
      %v6435 = vmul.f32 %v6403, %v4645
      %v6436 = vmul.f32 %v6404, %v4645
      %v6437 = vmul.f32 %v6405, %v4645
      %v6438 = vmul.f32 %v6406, %v4645
      %v6439 = vmul.f32 %v6407, %v4645
      %v6440 = vmul.f32 %v6408, %v4645
      %v6441 = vmul.f32 %v6409, %v4645
      %v6442 = vmul.f32 %v6410, %v4645
      %v6443 = vmul.f32 %v6411, %v4645
      %v6444 = vmul.f32 %v6412, %v4645
      %v6445 = vmul.f32 %v6413, %v4645
      %v6446 = vmul.f32 %v6414, %v4645
      %v6447 = vadd.f32 %v6287, %v6415
      %v6448 = vadd.f32 %v6288, %v6416
      %v6449 = vadd.f32 %v6289, %v6417
      %v6450 = vadd.f32 %v6290, %v6418
      %v6451 = vadd.f32 %v6291, %v6419
      %v6452 = vadd.f32 %v6292, %v6420
      %v6453 = vadd.f32 %v6293, %v6421
      %v6454 = vadd.f32 %v6294, %v6422
      %v6455 = vadd.f32 %v6295, %v6423
      %v6456 = vadd.f32 %v6296, %v6424
      %v6457 = vadd.f32 %v6297, %v6425
      %v6458 = vadd.f32 %v6298, %v6426
      %v6459 = vadd.f32 %v6299, %v6427
      %v6460 = vadd.f32 %v6300, %v6428
      %v6461 = vadd.f32 %v6301, %v6429
      %v6462 = vadd.f32 %v6302, %v6430
      %v6463 = vadd.f32 %v6303, %v6431
      %v6464 = vadd.f32 %v6304, %v6432
      %v6465 = vadd.f32 %v6305, %v6433
      %v6466 = vadd.f32 %v6306, %v6434
      %v6467 = vadd.f32 %v6307, %v6435
      %v6468 = vadd.f32 %v6308, %v6436
      %v6469 = vadd.f32 %v6309, %v6437
      %v6470 = vadd.f32 %v6310, %v6438
      %v6471 = vadd.f32 %v6311, %v6439
      %v6472 = vadd.f32 %v6312, %v6440
      %v6473 = vadd.f32 %v6313, %v6441
      %v6474 = vadd.f32 %v6314, %v6442
      %v6475 = vadd.f32 %v6315, %v6443
      %v6476 = vadd.f32 %v6316, %v6444
      %v6477 = vadd.f32 %v6317, %v6445
      %v6478 = vadd.f32 %v6318, %v6446
      %v6479 = vmul.f32 %v6447, 0.088388346
      %v6480 = vmul.f32 %v6448, 0.088388346
      %v6481 = vmul.f32 %v6449, 0.088388346
      %v6482 = vmul.f32 %v6450, 0.088388346
      %v6483 = vmul.f32 %v6451, 0.088388346
      %v6484 = vmul.f32 %v6452, 0.088388346
      %v6485 = vmul.f32 %v6453, 0.088388346
      %v6486 = vmul.f32 %v6454, 0.088388346
      %v6487 = vmul.f32 %v6455, 0.088388346
      %v6488 = vmul.f32 %v6456, 0.088388346
      %v6489 = vmul.f32 %v6457, 0.088388346
      %v6490 = vmul.f32 %v6458, 0.088388346
      %v6491 = vmul.f32 %v6459, 0.088388346
      %v6492 = vmul.f32 %v6460, 0.088388346
      %v6493 = vmul.f32 %v6461, 0.088388346
      %v6494 = vmul.f32 %v6462, 0.088388346
      %v6495 = vmul.f32 %v6463, 0.088388346
      %v6496 = vmul.f32 %v6464, 0.088388346
      %v6497 = vmul.f32 %v6465, 0.088388346
      %v6498 = vmul.f32 %v6466, 0.088388346
      %v6499 = vmul.f32 %v6467, 0.088388346
      %v6500 = vmul.f32 %v6468, 0.088388346
      %v6501 = vmul.f32 %v6469, 0.088388346
      %v6502 = vmul.f32 %v6470, 0.088388346
      %v6503 = vmul.f32 %v6471, 0.088388346
      %v6504 = vmul.f32 %v6472, 0.088388346
      %v6505 = vmul.f32 %v6473, 0.088388346
      %v6506 = vmul.f32 %v6474, 0.088388346
      %v6507 = vmul.f32 %v6475, 0.088388346
      %v6508 = vmul.f32 %v6476, 0.088388346
      %v6509 = vmul.f32 %v6477, 0.088388346
      %v6510 = vmul.f32 %v6478, 0.088388346
      %v6511 = vpack.c.bf16 %v6480, %v6479
      %v6512 = vpack.c.bf16 %v6482, %v6481
      %v6513 = vpack.c.bf16 %v6484, %v6483
      %v6514 = vpack.c.bf16 %v6486, %v6485
      %v6515 = vpack.c.bf16 %v6488, %v6487
      %v6516 = vpack.c.bf16 %v6490, %v6489
      %v6517 = vpack.c.bf16 %v6492, %v6491
      %v6518 = vpack.c.bf16 %v6494, %v6493
      %v6519 = vpack.c.bf16 %v6496, %v6495
      %v6520 = vpack.c.bf16 %v6498, %v6497
      %v6521 = vpack.c.bf16 %v6500, %v6499
      %v6522 = vpack.c.bf16 %v6502, %v6501
      %v6523 = vpack.c.bf16 %v6504, %v6503
      %v6524 = vpack.c.bf16 %v6506, %v6505
      %v6525 = vpack.c.bf16 %v6508, %v6507
      %v6526 = vpack.c.bf16 %v6510, %v6509
      %v6543 = vunpack.c.l.b16 %v6511
      %v6544 = vunpack.c.h.b16 %v6511
      %v6545 = vunpack.c.l.b16 %v6512
      %v6546 = vunpack.c.h.b16 %v6512
      %v6547 = vunpack.c.l.b16 %v6513
      %v6548 = vunpack.c.h.b16 %v6513
      %v6549 = vunpack.c.l.b16 %v6514
      %v6550 = vunpack.c.h.b16 %v6514
      %v6551 = vunpack.c.l.b16 %v6515
      %v6552 = vunpack.c.h.b16 %v6515
      %v6553 = vunpack.c.l.b16 %v6516
      %v6554 = vunpack.c.h.b16 %v6516
      %v6555 = vunpack.c.l.b16 %v6517
      %v6556 = vunpack.c.h.b16 %v6517
      %v6557 = vunpack.c.l.b16 %v6518
      %v6558 = vunpack.c.h.b16 %v6518
      %v6559 = vunpack.c.l.b16 %v6519
      %v6560 = vunpack.c.h.b16 %v6519
      %v6561 = vunpack.c.l.b16 %v6520
      %v6562 = vunpack.c.h.b16 %v6520
      %v6563 = vunpack.c.l.b16 %v6521
      %v6564 = vunpack.c.h.b16 %v6521
      %v6565 = vunpack.c.l.b16 %v6522
      %v6566 = vunpack.c.h.b16 %v6522
      %v6567 = vunpack.c.l.b16 %v6523
      %v6568 = vunpack.c.h.b16 %v6523
      %v6569 = vunpack.c.l.b16 %v6524
      %v6570 = vunpack.c.h.b16 %v6524
      %v6571 = vunpack.c.l.b16 %v6525
      %v6572 = vunpack.c.h.b16 %v6525
      %v6573 = vunpack.c.l.b16 %v6526
      %v6574 = vunpack.c.h.b16 %v6526
      %v6575 = vpack.c.b16 %v6543, %v6543
      %v6576 = vpack.c.b16 %v6544, %v6544
      %v6577 = vpack.c.b16 %v6545, %v6545
      %v6578 = vpack.c.b16 %v6546, %v6546
      %v6579 = vpack.c.b16 %v6547, %v6547
      %v6580 = vpack.c.b16 %v6548, %v6548
      %v6581 = vpack.c.b16 %v6549, %v6549
      %v6582 = vpack.c.b16 %v6550, %v6550
      %v6583 = vpack.c.b16 %v6551, %v6551
      %v6584 = vpack.c.b16 %v6552, %v6552
      %v6585 = vpack.c.b16 %v6553, %v6553
      %v6586 = vpack.c.b16 %v6554, %v6554
      %v6587 = vpack.c.b16 %v6555, %v6555
      %v6588 = vpack.c.b16 %v6556, %v6556
      %v6589 = vpack.c.b16 %v6557, %v6557
      %v6590 = vpack.c.b16 %v6558, %v6558
      %v6591 = vpack.c.b16 %v6559, %v6559
      %v6592 = vpack.c.b16 %v6560, %v6560
      %v6593 = vpack.c.b16 %v6561, %v6561
      %v6594 = vpack.c.b16 %v6562, %v6562
      %v6595 = vpack.c.b16 %v6563, %v6563
      %v6596 = vpack.c.b16 %v6564, %v6564
      %v6597 = vpack.c.b16 %v6565, %v6565
      %v6598 = vpack.c.b16 %v6566, %v6566
      %v6599 = vpack.c.b16 %v6567, %v6567
      %v6600 = vpack.c.b16 %v6568, %v6568
      %v6601 = vpack.c.b16 %v6569, %v6569
      %v6602 = vpack.c.b16 %v6570, %v6570
      %v6603 = vpack.c.b16 %v6571, %v6571
      %v6604 = vpack.c.b16 %v6572, %v6572
      %v6605 = vpack.c.b16 %v6573, %v6573
      %v6606 = vpack.c.b16 %v6574, %v6574
      %6639 = vst [vmem:[#allocation11 + $0x8] sm:$0xf] %v6575
      %6640 = vst [vmem:[#allocation11 + $0x18] sm:$0xf] %v6576
      %6641 = vst [vmem:[#allocation11 + $0x28] sm:$0xf] %v6577
      %6642 = vst [vmem:[#allocation11 + $0x38] sm:$0xf] %v6578
      %6643 = vst [vmem:[#allocation11 + $0x48] sm:$0xf] %v6579
      %6644 = vst [vmem:[#allocation11 + $0x58] sm:$0xf] %v6580
      %6645 = vst [vmem:[#allocation11 + $0x68] sm:$0xf] %v6581
      %6646 = vst [vmem:[#allocation11 + $0x78] sm:$0xf] %v6582
      %6647 = vst [vmem:[#allocation11 + $0x88] sm:$0xf] %v6583
      %6648 = vst [vmem:[#allocation11 + $0x98] sm:$0xf] %v6584
      %6649 = vst [vmem:[#allocation11 + $0xa8] sm:$0xf] %v6585
      %6650 = vst [vmem:[#allocation11 + $0xb8] sm:$0xf] %v6586
      %6651 = vst [vmem:[#allocation11 + $0xc8] sm:$0xf] %v6587
      %6652 = vst [vmem:[#allocation11 + $0xd8] sm:$0xf] %v6588
      %6653 = vst [vmem:[#allocation11 + $0xe8] sm:$0xf] %v6589
      %6654 = vst [vmem:[#allocation11 + $0xf8] sm:$0xf] %v6590
      %6655 = vst [vmem:[#allocation11 + $0x108] sm:$0xf] %v6591
      %6656 = vst [vmem:[#allocation11 + $0x118] sm:$0xf] %v6592
      %6657 = vst [vmem:[#allocation11 + $0x128] sm:$0xf] %v6593
      %6658 = vst [vmem:[#allocation11 + $0x138] sm:$0xf] %v6594
      %6659 = vst [vmem:[#allocation11 + $0x148] sm:$0xf] %v6595
      %6660 = vst [vmem:[#allocation11 + $0x158] sm:$0xf] %v6596
      %6661 = vst [vmem:[#allocation11 + $0x168] sm:$0xf] %v6597
      %6662 = vst [vmem:[#allocation11 + $0x178] sm:$0xf] %v6598
      %6663 = vst [vmem:[#allocation11 + $0x188] sm:$0xf] %v6599
      %6664 = vst [vmem:[#allocation11 + $0x198] sm:$0xf] %v6600
      %6665 = vst [vmem:[#allocation11 + $0x1a8] sm:$0xf] %v6601
      %6666 = vst [vmem:[#allocation11 + $0x1b8] sm:$0xf] %v6602
      %6667 = vst [vmem:[#allocation11 + $0x1c8] sm:$0xf] %v6603
      %6668 = vst [vmem:[#allocation11 + $0x1d8] sm:$0xf] %v6604
      %6669 = vst [vmem:[#allocation11 + $0x1e8] sm:$0xf] %v6605
      %6670 = vst [vmem:[#allocation11 + $0x1f8] sm:$0xf] %v6606
      %v6671 = vld [vmem:[#allocation2 + $0x18] sm:$0xff]
      %v6672 = vld [vmem:[#allocation2 + $0x58] sm:$0xff]
      %v6673 = vld [vmem:[#allocation2 + $0x98] sm:$0xff]
      %v6674 = vld [vmem:[#allocation2 + $0xd8] sm:$0xff]
      %v6675 = vld [vmem:[#allocation2 + $0x118] sm:$0xff]
      %v6676 = vld [vmem:[#allocation2 + $0x158] sm:$0xff]
      %v6677 = vld [vmem:[#allocation2 + $0x198] sm:$0xff]
      %v6678 = vld [vmem:[#allocation2 + $0x1d8] sm:$0xff]
      %v6679 = vld [vmem:[#allocation2 + $0x218] sm:$0xff]
      %v6680 = vld [vmem:[#allocation2 + $0x258] sm:$0xff]
      %v6681 = vld [vmem:[#allocation2 + $0x298] sm:$0xff]
      %v6682 = vld [vmem:[#allocation2 + $0x2d8] sm:$0xff]
      %v6683 = vld [vmem:[#allocation2 + $0x318] sm:$0xff]
      %v6684 = vld [vmem:[#allocation2 + $0x358] sm:$0xff]
      %v6685 = vld [vmem:[#allocation2 + $0x398] sm:$0xff]
      %v6686 = vld [vmem:[#allocation2 + $0x3d8] sm:$0xff]
      %v6687 = vld [vmem:[#allocation2 + $0x418] sm:$0xff]
      %v6688 = vld [vmem:[#allocation2 + $0x458] sm:$0xff]
      %v6689 = vld [vmem:[#allocation2 + $0x498] sm:$0xff]
      %v6690 = vld [vmem:[#allocation2 + $0x4d8] sm:$0xff]
      %v6691 = vld [vmem:[#allocation2 + $0x518] sm:$0xff]
      %v6692 = vld [vmem:[#allocation2 + $0x558] sm:$0xff]
      %v6693 = vld [vmem:[#allocation2 + $0x598] sm:$0xff]
      %v6694 = vld [vmem:[#allocation2 + $0x5d8] sm:$0xff]
      %v6695 = vld [vmem:[#allocation2 + $0x618] sm:$0xff]
      %v6696 = vld [vmem:[#allocation2 + $0x658] sm:$0xff]
      %v6697 = vld [vmem:[#allocation2 + $0x698] sm:$0xff]
      %v6698 = vld [vmem:[#allocation2 + $0x6d8] sm:$0xff]
      %v6699 = vld [vmem:[#allocation2 + $0x718] sm:$0xff]
      %v6700 = vld [vmem:[#allocation2 + $0x758] sm:$0xff]
      %v6701 = vld [vmem:[#allocation2 + $0x798] sm:$0xff]
      %v6702 = vld [vmem:[#allocation2 + $0x7d8] sm:$0xff]
      %v6703 = vmul.f32 %v6671, %v6671
      %v6704 = vmul.f32 %v6672, %v6672
      %v6705 = vmul.f32 %v6673, %v6673
      %v6706 = vmul.f32 %v6674, %v6674
      %v6707 = vmul.f32 %v6675, %v6675
      %v6708 = vmul.f32 %v6676, %v6676
      %v6709 = vmul.f32 %v6677, %v6677
      %v6710 = vmul.f32 %v6678, %v6678
      %v6711 = vmul.f32 %v6679, %v6679
      %v6712 = vmul.f32 %v6680, %v6680
      %v6713 = vmul.f32 %v6681, %v6681
      %v6714 = vmul.f32 %v6682, %v6682
      %v6715 = vmul.f32 %v6683, %v6683
      %v6716 = vmul.f32 %v6684, %v6684
      %v6717 = vmul.f32 %v6685, %v6685
      %v6718 = vmul.f32 %v6686, %v6686
      %v6719 = vmul.f32 %v6687, %v6687
      %v6720 = vmul.f32 %v6688, %v6688
      %v6721 = vmul.f32 %v6689, %v6689
      %v6722 = vmul.f32 %v6690, %v6690
      %v6723 = vmul.f32 %v6691, %v6691
      %v6724 = vmul.f32 %v6692, %v6692
      %v6725 = vmul.f32 %v6693, %v6693
      %v6726 = vmul.f32 %v6694, %v6694
      %v6727 = vmul.f32 %v6695, %v6695
      %v6728 = vmul.f32 %v6696, %v6696
      %v6729 = vmul.f32 %v6697, %v6697
      %v6730 = vmul.f32 %v6698, %v6698
      %v6731 = vmul.f32 %v6699, %v6699
      %v6732 = vmul.f32 %v6700, %v6700
      %v6733 = vmul.f32 %v6701, %v6701
      %v6734 = vmul.f32 %v6702, %v6702
      %6735 = vadd.xlane.f32.xlu0 %v6703
      %v6736 = vpop.xlane.xlu0 %6735
      %6737 = vadd.xlane.f32.xlu0 %v6704
      %v6738 = vpop.xlane.xlu0 %6737
      %6739 = vadd.xlane.f32.xlu0 %v6705
      %v6740 = vpop.xlane.xlu0 %6739
      %6741 = vadd.xlane.f32.xlu0 %v6706
      %v6742 = vpop.xlane.xlu0 %6741
      %6743 = vadd.xlane.f32.xlu0 %v6707
      %v6744 = vpop.xlane.xlu0 %6743
      %6745 = vadd.xlane.f32.xlu0 %v6708
      %v6746 = vpop.xlane.xlu0 %6745
      %6747 = vadd.xlane.f32.xlu0 %v6709
      %v6748 = vpop.xlane.xlu0 %6747
      %6749 = vadd.xlane.f32.xlu0 %v6710
      %v6750 = vpop.xlane.xlu0 %6749
      %6751 = vadd.xlane.f32.xlu0 %v6711
      %v6752 = vpop.xlane.xlu0 %6751
      %6753 = vadd.xlane.f32.xlu0 %v6712
      %v6754 = vpop.xlane.xlu0 %6753
      %6755 = vadd.xlane.f32.xlu0 %v6713
      %v6756 = vpop.xlane.xlu0 %6755
      %6757 = vadd.xlane.f32.xlu0 %v6714
      %v6758 = vpop.xlane.xlu0 %6757
      %6759 = vadd.xlane.f32.xlu0 %v6715
      %v6760 = vpop.xlane.xlu0 %6759
      %6761 = vadd.xlane.f32.xlu0 %v6716
      %v6762 = vpop.xlane.xlu0 %6761
      %6763 = vadd.xlane.f32.xlu0 %v6717
      %v6764 = vpop.xlane.xlu0 %6763
      %6765 = vadd.xlane.f32.xlu0 %v6718
      %v6766 = vpop.xlane.xlu0 %6765
      %6767 = vadd.xlane.f32.xlu0 %v6719
      %v6768 = vpop.xlane.xlu0 %6767
      %6769 = vadd.xlane.f32.xlu0 %v6720
      %v6770 = vpop.xlane.xlu0 %6769
      %6771 = vadd.xlane.f32.xlu0 %v6721
      %v6772 = vpop.xlane.xlu0 %6771
      %6773 = vadd.xlane.f32.xlu0 %v6722
      %v6774 = vpop.xlane.xlu0 %6773
      %6775 = vadd.xlane.f32.xlu0 %v6723
      %v6776 = vpop.xlane.xlu0 %6775
      %6777 = vadd.xlane.f32.xlu0 %v6724
      %v6778 = vpop.xlane.xlu0 %6777
      %6779 = vadd.xlane.f32.xlu0 %v6725
      %v6780 = vpop.xlane.xlu0 %6779
      %6781 = vadd.xlane.f32.xlu0 %v6726
      %v6782 = vpop.xlane.xlu0 %6781
      %6783 = vadd.xlane.f32.xlu0 %v6727
      %v6784 = vpop.xlane.xlu0 %6783
      %6785 = vadd.xlane.f32.xlu0 %v6728
      %v6786 = vpop.xlane.xlu0 %6785
      %6787 = vadd.xlane.f32.xlu0 %v6729
      %v6788 = vpop.xlane.xlu0 %6787
      %6789 = vadd.xlane.f32.xlu0 %v6730
      %v6790 = vpop.xlane.xlu0 %6789
      %6791 = vadd.xlane.f32.xlu0 %v6731
      %v6792 = vpop.xlane.xlu0 %6791
      %6793 = vadd.xlane.f32.xlu0 %v6732
      %v6794 = vpop.xlane.xlu0 %6793
      %6795 = vadd.xlane.f32.xlu0 %v6733
      %v6796 = vpop.xlane.xlu0 %6795
      %6797 = vadd.xlane.f32.xlu0 %v6734
      %v6798 = vpop.xlane.xlu0 %6797
      %v6799 = vmul.f32 %v6736, %v4776
      %v6800 = vmul.f32 %v6738, %v4776
      %v6801 = vmul.f32 %v6740, %v4776
      %v6802 = vmul.f32 %v6742, %v4776
      %v6803 = vmul.f32 %v6744, %v4776
      %v6804 = vmul.f32 %v6746, %v4776
      %v6805 = vmul.f32 %v6748, %v4776
      %v6806 = vmul.f32 %v6750, %v4776
      %v6807 = vmul.f32 %v6752, %v4776
      %v6808 = vmul.f32 %v6754, %v4776
      %v6809 = vmul.f32 %v6756, %v4776
      %v6810 = vmul.f32 %v6758, %v4776
      %v6811 = vmul.f32 %v6760, %v4776
      %v6812 = vmul.f32 %v6762, %v4776
      %v6813 = vmul.f32 %v6764, %v4776
      %v6814 = vmul.f32 %v6766, %v4776
      %v6815 = vmul.f32 %v6768, %v4776
      %v6816 = vmul.f32 %v6770, %v4776
      %v6817 = vmul.f32 %v6772, %v4776
      %v6818 = vmul.f32 %v6774, %v4776
      %v6819 = vmul.f32 %v6776, %v4776
      %v6820 = vmul.f32 %v6778, %v4776
      %v6821 = vmul.f32 %v6780, %v4776
      %v6822 = vmul.f32 %v6782, %v4776
      %v6823 = vmul.f32 %v6784, %v4776
      %v6824 = vmul.f32 %v6786, %v4776
      %v6825 = vmul.f32 %v6788, %v4776
      %v6826 = vmul.f32 %v6790, %v4776
      %v6827 = vmul.f32 %v6792, %v4776
      %v6828 = vmul.f32 %v6794, %v4776
      %v6829 = vmul.f32 %v6796, %v4776
      %v6830 = vmul.f32 %v6798, %v4776
      %v6831 = vadd.f32 %v6799, 1e-06
      %v6832 = vadd.f32 %v6800, 1e-06
      %v6833 = vadd.f32 %v6801, 1e-06
      %v6834 = vadd.f32 %v6802, 1e-06
      %v6835 = vadd.f32 %v6803, 1e-06
      %v6836 = vadd.f32 %v6804, 1e-06
      %v6837 = vadd.f32 %v6805, 1e-06
      %v6838 = vadd.f32 %v6806, 1e-06
      %v6839 = vadd.f32 %v6807, 1e-06
      %v6840 = vadd.f32 %v6808, 1e-06
      %v6841 = vadd.f32 %v6809, 1e-06
      %v6842 = vadd.f32 %v6810, 1e-06
      %v6843 = vadd.f32 %v6811, 1e-06
      %v6844 = vadd.f32 %v6812, 1e-06
      %v6845 = vadd.f32 %v6813, 1e-06
      %v6846 = vadd.f32 %v6814, 1e-06
      %v6847 = vadd.f32 %v6815, 1e-06
      %v6848 = vadd.f32 %v6816, 1e-06
      %v6849 = vadd.f32 %v6817, 1e-06
      %v6850 = vadd.f32 %v6818, 1e-06
      %v6851 = vadd.f32 %v6819, 1e-06
      %v6852 = vadd.f32 %v6820, 1e-06
      %v6853 = vadd.f32 %v6821, 1e-06
      %v6854 = vadd.f32 %v6822, 1e-06
      %v6855 = vadd.f32 %v6823, 1e-06
      %v6856 = vadd.f32 %v6824, 1e-06
      %v6857 = vadd.f32 %v6825, 1e-06
      %v6858 = vadd.f32 %v6826, 1e-06
      %v6859 = vadd.f32 %v6827, 1e-06
      %v6860 = vadd.f32 %v6828, 1e-06
      %v6861 = vadd.f32 %v6829, 1e-06
      %v6862 = vadd.f32 %v6830, 1e-06
      %v6863 = vrsqrt.pop %v6831
      %v6864 = vrsqrt.pop %v6832
      %v6865 = vrsqrt.pop %v6833
      %v6866 = vrsqrt.pop %v6834
      %v6867 = vrsqrt.pop %v6835
      %v6868 = vrsqrt.pop %v6836
      %v6869 = vrsqrt.pop %v6837
      %v6870 = vrsqrt.pop %v6838
      %v6871 = vrsqrt.pop %v6839
      %v6872 = vrsqrt.pop %v6840
      %v6873 = vrsqrt.pop %v6841
      %v6874 = vrsqrt.pop %v6842
      %v6875 = vrsqrt.pop %v6843
      %v6876 = vrsqrt.pop %v6844
      %v6877 = vrsqrt.pop %v6845
      %v6878 = vrsqrt.pop %v6846
      %v6879 = vrsqrt.pop %v6847
      %v6880 = vrsqrt.pop %v6848
      %v6881 = vrsqrt.pop %v6849
      %v6882 = vrsqrt.pop %v6850
      %v6883 = vrsqrt.pop %v6851
      %v6884 = vrsqrt.pop %v6852
      %v6885 = vrsqrt.pop %v6853
      %v6886 = vrsqrt.pop %v6854
      %v6887 = vrsqrt.pop %v6855
      %v6888 = vrsqrt.pop %v6856
      %v6889 = vrsqrt.pop %v6857
      %v6890 = vrsqrt.pop %v6858
      %v6891 = vrsqrt.pop %v6859
      %v6892 = vrsqrt.pop %v6860
      %v6893 = vrsqrt.pop %v6861
      %v6894 = vrsqrt.pop %v6862
      %v6895 = vmul.f32 %v6671, %v6863
      %v6896 = vmul.f32 %v6672, %v6864
      %v6897 = vmul.f32 %v6673, %v6865
      %v6898 = vmul.f32 %v6674, %v6866
      %v6899 = vmul.f32 %v6675, %v6867
      %v6900 = vmul.f32 %v6676, %v6868
      %v6901 = vmul.f32 %v6677, %v6869
      %v6902 = vmul.f32 %v6678, %v6870
      %v6903 = vmul.f32 %v6679, %v6871
      %v6904 = vmul.f32 %v6680, %v6872
      %v6905 = vmul.f32 %v6681, %v6873
      %v6906 = vmul.f32 %v6682, %v6874
      %v6907 = vmul.f32 %v6683, %v6875
      %v6908 = vmul.f32 %v6684, %v6876
      %v6909 = vmul.f32 %v6685, %v6877
      %v6910 = vmul.f32 %v6686, %v6878
      %v6911 = vmul.f32 %v6687, %v6879
      %v6912 = vmul.f32 %v6688, %v6880
      %v6913 = vmul.f32 %v6689, %v6881
      %v6914 = vmul.f32 %v6690, %v6882
      %v6915 = vmul.f32 %v6691, %v6883
      %v6916 = vmul.f32 %v6692, %v6884
      %v6917 = vmul.f32 %v6693, %v6885
      %v6918 = vmul.f32 %v6694, %v6886
      %v6919 = vmul.f32 %v6695, %v6887
      %v6920 = vmul.f32 %v6696, %v6888
      %v6921 = vmul.f32 %v6697, %v6889
      %v6922 = vmul.f32 %v6698, %v6890
      %v6923 = vmul.f32 %v6699, %v6891
      %v6924 = vmul.f32 %v6700, %v6892
      %v6925 = vmul.f32 %v6701, %v6893
      %v6926 = vmul.f32 %v6702, %v6894
      %v6927 = vmul.f32 %v6895, %v4909
      %v6928 = vmul.f32 %v6896, %v4909
      %v6929 = vmul.f32 %v6897, %v4909
      %v6930 = vmul.f32 %v6898, %v4909
      %v6931 = vmul.f32 %v6899, %v4909
      %v6932 = vmul.f32 %v6900, %v4909
      %v6933 = vmul.f32 %v6901, %v4909
      %v6934 = vmul.f32 %v6902, %v4909
      %v6935 = vmul.f32 %v6903, %v4909
      %v6936 = vmul.f32 %v6904, %v4909
      %v6937 = vmul.f32 %v6905, %v4909
      %v6938 = vmul.f32 %v6906, %v4909
      %v6939 = vmul.f32 %v6907, %v4909
      %v6940 = vmul.f32 %v6908, %v4909
      %v6941 = vmul.f32 %v6909, %v4909
      %v6942 = vmul.f32 %v6910, %v4909
      %v6943 = vmul.f32 %v6911, %v4909
      %v6944 = vmul.f32 %v6912, %v4909
      %v6945 = vmul.f32 %v6913, %v4909
      %v6946 = vmul.f32 %v6914, %v4909
      %v6947 = vmul.f32 %v6915, %v4909
      %v6948 = vmul.f32 %v6916, %v4909
      %v6949 = vmul.f32 %v6917, %v4909
      %v6950 = vmul.f32 %v6918, %v4909
      %v6951 = vmul.f32 %v6919, %v4909
      %v6952 = vmul.f32 %v6920, %v4909
      %v6953 = vmul.f32 %v6921, %v4909
      %v6954 = vmul.f32 %v6922, %v4909
      %v6955 = vmul.f32 %v6923, %v4909
      %v6956 = vmul.f32 %v6924, %v4909
      %v6957 = vmul.f32 %v6925, %v4909
      %v6958 = vmul.f32 %v6926, %v4909
      %v6959 = vmul.f32 %v6927, %v4578
      %v6960 = vmul.f32 %v6928, %v4579
      %v6961 = vmul.f32 %v6929, %v4580
      %v6962 = vmul.f32 %v6930, %v4581
      %v6963 = vmul.f32 %v6931, %v4582
      %v6964 = vmul.f32 %v6932, %v4583
      %v6965 = vmul.f32 %v6933, %v4584
      %v6966 = vmul.f32 %v6934, %v4585
      %v6967 = vmul.f32 %v6935, %v4586
      %v6968 = vmul.f32 %v6936, %v4587
      %v6969 = vmul.f32 %v6937, %v4588
      %v6970 = vmul.f32 %v6938, %v4589
      %v6971 = vmul.f32 %v6939, %v4590
      %v6972 = vmul.f32 %v6940, %v4591
      %v6973 = vmul.f32 %v6941, %v4592
      %v6974 = vmul.f32 %v6942, %v4593
      %v6975 = vmul.f32 %v6943, %v4594
      %v6976 = vmul.f32 %v6944, %v4595
      %v6977 = vmul.f32 %v6945, %v4596
      %v6978 = vmul.f32 %v6946, %v4597
      %v6979 = vmul.f32 %v6947, %v4598
      %v6980 = vmul.f32 %v6948, %v4599
      %v6981 = vmul.f32 %v6949, %v4600
      %v6982 = vmul.f32 %v6950, %v4601
      %v6983 = vmul.f32 %v6951, %v4602
      %v6984 = vmul.f32 %v6952, %v4603
      %v6985 = vmul.f32 %v6953, %v4604
      %v6986 = vmul.f32 %v6954, %v4605
      %v6987 = vmul.f32 %v6955, %v4606
      %v6988 = vmul.f32 %v6956, %v4607
      %v6989 = vmul.f32 %v6957, %v4608
      %v6990 = vmul.f32 %v6958, %v4609
      %6991 = vrot.lane.b32.xlu0 %v6927, 64
      %v6992 = vpop.permute.xlu0 %6991
      %6993 = vrot.lane.b32.xlu0 %v6928, 64
      %v6994 = vpop.permute.xlu0 %6993
      %6995 = vrot.lane.b32.xlu0 %v6929, 64
      %v6996 = vpop.permute.xlu0 %6995
      %6997 = vrot.lane.b32.xlu0 %v6930, 64
      %v6998 = vpop.permute.xlu0 %6997
      %6999 = vrot.lane.b32.xlu0 %v6931, 64
      %v7000 = vpop.permute.xlu0 %6999
      %7001 = vrot.lane.b32.xlu0 %v6932, 64
      %v7002 = vpop.permute.xlu0 %7001
      %7003 = vrot.lane.b32.xlu0 %v6933, 64
      %v7004 = vpop.permute.xlu0 %7003
      %7005 = vrot.lane.b32.xlu0 %v6934, 64
      %v7006 = vpop.permute.xlu0 %7005
      %7007 = vrot.lane.b32.xlu0 %v6935, 64
      %v7008 = vpop.permute.xlu0 %7007
      %7009 = vrot.lane.b32.xlu0 %v6936, 64
      %v7010 = vpop.permute.xlu0 %7009
      %7011 = vrot.lane.b32.xlu0 %v6937, 64
      %v7012 = vpop.permute.xlu0 %7011
      %7013 = vrot.lane.b32.xlu0 %v6938, 64
      %v7014 = vpop.permute.xlu0 %7013
      %7015 = vrot.lane.b32.xlu0 %v6939, 64
      %v7016 = vpop.permute.xlu0 %7015
      %7017 = vrot.lane.b32.xlu0 %v6940, 64
      %v7018 = vpop.permute.xlu0 %7017
      %7019 = vrot.lane.b32.xlu0 %v6941, 64
      %v7020 = vpop.permute.xlu0 %7019
      %7021 = vrot.lane.b32.xlu0 %v6942, 64
      %v7022 = vpop.permute.xlu0 %7021
      %7023 = vrot.lane.b32.xlu0 %v6943, 64
      %v7024 = vpop.permute.xlu0 %7023
      %7025 = vrot.lane.b32.xlu0 %v6944, 64
      %v7026 = vpop.permute.xlu0 %7025
      %7027 = vrot.lane.b32.xlu0 %v6945, 64
      %v7028 = vpop.permute.xlu0 %7027
      %7029 = vrot.lane.b32.xlu0 %v6946, 64
      %v7030 = vpop.permute.xlu0 %7029
      %7031 = vrot.lane.b32.xlu0 %v6947, 64
      %v7032 = vpop.permute.xlu0 %7031
      %7033 = vrot.lane.b32.xlu0 %v6948, 64
      %v7034 = vpop.permute.xlu0 %7033
      %7035 = vrot.lane.b32.xlu0 %v6949, 64
      %v7036 = vpop.permute.xlu0 %7035
      %7037 = vrot.lane.b32.xlu0 %v6950, 64
      %v7038 = vpop.permute.xlu0 %7037
      %7039 = vrot.lane.b32.xlu0 %v6951, 64
      %v7040 = vpop.permute.xlu0 %7039
      %7041 = vrot.lane.b32.xlu0 %v6952, 64
      %v7042 = vpop.permute.xlu0 %7041
      %7043 = vrot.lane.b32.xlu0 %v6953, 64
      %v7044 = vpop.permute.xlu0 %7043
      %7045 = vrot.lane.b32.xlu0 %v6954, 64
      %v7046 = vpop.permute.xlu0 %7045
      %7047 = vrot.lane.b32.xlu0 %v6955, 64
      %v7048 = vpop.permute.xlu0 %7047
      %7049 = vrot.lane.b32.xlu0 %v6956, 64
      %v7050 = vpop.permute.xlu0 %7049
      %7051 = vrot.lane.b32.xlu0 %v6957, 64
      %v7052 = vpop.permute.xlu0 %7051
      %7053 = vrot.lane.b32.xlu0 %v6958, 64
      %v7054 = vpop.permute.xlu0 %7053
      %v7055 = vmul.f32 %v6992, %v4610
      %v7056 = vmul.f32 %v6994, %v4611
      %v7057 = vmul.f32 %v6996, %v4612
      %v7058 = vmul.f32 %v6998, %v4613
      %v7059 = vmul.f32 %v7000, %v4614
      %v7060 = vmul.f32 %v7002, %v4615
      %v7061 = vmul.f32 %v7004, %v4616
      %v7062 = vmul.f32 %v7006, %v4617
      %v7063 = vmul.f32 %v7008, %v4618
      %v7064 = vmul.f32 %v7010, %v4619
      %v7065 = vmul.f32 %v7012, %v4620
      %v7066 = vmul.f32 %v7014, %v4621
      %v7067 = vmul.f32 %v7016, %v4622
      %v7068 = vmul.f32 %v7018, %v4623
      %v7069 = vmul.f32 %v7020, %v4624
      %v7070 = vmul.f32 %v7022, %v4625
      %v7071 = vmul.f32 %v7024, %v4626
      %v7072 = vmul.f32 %v7026, %v4627
      %v7073 = vmul.f32 %v7028, %v4628
      %v7074 = vmul.f32 %v7030, %v4629
      %v7075 = vmul.f32 %v7032, %v4630
      %v7076 = vmul.f32 %v7034, %v4631
      %v7077 = vmul.f32 %v7036, %v4632
      %v7078 = vmul.f32 %v7038, %v4633
      %v7079 = vmul.f32 %v7040, %v4634
      %v7080 = vmul.f32 %v7042, %v4635
      %v7081 = vmul.f32 %v7044, %v4636
      %v7082 = vmul.f32 %v7046, %v4637
      %v7083 = vmul.f32 %v7048, %v4638
      %v7084 = vmul.f32 %v7050, %v4639
      %v7085 = vmul.f32 %v7052, %v4640
      %v7086 = vmul.f32 %v7054, %v4641
      %v7087 = vmul.f32 %v7055, %v4645
      %v7088 = vmul.f32 %v7056, %v4645
      %v7089 = vmul.f32 %v7057, %v4645
      %v7090 = vmul.f32 %v7058, %v4645
      %v7091 = vmul.f32 %v7059, %v4645
      %v7092 = vmul.f32 %v7060, %v4645
      %v7093 = vmul.f32 %v7061, %v4645
      %v7094 = vmul.f32 %v7062, %v4645
      %v7095 = vmul.f32 %v7063, %v4645
      %v7096 = vmul.f32 %v7064, %v4645
      %v7097 = vmul.f32 %v7065, %v4645
      %v7098 = vmul.f32 %v7066, %v4645
      %v7099 = vmul.f32 %v7067, %v4645
      %v7100 = vmul.f32 %v7068, %v4645
      %v7101 = vmul.f32 %v7069, %v4645
      %v7102 = vmul.f32 %v7070, %v4645
      %v7103 = vmul.f32 %v7071, %v4645
      %v7104 = vmul.f32 %v7072, %v4645
      %v7105 = vmul.f32 %v7073, %v4645
      %v7106 = vmul.f32 %v7074, %v4645
      %v7107 = vmul.f32 %v7075, %v4645
      %v7108 = vmul.f32 %v7076, %v4645
      %v7109 = vmul.f32 %v7077, %v4645
      %v7110 = vmul.f32 %v7078, %v4645
      %v7111 = vmul.f32 %v7079, %v4645
      %v7112 = vmul.f32 %v7080, %v4645
      %v7113 = vmul.f32 %v7081, %v4645
      %v7114 = vmul.f32 %v7082, %v4645
      %v7115 = vmul.f32 %v7083, %v4645
      %v7116 = vmul.f32 %v7084, %v4645
      %v7117 = vmul.f32 %v7085, %v4645
      %v7118 = vmul.f32 %v7086, %v4645
      %v7119 = vadd.f32 %v6959, %v7087
      %v7120 = vadd.f32 %v6960, %v7088
      %v7121 = vadd.f32 %v6961, %v7089
      %v7122 = vadd.f32 %v6962, %v7090
      %v7123 = vadd.f32 %v6963, %v7091
      %v7124 = vadd.f32 %v6964, %v7092
      %v7125 = vadd.f32 %v6965, %v7093
      %v7126 = vadd.f32 %v6966, %v7094
      %v7127 = vadd.f32 %v6967, %v7095
      %v7128 = vadd.f32 %v6968, %v7096
      %v7129 = vadd.f32 %v6969, %v7097
      %v7130 = vadd.f32 %v6970, %v7098
      %v7131 = vadd.f32 %v6971, %v7099
      %v7132 = vadd.f32 %v6972, %v7100
      %v7133 = vadd.f32 %v6973, %v7101
      %v7134 = vadd.f32 %v6974, %v7102
      %v7135 = vadd.f32 %v6975, %v7103
      %v7136 = vadd.f32 %v6976, %v7104
      %v7137 = vadd.f32 %v6977, %v7105
      %v7138 = vadd.f32 %v6978, %v7106
      %v7139 = vadd.f32 %v6979, %v7107
      %v7140 = vadd.f32 %v6980, %v7108
      %v7141 = vadd.f32 %v6981, %v7109
      %v7142 = vadd.f32 %v6982, %v7110
      %v7143 = vadd.f32 %v6983, %v7111
      %v7144 = vadd.f32 %v6984, %v7112
      %v7145 = vadd.f32 %v6985, %v7113
      %v7146 = vadd.f32 %v6986, %v7114
      %v7147 = vadd.f32 %v6987, %v7115
      %v7148 = vadd.f32 %v6988, %v7116
      %v7149 = vadd.f32 %v6989, %v7117
      %v7150 = vadd.f32 %v6990, %v7118
      %v7151 = vmul.f32 %v7119, 0.088388346
      %v7152 = vmul.f32 %v7120, 0.088388346
      %v7153 = vmul.f32 %v7121, 0.088388346
      %v7154 = vmul.f32 %v7122, 0.088388346
      %v7155 = vmul.f32 %v7123, 0.088388346
      %v7156 = vmul.f32 %v7124, 0.088388346
      %v7157 = vmul.f32 %v7125, 0.088388346
      %v7158 = vmul.f32 %v7126, 0.088388346
      %v7159 = vmul.f32 %v7127, 0.088388346
      %v7160 = vmul.f32 %v7128, 0.088388346
      %v7161 = vmul.f32 %v7129, 0.088388346
      %v7162 = vmul.f32 %v7130, 0.088388346
      %v7163 = vmul.f32 %v7131, 0.088388346
      %v7164 = vmul.f32 %v7132, 0.088388346
      %v7165 = vmul.f32 %v7133, 0.088388346
      %v7166 = vmul.f32 %v7134, 0.088388346
      %v7167 = vmul.f32 %v7135, 0.088388346
      %v7168 = vmul.f32 %v7136, 0.088388346
      %v7169 = vmul.f32 %v7137, 0.088388346
      %v7170 = vmul.f32 %v7138, 0.088388346
      %v7171 = vmul.f32 %v7139, 0.088388346
      %v7172 = vmul.f32 %v7140, 0.088388346
      %v7173 = vmul.f32 %v7141, 0.088388346
      %v7174 = vmul.f32 %v7142, 0.088388346
      %v7175 = vmul.f32 %v7143, 0.088388346
      %v7176 = vmul.f32 %v7144, 0.088388346
      %v7177 = vmul.f32 %v7145, 0.088388346
      %v7178 = vmul.f32 %v7146, 0.088388346
      %v7179 = vmul.f32 %v7147, 0.088388346
      %v7180 = vmul.f32 %v7148, 0.088388346
      %v7181 = vmul.f32 %v7149, 0.088388346
      %v7182 = vmul.f32 %v7150, 0.088388346
      %v7183 = vpack.c.bf16 %v7152, %v7151
      %v7184 = vpack.c.bf16 %v7154, %v7153
      %v7185 = vpack.c.bf16 %v7156, %v7155
      %v7186 = vpack.c.bf16 %v7158, %v7157
      %v7187 = vpack.c.bf16 %v7160, %v7159
      %v7188 = vpack.c.bf16 %v7162, %v7161
      %v7189 = vpack.c.bf16 %v7164, %v7163
      %v7190 = vpack.c.bf16 %v7166, %v7165
      %v7191 = vpack.c.bf16 %v7168, %v7167
      %v7192 = vpack.c.bf16 %v7170, %v7169
      %v7193 = vpack.c.bf16 %v7172, %v7171
      %v7194 = vpack.c.bf16 %v7174, %v7173
      %v7195 = vpack.c.bf16 %v7176, %v7175
      %v7196 = vpack.c.bf16 %v7178, %v7177
      %v7197 = vpack.c.bf16 %v7180, %v7179
      %v7198 = vpack.c.bf16 %v7182, %v7181
      %v7215 = vunpack.c.l.b16 %v7183
      %v7216 = vunpack.c.h.b16 %v7183
      %v7217 = vunpack.c.l.b16 %v7184
      %v7218 = vunpack.c.h.b16 %v7184
      %v7219 = vunpack.c.l.b16 %v7185
      %v7220 = vunpack.c.h.b16 %v7185
      %v7221 = vunpack.c.l.b16 %v7186
      %v7222 = vunpack.c.h.b16 %v7186
      %v7223 = vunpack.c.l.b16 %v7187
      %v7224 = vunpack.c.h.b16 %v7187
      %v7225 = vunpack.c.l.b16 %v7188
      %v7226 = vunpack.c.h.b16 %v7188
      %v7227 = vunpack.c.l.b16 %v7189
      %v7228 = vunpack.c.h.b16 %v7189
      %v7229 = vunpack.c.l.b16 %v7190
      %v7230 = vunpack.c.h.b16 %v7190
      %v7231 = vunpack.c.l.b16 %v7191
      %v7232 = vunpack.c.h.b16 %v7191
      %v7233 = vunpack.c.l.b16 %v7192
      %v7234 = vunpack.c.h.b16 %v7192
      %v7235 = vunpack.c.l.b16 %v7193
      %v7236 = vunpack.c.h.b16 %v7193
      %v7237 = vunpack.c.l.b16 %v7194
      %v7238 = vunpack.c.h.b16 %v7194
      %v7239 = vunpack.c.l.b16 %v7195
      %v7240 = vunpack.c.h.b16 %v7195
      %v7241 = vunpack.c.l.b16 %v7196
      %v7242 = vunpack.c.h.b16 %v7196
      %v7243 = vunpack.c.l.b16 %v7197
      %v7244 = vunpack.c.h.b16 %v7197
      %v7245 = vunpack.c.l.b16 %v7198
      %v7246 = vunpack.c.h.b16 %v7198
      %v7247 = vpack.c.b16 %v7215, %v7215
      %v7248 = vpack.c.b16 %v7216, %v7216
      %v7249 = vpack.c.b16 %v7217, %v7217
      %v7250 = vpack.c.b16 %v7218, %v7218
      %v7251 = vpack.c.b16 %v7219, %v7219
      %v7252 = vpack.c.b16 %v7220, %v7220
      %v7253 = vpack.c.b16 %v7221, %v7221
      %v7254 = vpack.c.b16 %v7222, %v7222
      %v7255 = vpack.c.b16 %v7223, %v7223
      %v7256 = vpack.c.b16 %v7224, %v7224
      %v7257 = vpack.c.b16 %v7225, %v7225
      %v7258 = vpack.c.b16 %v7226, %v7226
      %v7259 = vpack.c.b16 %v7227, %v7227
      %v7260 = vpack.c.b16 %v7228, %v7228
      %v7261 = vpack.c.b16 %v7229, %v7229
      %v7262 = vpack.c.b16 %v7230, %v7230
      %v7263 = vpack.c.b16 %v7231, %v7231
      %v7264 = vpack.c.b16 %v7232, %v7232
      %v7265 = vpack.c.b16 %v7233, %v7233
      %v7266 = vpack.c.b16 %v7234, %v7234
      %v7267 = vpack.c.b16 %v7235, %v7235
      %v7268 = vpack.c.b16 %v7236, %v7236
      %v7269 = vpack.c.b16 %v7237, %v7237
      %v7270 = vpack.c.b16 %v7238, %v7238
      %v7271 = vpack.c.b16 %v7239, %v7239
      %v7272 = vpack.c.b16 %v7240, %v7240
      %v7273 = vpack.c.b16 %v7241, %v7241
      %v7274 = vpack.c.b16 %v7242, %v7242
      %v7275 = vpack.c.b16 %v7243, %v7243
      %v7276 = vpack.c.b16 %v7244, %v7244
      %v7277 = vpack.c.b16 %v7245, %v7245
      %v7278 = vpack.c.b16 %v7246, %v7246
      %7311 = vst [vmem:[#allocation11 + $0xc] sm:$0xf] %v7247
      %7312 = vst [vmem:[#allocation11 + $0x1c] sm:$0xf] %v7248
      %7313 = vst [vmem:[#allocation11 + $0x2c] sm:$0xf] %v7249
      %7314 = vst [vmem:[#allocation11 + $0x3c] sm:$0xf] %v7250
      %7315 = vst [vmem:[#allocation11 + $0x4c] sm:$0xf] %v7251
      %7316 = vst [vmem:[#allocation11 + $0x5c] sm:$0xf] %v7252
      %7317 = vst [vmem:[#allocation11 + $0x6c] sm:$0xf] %v7253
      %7318 = vst [vmem:[#allocation11 + $0x7c] sm:$0xf] %v7254
      %7319 = vst [vmem:[#allocation11 + $0x8c] sm:$0xf] %v7255
      %7320 = vst [vmem:[#allocation11 + $0x9c] sm:$0xf] %v7256
      %7321 = vst [vmem:[#allocation11 + $0xac] sm:$0xf] %v7257
      %7322 = vst [vmem:[#allocation11 + $0xbc] sm:$0xf] %v7258
      %7323 = vst [vmem:[#allocation11 + $0xcc] sm:$0xf] %v7259
      %7324 = vst [vmem:[#allocation11 + $0xdc] sm:$0xf] %v7260
      %7325 = vst [vmem:[#allocation11 + $0xec] sm:$0xf] %v7261
      %7326 = vst [vmem:[#allocation11 + $0xfc] sm:$0xf] %v7262
      %7327 = vst [vmem:[#allocation11 + $0x10c] sm:$0xf] %v7263
      %7328 = vst [vmem:[#allocation11 + $0x11c] sm:$0xf] %v7264
      %7329 = vst [vmem:[#allocation11 + $0x12c] sm:$0xf] %v7265
      %7330 = vst [vmem:[#allocation11 + $0x13c] sm:$0xf] %v7266
      %7331 = vst [vmem:[#allocation11 + $0x14c] sm:$0xf] %v7267
      %7332 = vst [vmem:[#allocation11 + $0x15c] sm:$0xf] %v7268
      %7333 = vst [vmem:[#allocation11 + $0x16c] sm:$0xf] %v7269
      %7334 = vst [vmem:[#allocation11 + $0x17c] sm:$0xf] %v7270
      %7335 = vst [vmem:[#allocation11 + $0x18c] sm:$0xf] %v7271
      %7336 = vst [vmem:[#allocation11 + $0x19c] sm:$0xf] %v7272
      %7337 = vst [vmem:[#allocation11 + $0x1ac] sm:$0xf] %v7273
      %7338 = vst [vmem:[#allocation11 + $0x1bc] sm:$0xf] %v7274
      %7339 = vst [vmem:[#allocation11 + $0x1cc] sm:$0xf] %v7275
      %7340 = vst [vmem:[#allocation11 + $0x1dc] sm:$0xf] %v7276
      %7341 = vst [vmem:[#allocation11 + $0x1ec] sm:$0xf] %v7277
      %7342 = vst [vmem:[#allocation11 + $0x1fc] sm:$0xf] %v7278
      %v7343 = vld [vmem:[#allocation2 + $0x20] sm:$0xff]
      %v7344 = vld [vmem:[#allocation2 + $0x60] sm:$0xff]
      %v7345 = vld [vmem:[#allocation2 + $0xa0] sm:$0xff]
      %v7346 = vld [vmem:[#allocation2 + $0xe0] sm:$0xff]
      %v7347 = vld [vmem:[#allocation2 + $0x120] sm:$0xff]
      %v7348 = vld [vmem:[#allocation2 + $0x160] sm:$0xff]
      %v7349 = vld [vmem:[#allocation2 + $0x1a0] sm:$0xff]
      %v7350 = vld [vmem:[#allocation2 + $0x1e0] sm:$0xff]
      %v7351 = vld [vmem:[#allocation2 + $0x220] sm:$0xff]
      %v7352 = vld [vmem:[#allocation2 + $0x260] sm:$0xff]
      %v7353 = vld [vmem:[#allocation2 + $0x2a0] sm:$0xff]
      %v7354 = vld [vmem:[#allocation2 + $0x2e0] sm:$0xff]
      %v7355 = vld [vmem:[#allocation2 + $0x320] sm:$0xff]
      %v7356 = vld [vmem:[#allocation2 + $0x360] sm:$0xff]
      %v7357 = vld [vmem:[#allocation2 + $0x3a0] sm:$0xff]
      %v7358 = vld [vmem:[#allocation2 + $0x3e0] sm:$0xff]
      %v7359 = vld [vmem:[#allocation2 + $0x420] sm:$0xff]
      %v7360 = vld [vmem:[#allocation2 + $0x460] sm:$0xff]
      %v7361 = vld [vmem:[#allocation2 + $0x4a0] sm:$0xff]
      %v7362 = vld [vmem:[#allocation2 + $0x4e0] sm:$0xff]
      %v7363 = vld [vmem:[#allocation2 + $0x520] sm:$0xff]
      %v7364 = vld [vmem:[#allocation2 + $0x560] sm:$0xff]
      %v7365 = vld [vmem:[#allocation2 + $0x5a0] sm:$0xff]
      %v7366 = vld [vmem:[#allocation2 + $0x5e0] sm:$0xff]
      %v7367 = vld [vmem:[#allocation2 + $0x620] sm:$0xff]
      %v7368 = vld [vmem:[#allocation2 + $0x660] sm:$0xff]
      %v7369 = vld [vmem:[#allocation2 + $0x6a0] sm:$0xff]
      %v7370 = vld [vmem:[#allocation2 + $0x6e0] sm:$0xff]
      %v7371 = vld [vmem:[#allocation2 + $0x720] sm:$0xff]
      %v7372 = vld [vmem:[#allocation2 + $0x760] sm:$0xff]
      %v7373 = vld [vmem:[#allocation2 + $0x7a0] sm:$0xff]
      %v7374 = vld [vmem:[#allocation2 + $0x7e0] sm:$0xff]
      %v7375 = vmul.f32 %v7343, %v7343
      %v7376 = vmul.f32 %v7344, %v7344
      %v7377 = vmul.f32 %v7345, %v7345
      %v7378 = vmul.f32 %v7346, %v7346
      %v7379 = vmul.f32 %v7347, %v7347
      %v7380 = vmul.f32 %v7348, %v7348
      %v7381 = vmul.f32 %v7349, %v7349
      %v7382 = vmul.f32 %v7350, %v7350
      %v7383 = vmul.f32 %v7351, %v7351
      %v7384 = vmul.f32 %v7352, %v7352
      %v7385 = vmul.f32 %v7353, %v7353
      %v7386 = vmul.f32 %v7354, %v7354
      %v7387 = vmul.f32 %v7355, %v7355
      %v7388 = vmul.f32 %v7356, %v7356
      %v7389 = vmul.f32 %v7357, %v7357
      %v7390 = vmul.f32 %v7358, %v7358
      %v7391 = vmul.f32 %v7359, %v7359
      %v7392 = vmul.f32 %v7360, %v7360
      %v7393 = vmul.f32 %v7361, %v7361
      %v7394 = vmul.f32 %v7362, %v7362
      %v7395 = vmul.f32 %v7363, %v7363
      %v7396 = vmul.f32 %v7364, %v7364
      %v7397 = vmul.f32 %v7365, %v7365
      %v7398 = vmul.f32 %v7366, %v7366
      %v7399 = vmul.f32 %v7367, %v7367
      %v7400 = vmul.f32 %v7368, %v7368
      %v7401 = vmul.f32 %v7369, %v7369
      %v7402 = vmul.f32 %v7370, %v7370
      %v7403 = vmul.f32 %v7371, %v7371
      %v7404 = vmul.f32 %v7372, %v7372
      %v7405 = vmul.f32 %v7373, %v7373
      %v7406 = vmul.f32 %v7374, %v7374
      %7407 = vadd.xlane.f32.xlu0 %v7375
      %v7408 = vpop.xlane.xlu0 %7407
      %7409 = vadd.xlane.f32.xlu0 %v7376
      %v7410 = vpop.xlane.xlu0 %7409
      %7411 = vadd.xlane.f32.xlu0 %v7377
      %v7412 = vpop.xlane.xlu0 %7411
      %7413 = vadd.xlane.f32.xlu0 %v7378
      %v7414 = vpop.xlane.xlu0 %7413
      %7415 = vadd.xlane.f32.xlu0 %v7379
      %v7416 = vpop.xlane.xlu0 %7415
      %7417 = vadd.xlane.f32.xlu0 %v7380
      %v7418 = vpop.xlane.xlu0 %7417
      %7419 = vadd.xlane.f32.xlu0 %v7381
      %v7420 = vpop.xlane.xlu0 %7419
      %7421 = vadd.xlane.f32.xlu0 %v7382
      %v7422 = vpop.xlane.xlu0 %7421
      %7423 = vadd.xlane.f32.xlu0 %v7383
      %v7424 = vpop.xlane.xlu0 %7423
      %7425 = vadd.xlane.f32.xlu0 %v7384
      %v7426 = vpop.xlane.xlu0 %7425
      %7427 = vadd.xlane.f32.xlu0 %v7385
      %v7428 = vpop.xlane.xlu0 %7427
      %7429 = vadd.xlane.f32.xlu0 %v7386
      %v7430 = vpop.xlane.xlu0 %7429
      %7431 = vadd.xlane.f32.xlu0 %v7387
      %v7432 = vpop.xlane.xlu0 %7431
      %7433 = vadd.xlane.f32.xlu0 %v7388
      %v7434 = vpop.xlane.xlu0 %7433
      %7435 = vadd.xlane.f32.xlu0 %v7389
      %v7436 = vpop.xlane.xlu0 %7435
      %7437 = vadd.xlane.f32.xlu0 %v7390
      %v7438 = vpop.xlane.xlu0 %7437
      %7439 = vadd.xlane.f32.xlu0 %v7391
      %v7440 = vpop.xlane.xlu0 %7439
      %7441 = vadd.xlane.f32.xlu0 %v7392
      %v7442 = vpop.xlane.xlu0 %7441
      %7443 = vadd.xlane.f32.xlu0 %v7393
      %v7444 = vpop.xlane.xlu0 %7443
      %7445 = vadd.xlane.f32.xlu0 %v7394
      %v7446 = vpop.xlane.xlu0 %7445
      %7447 = vadd.xlane.f32.xlu0 %v7395
      %v7448 = vpop.xlane.xlu0 %7447
      %7449 = vadd.xlane.f32.xlu0 %v7396
      %v7450 = vpop.xlane.xlu0 %7449
      %7451 = vadd.xlane.f32.xlu0 %v7397
      %v7452 = vpop.xlane.xlu0 %7451
      %7453 = vadd.xlane.f32.xlu0 %v7398
      %v7454 = vpop.xlane.xlu0 %7453
      %7455 = vadd.xlane.f32.xlu0 %v7399
      %v7456 = vpop.xlane.xlu0 %7455
      %7457 = vadd.xlane.f32.xlu0 %v7400
      %v7458 = vpop.xlane.xlu0 %7457
      %7459 = vadd.xlane.f32.xlu0 %v7401
      %v7460 = vpop.xlane.xlu0 %7459
      %7461 = vadd.xlane.f32.xlu0 %v7402
      %v7462 = vpop.xlane.xlu0 %7461
      %7463 = vadd.xlane.f32.xlu0 %v7403
      %v7464 = vpop.xlane.xlu0 %7463
      %7465 = vadd.xlane.f32.xlu0 %v7404
      %v7466 = vpop.xlane.xlu0 %7465
      %7467 = vadd.xlane.f32.xlu0 %v7405
      %v7468 = vpop.xlane.xlu0 %7467
      %7469 = vadd.xlane.f32.xlu0 %v7406
      %v7470 = vpop.xlane.xlu0 %7469
      %v7471 = vmul.f32 %v7408, %v4776
      %v7472 = vmul.f32 %v7410, %v4776
      %v7473 = vmul.f32 %v7412, %v4776
      %v7474 = vmul.f32 %v7414, %v4776
      %v7475 = vmul.f32 %v7416, %v4776
      %v7476 = vmul.f32 %v7418, %v4776
      %v7477 = vmul.f32 %v7420, %v4776
      %v7478 = vmul.f32 %v7422, %v4776
      %v7479 = vmul.f32 %v7424, %v4776
      %v7480 = vmul.f32 %v7426, %v4776
      %v7481 = vmul.f32 %v7428, %v4776
      %v7482 = vmul.f32 %v7430, %v4776
      %v7483 = vmul.f32 %v7432, %v4776
      %v7484 = vmul.f32 %v7434, %v4776
      %v7485 = vmul.f32 %v7436, %v4776
      %v7486 = vmul.f32 %v7438, %v4776
      %v7487 = vmul.f32 %v7440, %v4776
      %v7488 = vmul.f32 %v7442, %v4776
      %v7489 = vmul.f32 %v7444, %v4776
      %v7490 = vmul.f32 %v7446, %v4776
      %v7491 = vmul.f32 %v7448, %v4776
      %v7492 = vmul.f32 %v7450, %v4776
      %v7493 = vmul.f32 %v7452, %v4776
      %v7494 = vmul.f32 %v7454, %v4776
      %v7495 = vmul.f32 %v7456, %v4776
      %v7496 = vmul.f32 %v7458, %v4776
      %v7497 = vmul.f32 %v7460, %v4776
      %v7498 = vmul.f32 %v7462, %v4776
      %v7499 = vmul.f32 %v7464, %v4776
      %v7500 = vmul.f32 %v7466, %v4776
      %v7501 = vmul.f32 %v7468, %v4776
      %v7502 = vmul.f32 %v7470, %v4776
      %v7503 = vadd.f32 %v7471, 1e-06
      %v7504 = vadd.f32 %v7472, 1e-06
      %v7505 = vadd.f32 %v7473, 1e-06
      %v7506 = vadd.f32 %v7474, 1e-06
      %v7507 = vadd.f32 %v7475, 1e-06
      %v7508 = vadd.f32 %v7476, 1e-06
      %v7509 = vadd.f32 %v7477, 1e-06
      %v7510 = vadd.f32 %v7478, 1e-06
      %v7511 = vadd.f32 %v7479, 1e-06
      %v7512 = vadd.f32 %v7480, 1e-06
      %v7513 = vadd.f32 %v7481, 1e-06
      %v7514 = vadd.f32 %v7482, 1e-06
      %v7515 = vadd.f32 %v7483, 1e-06
      %v7516 = vadd.f32 %v7484, 1e-06
      %v7517 = vadd.f32 %v7485, 1e-06
      %v7518 = vadd.f32 %v7486, 1e-06
      %v7519 = vadd.f32 %v7487, 1e-06
      %v7520 = vadd.f32 %v7488, 1e-06
      %v7521 = vadd.f32 %v7489, 1e-06
      %v7522 = vadd.f32 %v7490, 1e-06
      %v7523 = vadd.f32 %v7491, 1e-06
      %v7524 = vadd.f32 %v7492, 1e-06
      %v7525 = vadd.f32 %v7493, 1e-06
      %v7526 = vadd.f32 %v7494, 1e-06
      %v7527 = vadd.f32 %v7495, 1e-06
      %v7528 = vadd.f32 %v7496, 1e-06
      %v7529 = vadd.f32 %v7497, 1e-06
      %v7530 = vadd.f32 %v7498, 1e-06
      %v7531 = vadd.f32 %v7499, 1e-06
      %v7532 = vadd.f32 %v7500, 1e-06
      %v7533 = vadd.f32 %v7501, 1e-06
      %v7534 = vadd.f32 %v7502, 1e-06
      %v7535 = vrsqrt.pop %v7503
      %v7536 = vrsqrt.pop %v7504
      %v7537 = vrsqrt.pop %v7505
      %v7538 = vrsqrt.pop %v7506
      %v7539 = vrsqrt.pop %v7507
      %v7540 = vrsqrt.pop %v7508
      %v7541 = vrsqrt.pop %v7509
      %v7542 = vrsqrt.pop %v7510
      %v7543 = vrsqrt.pop %v7511
      %v7544 = vrsqrt.pop %v7512
      %v7545 = vrsqrt.pop %v7513
      %v7546 = vrsqrt.pop %v7514
      %v7547 = vrsqrt.pop %v7515
      %v7548 = vrsqrt.pop %v7516
      %v7549 = vrsqrt.pop %v7517
      %v7550 = vrsqrt.pop %v7518
      %v7551 = vrsqrt.pop %v7519
      %v7552 = vrsqrt.pop %v7520
      %v7553 = vrsqrt.pop %v7521
      %v7554 = vrsqrt.pop %v7522
      %v7555 = vrsqrt.pop %v7523
      %v7556 = vrsqrt.pop %v7524
      %v7557 = vrsqrt.pop %v7525
      %v7558 = vrsqrt.pop %v7526
      %v7559 = vrsqrt.pop %v7527
      %v7560 = vrsqrt.pop %v7528
      %v7561 = vrsqrt.pop %v7529
      %v7562 = vrsqrt.pop %v7530
      %v7563 = vrsqrt.pop %v7531
      %v7564 = vrsqrt.pop %v7532
      %v7565 = vrsqrt.pop %v7533
      %v7566 = vrsqrt.pop %v7534
      %v7567 = vmul.f32 %v7343, %v7535
      %v7568 = vmul.f32 %v7344, %v7536
      %v7569 = vmul.f32 %v7345, %v7537
      %v7570 = vmul.f32 %v7346, %v7538
      %v7571 = vmul.f32 %v7347, %v7539
      %v7572 = vmul.f32 %v7348, %v7540
      %v7573 = vmul.f32 %v7349, %v7541
      %v7574 = vmul.f32 %v7350, %v7542
      %v7575 = vmul.f32 %v7351, %v7543
      %v7576 = vmul.f32 %v7352, %v7544
      %v7577 = vmul.f32 %v7353, %v7545
      %v7578 = vmul.f32 %v7354, %v7546
      %v7579 = vmul.f32 %v7355, %v7547
      %v7580 = vmul.f32 %v7356, %v7548
      %v7581 = vmul.f32 %v7357, %v7549
      %v7582 = vmul.f32 %v7358, %v7550
      %v7583 = vmul.f32 %v7359, %v7551
      %v7584 = vmul.f32 %v7360, %v7552
      %v7585 = vmul.f32 %v7361, %v7553
      %v7586 = vmul.f32 %v7362, %v7554
      %v7587 = vmul.f32 %v7363, %v7555
      %v7588 = vmul.f32 %v7364, %v7556
      %v7589 = vmul.f32 %v7365, %v7557
      %v7590 = vmul.f32 %v7366, %v7558
      %v7591 = vmul.f32 %v7367, %v7559
      %v7592 = vmul.f32 %v7368, %v7560
      %v7593 = vmul.f32 %v7369, %v7561
      %v7594 = vmul.f32 %v7370, %v7562
      %v7595 = vmul.f32 %v7371, %v7563
      %v7596 = vmul.f32 %v7372, %v7564
      %v7597 = vmul.f32 %v7373, %v7565
      %v7598 = vmul.f32 %v7374, %v7566
      %v7600 = vlaneseq
      %v7601 = vshrl.u32 %v7600, 7
      %v7602 = vsub.s32 0, %v7601
      %v7603 = vrot.slane %v4647, %v7602
      %v7605 = vmul.f32 %v7567, %v7603
      %v7606 = vmul.f32 %v7568, %v7603
      %v7607 = vmul.f32 %v7569, %v7603
      %v7608 = vmul.f32 %v7570, %v7603
      %v7609 = vmul.f32 %v7571, %v7603
      %v7610 = vmul.f32 %v7572, %v7603
      %v7611 = vmul.f32 %v7573, %v7603
      %v7612 = vmul.f32 %v7574, %v7603
      %v7613 = vmul.f32 %v7575, %v7603
      %v7614 = vmul.f32 %v7576, %v7603
      %v7615 = vmul.f32 %v7577, %v7603
      %v7616 = vmul.f32 %v7578, %v7603
      %v7617 = vmul.f32 %v7579, %v7603
      %v7618 = vmul.f32 %v7580, %v7603
      %v7619 = vmul.f32 %v7581, %v7603
      %v7620 = vmul.f32 %v7582, %v7603
      %v7621 = vmul.f32 %v7583, %v7603
      %v7622 = vmul.f32 %v7584, %v7603
      %v7623 = vmul.f32 %v7585, %v7603
      %v7624 = vmul.f32 %v7586, %v7603
      %v7625 = vmul.f32 %v7587, %v7603
      %v7626 = vmul.f32 %v7588, %v7603
      %v7627 = vmul.f32 %v7589, %v7603
      %v7628 = vmul.f32 %v7590, %v7603
      %v7629 = vmul.f32 %v7591, %v7603
      %v7630 = vmul.f32 %v7592, %v7603
      %v7631 = vmul.f32 %v7593, %v7603
      %v7632 = vmul.f32 %v7594, %v7603
      %v7633 = vmul.f32 %v7595, %v7603
      %v7634 = vmul.f32 %v7596, %v7603
      %v7635 = vmul.f32 %v7597, %v7603
      %v7636 = vmul.f32 %v7598, %v7603
      %v7637 = vmul.f32 %v7605, %v4578
      %v7638 = vmul.f32 %v7606, %v4579
      %v7639 = vmul.f32 %v7607, %v4580
      %v7640 = vmul.f32 %v7608, %v4581
      %v7641 = vmul.f32 %v7609, %v4582
      %v7642 = vmul.f32 %v7610, %v4583
      %v7643 = vmul.f32 %v7611, %v4584
      %v7644 = vmul.f32 %v7612, %v4585
      %v7645 = vmul.f32 %v7613, %v4586
      %v7646 = vmul.f32 %v7614, %v4587
      %v7647 = vmul.f32 %v7615, %v4588
      %v7648 = vmul.f32 %v7616, %v4589
      %v7649 = vmul.f32 %v7617, %v4590
      %v7650 = vmul.f32 %v7618, %v4591
      %v7651 = vmul.f32 %v7619, %v4592
      %v7652 = vmul.f32 %v7620, %v4593
      %v7653 = vmul.f32 %v7621, %v4594
      %v7654 = vmul.f32 %v7622, %v4595
      %v7655 = vmul.f32 %v7623, %v4596
      %v7656 = vmul.f32 %v7624, %v4597
      %v7657 = vmul.f32 %v7625, %v4598
      %v7658 = vmul.f32 %v7626, %v4599
      %v7659 = vmul.f32 %v7627, %v4600
      %v7660 = vmul.f32 %v7628, %v4601
      %v7661 = vmul.f32 %v7629, %v4602
      %v7662 = vmul.f32 %v7630, %v4603
      %v7663 = vmul.f32 %v7631, %v4604
      %v7664 = vmul.f32 %v7632, %v4605
      %v7665 = vmul.f32 %v7633, %v4606
      %v7666 = vmul.f32 %v7634, %v4607
      %v7667 = vmul.f32 %v7635, %v4608
      %v7668 = vmul.f32 %v7636, %v4609
      %7669 = vrot.lane.b32.xlu0 %v7605, 64
      %v7670 = vpop.permute.xlu0 %7669
      %7671 = vrot.lane.b32.xlu0 %v7606, 64
      %v7672 = vpop.permute.xlu0 %7671
      %7673 = vrot.lane.b32.xlu0 %v7607, 64
      %v7674 = vpop.permute.xlu0 %7673
      %7675 = vrot.lane.b32.xlu0 %v7608, 64
      %v7676 = vpop.permute.xlu0 %7675
      %7677 = vrot.lane.b32.xlu0 %v7609, 64
      %v7678 = vpop.permute.xlu0 %7677
      %7679 = vrot.lane.b32.xlu0 %v7610, 64
      %v7680 = vpop.permute.xlu0 %7679
      %7681 = vrot.lane.b32.xlu0 %v7611, 64
      %v7682 = vpop.permute.xlu0 %7681
      %7683 = vrot.lane.b32.xlu0 %v7612, 64
      %v7684 = vpop.permute.xlu0 %7683
      %7685 = vrot.lane.b32.xlu0 %v7613, 64
      %v7686 = vpop.permute.xlu0 %7685
      %7687 = vrot.lane.b32.xlu0 %v7614, 64
      %v7688 = vpop.permute.xlu0 %7687
      %7689 = vrot.lane.b32.xlu0 %v7615, 64
      %v7690 = vpop.permute.xlu0 %7689
      %7691 = vrot.lane.b32.xlu0 %v7616, 64
      %v7692 = vpop.permute.xlu0 %7691
      %7693 = vrot.lane.b32.xlu0 %v7617, 64
      %v7694 = vpop.permute.xlu0 %7693
      %7695 = vrot.lane.b32.xlu0 %v7618, 64
      %v7696 = vpop.permute.xlu0 %7695
      %7697 = vrot.lane.b32.xlu0 %v7619, 64
      %v7698 = vpop.permute.xlu0 %7697
      %7699 = vrot.lane.b32.xlu0 %v7620, 64
      %v7700 = vpop.permute.xlu0 %7699
      %7701 = vrot.lane.b32.xlu0 %v7621, 64
      %v7702 = vpop.permute.xlu0 %7701
      %7703 = vrot.lane.b32.xlu0 %v7622, 64
      %v7704 = vpop.permute.xlu0 %7703
      %7705 = vrot.lane.b32.xlu0 %v7623, 64
      %v7706 = vpop.permute.xlu0 %7705
      %7707 = vrot.lane.b32.xlu0 %v7624, 64
      %v7708 = vpop.permute.xlu0 %7707
      %7709 = vrot.lane.b32.xlu0 %v7625, 64
      %v7710 = vpop.permute.xlu0 %7709
      %7711 = vrot.lane.b32.xlu0 %v7626, 64
      %v7712 = vpop.permute.xlu0 %7711
      %7713 = vrot.lane.b32.xlu0 %v7627, 64
      %v7714 = vpop.permute.xlu0 %7713
      %7715 = vrot.lane.b32.xlu0 %v7628, 64
      %v7716 = vpop.permute.xlu0 %7715
      %7717 = vrot.lane.b32.xlu0 %v7629, 64
      %v7718 = vpop.permute.xlu0 %7717
      %7719 = vrot.lane.b32.xlu0 %v7630, 64
      %v7720 = vpop.permute.xlu0 %7719
      %7721 = vrot.lane.b32.xlu0 %v7631, 64
      %v7722 = vpop.permute.xlu0 %7721
      %7723 = vrot.lane.b32.xlu0 %v7632, 64
      %v7724 = vpop.permute.xlu0 %7723
      %7725 = vrot.lane.b32.xlu0 %v7633, 64
      %v7726 = vpop.permute.xlu0 %7725
      %7727 = vrot.lane.b32.xlu0 %v7634, 64
      %v7728 = vpop.permute.xlu0 %7727
      %7729 = vrot.lane.b32.xlu0 %v7635, 64
      %v7730 = vpop.permute.xlu0 %7729
      %7731 = vrot.lane.b32.xlu0 %v7636, 64
      %v7732 = vpop.permute.xlu0 %7731
      %v7733 = vmul.f32 %v7670, %v4610
      %v7734 = vmul.f32 %v7672, %v4611
      %v7735 = vmul.f32 %v7674, %v4612
      %v7736 = vmul.f32 %v7676, %v4613
      %v7737 = vmul.f32 %v7678, %v4614
      %v7738 = vmul.f32 %v7680, %v4615
      %v7739 = vmul.f32 %v7682, %v4616
      %v7740 = vmul.f32 %v7684, %v4617
      %v7741 = vmul.f32 %v7686, %v4618
      %v7742 = vmul.f32 %v7688, %v4619
      %v7743 = vmul.f32 %v7690, %v4620
      %v7744 = vmul.f32 %v7692, %v4621
      %v7745 = vmul.f32 %v7694, %v4622
      %v7746 = vmul.f32 %v7696, %v4623
      %v7747 = vmul.f32 %v7698, %v4624
      %v7748 = vmul.f32 %v7700, %v4625
      %v7749 = vmul.f32 %v7702, %v4626
      %v7750 = vmul.f32 %v7704, %v4627
      %v7751 = vmul.f32 %v7706, %v4628
      %v7752 = vmul.f32 %v7708, %v4629
      %v7753 = vmul.f32 %v7710, %v4630
      %v7754 = vmul.f32 %v7712, %v4631
      %v7755 = vmul.f32 %v7714, %v4632
      %v7756 = vmul.f32 %v7716, %v4633
      %v7757 = vmul.f32 %v7718, %v4634
      %v7758 = vmul.f32 %v7720, %v4635
      %v7759 = vmul.f32 %v7722, %v4636
      %v7760 = vmul.f32 %v7724, %v4637
      %v7761 = vmul.f32 %v7726, %v4638
      %v7762 = vmul.f32 %v7728, %v4639
      %v7763 = vmul.f32 %v7730, %v4640
      %v7764 = vmul.f32 %v7732, %v4641
      %v7765 = vmul.f32 %v7733, %v4645
      %v7766 = vmul.f32 %v7734, %v4645
      %v7767 = vmul.f32 %v7735, %v4645
      %v7768 = vmul.f32 %v7736, %v4645
      %v7769 = vmul.f32 %v7737, %v4645
      %v7770 = vmul.f32 %v7738, %v4645
      %v7771 = vmul.f32 %v7739, %v4645
      %v7772 = vmul.f32 %v7740, %v4645
      %v7773 = vmul.f32 %v7741, %v4645
      %v7774 = vmul.f32 %v7742, %v4645
      %v7775 = vmul.f32 %v7743, %v4645
      %v7776 = vmul.f32 %v7744, %v4645
      %v7777 = vmul.f32 %v7745, %v4645
      %v7778 = vmul.f32 %v7746, %v4645
      %v7779 = vmul.f32 %v7747, %v4645
      %v7780 = vmul.f32 %v7748, %v4645
      %v7781 = vmul.f32 %v7749, %v4645
      %v7782 = vmul.f32 %v7750, %v4645
      %v7783 = vmul.f32 %v7751, %v4645
      %v7784 = vmul.f32 %v7752, %v4645
      %v7785 = vmul.f32 %v7753, %v4645
      %v7786 = vmul.f32 %v7754, %v4645
      %v7787 = vmul.f32 %v7755, %v4645
      %v7788 = vmul.f32 %v7756, %v4645
      %v7789 = vmul.f32 %v7757, %v4645
      %v7790 = vmul.f32 %v7758, %v4645
      %v7791 = vmul.f32 %v7759, %v4645
      %v7792 = vmul.f32 %v7760, %v4645
      %v7793 = vmul.f32 %v7761, %v4645
      %v7794 = vmul.f32 %v7762, %v4645
      %v7795 = vmul.f32 %v7763, %v4645
      %v7796 = vmul.f32 %v7764, %v4645
      %v7797 = vadd.f32 %v7637, %v7765
      %v7798 = vadd.f32 %v7638, %v7766
      %v7799 = vadd.f32 %v7639, %v7767
      %v7800 = vadd.f32 %v7640, %v7768
      %v7801 = vadd.f32 %v7641, %v7769
      %v7802 = vadd.f32 %v7642, %v7770
      %v7803 = vadd.f32 %v7643, %v7771
      %v7804 = vadd.f32 %v7644, %v7772
      %v7805 = vadd.f32 %v7645, %v7773
      %v7806 = vadd.f32 %v7646, %v7774
      %v7807 = vadd.f32 %v7647, %v7775
      %v7808 = vadd.f32 %v7648, %v7776
      %v7809 = vadd.f32 %v7649, %v7777
      %v7810 = vadd.f32 %v7650, %v7778
      %v7811 = vadd.f32 %v7651, %v7779
      %v7812 = vadd.f32 %v7652, %v7780
      %v7813 = vadd.f32 %v7653, %v7781
      %v7814 = vadd.f32 %v7654, %v7782
      %v7815 = vadd.f32 %v7655, %v7783
      %v7816 = vadd.f32 %v7656, %v7784
      %v7817 = vadd.f32 %v7657, %v7785
      %v7818 = vadd.f32 %v7658, %v7786
      %v7819 = vadd.f32 %v7659, %v7787
      %v7820 = vadd.f32 %v7660, %v7788
      %v7821 = vadd.f32 %v7661, %v7789
      %v7822 = vadd.f32 %v7662, %v7790
      %v7823 = vadd.f32 %v7663, %v7791
      %v7824 = vadd.f32 %v7664, %v7792
      %v7825 = vadd.f32 %v7665, %v7793
      %v7826 = vadd.f32 %v7666, %v7794
      %v7827 = vadd.f32 %v7667, %v7795
      %v7828 = vadd.f32 %v7668, %v7796
      %v7829 = vpack.c.bf16 %v7798, %v7797
      %v7830 = vpack.c.bf16 %v7800, %v7799
      %v7831 = vpack.c.bf16 %v7802, %v7801
      %v7832 = vpack.c.bf16 %v7804, %v7803
      %v7833 = vpack.c.bf16 %v7806, %v7805
      %v7834 = vpack.c.bf16 %v7808, %v7807
      %v7835 = vpack.c.bf16 %v7810, %v7809
      %v7836 = vpack.c.bf16 %v7812, %v7811
      %v7837 = vpack.c.bf16 %v7814, %v7813
      %v7838 = vpack.c.bf16 %v7816, %v7815
      %v7839 = vpack.c.bf16 %v7818, %v7817
      %v7840 = vpack.c.bf16 %v7820, %v7819
      %v7841 = vpack.c.bf16 %v7822, %v7821
      %v7842 = vpack.c.bf16 %v7824, %v7823
      %v7843 = vpack.c.bf16 %v7826, %v7825
      %v7844 = vpack.c.bf16 %v7828, %v7827
      %v7861 = vunpack.c.l.b16 %v7829
      %v7862 = vunpack.c.h.b16 %v7829
      %v7863 = vunpack.c.l.b16 %v7830
      %v7864 = vunpack.c.h.b16 %v7830
      %v7865 = vunpack.c.l.b16 %v7831
      %v7866 = vunpack.c.h.b16 %v7831
      %v7867 = vunpack.c.l.b16 %v7832
      %v7868 = vunpack.c.h.b16 %v7832
      %v7869 = vunpack.c.l.b16 %v7833
      %v7870 = vunpack.c.h.b16 %v7833
      %v7871 = vunpack.c.l.b16 %v7834
      %v7872 = vunpack.c.h.b16 %v7834
      %v7873 = vunpack.c.l.b16 %v7835
      %v7874 = vunpack.c.h.b16 %v7835
      %v7875 = vunpack.c.l.b16 %v7836
      %v7876 = vunpack.c.h.b16 %v7836
      %v7877 = vunpack.c.l.b16 %v7837
      %v7878 = vunpack.c.h.b16 %v7837
      %v7879 = vunpack.c.l.b16 %v7838
      %v7880 = vunpack.c.h.b16 %v7838
      %v7881 = vunpack.c.l.b16 %v7839
      %v7882 = vunpack.c.h.b16 %v7839
      %v7883 = vunpack.c.l.b16 %v7840
      %v7884 = vunpack.c.h.b16 %v7840
      %v7885 = vunpack.c.l.b16 %v7841
      %v7886 = vunpack.c.h.b16 %v7841
      %v7887 = vunpack.c.l.b16 %v7842
      %v7888 = vunpack.c.h.b16 %v7842
      %v7889 = vunpack.c.l.b16 %v7843
      %v7890 = vunpack.c.h.b16 %v7843
      %v7891 = vunpack.c.l.b16 %v7844
      %v7892 = vunpack.c.h.b16 %v7844
      %v7893 = vpack.c.b16 %v7861, %v7861
      %v7894 = vpack.c.b16 %v7862, %v7862
      %v7895 = vpack.c.b16 %v7863, %v7863
      %v7896 = vpack.c.b16 %v7864, %v7864
      %v7897 = vpack.c.b16 %v7865, %v7865
      %v7898 = vpack.c.b16 %v7866, %v7866
      %v7899 = vpack.c.b16 %v7867, %v7867
      %v7900 = vpack.c.b16 %v7868, %v7868
      %v7901 = vpack.c.b16 %v7869, %v7869
      %v7902 = vpack.c.b16 %v7870, %v7870
      %v7903 = vpack.c.b16 %v7871, %v7871
      %v7904 = vpack.c.b16 %v7872, %v7872
      %v7905 = vpack.c.b16 %v7873, %v7873
      %v7906 = vpack.c.b16 %v7874, %v7874
      %v7907 = vpack.c.b16 %v7875, %v7875
      %v7908 = vpack.c.b16 %v7876, %v7876
      %v7909 = vpack.c.b16 %v7877, %v7877
      %v7910 = vpack.c.b16 %v7878, %v7878
      %v7911 = vpack.c.b16 %v7879, %v7879
      %v7912 = vpack.c.b16 %v7880, %v7880
      %v7913 = vpack.c.b16 %v7881, %v7881
      %v7914 = vpack.c.b16 %v7882, %v7882
      %v7915 = vpack.c.b16 %v7883, %v7883
      %v7916 = vpack.c.b16 %v7884, %v7884
      %v7917 = vpack.c.b16 %v7885, %v7885
      %v7918 = vpack.c.b16 %v7886, %v7886
      %v7919 = vpack.c.b16 %v7887, %v7887
      %v7920 = vpack.c.b16 %v7888, %v7888
      %v7921 = vpack.c.b16 %v7889, %v7889
      %v7922 = vpack.c.b16 %v7890, %v7890
      %v7923 = vpack.c.b16 %v7891, %v7891
      %v7924 = vpack.c.b16 %v7892, %v7892
      %7957 = vst [vmem:[#allocation12] sm:$0xf] %v7893
      %7958 = vst [vmem:[#allocation12 + $0x8] sm:$0xf] %v7894
      %7959 = vst [vmem:[#allocation12 + $0x10] sm:$0xf] %v7895
      %7960 = vst [vmem:[#allocation12 + $0x18] sm:$0xf] %v7896
      %7961 = vst [vmem:[#allocation12 + $0x20] sm:$0xf] %v7897
      %7962 = vst [vmem:[#allocation12 + $0x28] sm:$0xf] %v7898
      %7963 = vst [vmem:[#allocation12 + $0x30] sm:$0xf] %v7899
      %7964 = vst [vmem:[#allocation12 + $0x38] sm:$0xf] %v7900
      %7965 = vst [vmem:[#allocation12 + $0x40] sm:$0xf] %v7901
      %7966 = vst [vmem:[#allocation12 + $0x48] sm:$0xf] %v7902
      %7967 = vst [vmem:[#allocation12 + $0x50] sm:$0xf] %v7903
      %7968 = vst [vmem:[#allocation12 + $0x58] sm:$0xf] %v7904
      %7969 = vst [vmem:[#allocation12 + $0x60] sm:$0xf] %v7905
      %7970 = vst [vmem:[#allocation12 + $0x68] sm:$0xf] %v7906
      %7971 = vst [vmem:[#allocation12 + $0x70] sm:$0xf] %v7907
      %7972 = vst [vmem:[#allocation12 + $0x78] sm:$0xf] %v7908
      %7973 = vst [vmem:[#allocation12 + $0x80] sm:$0xf] %v7909
      %7974 = vst [vmem:[#allocation12 + $0x88] sm:$0xf] %v7910
      %7975 = vst [vmem:[#allocation12 + $0x90] sm:$0xf] %v7911
      %7976 = vst [vmem:[#allocation12 + $0x98] sm:$0xf] %v7912
      %7977 = vst [vmem:[#allocation12 + $0xa0] sm:$0xf] %v7913
      %7978 = vst [vmem:[#allocation12 + $0xa8] sm:$0xf] %v7914
      %7979 = vst [vmem:[#allocation12 + $0xb0] sm:$0xf] %v7915
      %7980 = vst [vmem:[#allocation12 + $0xb8] sm:$0xf] %v7916
      %7981 = vst [vmem:[#allocation12 + $0xc0] sm:$0xf] %v7917
      %7982 = vst [vmem:[#allocation12 + $0xc8] sm:$0xf] %v7918
      %7983 = vst [vmem:[#allocation12 + $0xd0] sm:$0xf] %v7919
      %7984 = vst [vmem:[#allocation12 + $0xd8] sm:$0xf] %v7920
      %7985 = vst [vmem:[#allocation12 + $0xe0] sm:$0xf] %v7921
      %7986 = vst [vmem:[#allocation12 + $0xe8] sm:$0xf] %v7922
      %7987 = vst [vmem:[#allocation12 + $0xf0] sm:$0xf] %v7923
      %7988 = vst [vmem:[#allocation12 + $0xf8] sm:$0xf] %v7924
      %v7989 = vld [vmem:[#allocation2 + $0x28] sm:$0xff]
      %v7990 = vld [vmem:[#allocation2 + $0x68] sm:$0xff]
      %v7991 = vld [vmem:[#allocation2 + $0xa8] sm:$0xff]
      %v7992 = vld [vmem:[#allocation2 + $0xe8] sm:$0xff]
      %v7993 = vld [vmem:[#allocation2 + $0x128] sm:$0xff]
      %v7994 = vld [vmem:[#allocation2 + $0x168] sm:$0xff]
      %v7995 = vld [vmem:[#allocation2 + $0x1a8] sm:$0xff]
      %v7996 = vld [vmem:[#allocation2 + $0x1e8] sm:$0xff]
      %v7997 = vld [vmem:[#allocation2 + $0x228] sm:$0xff]
      %v7998 = vld [vmem:[#allocation2 + $0x268] sm:$0xff]
      %v7999 = vld [vmem:[#allocation2 + $0x2a8] sm:$0xff]
      %v8000 = vld [vmem:[#allocation2 + $0x2e8] sm:$0xff]
      %v8001 = vld [vmem:[#allocation2 + $0x328] sm:$0xff]
      %v8002 = vld [vmem:[#allocation2 + $0x368] sm:$0xff]
      %v8003 = vld [vmem:[#allocation2 + $0x3a8] sm:$0xff]
      %v8004 = vld [vmem:[#allocation2 + $0x3e8] sm:$0xff]
      %v8005 = vld [vmem:[#allocation2 + $0x428] sm:$0xff]
      %v8006 = vld [vmem:[#allocation2 + $0x468] sm:$0xff]
      %v8007 = vld [vmem:[#allocation2 + $0x4a8] sm:$0xff]
      %v8008 = vld [vmem:[#allocation2 + $0x4e8] sm:$0xff]
      %v8009 = vld [vmem:[#allocation2 + $0x528] sm:$0xff]
      %v8010 = vld [vmem:[#allocation2 + $0x568] sm:$0xff]
      %v8011 = vld [vmem:[#allocation2 + $0x5a8] sm:$0xff]
      %v8012 = vld [vmem:[#allocation2 + $0x5e8] sm:$0xff]
      %v8013 = vld [vmem:[#allocation2 + $0x628] sm:$0xff]
      %v8014 = vld [vmem:[#allocation2 + $0x668] sm:$0xff]
      %v8015 = vld [vmem:[#allocation2 + $0x6a8] sm:$0xff]
      %v8016 = vld [vmem:[#allocation2 + $0x6e8] sm:$0xff]
      %v8017 = vld [vmem:[#allocation2 + $0x728] sm:$0xff]
      %v8018 = vld [vmem:[#allocation2 + $0x768] sm:$0xff]
      %v8019 = vld [vmem:[#allocation2 + $0x7a8] sm:$0xff]
      %v8020 = vld [vmem:[#allocation2 + $0x7e8] sm:$0xff]
      %v8021 = vmul.f32 %v7989, %v7989
      %v8022 = vmul.f32 %v7990, %v7990
      %v8023 = vmul.f32 %v7991, %v7991
      %v8024 = vmul.f32 %v7992, %v7992
      %v8025 = vmul.f32 %v7993, %v7993
      %v8026 = vmul.f32 %v7994, %v7994
      %v8027 = vmul.f32 %v7995, %v7995
      %v8028 = vmul.f32 %v7996, %v7996
      %v8029 = vmul.f32 %v7997, %v7997
      %v8030 = vmul.f32 %v7998, %v7998
      %v8031 = vmul.f32 %v7999, %v7999
      %v8032 = vmul.f32 %v8000, %v8000
      %v8033 = vmul.f32 %v8001, %v8001
      %v8034 = vmul.f32 %v8002, %v8002
      %v8035 = vmul.f32 %v8003, %v8003
      %v8036 = vmul.f32 %v8004, %v8004
      %v8037 = vmul.f32 %v8005, %v8005
      %v8038 = vmul.f32 %v8006, %v8006
      %v8039 = vmul.f32 %v8007, %v8007
      %v8040 = vmul.f32 %v8008, %v8008
      %v8041 = vmul.f32 %v8009, %v8009
      %v8042 = vmul.f32 %v8010, %v8010
      %v8043 = vmul.f32 %v8011, %v8011
      %v8044 = vmul.f32 %v8012, %v8012
      %v8045 = vmul.f32 %v8013, %v8013
      %v8046 = vmul.f32 %v8014, %v8014
      %v8047 = vmul.f32 %v8015, %v8015
      %v8048 = vmul.f32 %v8016, %v8016
      %v8049 = vmul.f32 %v8017, %v8017
      %v8050 = vmul.f32 %v8018, %v8018
      %v8051 = vmul.f32 %v8019, %v8019
      %v8052 = vmul.f32 %v8020, %v8020
      %8053 = vadd.xlane.f32.xlu0 %v8021
      %v8054 = vpop.xlane.xlu0 %8053
      %8055 = vadd.xlane.f32.xlu0 %v8022
      %v8056 = vpop.xlane.xlu0 %8055
      %8057 = vadd.xlane.f32.xlu0 %v8023
      %v8058 = vpop.xlane.xlu0 %8057
      %8059 = vadd.xlane.f32.xlu0 %v8024
      %v8060 = vpop.xlane.xlu0 %8059
      %8061 = vadd.xlane.f32.xlu0 %v8025
      %v8062 = vpop.xlane.xlu0 %8061
      %8063 = vadd.xlane.f32.xlu0 %v8026
      %v8064 = vpop.xlane.xlu0 %8063
      %8065 = vadd.xlane.f32.xlu0 %v8027
      %v8066 = vpop.xlane.xlu0 %8065
      %8067 = vadd.xlane.f32.xlu0 %v8028
      %v8068 = vpop.xlane.xlu0 %8067
      %8069 = vadd.xlane.f32.xlu0 %v8029
      %v8070 = vpop.xlane.xlu0 %8069
      %8071 = vadd.xlane.f32.xlu0 %v8030
      %v8072 = vpop.xlane.xlu0 %8071
      %8073 = vadd.xlane.f32.xlu0 %v8031
      %v8074 = vpop.xlane.xlu0 %8073
      %8075 = vadd.xlane.f32.xlu0 %v8032
      %v8076 = vpop.xlane.xlu0 %8075
      %8077 = vadd.xlane.f32.xlu0 %v8033
      %v8078 = vpop.xlane.xlu0 %8077
      %8079 = vadd.xlane.f32.xlu0 %v8034
      %v8080 = vpop.xlane.xlu0 %8079
      %8081 = vadd.xlane.f32.xlu0 %v8035
      %v8082 = vpop.xlane.xlu0 %8081
      %8083 = vadd.xlane.f32.xlu0 %v8036
      %v8084 = vpop.xlane.xlu0 %8083
      %8085 = vadd.xlane.f32.xlu0 %v8037
      %v8086 = vpop.xlane.xlu0 %8085
      %8087 = vadd.xlane.f32.xlu0 %v8038
      %v8088 = vpop.xlane.xlu0 %8087
      %8089 = vadd.xlane.f32.xlu0 %v8039
      %v8090 = vpop.xlane.xlu0 %8089
      %8091 = vadd.xlane.f32.xlu0 %v8040
      %v8092 = vpop.xlane.xlu0 %8091
      %8093 = vadd.xlane.f32.xlu0 %v8041
      %v8094 = vpop.xlane.xlu0 %8093
      %8095 = vadd.xlane.f32.xlu0 %v8042
      %v8096 = vpop.xlane.xlu0 %8095
      %8097 = vadd.xlane.f32.xlu0 %v8043
      %v8098 = vpop.xlane.xlu0 %8097
      %8099 = vadd.xlane.f32.xlu0 %v8044
      %v8100 = vpop.xlane.xlu0 %8099
      %8101 = vadd.xlane.f32.xlu0 %v8045
      %v8102 = vpop.xlane.xlu0 %8101
      %8103 = vadd.xlane.f32.xlu0 %v8046
      %v8104 = vpop.xlane.xlu0 %8103
      %8105 = vadd.xlane.f32.xlu0 %v8047
      %v8106 = vpop.xlane.xlu0 %8105
      %8107 = vadd.xlane.f32.xlu0 %v8048
      %v8108 = vpop.xlane.xlu0 %8107
      %8109 = vadd.xlane.f32.xlu0 %v8049
      %v8110 = vpop.xlane.xlu0 %8109
      %8111 = vadd.xlane.f32.xlu0 %v8050
      %v8112 = vpop.xlane.xlu0 %8111
      %8113 = vadd.xlane.f32.xlu0 %v8051
      %v8114 = vpop.xlane.xlu0 %8113
      %8115 = vadd.xlane.f32.xlu0 %v8052
      %v8116 = vpop.xlane.xlu0 %8115
      %v8117 = vmul.f32 %v8054, %v4776
      %v8118 = vmul.f32 %v8056, %v4776
      %v8119 = vmul.f32 %v8058, %v4776
      %v8120 = vmul.f32 %v8060, %v4776
      %v8121 = vmul.f32 %v8062, %v4776
      %v8122 = vmul.f32 %v8064, %v4776
      %v8123 = vmul.f32 %v8066, %v4776
      %v8124 = vmul.f32 %v8068, %v4776
      %v8125 = vmul.f32 %v8070, %v4776
      %v8126 = vmul.f32 %v8072, %v4776
      %v8127 = vmul.f32 %v8074, %v4776
      %v8128 = vmul.f32 %v8076, %v4776
      %v8129 = vmul.f32 %v8078, %v4776
      %v8130 = vmul.f32 %v8080, %v4776
      %v8131 = vmul.f32 %v8082, %v4776
      %v8132 = vmul.f32 %v8084, %v4776
      %v8133 = vmul.f32 %v8086, %v4776
      %v8134 = vmul.f32 %v8088, %v4776
      %v8135 = vmul.f32 %v8090, %v4776
      %v8136 = vmul.f32 %v8092, %v4776
      %v8137 = vmul.f32 %v8094, %v4776
      %v8138 = vmul.f32 %v8096, %v4776
      %v8139 = vmul.f32 %v8098, %v4776
      %v8140 = vmul.f32 %v8100, %v4776
      %v8141 = vmul.f32 %v8102, %v4776
      %v8142 = vmul.f32 %v8104, %v4776
      %v8143 = vmul.f32 %v8106, %v4776
      %v8144 = vmul.f32 %v8108, %v4776
      %v8145 = vmul.f32 %v8110, %v4776
      %v8146 = vmul.f32 %v8112, %v4776
      %v8147 = vmul.f32 %v8114, %v4776
      %v8148 = vmul.f32 %v8116, %v4776
      %v8149 = vadd.f32 %v8117, 1e-06
      %v8150 = vadd.f32 %v8118, 1e-06
      %v8151 = vadd.f32 %v8119, 1e-06
      %v8152 = vadd.f32 %v8120, 1e-06
      %v8153 = vadd.f32 %v8121, 1e-06
      %v8154 = vadd.f32 %v8122, 1e-06
      %v8155 = vadd.f32 %v8123, 1e-06
      %v8156 = vadd.f32 %v8124, 1e-06
      %v8157 = vadd.f32 %v8125, 1e-06
      %v8158 = vadd.f32 %v8126, 1e-06
      %v8159 = vadd.f32 %v8127, 1e-06
      %v8160 = vadd.f32 %v8128, 1e-06
      %v8161 = vadd.f32 %v8129, 1e-06
      %v8162 = vadd.f32 %v8130, 1e-06
      %v8163 = vadd.f32 %v8131, 1e-06
      %v8164 = vadd.f32 %v8132, 1e-06
      %v8165 = vadd.f32 %v8133, 1e-06
      %v8166 = vadd.f32 %v8134, 1e-06
      %v8167 = vadd.f32 %v8135, 1e-06
      %v8168 = vadd.f32 %v8136, 1e-06
      %v8169 = vadd.f32 %v8137, 1e-06
      %v8170 = vadd.f32 %v8138, 1e-06
      %v8171 = vadd.f32 %v8139, 1e-06
      %v8172 = vadd.f32 %v8140, 1e-06
      %v8173 = vadd.f32 %v8141, 1e-06
      %v8174 = vadd.f32 %v8142, 1e-06
      %v8175 = vadd.f32 %v8143, 1e-06
      %v8176 = vadd.f32 %v8144, 1e-06
      %v8177 = vadd.f32 %v8145, 1e-06
      %v8178 = vadd.f32 %v8146, 1e-06
      %v8179 = vadd.f32 %v8147, 1e-06
      %v8180 = vadd.f32 %v8148, 1e-06
      %v8181 = vrsqrt.pop %v8149
      %v8182 = vrsqrt.pop %v8150
      %v8183 = vrsqrt.pop %v8151
      %v8184 = vrsqrt.pop %v8152
      %v8185 = vrsqrt.pop %v8153
      %v8186 = vrsqrt.pop %v8154
      %v8187 = vrsqrt.pop %v8155
      %v8188 = vrsqrt.pop %v8156
      %v8189 = vrsqrt.pop %v8157
      %v8190 = vrsqrt.pop %v8158
      %v8191 = vrsqrt.pop %v8159
      %v8192 = vrsqrt.pop %v8160
      %v8193 = vrsqrt.pop %v8161
      %v8194 = vrsqrt.pop %v8162
      %v8195 = vrsqrt.pop %v8163
      %v8196 = vrsqrt.pop %v8164
      %v8197 = vrsqrt.pop %v8165
      %v8198 = vrsqrt.pop %v8166
      %v8199 = vrsqrt.pop %v8167
      %v8200 = vrsqrt.pop %v8168
      %v8201 = vrsqrt.pop %v8169
      %v8202 = vrsqrt.pop %v8170
      %v8203 = vrsqrt.pop %v8171
      %v8204 = vrsqrt.pop %v8172
      %v8205 = vrsqrt.pop %v8173
      %v8206 = vrsqrt.pop %v8174
      %v8207 = vrsqrt.pop %v8175
      %v8208 = vrsqrt.pop %v8176
      %v8209 = vrsqrt.pop %v8177
      %v8210 = vrsqrt.pop %v8178
      %v8211 = vrsqrt.pop %v8179
      %v8212 = vrsqrt.pop %v8180
      %v8213 = vmul.f32 %v7989, %v8181
      %v8214 = vmul.f32 %v7990, %v8182
      %v8215 = vmul.f32 %v7991, %v8183
      %v8216 = vmul.f32 %v7992, %v8184
      %v8217 = vmul.f32 %v7993, %v8185
      %v8218 = vmul.f32 %v7994, %v8186
      %v8219 = vmul.f32 %v7995, %v8187
      %v8220 = vmul.f32 %v7996, %v8188
      %v8221 = vmul.f32 %v7997, %v8189
      %v8222 = vmul.f32 %v7998, %v8190
      %v8223 = vmul.f32 %v7999, %v8191
      %v8224 = vmul.f32 %v8000, %v8192
      %v8225 = vmul.f32 %v8001, %v8193
      %v8226 = vmul.f32 %v8002, %v8194
      %v8227 = vmul.f32 %v8003, %v8195
      %v8228 = vmul.f32 %v8004, %v8196
      %v8229 = vmul.f32 %v8005, %v8197
      %v8230 = vmul.f32 %v8006, %v8198
      %v8231 = vmul.f32 %v8007, %v8199
      %v8232 = vmul.f32 %v8008, %v8200
      %v8233 = vmul.f32 %v8009, %v8201
      %v8234 = vmul.f32 %v8010, %v8202
      %v8235 = vmul.f32 %v8011, %v8203
      %v8236 = vmul.f32 %v8012, %v8204
      %v8237 = vmul.f32 %v8013, %v8205
      %v8238 = vmul.f32 %v8014, %v8206
      %v8239 = vmul.f32 %v8015, %v8207
      %v8240 = vmul.f32 %v8016, %v8208
      %v8241 = vmul.f32 %v8017, %v8209
      %v8242 = vmul.f32 %v8018, %v8210
      %v8243 = vmul.f32 %v8019, %v8211
      %v8244 = vmul.f32 %v8020, %v8212
      %v8245 = vmul.f32 %v8213, %v7603
      %v8246 = vmul.f32 %v8214, %v7603
      %v8247 = vmul.f32 %v8215, %v7603
      %v8248 = vmul.f32 %v8216, %v7603
      %v8249 = vmul.f32 %v8217, %v7603
      %v8250 = vmul.f32 %v8218, %v7603
      %v8251 = vmul.f32 %v8219, %v7603
      %v8252 = vmul.f32 %v8220, %v7603
      %v8253 = vmul.f32 %v8221, %v7603
      %v8254 = vmul.f32 %v8222, %v7603
      %v8255 = vmul.f32 %v8223, %v7603
      %v8256 = vmul.f32 %v8224, %v7603
      %v8257 = vmul.f32 %v8225, %v7603
      %v8258 = vmul.f32 %v8226, %v7603
      %v8259 = vmul.f32 %v8227, %v7603
      %v8260 = vmul.f32 %v8228, %v7603
      %v8261 = vmul.f32 %v8229, %v7603
      %v8262 = vmul.f32 %v8230, %v7603
      %v8263 = vmul.f32 %v8231, %v7603
      %v8264 = vmul.f32 %v8232, %v7603
      %v8265 = vmul.f32 %v8233, %v7603
      %v8266 = vmul.f32 %v8234, %v7603
      %v8267 = vmul.f32 %v8235, %v7603
      %v8268 = vmul.f32 %v8236, %v7603
      %v8269 = vmul.f32 %v8237, %v7603
      %v8270 = vmul.f32 %v8238, %v7603
      %v8271 = vmul.f32 %v8239, %v7603
      %v8272 = vmul.f32 %v8240, %v7603
      %v8273 = vmul.f32 %v8241, %v7603
      %v8274 = vmul.f32 %v8242, %v7603
      %v8275 = vmul.f32 %v8243, %v7603
      %v8276 = vmul.f32 %v8244, %v7603
      %v8277 = vmul.f32 %v8245, %v4578
      %v8278 = vmul.f32 %v8246, %v4579
      %v8279 = vmul.f32 %v8247, %v4580
      %v8280 = vmul.f32 %v8248, %v4581
      %v8281 = vmul.f32 %v8249, %v4582
      %v8282 = vmul.f32 %v8250, %v4583
      %v8283 = vmul.f32 %v8251, %v4584
      %v8284 = vmul.f32 %v8252, %v4585
      %v8285 = vmul.f32 %v8253, %v4586
      %v8286 = vmul.f32 %v8254, %v4587
      %v8287 = vmul.f32 %v8255, %v4588
      %v8288 = vmul.f32 %v8256, %v4589
      %v8289 = vmul.f32 %v8257, %v4590
      %v8290 = vmul.f32 %v8258, %v4591
      %v8291 = vmul.f32 %v8259, %v4592
      %v8292 = vmul.f32 %v8260, %v4593
      %v8293 = vmul.f32 %v8261, %v4594
      %v8294 = vmul.f32 %v8262, %v4595
      %v8295 = vmul.f32 %v8263, %v4596
      %v8296 = vmul.f32 %v8264, %v4597
      %v8297 = vmul.f32 %v8265, %v4598
      %v8298 = vmul.f32 %v8266, %v4599
      %v8299 = vmul.f32 %v8267, %v4600
      %v8300 = vmul.f32 %v8268, %v4601
      %v8301 = vmul.f32 %v8269, %v4602
      %v8302 = vmul.f32 %v8270, %v4603
      %v8303 = vmul.f32 %v8271, %v4604
      %v8304 = vmul.f32 %v8272, %v4605
      %v8305 = vmul.f32 %v8273, %v4606
      %v8306 = vmul.f32 %v8274, %v4607
      %v8307 = vmul.f32 %v8275, %v4608
      %v8308 = vmul.f32 %v8276, %v4609
      %8309 = vrot.lane.b32.xlu0 %v8245, 64
      %v8310 = vpop.permute.xlu0 %8309
      %8311 = vrot.lane.b32.xlu0 %v8246, 64
      %v8312 = vpop.permute.xlu0 %8311
      %8313 = vrot.lane.b32.xlu0 %v8247, 64
      %v8314 = vpop.permute.xlu0 %8313
      %8315 = vrot.lane.b32.xlu0 %v8248, 64
      %v8316 = vpop.permute.xlu0 %8315
      %8317 = vrot.lane.b32.xlu0 %v8249, 64
      %v8318 = vpop.permute.xlu0 %8317
      %8319 = vrot.lane.b32.xlu0 %v8250, 64
      %v8320 = vpop.permute.xlu0 %8319
      %8321 = vrot.lane.b32.xlu0 %v8251, 64
      %v8322 = vpop.permute.xlu0 %8321
      %8323 = vrot.lane.b32.xlu0 %v8252, 64
      %v8324 = vpop.permute.xlu0 %8323
      %8325 = vrot.lane.b32.xlu0 %v8253, 64
      %v8326 = vpop.permute.xlu0 %8325
      %8327 = vrot.lane.b32.xlu0 %v8254, 64
      %v8328 = vpop.permute.xlu0 %8327
      %8329 = vrot.lane.b32.xlu0 %v8255, 64
      %v8330 = vpop.permute.xlu0 %8329
      %8331 = vrot.lane.b32.xlu0 %v8256, 64
      %v8332 = vpop.permute.xlu0 %8331
      %8333 = vrot.lane.b32.xlu0 %v8257, 64
      %v8334 = vpop.permute.xlu0 %8333
      %8335 = vrot.lane.b32.xlu0 %v8258, 64
      %v8336 = vpop.permute.xlu0 %8335
      %8337 = vrot.lane.b32.xlu0 %v8259, 64
      %v8338 = vpop.permute.xlu0 %8337
      %8339 = vrot.lane.b32.xlu0 %v8260, 64
      %v8340 = vpop.permute.xlu0 %8339
      %8341 = vrot.lane.b32.xlu0 %v8261, 64
      %v8342 = vpop.permute.xlu0 %8341
      %8343 = vrot.lane.b32.xlu0 %v8262, 64
      %v8344 = vpop.permute.xlu0 %8343
      %8345 = vrot.lane.b32.xlu0 %v8263, 64
      %v8346 = vpop.permute.xlu0 %8345
      %8347 = vrot.lane.b32.xlu0 %v8264, 64
      %v8348 = vpop.permute.xlu0 %8347
      %8349 = vrot.lane.b32.xlu0 %v8265, 64
      %v8350 = vpop.permute.xlu0 %8349
      %8351 = vrot.lane.b32.xlu0 %v8266, 64
      %v8352 = vpop.permute.xlu0 %8351
      %8353 = vrot.lane.b32.xlu0 %v8267, 64
      %v8354 = vpop.permute.xlu0 %8353
      %8355 = vrot.lane.b32.xlu0 %v8268, 64
      %v8356 = vpop.permute.xlu0 %8355
      %8357 = vrot.lane.b32.xlu0 %v8269, 64
      %v8358 = vpop.permute.xlu0 %8357
      %8359 = vrot.lane.b32.xlu0 %v8270, 64
      %v8360 = vpop.permute.xlu0 %8359
      %8361 = vrot.lane.b32.xlu0 %v8271, 64
      %v8362 = vpop.permute.xlu0 %8361
      %8363 = vrot.lane.b32.xlu0 %v8272, 64
      %v8364 = vpop.permute.xlu0 %8363
      %8365 = vrot.lane.b32.xlu0 %v8273, 64
      %v8366 = vpop.permute.xlu0 %8365
      %8367 = vrot.lane.b32.xlu0 %v8274, 64
      %v8368 = vpop.permute.xlu0 %8367
      %8369 = vrot.lane.b32.xlu0 %v8275, 64
      %v8370 = vpop.permute.xlu0 %8369
      %8371 = vrot.lane.b32.xlu0 %v8276, 64
      %v8372 = vpop.permute.xlu0 %8371
      %v8373 = vmul.f32 %v8310, %v4610
      %v8374 = vmul.f32 %v8312, %v4611
      %v8375 = vmul.f32 %v8314, %v4612
      %v8376 = vmul.f32 %v8316, %v4613
      %v8377 = vmul.f32 %v8318, %v4614
      %v8378 = vmul.f32 %v8320, %v4615
      %v8379 = vmul.f32 %v8322, %v4616
      %v8380 = vmul.f32 %v8324, %v4617
      %v8381 = vmul.f32 %v8326, %v4618
      %v8382 = vmul.f32 %v8328, %v4619
      %v8383 = vmul.f32 %v8330, %v4620
      %v8384 = vmul.f32 %v8332, %v4621
      %v8385 = vmul.f32 %v8334, %v4622
      %v8386 = vmul.f32 %v8336, %v4623
      %v8387 = vmul.f32 %v8338, %v4624
      %v8388 = vmul.f32 %v8340, %v4625
      %v8389 = vmul.f32 %v8342, %v4626
      %v8390 = vmul.f32 %v8344, %v4627
      %v8391 = vmul.f32 %v8346, %v4628
      %v8392 = vmul.f32 %v8348, %v4629
      %v8393 = vmul.f32 %v8350, %v4630
      %v8394 = vmul.f32 %v8352, %v4631
      %v8395 = vmul.f32 %v8354, %v4632
      %v8396 = vmul.f32 %v8356, %v4633
      %v8397 = vmul.f32 %v8358, %v4634
      %v8398 = vmul.f32 %v8360, %v4635
      %v8399 = vmul.f32 %v8362, %v4636
      %v8400 = vmul.f32 %v8364, %v4637
      %v8401 = vmul.f32 %v8366, %v4638
      %v8402 = vmul.f32 %v8368, %v4639
      %v8403 = vmul.f32 %v8370, %v4640
      %v8404 = vmul.f32 %v8372, %v4641
      %v8405 = vmul.f32 %v8373, %v4645
      %v8406 = vmul.f32 %v8374, %v4645
      %v8407 = vmul.f32 %v8375, %v4645
      %v8408 = vmul.f32 %v8376, %v4645
      %v8409 = vmul.f32 %v8377, %v4645
      %v8410 = vmul.f32 %v8378, %v4645
      %v8411 = vmul.f32 %v8379, %v4645
      %v8412 = vmul.f32 %v8380, %v4645
      %v8413 = vmul.f32 %v8381, %v4645
      %v8414 = vmul.f32 %v8382, %v4645
      %v8415 = vmul.f32 %v8383, %v4645
      %v8416 = vmul.f32 %v8384, %v4645
      %v8417 = vmul.f32 %v8385, %v4645
      %v8418 = vmul.f32 %v8386, %v4645
      %v8419 = vmul.f32 %v8387, %v4645
      %v8420 = vmul.f32 %v8388, %v4645
      %v8421 = vmul.f32 %v8389, %v4645
      %v8422 = vmul.f32 %v8390, %v4645
      %v8423 = vmul.f32 %v8391, %v4645
      %v8424 = vmul.f32 %v8392, %v4645
      %v8425 = vmul.f32 %v8393, %v4645
      %v8426 = vmul.f32 %v8394, %v4645
      %v8427 = vmul.f32 %v8395, %v4645
      %v8428 = vmul.f32 %v8396, %v4645
      %v8429 = vmul.f32 %v8397, %v4645
      %v8430 = vmul.f32 %v8398, %v4645
      %v8431 = vmul.f32 %v8399, %v4645
      %v8432 = vmul.f32 %v8400, %v4645
      %v8433 = vmul.f32 %v8401, %v4645
      %v8434 = vmul.f32 %v8402, %v4645
      %v8435 = vmul.f32 %v8403, %v4645
      %v8436 = vmul.f32 %v8404, %v4645
      %v8437 = vadd.f32 %v8277, %v8405
      %v8438 = vadd.f32 %v8278, %v8406
      %v8439 = vadd.f32 %v8279, %v8407
      %v8440 = vadd.f32 %v8280, %v8408
      %v8441 = vadd.f32 %v8281, %v8409
      %v8442 = vadd.f32 %v8282, %v8410
      %v8443 = vadd.f32 %v8283, %v8411
      %v8444 = vadd.f32 %v8284, %v8412
      %v8445 = vadd.f32 %v8285, %v8413
      %v8446 = vadd.f32 %v8286, %v8414
      %v8447 = vadd.f32 %v8287, %v8415
      %v8448 = vadd.f32 %v8288, %v8416
      %v8449 = vadd.f32 %v8289, %v8417
      %v8450 = vadd.f32 %v8290, %v8418
      %v8451 = vadd.f32 %v8291, %v8419
      %v8452 = vadd.f32 %v8292, %v8420
      %v8453 = vadd.f32 %v8293, %v8421
      %v8454 = vadd.f32 %v8294, %v8422
      %v8455 = vadd.f32 %v8295, %v8423
      %v8456 = vadd.f32 %v8296, %v8424
      %v8457 = vadd.f32 %v8297, %v8425
      %v8458 = vadd.f32 %v8298, %v8426
      %v8459 = vadd.f32 %v8299, %v8427
      %v8460 = vadd.f32 %v8300, %v8428
      %v8461 = vadd.f32 %v8301, %v8429
      %v8462 = vadd.f32 %v8302, %v8430
      %v8463 = vadd.f32 %v8303, %v8431
      %v8464 = vadd.f32 %v8304, %v8432
      %v8465 = vadd.f32 %v8305, %v8433
      %v8466 = vadd.f32 %v8306, %v8434
      %v8467 = vadd.f32 %v8307, %v8435
      %v8468 = vadd.f32 %v8308, %v8436
      %v8469 = vpack.c.bf16 %v8438, %v8437
      %v8470 = vpack.c.bf16 %v8440, %v8439
      %v8471 = vpack.c.bf16 %v8442, %v8441
      %v8472 = vpack.c.bf16 %v8444, %v8443
      %v8473 = vpack.c.bf16 %v8446, %v8445
      %v8474 = vpack.c.bf16 %v8448, %v8447
      %v8475 = vpack.c.bf16 %v8450, %v8449
      %v8476 = vpack.c.bf16 %v8452, %v8451
      %v8477 = vpack.c.bf16 %v8454, %v8453
      %v8478 = vpack.c.bf16 %v8456, %v8455
      %v8479 = vpack.c.bf16 %v8458, %v8457
      %v8480 = vpack.c.bf16 %v8460, %v8459
      %v8481 = vpack.c.bf16 %v8462, %v8461
      %v8482 = vpack.c.bf16 %v8464, %v8463
      %v8483 = vpack.c.bf16 %v8466, %v8465
      %v8484 = vpack.c.bf16 %v8468, %v8467
      %v8501 = vunpack.c.l.b16 %v8469
      %v8502 = vunpack.c.h.b16 %v8469
      %v8503 = vunpack.c.l.b16 %v8470
      %v8504 = vunpack.c.h.b16 %v8470
      %v8505 = vunpack.c.l.b16 %v8471
      %v8506 = vunpack.c.h.b16 %v8471
      %v8507 = vunpack.c.l.b16 %v8472
      %v8508 = vunpack.c.h.b16 %v8472
      %v8509 = vunpack.c.l.b16 %v8473
      %v8510 = vunpack.c.h.b16 %v8473
      %v8511 = vunpack.c.l.b16 %v8474
      %v8512 = vunpack.c.h.b16 %v8474
      %v8513 = vunpack.c.l.b16 %v8475
      %v8514 = vunpack.c.h.b16 %v8475
      %v8515 = vunpack.c.l.b16 %v8476
      %v8516 = vunpack.c.h.b16 %v8476
      %v8517 = vunpack.c.l.b16 %v8477
      %v8518 = vunpack.c.h.b16 %v8477
      %v8519 = vunpack.c.l.b16 %v8478
      %v8520 = vunpack.c.h.b16 %v8478
      %v8521 = vunpack.c.l.b16 %v8479
      %v8522 = vunpack.c.h.b16 %v8479
      %v8523 = vunpack.c.l.b16 %v8480
      %v8524 = vunpack.c.h.b16 %v8480
      %v8525 = vunpack.c.l.b16 %v8481
      %v8526 = vunpack.c.h.b16 %v8481
      %v8527 = vunpack.c.l.b16 %v8482
      %v8528 = vunpack.c.h.b16 %v8482
      %v8529 = vunpack.c.l.b16 %v8483
      %v8530 = vunpack.c.h.b16 %v8483
      %v8531 = vunpack.c.l.b16 %v8484
      %v8532 = vunpack.c.h.b16 %v8484
      %v8533 = vpack.c.b16 %v8501, %v8501
      %v8534 = vpack.c.b16 %v8502, %v8502
      %v8535 = vpack.c.b16 %v8503, %v8503
      %v8536 = vpack.c.b16 %v8504, %v8504
      %v8537 = vpack.c.b16 %v8505, %v8505
      %v8538 = vpack.c.b16 %v8506, %v8506
      %v8539 = vpack.c.b16 %v8507, %v8507
      %v8540 = vpack.c.b16 %v8508, %v8508
      %v8541 = vpack.c.b16 %v8509, %v8509
      %v8542 = vpack.c.b16 %v8510, %v8510
      %v8543 = vpack.c.b16 %v8511, %v8511
      %v8544 = vpack.c.b16 %v8512, %v8512
      %v8545 = vpack.c.b16 %v8513, %v8513
      %v8546 = vpack.c.b16 %v8514, %v8514
      %v8547 = vpack.c.b16 %v8515, %v8515
      %v8548 = vpack.c.b16 %v8516, %v8516
      %v8549 = vpack.c.b16 %v8517, %v8517
      %v8550 = vpack.c.b16 %v8518, %v8518
      %v8551 = vpack.c.b16 %v8519, %v8519
      %v8552 = vpack.c.b16 %v8520, %v8520
      %v8553 = vpack.c.b16 %v8521, %v8521
      %v8554 = vpack.c.b16 %v8522, %v8522
      %v8555 = vpack.c.b16 %v8523, %v8523
      %v8556 = vpack.c.b16 %v8524, %v8524
      %v8557 = vpack.c.b16 %v8525, %v8525
      %v8558 = vpack.c.b16 %v8526, %v8526
      %v8559 = vpack.c.b16 %v8527, %v8527
      %v8560 = vpack.c.b16 %v8528, %v8528
      %v8561 = vpack.c.b16 %v8529, %v8529
      %v8562 = vpack.c.b16 %v8530, %v8530
      %v8563 = vpack.c.b16 %v8531, %v8531
      %v8564 = vpack.c.b16 %v8532, %v8532
      %8597 = vst [vmem:[#allocation12 + $0x4] sm:$0xf] %v8533
      %8598 = vst [vmem:[#allocation12 + $0xc] sm:$0xf] %v8534
      %8599 = vst [vmem:[#allocation12 + $0x14] sm:$0xf] %v8535
      %8600 = vst [vmem:[#allocation12 + $0x1c] sm:$0xf] %v8536
      %8601 = vst [vmem:[#allocation12 + $0x24] sm:$0xf] %v8537
      %8602 = vst [vmem:[#allocation12 + $0x2c] sm:$0xf] %v8538
      %8603 = vst [vmem:[#allocation12 + $0x34] sm:$0xf] %v8539
      %8604 = vst [vmem:[#allocation12 + $0x3c] sm:$0xf] %v8540
      %8605 = vst [vmem:[#allocation12 + $0x44] sm:$0xf] %v8541
      %8606 = vst [vmem:[#allocation12 + $0x4c] sm:$0xf] %v8542
      %8607 = vst [vmem:[#allocation12 + $0x54] sm:$0xf] %v8543
      %8608 = vst [vmem:[#allocation12 + $0x5c] sm:$0xf] %v8544
      %8609 = vst [vmem:[#allocation12 + $0x64] sm:$0xf] %v8545
      %8610 = vst [vmem:[#allocation12 + $0x6c] sm:$0xf] %v8546
      %8611 = vst [vmem:[#allocation12 + $0x74] sm:$0xf] %v8547
      %8612 = vst [vmem:[#allocation12 + $0x7c] sm:$0xf] %v8548
      %8613 = vst [vmem:[#allocation12 + $0x84] sm:$0xf] %v8549
      %8614 = vst [vmem:[#allocation12 + $0x8c] sm:$0xf] %v8550
      %8615 = vst [vmem:[#allocation12 + $0x94] sm:$0xf] %v8551
      %8616 = vst [vmem:[#allocation12 + $0x9c] sm:$0xf] %v8552
      %8617 = vst [vmem:[#allocation12 + $0xa4] sm:$0xf] %v8553
      %8618 = vst [vmem:[#allocation12 + $0xac] sm:$0xf] %v8554
      %8619 = vst [vmem:[#allocation12 + $0xb4] sm:$0xf] %v8555
      %8620 = vst [vmem:[#allocation12 + $0xbc] sm:$0xf] %v8556
      %8621 = vst [vmem:[#allocation12 + $0xc4] sm:$0xf] %v8557
      %8622 = vst [vmem:[#allocation12 + $0xcc] sm:$0xf] %v8558
      %8623 = vst [vmem:[#allocation12 + $0xd4] sm:$0xf] %v8559
      %8624 = vst [vmem:[#allocation12 + $0xdc] sm:$0xf] %v8560
      %8625 = vst [vmem:[#allocation12 + $0xe4] sm:$0xf] %v8561
      %8626 = vst [vmem:[#allocation12 + $0xec] sm:$0xf] %v8562
      %8627 = vst [vmem:[#allocation12 + $0xf4] sm:$0xf] %v8563
      %8628 = vst [vmem:[#allocation12 + $0xfc] sm:$0xf] %v8564
      %v8629 = vld [vmem:[#allocation2 + $0x30] sm:$0xff]
      %v8630 = vld [vmem:[#allocation2 + $0x70] sm:$0xff]
      %v8631 = vld [vmem:[#allocation2 + $0xb0] sm:$0xff]
      %v8632 = vld [vmem:[#allocation2 + $0xf0] sm:$0xff]
      %v8633 = vld [vmem:[#allocation2 + $0x130] sm:$0xff]
      %v8634 = vld [vmem:[#allocation2 + $0x170] sm:$0xff]
      %v8635 = vld [vmem:[#allocation2 + $0x1b0] sm:$0xff]
      %v8636 = vld [vmem:[#allocation2 + $0x1f0] sm:$0xff]
      %v8637 = vld [vmem:[#allocation2 + $0x230] sm:$0xff]
      %v8638 = vld [vmem:[#allocation2 + $0x270] sm:$0xff]
      %v8639 = vld [vmem:[#allocation2 + $0x2b0] sm:$0xff]
      %v8640 = vld [vmem:[#allocation2 + $0x2f0] sm:$0xff]
      %v8641 = vld [vmem:[#allocation2 + $0x330] sm:$0xff]
      %v8642 = vld [vmem:[#allocation2 + $0x370] sm:$0xff]
      %v8643 = vld [vmem:[#allocation2 + $0x3b0] sm:$0xff]
      %v8644 = vld [vmem:[#allocation2 + $0x3f0] sm:$0xff]
      %v8645 = vld [vmem:[#allocation2 + $0x430] sm:$0xff]
      %v8646 = vld [vmem:[#allocation2 + $0x470] sm:$0xff]
      %v8647 = vld [vmem:[#allocation2 + $0x4b0] sm:$0xff]
      %v8648 = vld [vmem:[#allocation2 + $0x4f0] sm:$0xff]
      %v8649 = vld [vmem:[#allocation2 + $0x530] sm:$0xff]
      %v8650 = vld [vmem:[#allocation2 + $0x570] sm:$0xff]
      %v8651 = vld [vmem:[#allocation2 + $0x5b0] sm:$0xff]
      %v8652 = vld [vmem:[#allocation2 + $0x5f0] sm:$0xff]
      %v8653 = vld [vmem:[#allocation2 + $0x630] sm:$0xff]
      %v8654 = vld [vmem:[#allocation2 + $0x670] sm:$0xff]
      %v8655 = vld [vmem:[#allocation2 + $0x6b0] sm:$0xff]
      %v8656 = vld [vmem:[#allocation2 + $0x6f0] sm:$0xff]
      %v8657 = vld [vmem:[#allocation2 + $0x730] sm:$0xff]
      %v8658 = vld [vmem:[#allocation2 + $0x770] sm:$0xff]
      %v8659 = vld [vmem:[#allocation2 + $0x7b0] sm:$0xff]
      %v8660 = vld [vmem:[#allocation2 + $0x7f0] sm:$0xff]
      %v8661 = vpack.c.bf16 %v8630, %v8629
      %v8662 = vpack.c.bf16 %v8632, %v8631
      %v8663 = vpack.c.bf16 %v8634, %v8633
      %v8664 = vpack.c.bf16 %v8636, %v8635
      %v8665 = vpack.c.bf16 %v8638, %v8637
      %v8666 = vpack.c.bf16 %v8640, %v8639
      %v8667 = vpack.c.bf16 %v8642, %v8641
      %v8668 = vpack.c.bf16 %v8644, %v8643
      %v8669 = vpack.c.bf16 %v8646, %v8645
      %v8670 = vpack.c.bf16 %v8648, %v8647
      %v8671 = vpack.c.bf16 %v8650, %v8649
      %v8672 = vpack.c.bf16 %v8652, %v8651
      %v8673 = vpack.c.bf16 %v8654, %v8653
      %v8674 = vpack.c.bf16 %v8656, %v8655
      %v8675 = vpack.c.bf16 %v8658, %v8657
      %v8676 = vpack.c.bf16 %v8660, %v8659
      %v8693 = vunpack.c.l.b16 %v8661
      %v8694 = vunpack.c.h.b16 %v8661
      %v8695 = vunpack.c.l.b16 %v8662
      %v8696 = vunpack.c.h.b16 %v8662
      %v8697 = vunpack.c.l.b16 %v8663
      %v8698 = vunpack.c.h.b16 %v8663
      %v8699 = vunpack.c.l.b16 %v8664
      %v8700 = vunpack.c.h.b16 %v8664
      %v8701 = vunpack.c.l.b16 %v8665
      %v8702 = vunpack.c.h.b16 %v8665
      %v8703 = vunpack.c.l.b16 %v8666
      %v8704 = vunpack.c.h.b16 %v8666
      %v8705 = vunpack.c.l.b16 %v8667
      %v8706 = vunpack.c.h.b16 %v8667
      %v8707 = vunpack.c.l.b16 %v8668
      %v8708 = vunpack.c.h.b16 %v8668
      %v8709 = vunpack.c.l.b16 %v8669
      %v8710 = vunpack.c.h.b16 %v8669
      %v8711 = vunpack.c.l.b16 %v8670
      %v8712 = vunpack.c.h.b16 %v8670
      %v8713 = vunpack.c.l.b16 %v8671
      %v8714 = vunpack.c.h.b16 %v8671
      %v8715 = vunpack.c.l.b16 %v8672
      %v8716 = vunpack.c.h.b16 %v8672
      %v8717 = vunpack.c.l.b16 %v8673
      %v8718 = vunpack.c.h.b16 %v8673
      %v8719 = vunpack.c.l.b16 %v8674
      %v8720 = vunpack.c.h.b16 %v8674
      %v8721 = vunpack.c.l.b16 %v8675
      %v8722 = vunpack.c.h.b16 %v8675
      %v8723 = vunpack.c.l.b16 %v8676
      %v8724 = vunpack.c.h.b16 %v8676
      %v8725 = vpack.c.b16 %v8693, %v8693
      %v8726 = vpack.c.b16 %v8694, %v8694
      %v8727 = vpack.c.b16 %v8695, %v8695
      %v8728 = vpack.c.b16 %v8696, %v8696
      %v8729 = vpack.c.b16 %v8697, %v8697
      %v8730 = vpack.c.b16 %v8698, %v8698
      %v8731 = vpack.c.b16 %v8699, %v8699
      %v8732 = vpack.c.b16 %v8700, %v8700
      %v8733 = vpack.c.b16 %v8701, %v8701
      %v8734 = vpack.c.b16 %v8702, %v8702
      %v8735 = vpack.c.b16 %v8703, %v8703
      %v8736 = vpack.c.b16 %v8704, %v8704
      %v8737 = vpack.c.b16 %v8705, %v8705
      %v8738 = vpack.c.b16 %v8706, %v8706
      %v8739 = vpack.c.b16 %v8707, %v8707
      %v8740 = vpack.c.b16 %v8708, %v8708
      %v8741 = vpack.c.b16 %v8709, %v8709
      %v8742 = vpack.c.b16 %v8710, %v8710
      %v8743 = vpack.c.b16 %v8711, %v8711
      %v8744 = vpack.c.b16 %v8712, %v8712
      %v8745 = vpack.c.b16 %v8713, %v8713
      %v8746 = vpack.c.b16 %v8714, %v8714
      %v8747 = vpack.c.b16 %v8715, %v8715
      %v8748 = vpack.c.b16 %v8716, %v8716
      %v8749 = vpack.c.b16 %v8717, %v8717
      %v8750 = vpack.c.b16 %v8718, %v8718
      %v8751 = vpack.c.b16 %v8719, %v8719
      %v8752 = vpack.c.b16 %v8720, %v8720
      %v8753 = vpack.c.b16 %v8721, %v8721
      %v8754 = vpack.c.b16 %v8722, %v8722
      %v8755 = vpack.c.b16 %v8723, %v8723
      %v8756 = vpack.c.b16 %v8724, %v8724
      %8789 = vst [vmem:[#allocation14] sm:$0xf] %v8725
      %8790 = vst [vmem:[#allocation14 + $0x8] sm:$0xf] %v8726
      %8791 = vst [vmem:[#allocation14 + $0x10] sm:$0xf] %v8727
      %8792 = vst [vmem:[#allocation14 + $0x18] sm:$0xf] %v8728
      %8793 = vst [vmem:[#allocation14 + $0x20] sm:$0xf] %v8729
      %8794 = vst [vmem:[#allocation14 + $0x28] sm:$0xf] %v8730
      %8795 = vst [vmem:[#allocation14 + $0x30] sm:$0xf] %v8731
      %8796 = vst [vmem:[#allocation14 + $0x38] sm:$0xf] %v8732
      %8797 = vst [vmem:[#allocation14 + $0x40] sm:$0xf] %v8733
      %8798 = vst [vmem:[#allocation14 + $0x48] sm:$0xf] %v8734
      %8799 = vst [vmem:[#allocation14 + $0x50] sm:$0xf] %v8735
      %8800 = vst [vmem:[#allocation14 + $0x58] sm:$0xf] %v8736
      %8801 = vst [vmem:[#allocation14 + $0x60] sm:$0xf] %v8737
      %8802 = vst [vmem:[#allocation14 + $0x68] sm:$0xf] %v8738
      %8803 = vst [vmem:[#allocation14 + $0x70] sm:$0xf] %v8739
      %8804 = vst [vmem:[#allocation14 + $0x78] sm:$0xf] %v8740
      %8805 = vst [vmem:[#allocation14 + $0x80] sm:$0xf] %v8741
      %8806 = vst [vmem:[#allocation14 + $0x88] sm:$0xf] %v8742
      %8807 = vst [vmem:[#allocation14 + $0x90] sm:$0xf] %v8743
      %8808 = vst [vmem:[#allocation14 + $0x98] sm:$0xf] %v8744
      %8809 = vst [vmem:[#allocation14 + $0xa0] sm:$0xf] %v8745
      %8810 = vst [vmem:[#allocation14 + $0xa8] sm:$0xf] %v8746
      %8811 = vst [vmem:[#allocation14 + $0xb0] sm:$0xf] %v8747
      %8812 = vst [vmem:[#allocation14 + $0xb8] sm:$0xf] %v8748
      %8813 = vst [vmem:[#allocation14 + $0xc0] sm:$0xf] %v8749
      %8814 = vst [vmem:[#allocation14 + $0xc8] sm:$0xf] %v8750
      %8815 = vst [vmem:[#allocation14 + $0xd0] sm:$0xf] %v8751
      %8816 = vst [vmem:[#allocation14 + $0xd8] sm:$0xf] %v8752
      %8817 = vst [vmem:[#allocation14 + $0xe0] sm:$0xf] %v8753
      %8818 = vst [vmem:[#allocation14 + $0xe8] sm:$0xf] %v8754
      %8819 = vst [vmem:[#allocation14 + $0xf0] sm:$0xf] %v8755
      %8820 = vst [vmem:[#allocation14 + $0xf8] sm:$0xf] %v8756
      %v8821 = vld [vmem:[#allocation2 + $0x38] sm:$0xff]
      %v8822 = vld [vmem:[#allocation2 + $0x78] sm:$0xff]
      %v8823 = vld [vmem:[#allocation2 + $0xb8] sm:$0xff]
      %v8824 = vld [vmem:[#allocation2 + $0xf8] sm:$0xff]
      %v8825 = vld [vmem:[#allocation2 + $0x138] sm:$0xff]
      %v8826 = vld [vmem:[#allocation2 + $0x178] sm:$0xff]
      %v8827 = vld [vmem:[#allocation2 + $0x1b8] sm:$0xff]
      %v8828 = vld [vmem:[#allocation2 + $0x1f8] sm:$0xff]
      %v8829 = vld [vmem:[#allocation2 + $0x238] sm:$0xff]
      %v8830 = vld [vmem:[#allocation2 + $0x278] sm:$0xff]
      %v8831 = vld [vmem:[#allocation2 + $0x2b8] sm:$0xff]
      %v8832 = vld [vmem:[#allocation2 + $0x2f8] sm:$0xff]
      %v8833 = vld [vmem:[#allocation2 + $0x338] sm:$0xff]
      %v8834 = vld [vmem:[#allocation2 + $0x378] sm:$0xff]
      %v8835 = vld [vmem:[#allocation2 + $0x3b8] sm:$0xff]
      %v8836 = vld [vmem:[#allocation2 + $0x3f8] sm:$0xff]
      %v8837 = vld [vmem:[#allocation2 + $0x438] sm:$0xff]
      %v8838 = vld [vmem:[#allocation2 + $0x478] sm:$0xff]
      %v8839 = vld [vmem:[#allocation2 + $0x4b8] sm:$0xff]
      %v8840 = vld [vmem:[#allocation2 + $0x4f8] sm:$0xff]
      %v8841 = vld [vmem:[#allocation2 + $0x538] sm:$0xff]
      %v8842 = vld [vmem:[#allocation2 + $0x578] sm:$0xff]
      %v8843 = vld [vmem:[#allocation2 + $0x5b8] sm:$0xff]
      %v8844 = vld [vmem:[#allocation2 + $0x5f8] sm:$0xff]
      %v8845 = vld [vmem:[#allocation2 + $0x638] sm:$0xff]
      %v8846 = vld [vmem:[#allocation2 + $0x678] sm:$0xff]
      %v8847 = vld [vmem:[#allocation2 + $0x6b8] sm:$0xff]
      %v8848 = vld [vmem:[#allocation2 + $0x6f8] sm:$0xff]
      %v8849 = vld [vmem:[#allocation2 + $0x738] sm:$0xff]
      %v8850 = vld [vmem:[#allocation2 + $0x778] sm:$0xff]
      %v8851 = vld [vmem:[#allocation2 + $0x7b8] sm:$0xff]
      %v8852 = vld [vmem:[#allocation2 + $0x7f8] sm:$0xff]
      %v8853 = vpack.c.bf16 %v8822, %v8821
      %v8854 = vpack.c.bf16 %v8824, %v8823
      %v8855 = vpack.c.bf16 %v8826, %v8825
      %v8856 = vpack.c.bf16 %v8828, %v8827
      %v8857 = vpack.c.bf16 %v8830, %v8829
      %v8858 = vpack.c.bf16 %v8832, %v8831
      %v8859 = vpack.c.bf16 %v8834, %v8833
      %v8860 = vpack.c.bf16 %v8836, %v8835
      %v8861 = vpack.c.bf16 %v8838, %v8837
      %v8862 = vpack.c.bf16 %v8840, %v8839
      %v8863 = vpack.c.bf16 %v8842, %v8841
      %v8864 = vpack.c.bf16 %v8844, %v8843
      %v8865 = vpack.c.bf16 %v8846, %v8845
      %v8866 = vpack.c.bf16 %v8848, %v8847
      %v8867 = vpack.c.bf16 %v8850, %v8849
      %v8868 = vpack.c.bf16 %v8852, %v8851
      %v8885 = vunpack.c.l.b16 %v8853
      %v8886 = vunpack.c.h.b16 %v8853
      %v8887 = vunpack.c.l.b16 %v8854
      %v8888 = vunpack.c.h.b16 %v8854
      %v8889 = vunpack.c.l.b16 %v8855
      %v8890 = vunpack.c.h.b16 %v8855
      %v8891 = vunpack.c.l.b16 %v8856
      %v8892 = vunpack.c.h.b16 %v8856
      %v8893 = vunpack.c.l.b16 %v8857
      %v8894 = vunpack.c.h.b16 %v8857
      %v8895 = vunpack.c.l.b16 %v8858
      %v8896 = vunpack.c.h.b16 %v8858
      %v8897 = vunpack.c.l.b16 %v8859
      %v8898 = vunpack.c.h.b16 %v8859
      %v8899 = vunpack.c.l.b16 %v8860
      %v8900 = vunpack.c.h.b16 %v8860
      %v8901 = vunpack.c.l.b16 %v8861
      %v8902 = vunpack.c.h.b16 %v8861
      %v8903 = vunpack.c.l.b16 %v8862
      %v8904 = vunpack.c.h.b16 %v8862
      %v8905 = vunpack.c.l.b16 %v8863
      %v8906 = vunpack.c.h.b16 %v8863
      %v8907 = vunpack.c.l.b16 %v8864
      %v8908 = vunpack.c.h.b16 %v8864
      %v8909 = vunpack.c.l.b16 %v8865
      %v8910 = vunpack.c.h.b16 %v8865
      %v8911 = vunpack.c.l.b16 %v8866
      %v8912 = vunpack.c.h.b16 %v8866
      %v8913 = vunpack.c.l.b16 %v8867
      %v8914 = vunpack.c.h.b16 %v8867
      %v8915 = vunpack.c.l.b16 %v8868
      %v8916 = vunpack.c.h.b16 %v8868
      %v8917 = vpack.c.b16 %v8885, %v8885
      %v8918 = vpack.c.b16 %v8886, %v8886
      %v8919 = vpack.c.b16 %v8887, %v8887
      %v8920 = vpack.c.b16 %v8888, %v8888
      %v8921 = vpack.c.b16 %v8889, %v8889
      %v8922 = vpack.c.b16 %v8890, %v8890
      %v8923 = vpack.c.b16 %v8891, %v8891
      %v8924 = vpack.c.b16 %v8892, %v8892
      %v8925 = vpack.c.b16 %v8893, %v8893
      %v8926 = vpack.c.b16 %v8894, %v8894
      %v8927 = vpack.c.b16 %v8895, %v8895
      %v8928 = vpack.c.b16 %v8896, %v8896
      %v8929 = vpack.c.b16 %v8897, %v8897
      %v8930 = vpack.c.b16 %v8898, %v8898
      %v8931 = vpack.c.b16 %v8899, %v8899
      %v8932 = vpack.c.b16 %v8900, %v8900
      %v8933 = vpack.c.b16 %v8901, %v8901
      %v8934 = vpack.c.b16 %v8902, %v8902
      %v8935 = vpack.c.b16 %v8903, %v8903
      %v8936 = vpack.c.b16 %v8904, %v8904
      %v8937 = vpack.c.b16 %v8905, %v8905
      %v8938 = vpack.c.b16 %v8906, %v8906
      %v8939 = vpack.c.b16 %v8907, %v8907
      %v8940 = vpack.c.b16 %v8908, %v8908
      %v8941 = vpack.c.b16 %v8909, %v8909
      %v8942 = vpack.c.b16 %v8910, %v8910
      %v8943 = vpack.c.b16 %v8911, %v8911
      %v8944 = vpack.c.b16 %v8912, %v8912
      %v8945 = vpack.c.b16 %v8913, %v8913
      %v8946 = vpack.c.b16 %v8914, %v8914
      %v8947 = vpack.c.b16 %v8915, %v8915
      %v8948 = vpack.c.b16 %v8916, %v8916
      %8981 = vst [vmem:[#allocation14 + $0x4] sm:$0xf] %v8917
      %8982 = vst [vmem:[#allocation14 + $0xc] sm:$0xf] %v8918
      %8983 = vst [vmem:[#allocation14 + $0x14] sm:$0xf] %v8919
      %8984 = vst [vmem:[#allocation14 + $0x1c] sm:$0xf] %v8920
      %8985 = vst [vmem:[#allocation14 + $0x24] sm:$0xf] %v8921
      %8986 = vst [vmem:[#allocation14 + $0x2c] sm:$0xf] %v8922
      %8987 = vst [vmem:[#allocation14 + $0x34] sm:$0xf] %v8923
      %8988 = vst [vmem:[#allocation14 + $0x3c] sm:$0xf] %v8924
      %8989 = vst [vmem:[#allocation14 + $0x44] sm:$0xf] %v8925
      %8990 = vst [vmem:[#allocation14 + $0x4c] sm:$0xf] %v8926
      %8991 = vst [vmem:[#allocation14 + $0x54] sm:$0xf] %v8927
      %8992 = vst [vmem:[#allocation14 + $0x5c] sm:$0xf] %v8928
      %8993 = vst [vmem:[#allocation14 + $0x64] sm:$0xf] %v8929
      %8994 = vst [vmem:[#allocation14 + $0x6c] sm:$0xf] %v8930
      %8995 = vst [vmem:[#allocation14 + $0x74] sm:$0xf] %v8931
      %8996 = vst [vmem:[#allocation14 + $0x7c] sm:$0xf] %v8932
      %8997 = vst [vmem:[#allocation14 + $0x84] sm:$0xf] %v8933
      %8998 = vst [vmem:[#allocation14 + $0x8c] sm:$0xf] %v8934
      %8999 = vst [vmem:[#allocation14 + $0x94] sm:$0xf] %v8935
      %9000 = vst [vmem:[#allocation14 + $0x9c] sm:$0xf] %v8936
      %9001 = vst [vmem:[#allocation14 + $0xa4] sm:$0xf] %v8937
      %9002 = vst [vmem:[#allocation14 + $0xac] sm:$0xf] %v8938
      %9003 = vst [vmem:[#allocation14 + $0xb4] sm:$0xf] %v8939
      %9004 = vst [vmem:[#allocation14 + $0xbc] sm:$0xf] %v8940
      %9005 = vst [vmem:[#allocation14 + $0xc4] sm:$0xf] %v8941
      %9006 = vst [vmem:[#allocation14 + $0xcc] sm:$0xf] %v8942
      %9007 = vst [vmem:[#allocation14 + $0xd4] sm:$0xf] %v8943
      %9008 = vst [vmem:[#allocation14 + $0xdc] sm:$0xf] %v8944
      %9009 = vst [vmem:[#allocation14 + $0xe4] sm:$0xf] %v8945
      %9010 = vst [vmem:[#allocation14 + $0xec] sm:$0xf] %v8946
      %9011 = vst [vmem:[#allocation14 + $0xf4] sm:$0xf] %v8947
      %9012 = vst [vmem:[#allocation14 + $0xfc] sm:$0xf] %v8948
    $region49: #{tpu_custom_call.1} parent=1 // pred_fallthru
      _
    // Predicated region
    $region50: #{tpu_custom_call.1} parent=1 // pred_check
      _
    $region51: #{tpu_custom_call.1} parent=1 // pred_check_branch
      %9014 = sbr.rel (0) target = $region53
    $region52: #{tpu_custom_call.1} parent=1 // pred_region
      %s9016 = ssub.s32 8192, 8192
      %9017 = vsyncadd [#allocation5], %s9016
      %s9018 = sshll.u32 [#allocation11], 4
      %s9019 = int_to_ptr.vmem [resolvable:$true] %s9018
      %9024 = dma.vmem_to_hbm [thread:$0]  %s9019, 8192, %s6, [#allocation5], 256, 256, 16
    $region53: #{tpu_custom_call.1} parent=1 // pred_fallthru
      _
    // Predicated region
    $region54: #{tpu_custom_call.1} parent=1 // pred_check
      _
    $region55: #{tpu_custom_call.1} parent=1 // pred_check_branch
      %9026 = sbr.rel (0) target = $region57
    $region56: #{tpu_custom_call.1} parent=1 // pred_region
      %s9028 = ssub.s32 4096, 4096
      %9029 = vsyncadd [#allocation13], %s9028
      %s9030 = sshll.u32 [#allocation12], 4
      %s9031 = int_to_ptr.vmem [resolvable:$true] %s9030
      %9036 = dma.vmem_to_hbm [thread:$0]  %s9031, 4096, %s7, [#allocation13], 128, 128, 8
    $region57: #{tpu_custom_call.1} parent=1 // pred_fallthru
      _
    // Predicated region
    $region58: #{tpu_custom_call.1} parent=1 // pred_check
      _
    $region59: #{tpu_custom_call.1} parent=1 // pred_check_branch
      %9038 = sbr.rel (0) target = $region61
    $region60: #{tpu_custom_call.1} parent=1 // pred_region
      %s9040 = ssub.s32 4096, 4096
      %9041 = vsyncadd [#allocation13], %s9040
      %s9042 = sshll.u32 [#allocation14], 4
      %s9043 = int_to_ptr.vmem [resolvable:$true] %s9042
      %9048 = dma.vmem_to_hbm [thread:$0]  %s9043, 4096, %s8, [#allocation13], 128, 128, 8
    $region61: #{tpu_custom_call.1} parent=1 // pred_fallthru
      _
    // Predicated region
    $region62: #{tpu_custom_call.1} parent=1 // pred_check
      _
    $region63: #{tpu_custom_call.1} parent=1 // pred_check_branch
      %9050 = sbr.rel (0) target = $region65
    $region64: #{tpu_custom_call.1} parent=1 // pred_region
      %9051 = dma.done [#allocation5], 8192
    $region65: #{tpu_custom_call.1} parent=1 // pred_fallthru
      _
    // Predicated region
    $region66: #{tpu_custom_call.1} parent=1 // pred_check
      _
    $region67: #{tpu_custom_call.1} parent=1 // pred_check_branch
      %9053 = sbr.rel (0) target = $region69
    $region68: #{tpu_custom_call.1} parent=1 // pred_region
      %9054 = dma.done [#allocation13], 4096
    $region69: #{tpu_custom_call.1} parent=1 // pred_fallthru
      _
    // Predicated region
    $region70: #{tpu_custom_call.1} parent=1 // pred_check
      _
    $region71: #{tpu_custom_call.1} parent=1 // pred_check_branch
      %9056 = sbr.rel (0) target = $region73
    $region72: #{tpu_custom_call.1} parent=1 // pred_region
      %9057 = dma.done [#allocation13], 4096
    $region73: #{tpu_custom_call.1} parent=1 // pred_fallthru
      _
    %9058 = vsyncpa [#allocation4], 1
    %9059 = vsyncpa [#allocation7], 1
    %9060 = vsyncpa [#allocation10], 1
    %9061 = vsyncpa [#allocation5], 1
    %9062 = vsyncpa [#allocation13], 1

</llo_original>
